<compile_context>
chip_gen: v6e
topology: v6e:2x2x1
jax: 0.10.0
libtpu: 0.0.40
codegen_flags: <defaults>
</compile_context>

<pallas_src>
import functools

import jax
import jax.numpy as jnp
from jax import lax
from jax.experimental import pallas as pl
from jax.experimental.pallas import tpu as pltpu


def _round_up(x, m):
    return ((x + m - 1) // m) * m


# ---------------------------------------------------------------- kernel ----

def _make_fused_kernel(n_conv, Wp, M, Npad_al, F_pad, chans, k_sizes):
    """Fused conv-stack + fc-head kernel for one image.

    Activations live in a flattened halo-padded buffer (R, F_pad) where row
    r = M + py*Wp + px holds padded spatial position (py, px); M margin rows
    at each end keep every shifted tap read in bounds.  For each conv layer
    the 9 shifted slabs' real channels are packed into a lane-dense staging
    buffer so the layer is a single MXU contraction.
    """
    offs = [(dy - 1) * Wp + (dx - 1) for dy in range(3) for dx in range(3)]

    def kernel(*refs):
        x_ref = refs[0]                                     # (R, Cin) f32
        mask_ref = refs[1]                                  # (Npad_al, 1) f32
        conv_refs = refs[2:2 + 2 * n_conv]                  # [w0,b0,w1,b1,...]
        fc1_w, fc1_b, fc2_w, fc2_b = refs[2 + 2 * n_conv:6 + 2 * n_conv]
        out_ref = refs[6 + 2 * n_conv]                      # (Npad_al, NO_pad)
        act_ref = refs[7 + 2 * n_conv]                      # (R, F_pad) f32
        stage_ref = refs[8 + 2 * n_conv]                    # (Npad_al, K_stage)

        mm_dtype = stage_ref.dtype

        # Zero only the halo-margin rows (interior rows are fully overwritten
        # every layer) and the staging buffer (unused K lanes must stay 0).
        # Unconditional each grid step: correct under megacore "parallel".
        act_ref[:M, :] = jnp.zeros((M, F_pad), act_ref.dtype)
        act_ref[M + Npad_al:, :] = jnp.zeros((M, F_pad), act_ref.dtype)
        stage_ref[...] = jnp.zeros(stage_ref.shape, mm_dtype)

        # Interior-pixel mask, broadcast ONCE (hoisted out of the layer loop).
        keep = jnp.broadcast_to(mask_ref[...], (Npad_al, F_pad)) > 0.5

        for l in range(n_conv):
            w_ref = conv_refs[2 * l]                        # (k_sizes[l], F_pad)
            b_ref = conv_refs[2 * l + 1]                    # (1, F_pad) f32
            c, kl = chans[l], k_sizes[l]
            src = x_ref if l == 0 else act_ref
            # Pack the 9 shifted taps (real channels only) into lane-dense K.
            for k, o in enumerate(offs):
                stage_ref[:, k * c:(k + 1) * c] = (
                    src[M + o:M + o + Npad_al, :c].astype(mm_dtype))
            acc = jnp.dot(stage_ref[:, :kl], w_ref[...],
                          preferred_element_type=jnp.float32)
            val = jnp.tanh(acc + b_ref[...])
            # Zero the halo ring (and alignment rows) so the next conv sees
            # exact SAME zero-padding.
            act_ref[M:M + Npad_al, :] = jnp.where(keep, val, 0.0)

        # Per-pixel fc head: tanh(a @ W1 + b1) @ W2 + b2 (ring rows are
        # discarded by the host slice, so computing them is harmless).
        a = act_ref[M:M + Npad_al, :].astype(mm_dtype)
        h1 = jnp.tanh(
            jnp.dot(a, fc1_w[...], preferred_element_type=jnp.float32)
            + fc1_b[...])
        out = (jnp.dot(h1.astype(mm_dtype), fc2_w[...],
                       preferred_element_type=jnp.float32) + fc2_b[...])
        out_ref[...] = out.astype(out_ref.dtype)

    return kernel


# --------------------------------------------------------------- wrapper ----

def quick_cnn_forward(x_nchw, params, *, matmul_dtype=jnp.bfloat16):
    """Matches quickCNN.forward: NCHW in -> NCHW out of shape (B, N_out, H, W)."""
    B, Cin, H, W = x_nchw.shape
    convs = params["convs"]                     # [(w_hwio(3,3,ci,F), b(F,)),...]
    L = len(convs)
    F = convs[0][0].shape[3]
    Hh = params["fc1_w"].shape[1]
    NO = params["fc2_w"].shape[1]

    SUB = 16                                    # covers f32(8) & bf16(16) tiles
    F_pad = _round_up(F, 128)
    Hh_pad = _round_up(Hh, 128)
    NO_pad = _round_up(NO, 128)                 # lane-dense output

    Hp, Wp = H + 2, W + 2
    Npad = Hp * Wp
    Npad_al = _round_up(Npad, SUB)              # sublane-aligned interior rows
    M = _round_up(Wp + 1, SUB)                  # margin rows (>= max tap offset)
    R = Npad_al + 2 * M

    # --- host glue: one padded copy of the input into the halo-flat layout ---
    x = jnp.transpose(x_nchw, (0, 2, 3, 1)).astype(jnp.float32)        # NHWC
    xp = jnp.pad(x, ((0, 0), (1, 1), (1, 1), (0, 0)))                  # (B,Hp,Wp,C)
    xf = jnp.pad(xp.reshape(B, Npad, Cin),
                 ((0, 0), (M, M + Npad_al - Npad), (0, 0)))            # (B,R,C)

    # interior-pixel mask over padded grid (1 at real pixels, 0 on ring and on
    # the sublane-alignment rows -- keeps them exactly zero between layers).
    mask = jnp.pad(jnp.ones((H, W), jnp.float32), ((1, 1), (1, 1))).reshape(Npad, 1)
    mask = jnp.pad(mask, ((0, Npad_al - Npad), (0, 0)))                # (Npad_al,1)

    # --- pad weights to lane-dense shapes (zero padding is exact) ------------
    kernel_inputs = [xf, mask]
    in_specs = [
        pl.BlockSpec((None, R, Cin), lambda b: (b, 0, 0)),
        pl.BlockSpec((Npad_al, 1), lambda b: (0, 0)),
    ]
    chans, k_sizes = [], []
    for wk, bk in convs:
        kh, kw, ci, co = wk.shape
        k_real = kh * kw * ci
        kl = _round_up(k_real, 128)
        # rows ordered ((dy,dx), cin) to match the in-kernel tap packing
        w2 = jnp.pad(wk.reshape(k_real, co),
                     ((0, kl - k_real), (0, F_pad - co))).astype(matmul_dtype)
        b2 = jnp.pad(bk.reshape(1, co),
                     ((0, 0), (0, F_pad - co))).astype(jnp.float32)
        kernel_inputs += [w2, b2]
        in_specs += [pl.BlockSpec(w2.shape, lambda b: (0, 0)),
                     pl.BlockSpec(b2.shape, lambda b: (0, 0))]
        chans.append(ci)
        k_sizes.append(kl)
    K_stage = max(k_sizes)

    fc1_w = jnp.pad(params["fc1_w"],
                    ((0, F_pad - F), (0, Hh_pad - Hh))).astype(matmul_dtype)
    fc1_b = jnp.pad(params["fc1_b"].reshape(1, Hh),
                    ((0, 0), (0, Hh_pad - Hh))).astype(jnp.float32)
    fc2_w = jnp.pad(params["fc2_w"],
                    ((0, Hh_pad - Hh), (0, NO_pad - NO))).astype(matmul_dtype)
    fc2_b = jnp.pad(params["fc2_b"].reshape(1, NO),
                    ((0, 0), (0, NO_pad - NO))).astype(jnp.float32)
    kernel_inputs += [fc1_w, fc1_b, fc2_w, fc2_b]
    in_specs += [pl.BlockSpec(fc1_w.shape, lambda b: (0, 0)),
                 pl.BlockSpec(fc1_b.shape, lambda b: (0, 0)),
                 pl.BlockSpec(fc2_w.shape, lambda b: (0, 0)),
                 pl.BlockSpec(fc2_b.shape, lambda b: (0, 0))]

    kernel = _make_fused_kernel(L, Wp, M, Npad_al, F_pad,
                                tuple(chans), tuple(k_sizes))

    # --- VMEM footprint / compiler params ------------------------------------
    mm_bytes = 2 if matmul_dtype == jnp.bfloat16 else 4
    scratch_bytes = R * F_pad * 4 + Npad_al * K_stage * mm_bytes
    weight_bytes = sum(int(a.size) * a.dtype.itemsize for a in kernel_inputs[2:])
    block_bytes = 2 * (R * Cin * 4 + Npad_al * NO_pad * 4) + Npad_al * 4
    vmem_needed = scratch_bytes + weight_bytes + block_bytes
    if vmem_needed > 48 * 1024 * 1024:
        # TODO(synk): row-block grid with (L+1)-row halo for very large H*W.
        raise NotImplementedError("image too large for single-image VMEM scheme")
    vmem_limit = int(min(56 * 1024 * 1024,
                         max(2 * vmem_needed, 16 * 1024 * 1024)))

    flops = 2 * B * Npad_al * (sum(kl * F_pad for kl in k_sizes)
                               + F_pad * Hh_pad + Hh_pad * NO_pad)
    transcendentals = B * Npad_al * (L * F_pad + Hh_pad)
    bytes_accessed = (sum(int(a.size) * a.dtype.itemsize for a in kernel_inputs)
                      + B * Npad_al * NO_pad * 4)

    out_flat = pl.pallas_call(
        kernel,
        out_shape=jax.ShapeDtypeStruct((B, Npad_al, NO_pad), jnp.float32),
        grid=(B,),
        in_specs=in_specs,
        out_specs=pl.BlockSpec((None, Npad_al, NO_pad), lambda b: (b, 0, 0)),
        scratch_shapes=[pltpu.VMEM((R, F_pad), jnp.float32),
                        pltpu.VMEM((Npad_al, K_stage), matmul_dtype)],
        compiler_params=pltpu.CompilerParams(
            dimension_semantics=("parallel",),
            vmem_limit_bytes=vmem_limit),
        cost_estimate=pl.CostEstimate(
            flops=int(flops),
            transcendentals=int(transcendentals),
            bytes_accessed=int(bytes_accessed)),
    )(*kernel_inputs)

    out = out_flat[:, :Npad, :NO].reshape(B, Hp, Wp, NO)[:, 1:H + 1, 1:W + 1, :]
    return jnp.transpose(out, (0, 3, 1, 2))                 # back to NCHW


# ---------------------------------------------------------------- params ----

def init_params(key, n_input, n_output, n_hidden, n_layers,
                kernel_size=3, num_filters=16):
    assert kernel_size == 3, "this Pallas port implements the default 3x3 kernel"
    keys = jax.random.split(key, 2 * (n_layers + 1) + 4)
    convs = []
    cin = n_input
    ki = 0
    for _ in range(n_layers + 1):                # conv1 + N_layers hidden convs
        wk = 0.1 * jax.random.normal(keys[ki], (3, 3, cin, num_filters),
                                     jnp.float32)            # HWIO
        bk = 0.1 * jax.random.normal(keys[ki + 1], (num_filters,), jnp.float32)
        convs.append((wk, bk))
        ki += 2
        cin = num_filters
    fc1_w = 0.1 * jax.random.normal(keys[ki], (num_filters, n_hidden), jnp.float32)
    fc1_b = 0.1 * jax.random.normal(keys[ki + 1], (n_hidden,), jnp.float32)
    fc2_w = 0.1 * jax.random.normal(keys[ki + 2], (n_hidden, n_output), jnp.float32)
    fc2_b = 0.1 * jax.random.normal(keys[ki + 3], (n_output,), jnp.float32)
    return {"convs": convs, "fc1_w": fc1_w, "fc1_b": fc1_b,
            "fc2_w": fc2_w, "fc2_b": fc2_b}


# -------------------------------------------------------------- reference ---

def reference_forward(x_nchw, params):
    with jax.default_matmul_precision("highest"):
        x = jnp.transpose(x_nchw, (0, 2, 3, 1))
        for wk, bk in params["convs"]:
            x = jnp.tanh(lax.conv_general_dilated(
                x, wk, window_strides=(1, 1), padding="SAME",
                dimension_numbers=("NHWC", "HWIO", "NHWC")) + bk)
        h = jnp.tanh(x @ params["fc1_w"] + params["fc1_b"])
        out = h @ params["fc2_w"] + params["fc2_b"]
    return jnp.transpose(out, (0, 3, 1, 2))


# ------------------------------------------------------------------ main ----

if __name__ == "__main__":
    key = jax.random.PRNGKey(0)
    k_x, k_p = jax.random.split(key)

    # small shapes consistent with the module's forward (NCHW conv input)
    B, N_input, H, W = 2, 4, 16, 16
    N_output, N_Hidden, N_layers, num_filters = 3, 32, 2, 16

    x = jax.random.normal(k_x, (B, N_input, H, W), jnp.float32)
    params = init_params(k_p, N_input, N_output, N_Hidden, N_layers,
                         kernel_size=3, num_filters=num_filters)

    ref = reference_forward(x, params)

    # 1) f32 MXU-operand path: tight numerical check of the kernel structure.
    fwd_f32 = jax.jit(functools.partial(quick_cnn_forward,
                                        matmul_dtype=jnp.float32))
    out32 = jax.block_until_ready(fwd_f32(x, params))
    assert out32.shape == (B, N_output, H, W), out32.shape
    err32 = float(jnp.max(jnp.abs(out32 - ref)))
    assert jnp.allclose(out32, ref, atol=2e-3, rtol=2e-3), err32

    # 2) bf16 MXU-operand path (default / fast): f32 accumulation, looser tol.
    fwd_bf16 = jax.jit(functools.partial(quick_cnn_forward,
                                         matmul_dtype=jnp.bfloat16))
    out16 = jax.block_until_ready(fwd_bf16(x, params))
    assert out16.shape == (B, N_output, H, W), out16.shape
    err16 = float(jnp.max(jnp.abs(out16 - ref)))
    assert jnp.allclose(out16, ref, atol=3e-2, rtol=3e-2), err16

    print("KERNEL_OK")
</pallas_src>

<mosaic_0001>
module attributes {stable_mosaic.version = 11 : i64} {
  func.func @kernel(%arg0: i32, %arg1: memref<1x400x4xf32, #tpu.memory_space<vmem>>, %arg2: memref<336x1xf32, #tpu.memory_space<vmem>>, %arg3: memref<128x128xf32, #tpu.memory_space<vmem>>, %arg4: memref<1x128xf32, #tpu.memory_space<vmem>>, %arg5: memref<256x128xf32, #tpu.memory_space<vmem>>, %arg6: memref<1x128xf32, #tpu.memory_space<vmem>>, %arg7: memref<256x128xf32, #tpu.memory_space<vmem>>, %arg8: memref<1x128xf32, #tpu.memory_space<vmem>>, %arg9: memref<128x128xf32, #tpu.memory_space<vmem>>, %arg10: memref<1x128xf32, #tpu.memory_space<vmem>>, %arg11: memref<128x128xf32, #tpu.memory_space<vmem>>, %arg12: memref<1x128xf32, #tpu.memory_space<vmem>>, %arg13: memref<1x336x128xf32, #tpu.memory_space<vmem>>, %arg14: memref<400x128xf32, #tpu.memory_space<vmem>>, %arg15: memref<336x256xf32, #tpu.memory_space<vmem>>) attributes {dimension_semantics = [#tpu.dimension_semantics<parallel>], iteration_bounds = array<i64: 2>, scalar_prefetch = 0 : i64, scratch_operands = 2 : i64, tpu.core_type = #tpu.core_type<tc>, window_params = [{transform_indices = @transform_0, window_bounds = array<i64: 1, 400, 4>}, {pipeline_mode = #tpu.pipeline_mode<synchronous>, transform_indices = @transform_1, window_bounds = array<i64: 336, 1>}, {pipeline_mode = #tpu.pipeline_mode<synchronous>, transform_indices = @transform_2, window_bounds = array<i64: 128, 128>}, {pipeline_mode = #tpu.pipeline_mode<synchronous>, transform_indices = @transform_3, window_bounds = array<i64: 1, 128>}, {pipeline_mode = #tpu.pipeline_mode<synchronous>, transform_indices = @transform_4, window_bounds = array<i64: 256, 128>}, {pipeline_mode = #tpu.pipeline_mode<synchronous>, transform_indices = @transform_5, window_bounds = array<i64: 1, 128>}, {pipeline_mode = #tpu.pipeline_mode<synchronous>, transform_indices = @transform_6, window_bounds = array<i64: 256, 128>}, {pipeline_mode = #tpu.pipeline_mode<synchronous>, transform_indices = @transform_7, window_bounds = array<i64: 1, 128>}, {pipeline_mode = #tpu.pipeline_mode<synchronous>, transform_indices = @transform_8, window_bounds = array<i64: 128, 128>}, {pipeline_mode = #tpu.pipeline_mode<synchronous>, transform_indices = @transform_9, window_bounds = array<i64: 1, 128>}, {pipeline_mode = #tpu.pipeline_mode<synchronous>, transform_indices = @transform_10, window_bounds = array<i64: 128, 128>}, {pipeline_mode = #tpu.pipeline_mode<synchronous>, transform_indices = @transform_11, window_bounds = array<i64: 1, 128>}, {transform_indices = @transform_12, window_bounds = array<i64: 1, 336, 128>}]} {
    %cst = arith.constant 0.000000e+00 : f32
    %0 = vector.broadcast %cst : f32 to vector<32x128xf32>
    %c0 = arith.constant 0 : index
    %c0_0 = arith.constant 0 : index
    %1 = vector.load %arg14[%c0, %c0_0] : memref<400x128xf32, #tpu.memory_space<vmem>>, vector<32x128xf32>
    tpu.vector_store %arg14[%c0, %c0_0], %0 {strides = array<i32>} : memref<400x128xf32, #tpu.memory_space<vmem>>, vector<32x128xf32>,
    %cst_1 = arith.constant 0.000000e+00 : f32
    %2 = vector.broadcast %cst_1 : f32 to vector<32x128xf32>
    %c368 = arith.constant 368 : index
    %c0_2 = arith.constant 0 : index
    %3 = vector.load %arg14[%c368, %c0_2] : memref<400x128xf32, #tpu.memory_space<vmem>>, vector<32x128xf32>
    tpu.vector_store %arg14[%c368, %c0_2], %2 {strides = array<i32>} : memref<400x128xf32, #tpu.memory_space<vmem>>, vector<32x128xf32>,
    %cst_3 = arith.constant 0.000000e+00 : f32
    %4 = vector.broadcast %cst_3 : f32 to vector<336x256xf32>
    %c0_4 = arith.constant 0 : index
    %c0_5 = arith.constant 0 : index
    %5 = vector.load %arg15[%c0_4, %c0_5] : memref<336x256xf32, #tpu.memory_space<vmem>>, vector<336x256xf32>
    tpu.vector_store %arg15[%c0_4, %c0_5], %4 {strides = array<i32>} : memref<336x256xf32, #tpu.memory_space<vmem>>, vector<336x256xf32>,
    %c0_6 = arith.constant 0 : index
    %c0_7 = arith.constant 0 : index
    %6 = vector.load %arg2[%c0_6, %c0_7] : memref<336x1xf32, #tpu.memory_space<vmem>>, vector<336x1xf32>
    %7 = vector.shape_cast %6 : vector<336x1xf32> to vector<336x1xf32>
    %8 = vector.broadcast %7 : vector<336x1xf32> to vector<336x128xf32>
    %cst_8 = arith.constant 5.000000e-01 : f32
    %9 = vector.broadcast %cst_8 : f32 to vector<336x128xf32>
    %10 = arith.cmpf ogt, %8, %9 : vector<336x128xf32>
    %c0_9 = arith.constant 0 : index
    %c13 = arith.constant 13 : index
    %c0_10 = arith.constant 0 : index
    %11 = vector.load %arg1[%c0_9, %c13, %c0_10] : memref<1x400x4xf32, #tpu.memory_space<vmem>>, vector<1x336x4xf32>
    %12 = vector.shape_cast %11 : vector<1x336x4xf32> to vector<336x4xf32>
    %c0_11 = arith.constant 0 : index
    %c0_12 = arith.constant 0 : index
    %13 = vector.load %arg15[%c0_11, %c0_12] : memref<336x256xf32, #tpu.memory_space<vmem>>, vector<336x4xf32>
    tpu.vector_store %arg15[%c0_11, %c0_12], %12 {strides = array<i32>} : memref<336x256xf32, #tpu.memory_space<vmem>>, vector<336x4xf32>,
    %c0_13 = arith.constant 0 : index
    %c14 = arith.constant 14 : index
    %c0_14 = arith.constant 0 : index
    %14 = vector.load %arg1[%c0_13, %c14, %c0_14] : memref<1x400x4xf32, #tpu.memory_space<vmem>>, vector<1x336x4xf32>
    %15 = vector.shape_cast %14 : vector<1x336x4xf32> to vector<336x4xf32>
    %c0_15 = arith.constant 0 : index
    %c4 = arith.constant 4 : index
    %16 = vector.load %arg15[%c0_15, %c4] : memref<336x256xf32, #tpu.memory_space<vmem>>, vector<336x4xf32>
    tpu.vector_store %arg15[%c0_15, %c4], %15 {strides = array<i32>} : memref<336x256xf32, #tpu.memory_space<vmem>>, vector<336x4xf32>,
    %c0_16 = arith.constant 0 : index
    %c15 = arith.constant 15 : index
    %c0_17 = arith.constant 0 : index
    %17 = vector.load %arg1[%c0_16, %c15, %c0_17] : memref<1x400x4xf32, #tpu.memory_space<vmem>>, vector<1x336x4xf32>
    %18 = vector.shape_cast %17 : vector<1x336x4xf32> to vector<336x4xf32>
    %c0_18 = arith.constant 0 : index
    %c8 = arith.constant 8 : index
    %19 = vector.load %arg15[%c0_18, %c8] : memref<336x256xf32, #tpu.memory_space<vmem>>, vector<336x4xf32>
    tpu.vector_store %arg15[%c0_18, %c8], %18 {strides = array<i32>} : memref<336x256xf32, #tpu.memory_space<vmem>>, vector<336x4xf32>,
    %c0_19 = arith.constant 0 : index
    %c31 = arith.constant 31 : index
    %c0_20 = arith.constant 0 : index
    %20 = vector.load %arg1[%c0_19, %c31, %c0_20] : memref<1x400x4xf32, #tpu.memory_space<vmem>>, vector<1x336x4xf32>
    %21 = vector.shape_cast %20 : vector<1x336x4xf32> to vector<336x4xf32>
    %c0_21 = arith.constant 0 : index
    %c12 = arith.constant 12 : index
    %22 = vector.load %arg15[%c0_21, %c12] : memref<336x256xf32, #tpu.memory_space<vmem>>, vector<336x4xf32>
    tpu.vector_store %arg15[%c0_21, %c12], %21 {strides = array<i32>} : memref<336x256xf32, #tpu.memory_space<vmem>>, vector<336x4xf32>,
    %c0_22 = arith.constant 0 : index
    %c32 = arith.constant 32 : index
    %c0_23 = arith.constant 0 : index
    %23 = vector.load %arg1[%c0_22, %c32, %c0_23] : memref<1x400x4xf32, #tpu.memory_space<vmem>>, vector<1x336x4xf32>
    %24 = vector.shape_cast %23 : vector<1x336x4xf32> to vector<336x4xf32>
    %c0_24 = arith.constant 0 : index
    %c16 = arith.constant 16 : index
    %25 = vector.load %arg15[%c0_24, %c16] : memref<336x256xf32, #tpu.memory_space<vmem>>, vector<336x4xf32>
    tpu.vector_store %arg15[%c0_24, %c16], %24 {strides = array<i32>} : memref<336x256xf32, #tpu.memory_space<vmem>>, vector<336x4xf32>,
    %c0_25 = arith.constant 0 : index
    %c33 = arith.constant 33 : index
    %c0_26 = arith.constant 0 : index
    %26 = vector.load %arg1[%c0_25, %c33, %c0_26] : memref<1x400x4xf32, #tpu.memory_space<vmem>>, vector<1x336x4xf32>
    %27 = vector.shape_cast %26 : vector<1x336x4xf32> to vector<336x4xf32>
    %c0_27 = arith.constant 0 : index
    %c20 = arith.constant 20 : index
    %28 = vector.load %arg15[%c0_27, %c20] : memref<336x256xf32, #tpu.memory_space<vmem>>, vector<336x4xf32>
    tpu.vector_store %arg15[%c0_27, %c20], %27 {strides = array<i32>} : memref<336x256xf32, #tpu.memory_space<vmem>>, vector<336x4xf32>,
    %c0_28 = arith.constant 0 : index
    %c49 = arith.constant 49 : index
    %c0_29 = arith.constant 0 : index
    %29 = vector.load %arg1[%c0_28, %c49, %c0_29] : memref<1x400x4xf32, #tpu.memory_space<vmem>>, vector<1x336x4xf32>
    %30 = vector.shape_cast %29 : vector<1x336x4xf32> to vector<336x4xf32>
    %c0_30 = arith.constant 0 : index
    %c24 = arith.constant 24 : index
    %31 = vector.load %arg15[%c0_30, %c24] : memref<336x256xf32, #tpu.memory_space<vmem>>, vector<336x4xf32>
    tpu.vector_store %arg15[%c0_30, %c24], %30 {strides = array<i32>} : memref<336x256xf32, #tpu.memory_space<vmem>>, vector<336x4xf32>,
    %c0_31 = arith.constant 0 : index
    %c50 = arith.constant 50 : index
    %c0_32 = arith.constant 0 : index
    %32 = vector.load %arg1[%c0_31, %c50, %c0_32] : memref<1x400x4xf32, #tpu.memory_space<vmem>>, vector<1x336x4xf32>
    %33 = vector.shape_cast %32 : vector<1x336x4xf32> to vector<336x4xf32>
    %c0_33 = arith.constant 0 : index
    %c28 = arith.constant 28 : index
    %34 = vector.load %arg15[%c0_33, %c28] : memref<336x256xf32, #tpu.memory_space<vmem>>, vector<336x4xf32>
    tpu.vector_store %arg15[%c0_33, %c28], %33 {strides = array<i32>} : memref<336x256xf32, #tpu.memory_space<vmem>>, vector<336x4xf32>,
    %c0_34 = arith.constant 0 : index
    %c51 = arith.constant 51 : index
    %c0_35 = arith.constant 0 : index
    %35 = vector.load %arg1[%c0_34, %c51, %c0_35] : memref<1x400x4xf32, #tpu.memory_space<vmem>>, vector<1x336x4xf32>
    %36 = vector.shape_cast %35 : vector<1x336x4xf32> to vector<336x4xf32>
    %c0_36 = arith.constant 0 : index
    %c32_37 = arith.constant 32 : index
    %37 = vector.load %arg15[%c0_36, %c32_37] : memref<336x256xf32, #tpu.memory_space<vmem>>, vector<336x4xf32>
    tpu.vector_store %arg15[%c0_36, %c32_37], %36 {strides = array<i32>} : memref<336x256xf32, #tpu.memory_space<vmem>>, vector<336x4xf32>,
    %c0_38 = arith.constant 0 : index
    %c0_39 = arith.constant 0 : index
    %38 = vector.load %arg15[%c0_38, %c0_39] : memref<336x256xf32, #tpu.memory_space<vmem>>, vector<336x128xf32>
    %c0_40 = arith.constant 0 : index
    %c0_41 = arith.constant 0 : index
    %39 = vector.load %arg3[%c0_40, %c0_41] : memref<128x128xf32, #tpu.memory_space<vmem>>, vector<128x128xf32>
    %cst_42 = arith.constant dense<0.000000e+00> : vector<336x128xf32>
    %40 = tpu.matmul %38, %39, %cst_42 {dimension_numbers = #tpu.dot_dimension_numbers<[1], [0], [0], [1], [0, 0, 1, 1], [], []>} : vector<336x128xf32>, vector<128x128xf32>, vector<336x128xf32> -> vector<336x128xf32>
    %c0_43 = arith.constant 0 : index
    %c0_44 = arith.constant 0 : index
    %41 = vector.load %arg4[%c0_43, %c0_44] : memref<1x128xf32, #tpu.memory_space<vmem>>, vector<1x128xf32>
    %42 = vector.broadcast %41 : vector<1x128xf32> to vector<336x128xf32>
    %43 = arith.addf %40, %42 : vector<336x128xf32>
    %44 = math.tanh %43 : vector<336x128xf32>
    %cst_45 = arith.constant 0.000000e+00 : f32
    %45 = vector.broadcast %cst_45 : f32 to vector<336x128xf32>
    %46 = arith.select %10, %44, %45 : vector<336x128xi1>, vector<336x128xf32>
    %c32_46 = arith.constant 32 : index
    %c0_47 = arith.constant 0 : index
    %47 = vector.load %arg14[%c32_46, %c0_47] : memref<400x128xf32, #tpu.memory_space<vmem>>, vector<336x128xf32>
    tpu.vector_store %arg14[%c32_46, %c0_47], %46 {strides = array<i32>} : memref<400x128xf32, #tpu.memory_space<vmem>>, vector<336x128xf32>,
    %c13_48 = arith.constant 13 : index
    %c0_49 = arith.constant 0 : index
    %48 = vector.load %arg14[%c13_48, %c0_49] : memref<400x128xf32, #tpu.memory_space<vmem>>, vector<336x16xf32>
    %c0_50 = arith.constant 0 : index
    %c0_51 = arith.constant 0 : index
    %49 = vector.load %arg15[%c0_50, %c0_51] : memref<336x256xf32, #tpu.memory_space<vmem>>, vector<336x16xf32>
    tpu.vector_store %arg15[%c0_50, %c0_51], %48 {strides = array<i32>} : memref<336x256xf32, #tpu.memory_space<vmem>>, vector<336x16xf32>,
    %c14_52 = arith.constant 14 : index
    %c0_53 = arith.constant 0 : index
    %50 = vector.load %arg14[%c14_52, %c0_53] : memref<400x128xf32, #tpu.memory_space<vmem>>, vector<336x16xf32>
    %c0_54 = arith.constant 0 : index
    %c16_55 = arith.constant 16 : index
    %51 = vector.load %arg15[%c0_54, %c16_55] : memref<336x256xf32, #tpu.memory_space<vmem>>, vector<336x16xf32>
    tpu.vector_store %arg15[%c0_54, %c16_55], %50 {strides = array<i32>} : memref<336x256xf32, #tpu.memory_space<vmem>>, vector<336x16xf32>,
    %c15_56 = arith.constant 15 : index
    %c0_57 = arith.constant 0 : index
    %52 = vector.load %arg14[%c15_56, %c0_57] : memref<400x128xf32, #tpu.memory_space<vmem>>, vector<336x16xf32>
    %c0_58 = arith.constant 0 : index
    %c32_59 = arith.constant 32 : index
    %53 = vector.load %arg15[%c0_58, %c32_59] : memref<336x256xf32, #tpu.memory_space<vmem>>, vector<336x16xf32>
    tpu.vector_store %arg15[%c0_58, %c32_59], %52 {strides = array<i32>} : memref<336x256xf32, #tpu.memory_space<vmem>>, vector<336x16xf32>,
    %c31_60 = arith.constant 31 : index
    %c0_61 = arith.constant 0 : index
    %54 = vector.load %arg14[%c31_60, %c0_61] : memref<400x128xf32, #tpu.memory_space<vmem>>, vector<336x16xf32>
    %c0_62 = arith.constant 0 : index
    %c48 = arith.constant 48 : index
    %55 = vector.load %arg15[%c0_62, %c48] : memref<336x256xf32, #tpu.memory_space<vmem>>, vector<336x16xf32>
    tpu.vector_store %arg15[%c0_62, %c48], %54 {strides = array<i32>} : memref<336x256xf32, #tpu.memory_space<vmem>>, vector<336x16xf32>,
    %c32_63 = arith.constant 32 : index
    %c0_64 = arith.constant 0 : index
    %56 = vector.load %arg14[%c32_63, %c0_64] : memref<400x128xf32, #tpu.memory_space<vmem>>, vector<336x16xf32>
    %c0_65 = arith.constant 0 : index
    %c64 = arith.constant 64 : index
    %57 = vector.load %arg15[%c0_65, %c64] : memref<336x256xf32, #tpu.memory_space<vmem>>, vector<336x16xf32>
    tpu.vector_store %arg15[%c0_65, %c64], %56 {strides = array<i32>} : memref<336x256xf32, #tpu.memory_space<vmem>>, vector<336x16xf32>,
    %c33_66 = arith.constant 33 : index
    %c0_67 = arith.constant 0 : index
    %58 = vector.load %arg14[%c33_66, %c0_67] : memref<400x128xf32, #tpu.memory_space<vmem>>, vector<336x16xf32>
    %c0_68 = arith.constant 0 : index
    %c80 = arith.constant 80 : index
    %59 = vector.load %arg15[%c0_68, %c80] : memref<336x256xf32, #tpu.memory_space<vmem>>, vector<336x16xf32>
    tpu.vector_store %arg15[%c0_68, %c80], %58 {strides = array<i32>} : memref<336x256xf32, #tpu.memory_space<vmem>>, vector<336x16xf32>,
    %c49_69 = arith.constant 49 : index
    %c0_70 = arith.constant 0 : index
    %60 = vector.load %arg14[%c49_69, %c0_70] : memref<400x128xf32, #tpu.memory_space<vmem>>, vector<336x16xf32>
    %c0_71 = arith.constant 0 : index
    %c96 = arith.constant 96 : index
    %61 = vector.load %arg15[%c0_71, %c96] : memref<336x256xf32, #tpu.memory_space<vmem>>, vector<336x16xf32>
    tpu.vector_store %arg15[%c0_71, %c96], %60 {strides = array<i32>} : memref<336x256xf32, #tpu.memory_space<vmem>>, vector<336x16xf32>,
    %c50_72 = arith.constant 50 : index
    %c0_73 = arith.constant 0 : index
    %62 = vector.load %arg14[%c50_72, %c0_73] : memref<400x128xf32, #tpu.memory_space<vmem>>, vector<336x16xf32>
    %c0_74 = arith.constant 0 : index
    %c112 = arith.constant 112 : index
    %63 = vector.load %arg15[%c0_74, %c112] : memref<336x256xf32, #tpu.memory_space<vmem>>, vector<336x16xf32>
    tpu.vector_store %arg15[%c0_74, %c112], %62 {strides = array<i32>} : memref<336x256xf32, #tpu.memory_space<vmem>>, vector<336x16xf32>,
    %c51_75 = arith.constant 51 : index
    %c0_76 = arith.constant 0 : index
    %64 = vector.load %arg14[%c51_75, %c0_76] : memref<400x128xf32, #tpu.memory_space<vmem>>, vector<336x16xf32>
    %c0_77 = arith.constant 0 : index
    %c128 = arith.constant 128 : index
    %65 = vector.load %arg15[%c0_77, %c128] : memref<336x256xf32, #tpu.memory_space<vmem>>, vector<336x16xf32>
    tpu.vector_store %arg15[%c0_77, %c128], %64 {strides = array<i32>} : memref<336x256xf32, #tpu.memory_space<vmem>>, vector<336x16xf32>,
    %c0_78 = arith.constant 0 : index
    %c0_79 = arith.constant 0 : index
    %66 = vector.load %arg15[%c0_78, %c0_79] : memref<336x256xf32, #tpu.memory_space<vmem>>, vector<336x256xf32>
    %c0_80 = arith.constant 0 : index
    %c0_81 = arith.constant 0 : index
    %67 = vector.load %arg5[%c0_80, %c0_81] : memref<256x128xf32, #tpu.memory_space<vmem>>, vector<256x128xf32>
    %cst_82 = arith.constant dense<0.000000e+00> : vector<336x128xf32>
    %68 = tpu.matmul %66, %67, %cst_82 {dimension_numbers = #tpu.dot_dimension_numbers<[1], [0], [0], [1], [0, 0, 1, 1], [], []>} : vector<336x256xf32>, vector<256x128xf32>, vector<336x128xf32> -> vector<336x128xf32>
    %c0_83 = arith.constant 0 : index
    %c0_84 = arith.constant 0 : index
    %69 = vector.load %arg6[%c0_83, %c0_84] : memref<1x128xf32, #tpu.memory_space<vmem>>, vector<1x128xf32>
    %70 = vector.broadcast %69 : vector<1x128xf32> to vector<336x128xf32>
    %71 = arith.addf %68, %70 : vector<336x128xf32>
    %72 = math.tanh %71 : vector<336x128xf32>
    %cst_85 = arith.constant 0.000000e+00 : f32
    %73 = vector.broadcast %cst_85 : f32 to vector<336x128xf32>
    %74 = arith.select %10, %72, %73 : vector<336x128xi1>, vector<336x128xf32>
    %c32_86 = arith.constant 32 : index
    %c0_87 = arith.constant 0 : index
    %75 = vector.load %arg14[%c32_86, %c0_87] : memref<400x128xf32, #tpu.memory_space<vmem>>, vector<336x128xf32>
    tpu.vector_store %arg14[%c32_86, %c0_87], %74 {strides = array<i32>} : memref<400x128xf32, #tpu.memory_space<vmem>>, vector<336x128xf32>,
    %c13_88 = arith.constant 13 : index
    %c0_89 = arith.constant 0 : index
    %76 = vector.load %arg14[%c13_88, %c0_89] : memref<400x128xf32, #tpu.memory_space<vmem>>, vector<336x16xf32>
    %c0_90 = arith.constant 0 : index
    %c0_91 = arith.constant 0 : index
    %77 = vector.load %arg15[%c0_90, %c0_91] : memref<336x256xf32, #tpu.memory_space<vmem>>, vector<336x16xf32>
    tpu.vector_store %arg15[%c0_90, %c0_91], %76 {strides = array<i32>} : memref<336x256xf32, #tpu.memory_space<vmem>>, vector<336x16xf32>,
    %c14_92 = arith.constant 14 : index
    %c0_93 = arith.constant 0 : index
    %78 = vector.load %arg14[%c14_92, %c0_93] : memref<400x128xf32, #tpu.memory_space<vmem>>, vector<336x16xf32>
    %c0_94 = arith.constant 0 : index
    %c16_95 = arith.constant 16 : index
    %79 = vector.load %arg15[%c0_94, %c16_95] : memref<336x256xf32, #tpu.memory_space<vmem>>, vector<336x16xf32>
    tpu.vector_store %arg15[%c0_94, %c16_95], %78 {strides = array<i32>} : memref<336x256xf32, #tpu.memory_space<vmem>>, vector<336x16xf32>,
    %c15_96 = arith.constant 15 : index
    %c0_97 = arith.constant 0 : index
    %80 = vector.load %arg14[%c15_96, %c0_97] : memref<400x128xf32, #tpu.memory_space<vmem>>, vector<336x16xf32>
    %c0_98 = arith.constant 0 : index
    %c32_99 = arith.constant 32 : index
    %81 = vector.load %arg15[%c0_98, %c32_99] : memref<336x256xf32, #tpu.memory_space<vmem>>, vector<336x16xf32>
    tpu.vector_store %arg15[%c0_98, %c32_99], %80 {strides = array<i32>} : memref<336x256xf32, #tpu.memory_space<vmem>>, vector<336x16xf32>,
    %c31_100 = arith.constant 31 : index
    %c0_101 = arith.constant 0 : index
    %82 = vector.load %arg14[%c31_100, %c0_101] : memref<400x128xf32, #tpu.memory_space<vmem>>, vector<336x16xf32>
    %c0_102 = arith.constant 0 : index
    %c48_103 = arith.constant 48 : index
    %83 = vector.load %arg15[%c0_102, %c48_103] : memref<336x256xf32, #tpu.memory_space<vmem>>, vector<336x16xf32>
    tpu.vector_store %arg15[%c0_102, %c48_103], %82 {strides = array<i32>} : memref<336x256xf32, #tpu.memory_space<vmem>>, vector<336x16xf32>,
    %c32_104 = arith.constant 32 : index
    %c0_105 = arith.constant 0 : index
    %84 = vector.load %arg14[%c32_104, %c0_105] : memref<400x128xf32, #tpu.memory_space<vmem>>, vector<336x16xf32>
    %c0_106 = arith.constant 0 : index
    %c64_107 = arith.constant 64 : index
    %85 = vector.load %arg15[%c0_106, %c64_107] : memref<336x256xf32, #tpu.memory_space<vmem>>, vector<336x16xf32>
    tpu.vector_store %arg15[%c0_106, %c64_107], %84 {strides = array<i32>} : memref<336x256xf32, #tpu.memory_space<vmem>>, vector<336x16xf32>,
    %c33_108 = arith.constant 33 : index
    %c0_109 = arith.constant 0 : index
    %86 = vector.load %arg14[%c33_108, %c0_109] : memref<400x128xf32, #tpu.memory_space<vmem>>, vector<336x16xf32>
    %c0_110 = arith.constant 0 : index
    %c80_111 = arith.constant 80 : index
    %87 = vector.load %arg15[%c0_110, %c80_111] : memref<336x256xf32, #tpu.memory_space<vmem>>, vector<336x16xf32>
    tpu.vector_store %arg15[%c0_110, %c80_111], %86 {strides = array<i32>} : memref<336x256xf32, #tpu.memory_space<vmem>>, vector<336x16xf32>,
    %c49_112 = arith.constant 49 : index
    %c0_113 = arith.constant 0 : index
    %88 = vector.load %arg14[%c49_112, %c0_113] : memref<400x128xf32, #tpu.memory_space<vmem>>, vector<336x16xf32>
    %c0_114 = arith.constant 0 : index
    %c96_115 = arith.constant 96 : index
    %89 = vector.load %arg15[%c0_114, %c96_115] : memref<336x256xf32, #tpu.memory_space<vmem>>, vector<336x16xf32>
    tpu.vector_store %arg15[%c0_114, %c96_115], %88 {strides = array<i32>} : memref<336x256xf32, #tpu.memory_space<vmem>>, vector<336x16xf32>,
    %c50_116 = arith.constant 50 : index
    %c0_117 = arith.constant 0 : index
    %90 = vector.load %arg14[%c50_116, %c0_117] : memref<400x128xf32, #tpu.memory_space<vmem>>, vector<336x16xf32>
    %c0_118 = arith.constant 0 : index
    %c112_119 = arith.constant 112 : index
    %91 = vector.load %arg15[%c0_118, %c112_119] : memref<336x256xf32, #tpu.memory_space<vmem>>, vector<336x16xf32>
    tpu.vector_store %arg15[%c0_118, %c112_119], %90 {strides = array<i32>} : memref<336x256xf32, #tpu.memory_space<vmem>>, vector<336x16xf32>,
    %c51_120 = arith.constant 51 : index
    %c0_121 = arith.constant 0 : index
    %92 = vector.load %arg14[%c51_120, %c0_121] : memref<400x128xf32, #tpu.memory_space<vmem>>, vector<336x16xf32>
    %c0_122 = arith.constant 0 : index
    %c128_123 = arith.constant 128 : index
    %93 = vector.load %arg15[%c0_122, %c128_123] : memref<336x256xf32, #tpu.memory_space<vmem>>, vector<336x16xf32>
    tpu.vector_store %arg15[%c0_122, %c128_123], %92 {strides = array<i32>} : memref<336x256xf32, #tpu.memory_space<vmem>>, vector<336x16xf32>,
    %c0_124 = arith.constant 0 : index
    %c0_125 = arith.constant 0 : index
    %94 = vector.load %arg15[%c0_124, %c0_125] : memref<336x256xf32, #tpu.memory_space<vmem>>, vector<336x256xf32>
    %c0_126 = arith.constant 0 : index
    %c0_127 = arith.constant 0 : index
    %95 = vector.load %arg7[%c0_126, %c0_127] : memref<256x128xf32, #tpu.memory_space<vmem>>, vector<256x128xf32>
    %cst_128 = arith.constant dense<0.000000e+00> : vector<336x128xf32>
    %96 = tpu.matmul %94, %95, %cst_128 {dimension_numbers = #tpu.dot_dimension_numbers<[1], [0], [0], [1], [0, 0, 1, 1], [], []>} : vector<336x256xf32>, vector<256x128xf32>, vector<336x128xf32> -> vector<336x128xf32>
    %c0_129 = arith.constant 0 : index
    %c0_130 = arith.constant 0 : index
    %97 = vector.load %arg8[%c0_129, %c0_130] : memref<1x128xf32, #tpu.memory_space<vmem>>, vector<1x128xf32>
    %98 = vector.broadcast %97 : vector<1x128xf32> to vector<336x128xf32>
    %99 = arith.addf %96, %98 : vector<336x128xf32>
    %100 = math.tanh %99 : vector<336x128xf32>
    %cst_131 = arith.constant 0.000000e+00 : f32
    %101 = vector.broadcast %cst_131 : f32 to vector<336x128xf32>
    %102 = arith.select %10, %100, %101 : vector<336x128xi1>, vector<336x128xf32>
    %c32_132 = arith.constant 32 : index
    %c0_133 = arith.constant 0 : index
    %103 = vector.load %arg14[%c32_132, %c0_133] : memref<400x128xf32, #tpu.memory_space<vmem>>, vector<336x128xf32>
    tpu.vector_store %arg14[%c32_132, %c0_133], %102 {strides = array<i32>} : memref<400x128xf32, #tpu.memory_space<vmem>>, vector<336x128xf32>,
    %c32_134 = arith.constant 32 : index
    %c0_135 = arith.constant 0 : index
    %104 = vector.load %arg14[%c32_134, %c0_135] : memref<400x128xf32, #tpu.memory_space<vmem>>, vector<336x128xf32>
    %c0_136 = arith.constant 0 : index
    %c0_137 = arith.constant 0 : index
    %105 = vector.load %arg9[%c0_136, %c0_137] : memref<128x128xf32, #tpu.memory_space<vmem>>, vector<128x128xf32>
    %cst_138 = arith.constant dense<0.000000e+00> : vector<336x128xf32>
    %106 = tpu.matmul %104, %105, %cst_138 {dimension_numbers = #tpu.dot_dimension_numbers<[1], [0], [0], [1], [0, 0, 1, 1], [], []>} : vector<336x128xf32>, vector<128x128xf32>, vector<336x128xf32> -> vector<336x128xf32>
    %c0_139 = arith.constant 0 : index
    %c0_140 = arith.constant 0 : index
    %107 = vector.load %arg10[%c0_139, %c0_140] : memref<1x128xf32, #tpu.memory_space<vmem>>, vector<1x128xf32>
    %108 = vector.broadcast %107 : vector<1x128xf32> to vector<336x128xf32>
    %109 = arith.addf %106, %108 : vector<336x128xf32>
    %110 = math.tanh %109 : vector<336x128xf32>
    %c0_141 = arith.constant 0 : index
    %c0_142 = arith.constant 0 : index
    %111 = vector.load %arg11[%c0_141, %c0_142] : memref<128x128xf32, #tpu.memory_space<vmem>>, vector<128x128xf32>
    %cst_143 = arith.constant dense<0.000000e+00> : vector<336x128xf32>
    %112 = tpu.matmul %110, %111, %cst_143 {dimension_numbers = #tpu.dot_dimension_numbers<[1], [0], [0], [1], [0, 0, 1, 1], [], []>} : vector<336x128xf32>, vector<128x128xf32>, vector<336x128xf32> -> vector<336x128xf32>
    %c0_144 = arith.constant 0 : index
    %c0_145 = arith.constant 0 : index
    %113 = vector.load %arg12[%c0_144, %c0_145] : memref<1x128xf32, #tpu.memory_space<vmem>>, vector<1x128xf32>
    %114 = vector.broadcast %113 : vector<1x128xf32> to vector<336x128xf32>
    %115 = arith.addf %112, %114 : vector<336x128xf32>
    %c0_146 = arith.constant 0 : index
    %c0_147 = arith.constant 0 : index
    %c0_148 = arith.constant 0 : index
    %116 = vector.load %arg13[%c0_146, %c0_147, %c0_148] : memref<1x336x128xf32, #tpu.memory_space<vmem>>, vector<1x336x128xf32>
    %117 = vector.shape_cast %116 : vector<1x336x128xf32> to vector<336x128xf32>
    %118 = vector.shape_cast %115 : vector<336x128xf32> to vector<1x336x128xf32>
    tpu.vector_store %arg13[%c0_146, %c0_147, %c0_148], %118 {strides = array<i32>} : memref<1x336x128xf32, #tpu.memory_space<vmem>>, vector<1x336x128xf32>,
    return
  }
  func.func @transform_0(%arg0: i32) -> (i32, i32, i32) {
    %c0_i32 = arith.constant 0 : i32
    %c0_i32_0 = arith.constant 0 : i32
    %c0_i32_1 = arith.constant 0 : i32
    return %arg0, %c0_i32, %c0_i32_0 : i32, i32, i32
  }
  func.func @transform_1(%arg0: i32) -> (i32, i32) {
    %c0_i32 = arith.constant 0 : i32
    %c0_i32_0 = arith.constant 0 : i32
    %c0_i32_1 = arith.constant 0 : i32
    return %c0_i32, %c0_i32_0 : i32, i32
  }
  func.func @transform_2(%arg0: i32) -> (i32, i32) {
    %c0_i32 = arith.constant 0 : i32
    %c0_i32_0 = arith.constant 0 : i32
    %c0_i32_1 = arith.constant 0 : i32
    return %c0_i32, %c0_i32_0 : i32, i32
  }
  func.func @transform_3(%arg0: i32) -> (i32, i32) {
    %c0_i32 = arith.constant 0 : i32
    %c0_i32_0 = arith.constant 0 : i32
    %c0_i32_1 = arith.constant 0 : i32
    return %c0_i32, %c0_i32_0 : i32, i32
  }
  func.func @transform_4(%arg0: i32) -> (i32, i32) {
    %c0_i32 = arith.constant 0 : i32
    %c0_i32_0 = arith.constant 0 : i32
    %c0_i32_1 = arith.constant 0 : i32
    return %c0_i32, %c0_i32_0 : i32, i32
  }
  func.func @transform_5(%arg0: i32) -> (i32, i32) {
    %c0_i32 = arith.constant 0 : i32
    %c0_i32_0 = arith.constant 0 : i32
    %c0_i32_1 = arith.constant 0 : i32
    return %c0_i32, %c0_i32_0 : i32, i32
  }
  func.func @transform_6(%arg0: i32) -> (i32, i32) {
    %c0_i32 = arith.constant 0 : i32
    %c0_i32_0 = arith.constant 0 : i32
    %c0_i32_1 = arith.constant 0 : i32
    return %c0_i32, %c0_i32_0 : i32, i32
  }
  func.func @transform_7(%arg0: i32) -> (i32, i32) {
    %c0_i32 = arith.constant 0 : i32
    %c0_i32_0 = arith.constant 0 : i32
    %c0_i32_1 = arith.constant 0 : i32
    return %c0_i32, %c0_i32_0 : i32, i32
  }
  func.func @transform_8(%arg0: i32) -> (i32, i32) {
    %c0_i32 = arith.constant 0 : i32
    %c0_i32_0 = arith.constant 0 : i32
    %c0_i32_1 = arith.constant 0 : i32
    return %c0_i32, %c0_i32_0 : i32, i32
  }
  func.func @transform_9(%arg0: i32) -> (i32, i32) {
    %c0_i32 = arith.constant 0 : i32
    %c0_i32_0 = arith.constant 0 : i32
    %c0_i32_1 = arith.constant 0 : i32
    return %c0_i32, %c0_i32_0 : i32, i32
  }
  func.func @transform_10(%arg0: i32) -> (i32, i32) {
    %c0_i32 = arith.constant 0 : i32
    %c0_i32_0 = arith.constant 0 : i32
    %c0_i32_1 = arith.constant 0 : i32
    return %c0_i32, %c0_i32_0 : i32, i32
  }
  func.func @transform_11(%arg0: i32) -> (i32, i32) {
    %c0_i32 = arith.constant 0 : i32
    %c0_i32_0 = arith.constant 0 : i32
    %c0_i32_1 = arith.constant 0 : i32
    return %c0_i32, %c0_i32_0 : i32, i32
  }
  func.func @transform_12(%arg0: i32) -> (i32, i32, i32) {
    %c0_i32 = arith.constant 0 : i32
    %c0_i32_0 = arith.constant 0 : i32
    %c0_i32_1 = arith.constant 0 : i32
    return %arg0, %c0_i32, %c0_i32_0 : i32, i32, i32
  }
}

</mosaic_0001>

<llo_original>
// kernel: quick_cnn_forward.1
$region0: #{quick_cnn_forward.1}
  #allocation0 [shape = 'u32[]', space=smem, size = 0x4, offset = 0x4, fixed_abs, tag = 'smem constant byte address 0x4 - core index']
  #allocation1 [shape = 'u32[144,128]{1,0:T(1,128)}', space=vmem, size = 0x12000, scoped, tag = 'internal scratch']
  #allocation2 [shape = 'f32[400,128]{1,0:T(8,128)}', space=vmem, size = 0x32000, scoped, tag = 'scratch operand']
  #allocation3 [shape = 'f32[336,256]{1,0:T(8,128)}', space=vmem, size = 0x54000, scoped, tag = 'scratch operand']
  %s0 = inlined_call_operand.vmem [shape: f32[2,400,4], index: 0, kind: input, shape index: {}]
  %s1 = inlined_call_operand.vmem [shape: f32[336,1], index: 1, kind: input, shape index: {}]
  %s2 = inlined_call_operand.vmem [shape: f32[128,128], index: 2, kind: input, shape index: {}]
  %s3 = inlined_call_operand.vmem [shape: f32[1,128], index: 3, kind: input, shape index: {}]
  %s4 = inlined_call_operand.vmem [shape: f32[256,128], index: 4, kind: input, shape index: {}]
  %s5 = inlined_call_operand.vmem [shape: f32[1,128], index: 5, kind: input, shape index: {}]
  %s6 = inlined_call_operand.vmem [shape: f32[256,128], index: 6, kind: input, shape index: {}]
  %s7 = inlined_call_operand.vmem [shape: f32[1,128], index: 7, kind: input, shape index: {}]
  %s8 = inlined_call_operand.vmem [shape: f32[128,128], index: 8, kind: input, shape index: {}]
  %s9 = inlined_call_operand.vmem [shape: f32[1,128], index: 9, kind: input, shape index: {}]
  %s10 = inlined_call_operand.vmem [shape: f32[128,128], index: 10, kind: input, shape index: {}]
  %s11 = inlined_call_operand.vmem [shape: f32[1,128], index: 11, kind: input, shape index: {}]
  %s12 = inlined_call_operand.vmem [shape: f32[2,336,128], index: 12, kind: output, shape index: {}]
  %s13 = sld [smem:[#allocation0]]
  $region81: #{quick_cnn_forward.1} parent=0
    _
  %s15 = ssub.s32 1, %s13
  %s16 = scalar_select 0, %s15, %s13
  loop: start=0, step=1, limit=4
  $region2: #{quick_cnn_forward.1} parent=0 // loop_pre_header
    _
  $region3: #{quick_cnn_forward.1} parent=0 // loop_header
    %s18 = sphi 0, %s22
    %p19 = scmp.ge.s32.totalorder %s18, 4
    %s28 = sphi 0, %s30
    %s31 = sphi 0, %s28
    %s32 = sphi 0, %s31
    %s48 = sphi 0, %s32
    %s52 = sphi 0, %s52
    %s54 = sphi 0, %s52
    %s55 = sphi 0, %s54
    %s69 = sphi 0, %s55
    %s73 = sphi 0, %s73
    %s75 = sphi 0, %s73
    %s76 = sphi 0, %s75
    %s90 = sphi 0, %s76
    %s94 = sphi 0, %s94
    %s96 = sphi 0, %s94
    %s97 = sphi 0, %s96
    %s111 = sphi 0, %s97
    %s115 = sphi 0, %s115
    %s117 = sphi 0, %s115
    %s118 = sphi 0, %s117
    %s132 = sphi 0, %s118
    %s136 = sphi 0, %s136
    %s138 = sphi 0, %s136
    %s139 = sphi 0, %s138
    %s153 = sphi 0, %s139
    %s157 = sphi 0, %s157
    %s159 = sphi 0, %s157
    %s160 = sphi 0, %s159
    %s174 = sphi 0, %s160
    %s178 = sphi 0, %s178
    %s180 = sphi 0, %s178
    %s181 = sphi 0, %s180
    %s195 = sphi 0, %s181
    %s199 = sphi 0, %s199
    %s201 = sphi 0, %s199
    %s202 = sphi 0, %s201
    %s216 = sphi 0, %s202
    %s220 = sphi 0, %s220
    %s222 = sphi 0, %s220
    %s223 = sphi 0, %s222
    %s237 = sphi 0, %s223
    %s241 = sphi 0, %s241
    %s243 = sphi 0, %s241
    %s244 = sphi 0, %s243
    %s258 = sphi 0, %s244
    %s262 = sphi 0, %s262
    %s264 = sphi 0, %s262
    %s265 = sphi 0, %s264
    %s279 = sphi 0, %s265
    %s285 = sphi 0, %s287
    %s288 = sphi 0, %s285
    %s289 = sphi 0, %s288
    %s305 = sphi 0, %s289
  $region4: #{quick_cnn_forward.1} parent=0 // loop_header_branch
    %21 = sbr.rel (%p19) target = $region8
  $region5: #{quick_cnn_forward.1} parent=0 // loop_body
    %s23 = ssub.s32 %s18, 1
    %s24 = ssub.s32 %s18, 2
    %s25 = sadd.s32 %s18, 1
    %s26 = ssub.s32 %s18, %s25
    %p27 = scmp.eq.s32.totalorder %s26, 0
    %s29 = sadd.s32 %s28, 1
    %s30 = scalar_select %p27, %s28, %s29
    %p33 = pneg %p27
    %p34 = scmp.eq.s32.totalorder %s18, 1
    %p35 = por %p33, %p34
    %p36 = scmp.ne.s32.totalorder %s28, %s31
    %p37 = scmp.eq.s32.totalorder %s18, 0
    %p38 = por %p36, %p37
    %p39 = scmp.ne.s32.totalorder %s28, %s31
    %p40 = scmp.eq.s32.totalorder %s23, 1
    %p41 = por %p39, %p40
    %p42 = scmp.ne.s32.totalorder %s31, %s32
    %p43 = scmp.eq.s32.totalorder %s23, 0
    %p44 = por %p42, %p43
    %p45 = scmp.ne.s32.totalorder %s31, %s32
    %p46 = scmp.eq.s32.totalorder %s24, 1
    %p47 = por %p45, %p46
    %p49 = scmp.ne.s32.totalorder %s32, %s48
    %p50 = scmp.eq.s32.totalorder %s24, 0
    %p51 = por %p49, %p50
    %s53 = sadd.s32 %s52, 1
    %p56 = scmp.eq.s32.totalorder %s18, 1
    %p57 = scmp.ne.s32.totalorder %s52, %s54
    %p58 = scmp.eq.s32.totalorder %s18, 0
    %p59 = por %p57, %p58
    %p60 = scmp.ne.s32.totalorder %s52, %s54
    %p61 = scmp.eq.s32.totalorder %s23, 1
    %p62 = por %p60, %p61
    %p63 = scmp.ne.s32.totalorder %s54, %s55
    %p64 = scmp.eq.s32.totalorder %s23, 0
    %p65 = por %p63, %p64
    %p66 = scmp.ne.s32.totalorder %s54, %s55
    %p67 = scmp.eq.s32.totalorder %s24, 1
    %p68 = por %p66, %p67
    %p70 = scmp.ne.s32.totalorder %s55, %s69
    %p71 = scmp.eq.s32.totalorder %s24, 0
    %p72 = por %p70, %p71
    %s74 = sadd.s32 %s73, 1
    %p77 = scmp.eq.s32.totalorder %s18, 1
    %p78 = scmp.ne.s32.totalorder %s73, %s75
    %p79 = scmp.eq.s32.totalorder %s18, 0
    %p80 = por %p78, %p79
    %p81 = scmp.ne.s32.totalorder %s73, %s75
    %p82 = scmp.eq.s32.totalorder %s23, 1
    %p83 = por %p81, %p82
    %p84 = scmp.ne.s32.totalorder %s75, %s76
    %p85 = scmp.eq.s32.totalorder %s23, 0
    %p86 = por %p84, %p85
    %p87 = scmp.ne.s32.totalorder %s75, %s76
    %p88 = scmp.eq.s32.totalorder %s24, 1
    %p89 = por %p87, %p88
    %p91 = scmp.ne.s32.totalorder %s76, %s90
    %p92 = scmp.eq.s32.totalorder %s24, 0
    %p93 = por %p91, %p92
    %s95 = sadd.s32 %s94, 1
    %p98 = scmp.eq.s32.totalorder %s18, 1
    %p99 = scmp.ne.s32.totalorder %s94, %s96
    %p100 = scmp.eq.s32.totalorder %s18, 0
    %p101 = por %p99, %p100
    %p102 = scmp.ne.s32.totalorder %s94, %s96
    %p103 = scmp.eq.s32.totalorder %s23, 1
    %p104 = por %p102, %p103
    %p105 = scmp.ne.s32.totalorder %s96, %s97
    %p106 = scmp.eq.s32.totalorder %s23, 0
    %p107 = por %p105, %p106
    %p108 = scmp.ne.s32.totalorder %s96, %s97
    %p109 = scmp.eq.s32.totalorder %s24, 1
    %p110 = por %p108, %p109
    %p112 = scmp.ne.s32.totalorder %s97, %s111
    %p113 = scmp.eq.s32.totalorder %s24, 0
    %p114 = por %p112, %p113
    %s116 = sadd.s32 %s115, 1
    %p119 = scmp.eq.s32.totalorder %s18, 1
    %p120 = scmp.ne.s32.totalorder %s115, %s117
    %p121 = scmp.eq.s32.totalorder %s18, 0
    %p122 = por %p120, %p121
    %p123 = scmp.ne.s32.totalorder %s115, %s117
    %p124 = scmp.eq.s32.totalorder %s23, 1
    %p125 = por %p123, %p124
    %p126 = scmp.ne.s32.totalorder %s117, %s118
    %p127 = scmp.eq.s32.totalorder %s23, 0
    %p128 = por %p126, %p127
    %p129 = scmp.ne.s32.totalorder %s117, %s118
    %p130 = scmp.eq.s32.totalorder %s24, 1
    %p131 = por %p129, %p130
    %p133 = scmp.ne.s32.totalorder %s118, %s132
    %p134 = scmp.eq.s32.totalorder %s24, 0
    %p135 = por %p133, %p134
    %s137 = sadd.s32 %s136, 1
    %p140 = scmp.eq.s32.totalorder %s18, 1
    %p141 = scmp.ne.s32.totalorder %s136, %s138
    %p142 = scmp.eq.s32.totalorder %s18, 0
    %p143 = por %p141, %p142
    %p144 = scmp.ne.s32.totalorder %s136, %s138
    %p145 = scmp.eq.s32.totalorder %s23, 1
    %p146 = por %p144, %p145
    %p147 = scmp.ne.s32.totalorder %s138, %s139
    %p148 = scmp.eq.s32.totalorder %s23, 0
    %p149 = por %p147, %p148
    %p150 = scmp.ne.s32.totalorder %s138, %s139
    %p151 = scmp.eq.s32.totalorder %s24, 1
    %p152 = por %p150, %p151
    %p154 = scmp.ne.s32.totalorder %s139, %s153
    %p155 = scmp.eq.s32.totalorder %s24, 0
    %p156 = por %p154, %p155
    %s158 = sadd.s32 %s157, 1
    %p161 = scmp.eq.s32.totalorder %s18, 1
    %p162 = scmp.ne.s32.totalorder %s157, %s159
    %p163 = scmp.eq.s32.totalorder %s18, 0
    %p164 = por %p162, %p163
    %p165 = scmp.ne.s32.totalorder %s157, %s159
    %p166 = scmp.eq.s32.totalorder %s23, 1
    %p167 = por %p165, %p166
    %p168 = scmp.ne.s32.totalorder %s159, %s160
    %p169 = scmp.eq.s32.totalorder %s23, 0
    %p170 = por %p168, %p169
    %p171 = scmp.ne.s32.totalorder %s159, %s160
    %p172 = scmp.eq.s32.totalorder %s24, 1
    %p173 = por %p171, %p172
    %p175 = scmp.ne.s32.totalorder %s160, %s174
    %p176 = scmp.eq.s32.totalorder %s24, 0
    %p177 = por %p175, %p176
    %s179 = sadd.s32 %s178, 1
    %p182 = scmp.eq.s32.totalorder %s18, 1
    %p183 = scmp.ne.s32.totalorder %s178, %s180
    %p184 = scmp.eq.s32.totalorder %s18, 0
    %p185 = por %p183, %p184
    %p186 = scmp.ne.s32.totalorder %s178, %s180
    %p187 = scmp.eq.s32.totalorder %s23, 1
    %p188 = por %p186, %p187
    %p189 = scmp.ne.s32.totalorder %s180, %s181
    %p190 = scmp.eq.s32.totalorder %s23, 0
    %p191 = por %p189, %p190
    %p192 = scmp.ne.s32.totalorder %s180, %s181
    %p193 = scmp.eq.s32.totalorder %s24, 1
    %p194 = por %p192, %p193
    %p196 = scmp.ne.s32.totalorder %s181, %s195
    %p197 = scmp.eq.s32.totalorder %s24, 0
    %p198 = por %p196, %p197
    %s200 = sadd.s32 %s199, 1
    %p203 = scmp.eq.s32.totalorder %s18, 1
    %p204 = scmp.ne.s32.totalorder %s199, %s201
    %p205 = scmp.eq.s32.totalorder %s18, 0
    %p206 = por %p204, %p205
    %p207 = scmp.ne.s32.totalorder %s199, %s201
    %p208 = scmp.eq.s32.totalorder %s23, 1
    %p209 = por %p207, %p208
    %p210 = scmp.ne.s32.totalorder %s201, %s202
    %p211 = scmp.eq.s32.totalorder %s23, 0
    %p212 = por %p210, %p211
    %p213 = scmp.ne.s32.totalorder %s201, %s202
    %p214 = scmp.eq.s32.totalorder %s24, 1
    %p215 = por %p213, %p214
    %p217 = scmp.ne.s32.totalorder %s202, %s216
    %p218 = scmp.eq.s32.totalorder %s24, 0
    %p219 = por %p217, %p218
    %s221 = sadd.s32 %s220, 1
    %p224 = scmp.eq.s32.totalorder %s18, 1
    %p225 = scmp.ne.s32.totalorder %s220, %s222
    %p226 = scmp.eq.s32.totalorder %s18, 0
    %p227 = por %p225, %p226
    %p228 = scmp.ne.s32.totalorder %s220, %s222
    %p229 = scmp.eq.s32.totalorder %s23, 1
    %p230 = por %p228, %p229
    %p231 = scmp.ne.s32.totalorder %s222, %s223
    %p232 = scmp.eq.s32.totalorder %s23, 0
    %p233 = por %p231, %p232
    %p234 = scmp.ne.s32.totalorder %s222, %s223
    %p235 = scmp.eq.s32.totalorder %s24, 1
    %p236 = por %p234, %p235
    %p238 = scmp.ne.s32.totalorder %s223, %s237
    %p239 = scmp.eq.s32.totalorder %s24, 0
    %p240 = por %p238, %p239
    %s242 = sadd.s32 %s241, 1
    %p245 = scmp.eq.s32.totalorder %s18, 1
    %p246 = scmp.ne.s32.totalorder %s241, %s243
    %p247 = scmp.eq.s32.totalorder %s18, 0
    %p248 = por %p246, %p247
    %p249 = scmp.ne.s32.totalorder %s241, %s243
    %p250 = scmp.eq.s32.totalorder %s23, 1
    %p251 = por %p249, %p250
    %p252 = scmp.ne.s32.totalorder %s243, %s244
    %p253 = scmp.eq.s32.totalorder %s23, 0
    %p254 = por %p252, %p253
    %p255 = scmp.ne.s32.totalorder %s243, %s244
    %p256 = scmp.eq.s32.totalorder %s24, 1
    %p257 = por %p255, %p256
    %p259 = scmp.ne.s32.totalorder %s244, %s258
    %p260 = scmp.eq.s32.totalorder %s24, 0
    %p261 = por %p259, %p260
    %s263 = sadd.s32 %s262, 1
    %p266 = scmp.eq.s32.totalorder %s18, 1
    %p267 = scmp.ne.s32.totalorder %s262, %s264
    %p268 = scmp.eq.s32.totalorder %s18, 0
    %p269 = por %p267, %p268
    %p270 = scmp.ne.s32.totalorder %s262, %s264
    %p271 = scmp.eq.s32.totalorder %s23, 1
    %p272 = por %p270, %p271
    %p273 = scmp.ne.s32.totalorder %s264, %s265
    %p274 = scmp.eq.s32.totalorder %s23, 0
    %p275 = por %p273, %p274
    %p276 = scmp.ne.s32.totalorder %s264, %s265
    %p277 = scmp.eq.s32.totalorder %s24, 1
    %p278 = por %p276, %p277
    %p280 = scmp.ne.s32.totalorder %s265, %s279
    %p281 = scmp.eq.s32.totalorder %s24, 0
    %p282 = por %p280, %p281
    %s283 = ssub.s32 %s18, %s25
    %p284 = scmp.eq.s32.totalorder %s283, 0
    %s286 = sadd.s32 %s285, 1
    %s287 = scalar_select %p284, %s285, %s286
    %p290 = pneg %p284
    %p291 = scmp.eq.s32.totalorder %s18, 1
    %p292 = por %p290, %p291
    %p293 = scmp.ne.s32.totalorder %s285, %s288
    %p294 = scmp.eq.s32.totalorder %s18, 0
    %p295 = por %p293, %p294
    %p296 = scmp.ne.s32.totalorder %s285, %s288
    %p297 = scmp.eq.s32.totalorder %s23, 1
    %p298 = por %p296, %p297
    %p299 = scmp.ne.s32.totalorder %s288, %s289
    %p300 = scmp.eq.s32.totalorder %s23, 0
    %p301 = por %p299, %p300
    %p302 = scmp.ne.s32.totalorder %s288, %s289
    %p303 = scmp.eq.s32.totalorder %s24, 1
    %p304 = por %p302, %p303
    %p306 = scmp.ne.s32.totalorder %s289, %s305
    %p307 = scmp.eq.s32.totalorder %s24, 0
    %p308 = por %p306, %p307
    %p309 = scmp.le.s32.totalorder 1, %s18
    %p310 = scmp.lt.s32.totalorder %s18, 3
    %p311 = pnand %p309, %p310
    %p312 = pneg %p311
    // Predicated region
    $region9: #{quick_cnn_forward.1} parent=5 // pred_check
      _
    $region10: #{quick_cnn_forward.1} parent=5 // pred_check_branch
      %314 = sbr.rel (%p311) target = $region12
    $region11: #{quick_cnn_forward.1} parent=5 // pred_region
      %s315 = ssub.s32 %s18, 1
      // Predicated region
      $region13: #{quick_cnn_forward.1} parent=11 // pred_check
        %p316 = pneg %p65
      $region14: #{quick_cnn_forward.1} parent=11 // pred_check_branch
        %318 = sbr.rel (%p316) target = $region16
      $region15: #{quick_cnn_forward.1} parent=11 // pred_region
        _
      $region16: #{quick_cnn_forward.1} parent=11 // pred_fallthru
        _
      // Predicated region
      $region17: #{quick_cnn_forward.1} parent=11 // pred_check
        %p319 = pneg %p86
      $region18: #{quick_cnn_forward.1} parent=11 // pred_check_branch
        %321 = sbr.rel (%p319) target = $region20
      $region19: #{quick_cnn_forward.1} parent=11 // pred_region
        _
      $region20: #{quick_cnn_forward.1} parent=11 // pred_fallthru
        _
      // Predicated region
      $region21: #{quick_cnn_forward.1} parent=11 // pred_check
        %p322 = pneg %p107
      $region22: #{quick_cnn_forward.1} parent=11 // pred_check_branch
        %324 = sbr.rel (%p322) target = $region24
      $region23: #{quick_cnn_forward.1} parent=11 // pred_region
        _
      $region24: #{quick_cnn_forward.1} parent=11 // pred_fallthru
        _
      // Predicated region
      $region25: #{quick_cnn_forward.1} parent=11 // pred_check
        %p325 = pneg %p128
      $region26: #{quick_cnn_forward.1} parent=11 // pred_check_branch
        %327 = sbr.rel (%p325) target = $region28
      $region27: #{quick_cnn_forward.1} parent=11 // pred_region
        _
      $region28: #{quick_cnn_forward.1} parent=11 // pred_fallthru
        _
      // Predicated region
      $region29: #{quick_cnn_forward.1} parent=11 // pred_check
        %p328 = pneg %p149
      $region30: #{quick_cnn_forward.1} parent=11 // pred_check_branch
        %330 = sbr.rel (%p328) target = $region32
      $region31: #{quick_cnn_forward.1} parent=11 // pred_region
        _
      $region32: #{quick_cnn_forward.1} parent=11 // pred_fallthru
        _
      // Predicated region
      $region33: #{quick_cnn_forward.1} parent=11 // pred_check
        %p331 = pneg %p170
      $region34: #{quick_cnn_forward.1} parent=11 // pred_check_branch
        %333 = sbr.rel (%p331) target = $region36
      $region35: #{quick_cnn_forward.1} parent=11 // pred_region
        _
      $region36: #{quick_cnn_forward.1} parent=11 // pred_fallthru
        _
      // Predicated region
      $region37: #{quick_cnn_forward.1} parent=11 // pred_check
        %p334 = pneg %p191
      $region38: #{quick_cnn_forward.1} parent=11 // pred_check_branch
        %336 = sbr.rel (%p334) target = $region40
      $region39: #{quick_cnn_forward.1} parent=11 // pred_region
        _
      $region40: #{quick_cnn_forward.1} parent=11 // pred_fallthru
        _
      // Predicated region
      $region41: #{quick_cnn_forward.1} parent=11 // pred_check
        %p337 = pneg %p212
      $region42: #{quick_cnn_forward.1} parent=11 // pred_check_branch
        %339 = sbr.rel (%p337) target = $region44
      $region43: #{quick_cnn_forward.1} parent=11 // pred_region
        _
      $region44: #{quick_cnn_forward.1} parent=11 // pred_fallthru
        _
      // Predicated region
      $region45: #{quick_cnn_forward.1} parent=11 // pred_check
        %p340 = pneg %p233
      $region46: #{quick_cnn_forward.1} parent=11 // pred_check_branch
        %342 = sbr.rel (%p340) target = $region48
      $region47: #{quick_cnn_forward.1} parent=11 // pred_region
        _
      $region48: #{quick_cnn_forward.1} parent=11 // pred_fallthru
        _
      // Predicated region
      $region49: #{quick_cnn_forward.1} parent=11 // pred_check
        %p343 = pneg %p254
      $region50: #{quick_cnn_forward.1} parent=11 // pred_check_branch
        %345 = sbr.rel (%p343) target = $region52
      $region51: #{quick_cnn_forward.1} parent=11 // pred_region
        _
      $region52: #{quick_cnn_forward.1} parent=11 // pred_fallthru
        _
      // Predicated region
      $region53: #{quick_cnn_forward.1} parent=11 // pred_check
        %p346 = pneg %p275
      $region54: #{quick_cnn_forward.1} parent=11 // pred_check_branch
        %348 = sbr.rel (%p346) target = $region56
      $region55: #{quick_cnn_forward.1} parent=11 // pred_region
        _
      $region56: #{quick_cnn_forward.1} parent=11 // pred_fallthru
        _
    $region12: #{quick_cnn_forward.1} parent=5 // pred_fallthru
      _
    %p349 = scmp.lt.s32.totalorder %s18, 2
    // Predicated region
    $region57: #{quick_cnn_forward.1} parent=5 // pred_check
      %p350 = pneg %p349
    $region58: #{quick_cnn_forward.1} parent=5 // pred_check_branch
      %352 = sbr.rel (%p350) target = $region60
    $region59: #{quick_cnn_forward.1} parent=5 // pred_region
      // Predicated region
      $region61: #{quick_cnn_forward.1} parent=59 // pred_check
        %p353 = pneg %p38
      $region62: #{quick_cnn_forward.1} parent=59 // pred_check_branch
        %355 = sbr.rel (%p353) target = $region64
      $region63: #{quick_cnn_forward.1} parent=59 // pred_region
        %p356 = scmp.lt.s32.totalorder %s18, 1
        %s357 = scalar_select %p356, %s18, 1
        %s358 = smul.addr %s357, 50
        %s359 = smul.addr %s358, 8
        %s360 = scalar_lea.vmem %s0, %s359
      $region64: #{quick_cnn_forward.1} parent=59 // pred_fallthru
        _
    $region60: #{quick_cnn_forward.1} parent=5 // pred_fallthru
      _
    %p361 = scmp.le.s32.totalorder 1, %s18
    %p362 = scmp.lt.s32.totalorder %s18, 3
    %p363 = pnand %p361, %p362
    %p364 = pneg %p363
    // Predicated region
    $region65: #{quick_cnn_forward.1} parent=5 // pred_check
      _
    $region66: #{quick_cnn_forward.1} parent=5 // pred_check_branch
      %366 = sbr.rel (%p363) target = $region68
    $region67: #{quick_cnn_forward.1} parent=5 // pred_region
      %s367 = ssub.s32 %s18, 1
      %p368 = scmp.lt.s32.totalorder %s23, 1
      %s369 = scalar_select %p368, %s23, 1
      %s370 = smul.addr %s369, 50
      %s371 = smul.addr %s370, 8
      %s372 = scalar_lea.vmem %s0, %s371
      %p373 = pneg %p44
      %p374 = pneg %p41
      %p375 = pneg %p65
      %p376 = pneg %p62
      %p377 = pneg %p86
      %p378 = pneg %p83
      %p379 = pneg %p107
      %p380 = pneg %p104
      %p381 = pneg %p128
      %p382 = pneg %p125
      %p383 = pneg %p149
      %p384 = pneg %p146
      %p385 = pneg %p170
      %p386 = pneg %p167
      %p387 = pneg %p191
      %p388 = pneg %p188
      %p389 = pneg %p212
      %p390 = pneg %p209
      %p391 = pneg %p233
      %p392 = pneg %p230
      %p393 = pneg %p254
      %p394 = pneg %p251
      %p395 = pneg %p275
      %p396 = pneg %p272
      %p397 = pneg %p301
      %p398 = pneg %p298
      %p399 = scmp.lt.s32.totalorder %s23, 1
      %s400 = scalar_select %p399, %s23, 1
      %s401 = smul.addr %s400, 42
      %s402 = smul.addr %s401, 8
      %s403 = scalar_lea.vmem %s12, %s402
      %p404 = scmp.lt.s32.totalorder %s23, 1
      %s405 = scalar_select %p404, %s23, 1
      %s406 = smul.addr %s405, 50
      %s407 = smul.addr %s406, 8
      %s408 = scalar_lea.vmem %s0, %s407
      %p409 = scmp.lt.s32.totalorder %s23, 1
      %s410 = scalar_select %p409, %s23, 1
      %s411 = smul.addr %s410, 42
      %s412 = smul.addr %s411, 8
      %s413 = scalar_lea.vmem %s12, %s412
      %414 = vst [vmem:[#allocation2] sm:$0xff] 0.0
      %415 = vst [vmem:[#allocation2 + $0x8] sm:$0xff] 0.0
      %416 = vst [vmem:[#allocation2 + $0x10] sm:$0xff] 0.0
      %417 = vst [vmem:[#allocation2 + $0x18] sm:$0xff] 0.0
      %418 = vst [vmem:[#allocation2 + $0x170] sm:$0xff] 0.0
      %419 = vst [vmem:[#allocation2 + $0x178] sm:$0xff] 0.0
      %420 = vst [vmem:[#allocation2 + $0x180] sm:$0xff] 0.0
      %421 = vst [vmem:[#allocation2 + $0x188] sm:$0xff] 0.0
      %422 = vst [vmem:[#allocation3] sm:$0xff] 0.0
      %423 = vst [vmem:[#allocation3 + $0x8] sm:$0xff] 0.0
      %424 = vst [vmem:[#allocation3 + $0x10] sm:$0xff] 0.0
      %425 = vst [vmem:[#allocation3 + $0x18] sm:$0xff] 0.0
      %426 = vst [vmem:[#allocation3 + $0x20] sm:$0xff] 0.0
      %427 = vst [vmem:[#allocation3 + $0x28] sm:$0xff] 0.0
      %428 = vst [vmem:[#allocation3 + $0x30] sm:$0xff] 0.0
      %429 = vst [vmem:[#allocation3 + $0x38] sm:$0xff] 0.0
      %430 = vst [vmem:[#allocation3 + $0x40] sm:$0xff] 0.0
      %431 = vst [vmem:[#allocation3 + $0x48] sm:$0xff] 0.0
      %432 = vst [vmem:[#allocation3 + $0x50] sm:$0xff] 0.0
      %433 = vst [vmem:[#allocation3 + $0x58] sm:$0xff] 0.0
      %434 = vst [vmem:[#allocation3 + $0x60] sm:$0xff] 0.0
      %435 = vst [vmem:[#allocation3 + $0x68] sm:$0xff] 0.0
      %436 = vst [vmem:[#allocation3 + $0x70] sm:$0xff] 0.0
      %437 = vst [vmem:[#allocation3 + $0x78] sm:$0xff] 0.0
      %438 = vst [vmem:[#allocation3 + $0x80] sm:$0xff] 0.0
      %439 = vst [vmem:[#allocation3 + $0x88] sm:$0xff] 0.0
      %440 = vst [vmem:[#allocation3 + $0x90] sm:$0xff] 0.0
      %441 = vst [vmem:[#allocation3 + $0x98] sm:$0xff] 0.0
      %442 = vst [vmem:[#allocation3 + $0xa0] sm:$0xff] 0.0
      %443 = vst [vmem:[#allocation3 + $0xa8] sm:$0xff] 0.0
      %444 = vst [vmem:[#allocation3 + $0xb0] sm:$0xff] 0.0
      %445 = vst [vmem:[#allocation3 + $0xb8] sm:$0xff] 0.0
      %446 = vst [vmem:[#allocation3 + $0xc0] sm:$0xff] 0.0
      %447 = vst [vmem:[#allocation3 + $0xc8] sm:$0xff] 0.0
      %448 = vst [vmem:[#allocation3 + $0xd0] sm:$0xff] 0.0
      %449 = vst [vmem:[#allocation3 + $0xd8] sm:$0xff] 0.0
      %450 = vst [vmem:[#allocation3 + $0xe0] sm:$0xff] 0.0
      %451 = vst [vmem:[#allocation3 + $0xe8] sm:$0xff] 0.0
      %452 = vst [vmem:[#allocation3 + $0xf0] sm:$0xff] 0.0
      %453 = vst [vmem:[#allocation3 + $0xf8] sm:$0xff] 0.0
      %454 = vst [vmem:[#allocation3 + $0x100] sm:$0xff] 0.0
      %455 = vst [vmem:[#allocation3 + $0x108] sm:$0xff] 0.0
      %456 = vst [vmem:[#allocation3 + $0x110] sm:$0xff] 0.0
      %457 = vst [vmem:[#allocation3 + $0x118] sm:$0xff] 0.0
      %458 = vst [vmem:[#allocation3 + $0x120] sm:$0xff] 0.0
      %459 = vst [vmem:[#allocation3 + $0x128] sm:$0xff] 0.0
      %460 = vst [vmem:[#allocation3 + $0x130] sm:$0xff] 0.0
      %461 = vst [vmem:[#allocation3 + $0x138] sm:$0xff] 0.0
      %462 = vst [vmem:[#allocation3 + $0x140] sm:$0xff] 0.0
      %463 = vst [vmem:[#allocation3 + $0x148] sm:$0xff] 0.0
      %464 = vst [vmem:[#allocation3 + $0x150] sm:$0xff] 0.0
      %465 = vst [vmem:[#allocation3 + $0x158] sm:$0xff] 0.0
      %466 = vst [vmem:[#allocation3 + $0x160] sm:$0xff] 0.0
      %467 = vst [vmem:[#allocation3 + $0x168] sm:$0xff] 0.0
      %468 = vst [vmem:[#allocation3 + $0x170] sm:$0xff] 0.0
      %469 = vst [vmem:[#allocation3 + $0x178] sm:$0xff] 0.0
      %470 = vst [vmem:[#allocation3 + $0x180] sm:$0xff] 0.0
      %471 = vst [vmem:[#allocation3 + $0x188] sm:$0xff] 0.0
      %472 = vst [vmem:[#allocation3 + $0x190] sm:$0xff] 0.0
      %473 = vst [vmem:[#allocation3 + $0x198] sm:$0xff] 0.0
      %474 = vst [vmem:[#allocation3 + $0x1a0] sm:$0xff] 0.0
      %475 = vst [vmem:[#allocation3 + $0x1a8] sm:$0xff] 0.0
      %476 = vst [vmem:[#allocation3 + $0x1b0] sm:$0xff] 0.0
      %477 = vst [vmem:[#allocation3 + $0x1b8] sm:$0xff] 0.0
      %478 = vst [vmem:[#allocation3 + $0x1c0] sm:$0xff] 0.0
      %479 = vst [vmem:[#allocation3 + $0x1c8] sm:$0xff] 0.0
      %480 = vst [vmem:[#allocation3 + $0x1d0] sm:$0xff] 0.0
      %481 = vst [vmem:[#allocation3 + $0x1d8] sm:$0xff] 0.0
      %482 = vst [vmem:[#allocation3 + $0x1e0] sm:$0xff] 0.0
      %483 = vst [vmem:[#allocation3 + $0x1e8] sm:$0xff] 0.0
      %484 = vst [vmem:[#allocation3 + $0x1f0] sm:$0xff] 0.0
      %485 = vst [vmem:[#allocation3 + $0x1f8] sm:$0xff] 0.0
      %486 = vst [vmem:[#allocation3 + $0x200] sm:$0xff] 0.0
      %487 = vst [vmem:[#allocation3 + $0x208] sm:$0xff] 0.0
      %488 = vst [vmem:[#allocation3 + $0x210] sm:$0xff] 0.0
      %489 = vst [vmem:[#allocation3 + $0x218] sm:$0xff] 0.0
      %490 = vst [vmem:[#allocation3 + $0x220] sm:$0xff] 0.0
      %491 = vst [vmem:[#allocation3 + $0x228] sm:$0xff] 0.0
      %492 = vst [vmem:[#allocation3 + $0x230] sm:$0xff] 0.0
      %493 = vst [vmem:[#allocation3 + $0x238] sm:$0xff] 0.0
      %494 = vst [vmem:[#allocation3 + $0x240] sm:$0xff] 0.0
      %495 = vst [vmem:[#allocation3 + $0x248] sm:$0xff] 0.0
      %496 = vst [vmem:[#allocation3 + $0x250] sm:$0xff] 0.0
      %497 = vst [vmem:[#allocation3 + $0x258] sm:$0xff] 0.0
      %498 = vst [vmem:[#allocation3 + $0x260] sm:$0xff] 0.0
      %499 = vst [vmem:[#allocation3 + $0x268] sm:$0xff] 0.0
      %500 = vst [vmem:[#allocation3 + $0x270] sm:$0xff] 0.0
      %501 = vst [vmem:[#allocation3 + $0x278] sm:$0xff] 0.0
      %502 = vst [vmem:[#allocation3 + $0x280] sm:$0xff] 0.0
      %503 = vst [vmem:[#allocation3 + $0x288] sm:$0xff] 0.0
      %504 = vst [vmem:[#allocation3 + $0x290] sm:$0xff] 0.0
      %505 = vst [vmem:[#allocation3 + $0x298] sm:$0xff] 0.0
      %v506 = vld [vmem:[%s1] sm:$0xff]
      %v507 = vld [vmem:[%s1 + $0x8] sm:$0xff]
      %v508 = vld [vmem:[%s1 + $0x10] sm:$0xff]
      %v509 = vld [vmem:[%s1 + $0x18] sm:$0xff]
      %v510 = vld [vmem:[%s1 + $0x20] sm:$0xff]
      %v511 = vld [vmem:[%s1 + $0x28] sm:$0xff]
      %v512 = vld [vmem:[%s1 + $0x30] sm:$0xff]
      %v513 = vld [vmem:[%s1 + $0x38] sm:$0xff]
      %v514 = vld [vmem:[%s1 + $0x40] sm:$0xff]
      %v515 = vld [vmem:[%s1 + $0x48] sm:$0xff]
      %v516 = vld [vmem:[%s1 + $0x50] sm:$0xff]
      %v517 = vld [vmem:[%s1 + $0x58] sm:$0xff]
      %v518 = vld [vmem:[%s1 + $0x60] sm:$0xff]
      %v519 = vld [vmem:[%s1 + $0x68] sm:$0xff]
      %v520 = vld [vmem:[%s1 + $0x70] sm:$0xff]
      %v521 = vld [vmem:[%s1 + $0x78] sm:$0xff]
      %v522 = vld [vmem:[%s1 + $0x80] sm:$0xff]
      %v523 = vld [vmem:[%s1 + $0x88] sm:$0xff]
      %v524 = vld [vmem:[%s1 + $0x90] sm:$0xff]
      %v525 = vld [vmem:[%s1 + $0x98] sm:$0xff]
      %v526 = vld [vmem:[%s1 + $0xa0] sm:$0xff]
      %v527 = vld [vmem:[%s1 + $0xa8] sm:$0xff]
      %v528 = vld [vmem:[%s1 + $0xb0] sm:$0xff]
      %v529 = vld [vmem:[%s1 + $0xb8] sm:$0xff]
      %v530 = vld [vmem:[%s1 + $0xc0] sm:$0xff]
      %v531 = vld [vmem:[%s1 + $0xc8] sm:$0xff]
      %v532 = vld [vmem:[%s1 + $0xd0] sm:$0xff]
      %v533 = vld [vmem:[%s1 + $0xd8] sm:$0xff]
      %v534 = vld [vmem:[%s1 + $0xe0] sm:$0xff]
      %v535 = vld [vmem:[%s1 + $0xe8] sm:$0xff]
      %v536 = vld [vmem:[%s1 + $0xf0] sm:$0xff]
      %v537 = vld [vmem:[%s1 + $0xf8] sm:$0xff]
      %v538 = vld [vmem:[%s1 + $0x100] sm:$0xff]
      %v539 = vld [vmem:[%s1 + $0x108] sm:$0xff]
      %v540 = vld [vmem:[%s1 + $0x110] sm:$0xff]
      %v541 = vld [vmem:[%s1 + $0x118] sm:$0xff]
      %v542 = vld [vmem:[%s1 + $0x120] sm:$0xff]
      %v543 = vld [vmem:[%s1 + $0x128] sm:$0xff]
      %v544 = vld [vmem:[%s1 + $0x130] sm:$0xff]
      %v545 = vld [vmem:[%s1 + $0x138] sm:$0xff]
      %v546 = vld [vmem:[%s1 + $0x140] sm:$0xff]
      %v547 = vld [vmem:[%s1 + $0x148] sm:$0xff]
      %549 = vset.pattern.permute.xlu0 0
      %550 = vperm.xlu0 %549, %v506
      %v551 = vpop.permute.xlu0 %550
      %554 = vset.pattern.permute.xlu0 0
      %555 = vperm.xlu0 %554, %v507
      %v556 = vpop.permute.xlu0 %555
      %559 = vset.pattern.permute.xlu0 0
      %560 = vperm.xlu0 %559, %v508
      %v561 = vpop.permute.xlu0 %560
      %564 = vset.pattern.permute.xlu0 0
      %565 = vperm.xlu0 %564, %v509
      %v566 = vpop.permute.xlu0 %565
      %569 = vset.pattern.permute.xlu0 0
      %570 = vperm.xlu0 %569, %v510
      %v571 = vpop.permute.xlu0 %570
      %574 = vset.pattern.permute.xlu0 0
      %575 = vperm.xlu0 %574, %v511
      %v576 = vpop.permute.xlu0 %575
      %579 = vset.pattern.permute.xlu0 0
      %580 = vperm.xlu0 %579, %v512
      %v581 = vpop.permute.xlu0 %580
      %584 = vset.pattern.permute.xlu0 0
      %585 = vperm.xlu0 %584, %v513
      %v586 = vpop.permute.xlu0 %585
      %589 = vset.pattern.permute.xlu0 0
      %590 = vperm.xlu0 %589, %v514
      %v591 = vpop.permute.xlu0 %590
      %594 = vset.pattern.permute.xlu0 0
      %595 = vperm.xlu0 %594, %v515
      %v596 = vpop.permute.xlu0 %595
      %599 = vset.pattern.permute.xlu0 0
      %600 = vperm.xlu0 %599, %v516
      %v601 = vpop.permute.xlu0 %600
      %604 = vset.pattern.permute.xlu0 0
      %605 = vperm.xlu0 %604, %v517
      %v606 = vpop.permute.xlu0 %605
      %609 = vset.pattern.permute.xlu0 0
      %610 = vperm.xlu0 %609, %v518
      %v611 = vpop.permute.xlu0 %610
      %614 = vset.pattern.permute.xlu0 0
      %615 = vperm.xlu0 %614, %v519
      %v616 = vpop.permute.xlu0 %615
      %619 = vset.pattern.permute.xlu0 0
      %620 = vperm.xlu0 %619, %v520
      %v621 = vpop.permute.xlu0 %620
      %624 = vset.pattern.permute.xlu0 0
      %625 = vperm.xlu0 %624, %v521
      %v626 = vpop.permute.xlu0 %625
      %629 = vset.pattern.permute.xlu0 0
      %630 = vperm.xlu0 %629, %v522
      %v631 = vpop.permute.xlu0 %630
      %634 = vset.pattern.permute.xlu0 0
      %635 = vperm.xlu0 %634, %v523
      %v636 = vpop.permute.xlu0 %635
      %639 = vset.pattern.permute.xlu0 0
      %640 = vperm.xlu0 %639, %v524
      %v641 = vpop.permute.xlu0 %640
      %644 = vset.pattern.permute.xlu0 0
      %645 = vperm.xlu0 %644, %v525
      %v646 = vpop.permute.xlu0 %645
      %649 = vset.pattern.permute.xlu0 0
      %650 = vperm.xlu0 %649, %v526
      %v651 = vpop.permute.xlu0 %650
      %654 = vset.pattern.permute.xlu0 0
      %655 = vperm.xlu0 %654, %v527
      %v656 = vpop.permute.xlu0 %655
      %659 = vset.pattern.permute.xlu0 0
      %660 = vperm.xlu0 %659, %v528
      %v661 = vpop.permute.xlu0 %660
      %664 = vset.pattern.permute.xlu0 0
      %665 = vperm.xlu0 %664, %v529
      %v666 = vpop.permute.xlu0 %665
      %669 = vset.pattern.permute.xlu0 0
      %670 = vperm.xlu0 %669, %v530
      %v671 = vpop.permute.xlu0 %670
      %674 = vset.pattern.permute.xlu0 0
      %675 = vperm.xlu0 %674, %v531
      %v676 = vpop.permute.xlu0 %675
      %679 = vset.pattern.permute.xlu0 0
      %680 = vperm.xlu0 %679, %v532
      %v681 = vpop.permute.xlu0 %680
      %684 = vset.pattern.permute.xlu0 0
      %685 = vperm.xlu0 %684, %v533
      %v686 = vpop.permute.xlu0 %685
      %689 = vset.pattern.permute.xlu0 0
      %690 = vperm.xlu0 %689, %v534
      %v691 = vpop.permute.xlu0 %690
      %694 = vset.pattern.permute.xlu0 0
      %695 = vperm.xlu0 %694, %v535
      %v696 = vpop.permute.xlu0 %695
      %699 = vset.pattern.permute.xlu0 0
      %700 = vperm.xlu0 %699, %v536
      %v701 = vpop.permute.xlu0 %700
      %704 = vset.pattern.permute.xlu0 0
      %705 = vperm.xlu0 %704, %v537
      %v706 = vpop.permute.xlu0 %705
      %709 = vset.pattern.permute.xlu0 0
      %710 = vperm.xlu0 %709, %v538
      %v711 = vpop.permute.xlu0 %710
      %714 = vset.pattern.permute.xlu0 0
      %715 = vperm.xlu0 %714, %v539
      %v716 = vpop.permute.xlu0 %715
      %719 = vset.pattern.permute.xlu0 0
      %720 = vperm.xlu0 %719, %v540
      %v721 = vpop.permute.xlu0 %720
      %724 = vset.pattern.permute.xlu0 0
      %725 = vperm.xlu0 %724, %v541
      %v726 = vpop.permute.xlu0 %725
      %729 = vset.pattern.permute.xlu0 0
      %730 = vperm.xlu0 %729, %v542
      %v731 = vpop.permute.xlu0 %730
      %734 = vset.pattern.permute.xlu0 0
      %735 = vperm.xlu0 %734, %v543
      %v736 = vpop.permute.xlu0 %735
      %739 = vset.pattern.permute.xlu0 0
      %740 = vperm.xlu0 %739, %v544
      %v741 = vpop.permute.xlu0 %740
      %744 = vset.pattern.permute.xlu0 0
      %745 = vperm.xlu0 %744, %v545
      %v746 = vpop.permute.xlu0 %745
      %749 = vset.pattern.permute.xlu0 0
      %750 = vperm.xlu0 %749, %v546
      %v751 = vpop.permute.xlu0 %750
      %754 = vset.pattern.permute.xlu0 0
      %755 = vperm.xlu0 %754, %v547
      %v756 = vpop.permute.xlu0 %755
      %vm758 = vcmp.gt.f32.partialorder %v551, 0.5
      %vm759 = vcmp.gt.f32.partialorder %v556, 0.5
      %vm760 = vcmp.gt.f32.partialorder %v561, 0.5
      %vm761 = vcmp.gt.f32.partialorder %v566, 0.5
      %vm762 = vcmp.gt.f32.partialorder %v571, 0.5
      %vm763 = vcmp.gt.f32.partialorder %v576, 0.5
      %vm764 = vcmp.gt.f32.partialorder %v581, 0.5
      %vm765 = vcmp.gt.f32.partialorder %v586, 0.5
      %vm766 = vcmp.gt.f32.partialorder %v591, 0.5
      %vm767 = vcmp.gt.f32.partialorder %v596, 0.5
      %vm768 = vcmp.gt.f32.partialorder %v601, 0.5
      %vm769 = vcmp.gt.f32.partialorder %v606, 0.5
      %vm770 = vcmp.gt.f32.partialorder %v611, 0.5
      %vm771 = vcmp.gt.f32.partialorder %v616, 0.5
      %vm772 = vcmp.gt.f32.partialorder %v621, 0.5
      %vm773 = vcmp.gt.f32.partialorder %v626, 0.5
      %vm774 = vcmp.gt.f32.partialorder %v631, 0.5
      %vm775 = vcmp.gt.f32.partialorder %v636, 0.5
      %vm776 = vcmp.gt.f32.partialorder %v641, 0.5
      %vm777 = vcmp.gt.f32.partialorder %v646, 0.5
      %vm778 = vcmp.gt.f32.partialorder %v651, 0.5
      %vm779 = vcmp.gt.f32.partialorder %v656, 0.5
      %vm780 = vcmp.gt.f32.partialorder %v661, 0.5
      %vm781 = vcmp.gt.f32.partialorder %v666, 0.5
      %vm782 = vcmp.gt.f32.partialorder %v671, 0.5
      %vm783 = vcmp.gt.f32.partialorder %v676, 0.5
      %vm784 = vcmp.gt.f32.partialorder %v681, 0.5
      %vm785 = vcmp.gt.f32.partialorder %v686, 0.5
      %vm786 = vcmp.gt.f32.partialorder %v691, 0.5
      %vm787 = vcmp.gt.f32.partialorder %v696, 0.5
      %vm788 = vcmp.gt.f32.partialorder %v701, 0.5
      %vm789 = vcmp.gt.f32.partialorder %v706, 0.5
      %vm790 = vcmp.gt.f32.partialorder %v711, 0.5
      %vm791 = vcmp.gt.f32.partialorder %v716, 0.5
      %vm792 = vcmp.gt.f32.partialorder %v721, 0.5
      %vm793 = vcmp.gt.f32.partialorder %v726, 0.5
      %vm794 = vcmp.gt.f32.partialorder %v731, 0.5
      %vm795 = vcmp.gt.f32.partialorder %v736, 0.5
      %vm796 = vcmp.gt.f32.partialorder %v741, 0.5
      %vm797 = vcmp.gt.f32.partialorder %v746, 0.5
      %vm798 = vcmp.gt.f32.partialorder %v751, 0.5
      %vm799 = vcmp.gt.f32.partialorder %v756, 0.5
      %v800 = vld [vmem:[%s408 + $0xd] sm:$0xff]
      %v801 = vld [vmem:[%s408 + $0x15] sm:$0xff]
      %v802 = vld [vmem:[%s408 + $0x1d] sm:$0xff]
      %v803 = vld [vmem:[%s408 + $0x25] sm:$0xff]
      %v804 = vld [vmem:[%s408 + $0x2d] sm:$0xff]
      %v805 = vld [vmem:[%s408 + $0x35] sm:$0xff]
      %v806 = vld [vmem:[%s408 + $0x3d] sm:$0xff]
      %v807 = vld [vmem:[%s408 + $0x45] sm:$0xff]
      %v808 = vld [vmem:[%s408 + $0x4d] sm:$0xff]
      %v809 = vld [vmem:[%s408 + $0x55] sm:$0xff]
      %v810 = vld [vmem:[%s408 + $0x5d] sm:$0xff]
      %v811 = vld [vmem:[%s408 + $0x65] sm:$0xff]
      %v812 = vld [vmem:[%s408 + $0x6d] sm:$0xff]
      %v813 = vld [vmem:[%s408 + $0x75] sm:$0xff]
      %v814 = vld [vmem:[%s408 + $0x7d] sm:$0xff]
      %v815 = vld [vmem:[%s408 + $0x85] sm:$0xff]
      %v816 = vld [vmem:[%s408 + $0x8d] sm:$0xff]
      %v817 = vld [vmem:[%s408 + $0x95] sm:$0xff]
      %v818 = vld [vmem:[%s408 + $0x9d] sm:$0xff]
      %v819 = vld [vmem:[%s408 + $0xa5] sm:$0xff]
      %v820 = vld [vmem:[%s408 + $0xad] sm:$0xff]
      %v821 = vld [vmem:[%s408 + $0xb5] sm:$0xff]
      %v822 = vld [vmem:[%s408 + $0xbd] sm:$0xff]
      %v823 = vld [vmem:[%s408 + $0xc5] sm:$0xff]
      %v824 = vld [vmem:[%s408 + $0xcd] sm:$0xff]
      %v825 = vld [vmem:[%s408 + $0xd5] sm:$0xff]
      %v826 = vld [vmem:[%s408 + $0xdd] sm:$0xff]
      %v827 = vld [vmem:[%s408 + $0xe5] sm:$0xff]
      %v828 = vld [vmem:[%s408 + $0xed] sm:$0xff]
      %v829 = vld [vmem:[%s408 + $0xf5] sm:$0xff]
      %v830 = vld [vmem:[%s408 + $0xfd] sm:$0xff]
      %v831 = vld [vmem:[%s408 + $0x105] sm:$0xff]
      %v832 = vld [vmem:[%s408 + $0x10d] sm:$0xff]
      %v833 = vld [vmem:[%s408 + $0x115] sm:$0xff]
      %v834 = vld [vmem:[%s408 + $0x11d] sm:$0xff]
      %v835 = vld [vmem:[%s408 + $0x125] sm:$0xff]
      %v836 = vld [vmem:[%s408 + $0x12d] sm:$0xff]
      %v837 = vld [vmem:[%s408 + $0x135] sm:$0xff]
      %v838 = vld [vmem:[%s408 + $0x13d] sm:$0xff]
      %v839 = vld [vmem:[%s408 + $0x145] sm:$0xff]
      %v840 = vld [vmem:[%s408 + $0x14d] sm:$0xff]
      %v841 = vld [vmem:[%s408 + $0x155] sm:$0xff]
      %vm842 = vcmask 31744
      %843 = vst.msk [vmem:[#allocation3] sm:$0xff] %vm842, %v800
      %844 = vst.msk [vmem:[#allocation3 + $0x10] sm:$0xff] %vm842, %v801
      %845 = vst.msk [vmem:[#allocation3 + $0x20] sm:$0xff] %vm842, %v802
      %846 = vst.msk [vmem:[#allocation3 + $0x30] sm:$0xff] %vm842, %v803
      %847 = vst.msk [vmem:[#allocation3 + $0x40] sm:$0xff] %vm842, %v804
      %848 = vst.msk [vmem:[#allocation3 + $0x50] sm:$0xff] %vm842, %v805
      %849 = vst.msk [vmem:[#allocation3 + $0x60] sm:$0xff] %vm842, %v806
      %850 = vst.msk [vmem:[#allocation3 + $0x70] sm:$0xff] %vm842, %v807
      %851 = vst.msk [vmem:[#allocation3 + $0x80] sm:$0xff] %vm842, %v808
      %852 = vst.msk [vmem:[#allocation3 + $0x90] sm:$0xff] %vm842, %v809
      %853 = vst.msk [vmem:[#allocation3 + $0xa0] sm:$0xff] %vm842, %v810
      %854 = vst.msk [vmem:[#allocation3 + $0xb0] sm:$0xff] %vm842, %v811
      %855 = vst.msk [vmem:[#allocation3 + $0xc0] sm:$0xff] %vm842, %v812
      %856 = vst.msk [vmem:[#allocation3 + $0xd0] sm:$0xff] %vm842, %v813
      %857 = vst.msk [vmem:[#allocation3 + $0xe0] sm:$0xff] %vm842, %v814
      %858 = vst.msk [vmem:[#allocation3 + $0xf0] sm:$0xff] %vm842, %v815
      %859 = vst.msk [vmem:[#allocation3 + $0x100] sm:$0xff] %vm842, %v816
      %860 = vst.msk [vmem:[#allocation3 + $0x110] sm:$0xff] %vm842, %v817
      %861 = vst.msk [vmem:[#allocation3 + $0x120] sm:$0xff] %vm842, %v818
      %862 = vst.msk [vmem:[#allocation3 + $0x130] sm:$0xff] %vm842, %v819
      %863 = vst.msk [vmem:[#allocation3 + $0x140] sm:$0xff] %vm842, %v820
      %864 = vst.msk [vmem:[#allocation3 + $0x150] sm:$0xff] %vm842, %v821
      %865 = vst.msk [vmem:[#allocation3 + $0x160] sm:$0xff] %vm842, %v822
      %866 = vst.msk [vmem:[#allocation3 + $0x170] sm:$0xff] %vm842, %v823
      %867 = vst.msk [vmem:[#allocation3 + $0x180] sm:$0xff] %vm842, %v824
      %868 = vst.msk [vmem:[#allocation3 + $0x190] sm:$0xff] %vm842, %v825
      %869 = vst.msk [vmem:[#allocation3 + $0x1a0] sm:$0xff] %vm842, %v826
      %870 = vst.msk [vmem:[#allocation3 + $0x1b0] sm:$0xff] %vm842, %v827
      %871 = vst.msk [vmem:[#allocation3 + $0x1c0] sm:$0xff] %vm842, %v828
      %872 = vst.msk [vmem:[#allocation3 + $0x1d0] sm:$0xff] %vm842, %v829
      %873 = vst.msk [vmem:[#allocation3 + $0x1e0] sm:$0xff] %vm842, %v830
      %874 = vst.msk [vmem:[#allocation3 + $0x1f0] sm:$0xff] %vm842, %v831
      %875 = vst.msk [vmem:[#allocation3 + $0x200] sm:$0xff] %vm842, %v832
      %876 = vst.msk [vmem:[#allocation3 + $0x210] sm:$0xff] %vm842, %v833
      %877 = vst.msk [vmem:[#allocation3 + $0x220] sm:$0xff] %vm842, %v834
      %878 = vst.msk [vmem:[#allocation3 + $0x230] sm:$0xff] %vm842, %v835
      %879 = vst.msk [vmem:[#allocation3 + $0x240] sm:$0xff] %vm842, %v836
      %880 = vst.msk [vmem:[#allocation3 + $0x250] sm:$0xff] %vm842, %v837
      %881 = vst.msk [vmem:[#allocation3 + $0x260] sm:$0xff] %vm842, %v838
      %882 = vst.msk [vmem:[#allocation3 + $0x270] sm:$0xff] %vm842, %v839
      %883 = vst.msk [vmem:[#allocation3 + $0x280] sm:$0xff] %vm842, %v840
      %884 = vst.msk [vmem:[#allocation3 + $0x290] sm:$0xff] %vm842, %v841
      %v885 = vld [vmem:[%s408 + $0xe] sm:$0xff]
      %v886 = vld [vmem:[%s408 + $0x16] sm:$0xff]
      %v887 = vld [vmem:[%s408 + $0x1e] sm:$0xff]
      %v888 = vld [vmem:[%s408 + $0x26] sm:$0xff]
      %v889 = vld [vmem:[%s408 + $0x2e] sm:$0xff]
      %v890 = vld [vmem:[%s408 + $0x36] sm:$0xff]
      %v891 = vld [vmem:[%s408 + $0x3e] sm:$0xff]
      %v892 = vld [vmem:[%s408 + $0x46] sm:$0xff]
      %v893 = vld [vmem:[%s408 + $0x4e] sm:$0xff]
      %v894 = vld [vmem:[%s408 + $0x56] sm:$0xff]
      %v895 = vld [vmem:[%s408 + $0x5e] sm:$0xff]
      %v896 = vld [vmem:[%s408 + $0x66] sm:$0xff]
      %v897 = vld [vmem:[%s408 + $0x6e] sm:$0xff]
      %v898 = vld [vmem:[%s408 + $0x76] sm:$0xff]
      %v899 = vld [vmem:[%s408 + $0x7e] sm:$0xff]
      %v900 = vld [vmem:[%s408 + $0x86] sm:$0xff]
      %v901 = vld [vmem:[%s408 + $0x8e] sm:$0xff]
      %v902 = vld [vmem:[%s408 + $0x96] sm:$0xff]
      %v903 = vld [vmem:[%s408 + $0x9e] sm:$0xff]
      %v904 = vld [vmem:[%s408 + $0xa6] sm:$0xff]
      %v905 = vld [vmem:[%s408 + $0xae] sm:$0xff]
      %v906 = vld [vmem:[%s408 + $0xb6] sm:$0xff]
      %v907 = vld [vmem:[%s408 + $0xbe] sm:$0xff]
      %v908 = vld [vmem:[%s408 + $0xc6] sm:$0xff]
      %v909 = vld [vmem:[%s408 + $0xce] sm:$0xff]
      %v910 = vld [vmem:[%s408 + $0xd6] sm:$0xff]
      %v911 = vld [vmem:[%s408 + $0xde] sm:$0xff]
      %v912 = vld [vmem:[%s408 + $0xe6] sm:$0xff]
      %v913 = vld [vmem:[%s408 + $0xee] sm:$0xff]
      %v914 = vld [vmem:[%s408 + $0xf6] sm:$0xff]
      %v915 = vld [vmem:[%s408 + $0xfe] sm:$0xff]
      %v916 = vld [vmem:[%s408 + $0x106] sm:$0xff]
      %v917 = vld [vmem:[%s408 + $0x10e] sm:$0xff]
      %v918 = vld [vmem:[%s408 + $0x116] sm:$0xff]
      %v919 = vld [vmem:[%s408 + $0x11e] sm:$0xff]
      %v920 = vld [vmem:[%s408 + $0x126] sm:$0xff]
      %v921 = vld [vmem:[%s408 + $0x12e] sm:$0xff]
      %v922 = vld [vmem:[%s408 + $0x136] sm:$0xff]
      %v923 = vld [vmem:[%s408 + $0x13e] sm:$0xff]
      %v924 = vld [vmem:[%s408 + $0x146] sm:$0xff]
      %v925 = vld [vmem:[%s408 + $0x14e] sm:$0xff]
      %v926 = vld [vmem:[%s408 + $0x156] sm:$0xff]
      %969 = vrot.lane.b32.xlu0 %v885, 4
      %v970 = vpop.permute.xlu0 %969
      %971 = vrot.lane.b32.xlu0 %v886, 4
      %v972 = vpop.permute.xlu0 %971
      %973 = vrot.lane.b32.xlu0 %v887, 4
      %v974 = vpop.permute.xlu0 %973
      %975 = vrot.lane.b32.xlu0 %v888, 4
      %v976 = vpop.permute.xlu0 %975
      %977 = vrot.lane.b32.xlu0 %v889, 4
      %v978 = vpop.permute.xlu0 %977
      %979 = vrot.lane.b32.xlu0 %v890, 4
      %v980 = vpop.permute.xlu0 %979
      %981 = vrot.lane.b32.xlu0 %v891, 4
      %v982 = vpop.permute.xlu0 %981
      %983 = vrot.lane.b32.xlu0 %v892, 4
      %v984 = vpop.permute.xlu0 %983
      %985 = vrot.lane.b32.xlu0 %v893, 4
      %v986 = vpop.permute.xlu0 %985
      %987 = vrot.lane.b32.xlu0 %v894, 4
      %v988 = vpop.permute.xlu0 %987
      %989 = vrot.lane.b32.xlu0 %v895, 4
      %v990 = vpop.permute.xlu0 %989
      %991 = vrot.lane.b32.xlu0 %v896, 4
      %v992 = vpop.permute.xlu0 %991
      %993 = vrot.lane.b32.xlu0 %v897, 4
      %v994 = vpop.permute.xlu0 %993
      %995 = vrot.lane.b32.xlu0 %v898, 4
      %v996 = vpop.permute.xlu0 %995
      %997 = vrot.lane.b32.xlu0 %v899, 4
      %v998 = vpop.permute.xlu0 %997
      %999 = vrot.lane.b32.xlu0 %v900, 4
      %v1000 = vpop.permute.xlu0 %999
      %1001 = vrot.lane.b32.xlu0 %v901, 4
      %v1002 = vpop.permute.xlu0 %1001
      %1003 = vrot.lane.b32.xlu0 %v902, 4
      %v1004 = vpop.permute.xlu0 %1003
      %1005 = vrot.lane.b32.xlu0 %v903, 4
      %v1006 = vpop.permute.xlu0 %1005
      %1007 = vrot.lane.b32.xlu0 %v904, 4
      %v1008 = vpop.permute.xlu0 %1007
      %1009 = vrot.lane.b32.xlu0 %v905, 4
      %v1010 = vpop.permute.xlu0 %1009
      %1011 = vrot.lane.b32.xlu0 %v906, 4
      %v1012 = vpop.permute.xlu0 %1011
      %1013 = vrot.lane.b32.xlu0 %v907, 4
      %v1014 = vpop.permute.xlu0 %1013
      %1015 = vrot.lane.b32.xlu0 %v908, 4
      %v1016 = vpop.permute.xlu0 %1015
      %1017 = vrot.lane.b32.xlu0 %v909, 4
      %v1018 = vpop.permute.xlu0 %1017
      %1019 = vrot.lane.b32.xlu0 %v910, 4
      %v1020 = vpop.permute.xlu0 %1019
      %1021 = vrot.lane.b32.xlu0 %v911, 4
      %v1022 = vpop.permute.xlu0 %1021
      %1023 = vrot.lane.b32.xlu0 %v912, 4
      %v1024 = vpop.permute.xlu0 %1023
      %1025 = vrot.lane.b32.xlu0 %v913, 4
      %v1026 = vpop.permute.xlu0 %1025
      %1027 = vrot.lane.b32.xlu0 %v914, 4
      %v1028 = vpop.permute.xlu0 %1027
      %1029 = vrot.lane.b32.xlu0 %v915, 4
      %v1030 = vpop.permute.xlu0 %1029
      %1031 = vrot.lane.b32.xlu0 %v916, 4
      %v1032 = vpop.permute.xlu0 %1031
      %1033 = vrot.lane.b32.xlu0 %v917, 4
      %v1034 = vpop.permute.xlu0 %1033
      %1035 = vrot.lane.b32.xlu0 %v918, 4
      %v1036 = vpop.permute.xlu0 %1035
      %1037 = vrot.lane.b32.xlu0 %v919, 4
      %v1038 = vpop.permute.xlu0 %1037
      %1039 = vrot.lane.b32.xlu0 %v920, 4
      %v1040 = vpop.permute.xlu0 %1039
      %1041 = vrot.lane.b32.xlu0 %v921, 4
      %v1042 = vpop.permute.xlu0 %1041
      %1043 = vrot.lane.b32.xlu0 %v922, 4
      %v1044 = vpop.permute.xlu0 %1043
      %1045 = vrot.lane.b32.xlu0 %v923, 4
      %v1046 = vpop.permute.xlu0 %1045
      %1047 = vrot.lane.b32.xlu0 %v924, 4
      %v1048 = vpop.permute.xlu0 %1047
      %1049 = vrot.lane.b32.xlu0 %v925, 4
      %v1050 = vpop.permute.xlu0 %1049
      %1051 = vrot.lane.b32.xlu0 %v926, 4
      %v1052 = vpop.permute.xlu0 %1051
      %vm1095 = vcmask 64544
      %1096 = vst.msk [vmem:[#allocation3] sm:$0xff] %vm1095, %v970
      %1097 = vst.msk [vmem:[#allocation3 + $0x10] sm:$0xff] %vm1095, %v972
      %1098 = vst.msk [vmem:[#allocation3 + $0x20] sm:$0xff] %vm1095, %v974
      %1099 = vst.msk [vmem:[#allocation3 + $0x30] sm:$0xff] %vm1095, %v976
      %1100 = vst.msk [vmem:[#allocation3 + $0x40] sm:$0xff] %vm1095, %v978
      %1101 = vst.msk [vmem:[#allocation3 + $0x50] sm:$0xff] %vm1095, %v980
      %1102 = vst.msk [vmem:[#allocation3 + $0x60] sm:$0xff] %vm1095, %v982
      %1103 = vst.msk [vmem:[#allocation3 + $0x70] sm:$0xff] %vm1095, %v984
      %1104 = vst.msk [vmem:[#allocation3 + $0x80] sm:$0xff] %vm1095, %v986
      %1105 = vst.msk [vmem:[#allocation3 + $0x90] sm:$0xff] %vm1095, %v988
      %1106 = vst.msk [vmem:[#allocation3 + $0xa0] sm:$0xff] %vm1095, %v990
      %1107 = vst.msk [vmem:[#allocation3 + $0xb0] sm:$0xff] %vm1095, %v992
      %1108 = vst.msk [vmem:[#allocation3 + $0xc0] sm:$0xff] %vm1095, %v994
      %1109 = vst.msk [vmem:[#allocation3 + $0xd0] sm:$0xff] %vm1095, %v996
      %1110 = vst.msk [vmem:[#allocation3 + $0xe0] sm:$0xff] %vm1095, %v998
      %1111 = vst.msk [vmem:[#allocation3 + $0xf0] sm:$0xff] %vm1095, %v1000
      %1112 = vst.msk [vmem:[#allocation3 + $0x100] sm:$0xff] %vm1095, %v1002
      %1113 = vst.msk [vmem:[#allocation3 + $0x110] sm:$0xff] %vm1095, %v1004
      %1114 = vst.msk [vmem:[#allocation3 + $0x120] sm:$0xff] %vm1095, %v1006
      %1115 = vst.msk [vmem:[#allocation3 + $0x130] sm:$0xff] %vm1095, %v1008
      %1116 = vst.msk [vmem:[#allocation3 + $0x140] sm:$0xff] %vm1095, %v1010
      %1117 = vst.msk [vmem:[#allocation3 + $0x150] sm:$0xff] %vm1095, %v1012
      %1118 = vst.msk [vmem:[#allocation3 + $0x160] sm:$0xff] %vm1095, %v1014
      %1119 = vst.msk [vmem:[#allocation3 + $0x170] sm:$0xff] %vm1095, %v1016
      %1120 = vst.msk [vmem:[#allocation3 + $0x180] sm:$0xff] %vm1095, %v1018
      %1121 = vst.msk [vmem:[#allocation3 + $0x190] sm:$0xff] %vm1095, %v1020
      %1122 = vst.msk [vmem:[#allocation3 + $0x1a0] sm:$0xff] %vm1095, %v1022
      %1123 = vst.msk [vmem:[#allocation3 + $0x1b0] sm:$0xff] %vm1095, %v1024
      %1124 = vst.msk [vmem:[#allocation3 + $0x1c0] sm:$0xff] %vm1095, %v1026
      %1125 = vst.msk [vmem:[#allocation3 + $0x1d0] sm:$0xff] %vm1095, %v1028
      %1126 = vst.msk [vmem:[#allocation3 + $0x1e0] sm:$0xff] %vm1095, %v1030
      %1127 = vst.msk [vmem:[#allocation3 + $0x1f0] sm:$0xff] %vm1095, %v1032
      %1128 = vst.msk [vmem:[#allocation3 + $0x200] sm:$0xff] %vm1095, %v1034
      %1129 = vst.msk [vmem:[#allocation3 + $0x210] sm:$0xff] %vm1095, %v1036
      %1130 = vst.msk [vmem:[#allocation3 + $0x220] sm:$0xff] %vm1095, %v1038
      %1131 = vst.msk [vmem:[#allocation3 + $0x230] sm:$0xff] %vm1095, %v1040
      %1132 = vst.msk [vmem:[#allocation3 + $0x240] sm:$0xff] %vm1095, %v1042
      %1133 = vst.msk [vmem:[#allocation3 + $0x250] sm:$0xff] %vm1095, %v1044
      %1134 = vst.msk [vmem:[#allocation3 + $0x260] sm:$0xff] %vm1095, %v1046
      %1135 = vst.msk [vmem:[#allocation3 + $0x270] sm:$0xff] %vm1095, %v1048
      %1136 = vst.msk [vmem:[#allocation3 + $0x280] sm:$0xff] %vm1095, %v1050
      %1137 = vst.msk [vmem:[#allocation3 + $0x290] sm:$0xff] %vm1095, %v1052
      %v1138 = vld [vmem:[%s408 + $0xf] sm:$0xff]
      %v1139 = vld [vmem:[%s408 + $0x17] sm:$0xff]
      %v1140 = vld [vmem:[%s408 + $0x1f] sm:$0xff]
      %v1141 = vld [vmem:[%s408 + $0x27] sm:$0xff]
      %v1142 = vld [vmem:[%s408 + $0x2f] sm:$0xff]
      %v1143 = vld [vmem:[%s408 + $0x37] sm:$0xff]
      %v1144 = vld [vmem:[%s408 + $0x3f] sm:$0xff]
      %v1145 = vld [vmem:[%s408 + $0x47] sm:$0xff]
      %v1146 = vld [vmem:[%s408 + $0x4f] sm:$0xff]
      %v1147 = vld [vmem:[%s408 + $0x57] sm:$0xff]
      %v1148 = vld [vmem:[%s408 + $0x5f] sm:$0xff]
      %v1149 = vld [vmem:[%s408 + $0x67] sm:$0xff]
      %v1150 = vld [vmem:[%s408 + $0x6f] sm:$0xff]
      %v1151 = vld [vmem:[%s408 + $0x77] sm:$0xff]
      %v1152 = vld [vmem:[%s408 + $0x7f] sm:$0xff]
      %v1153 = vld [vmem:[%s408 + $0x87] sm:$0xff]
      %v1154 = vld [vmem:[%s408 + $0x8f] sm:$0xff]
      %v1155 = vld [vmem:[%s408 + $0x97] sm:$0xff]
      %v1156 = vld [vmem:[%s408 + $0x9f] sm:$0xff]
      %v1157 = vld [vmem:[%s408 + $0xa7] sm:$0xff]
      %v1158 = vld [vmem:[%s408 + $0xaf] sm:$0xff]
      %v1159 = vld [vmem:[%s408 + $0xb7] sm:$0xff]
      %v1160 = vld [vmem:[%s408 + $0xbf] sm:$0xff]
      %v1161 = vld [vmem:[%s408 + $0xc7] sm:$0xff]
      %v1162 = vld [vmem:[%s408 + $0xcf] sm:$0xff]
      %v1163 = vld [vmem:[%s408 + $0xd7] sm:$0xff]
      %v1164 = vld [vmem:[%s408 + $0xdf] sm:$0xff]
      %v1165 = vld [vmem:[%s408 + $0xe7] sm:$0xff]
      %v1166 = vld [vmem:[%s408 + $0xef] sm:$0xff]
      %v1167 = vld [vmem:[%s408 + $0xf7] sm:$0xff]
      %v1168 = vld [vmem:[%s408 + $0xff] sm:$0xff]
      %v1169 = vld [vmem:[%s408 + $0x107] sm:$0xff]
      %v1170 = vld [vmem:[%s408 + $0x10f] sm:$0xff]
      %v1171 = vld [vmem:[%s408 + $0x117] sm:$0xff]
      %v1172 = vld [vmem:[%s408 + $0x11f] sm:$0xff]
      %v1173 = vld [vmem:[%s408 + $0x127] sm:$0xff]
      %v1174 = vld [vmem:[%s408 + $0x12f] sm:$0xff]
      %v1175 = vld [vmem:[%s408 + $0x137] sm:$0xff]
      %v1176 = vld [vmem:[%s408 + $0x13f] sm:$0xff]
      %v1177 = vld [vmem:[%s408 + $0x147] sm:$0xff]
      %v1178 = vld [vmem:[%s408 + $0x14f] sm:$0xff]
      %v1179 = vld [vmem:[%s408 + $0x157] sm:$0xff]
      %1222 = vrot.lane.b32.xlu0 %v1138, 8
      %v1223 = vpop.permute.xlu0 %1222
      %1224 = vrot.lane.b32.xlu0 %v1139, 8
      %v1225 = vpop.permute.xlu0 %1224
      %1226 = vrot.lane.b32.xlu0 %v1140, 8
      %v1227 = vpop.permute.xlu0 %1226
      %1228 = vrot.lane.b32.xlu0 %v1141, 8
      %v1229 = vpop.permute.xlu0 %1228
      %1230 = vrot.lane.b32.xlu0 %v1142, 8
      %v1231 = vpop.permute.xlu0 %1230
      %1232 = vrot.lane.b32.xlu0 %v1143, 8
      %v1233 = vpop.permute.xlu0 %1232
      %1234 = vrot.lane.b32.xlu0 %v1144, 8
      %v1235 = vpop.permute.xlu0 %1234
      %1236 = vrot.lane.b32.xlu0 %v1145, 8
      %v1237 = vpop.permute.xlu0 %1236
      %1238 = vrot.lane.b32.xlu0 %v1146, 8
      %v1239 = vpop.permute.xlu0 %1238
      %1240 = vrot.lane.b32.xlu0 %v1147, 8
      %v1241 = vpop.permute.xlu0 %1240
      %1242 = vrot.lane.b32.xlu0 %v1148, 8
      %v1243 = vpop.permute.xlu0 %1242
      %1244 = vrot.lane.b32.xlu0 %v1149, 8
      %v1245 = vpop.permute.xlu0 %1244
      %1246 = vrot.lane.b32.xlu0 %v1150, 8
      %v1247 = vpop.permute.xlu0 %1246
      %1248 = vrot.lane.b32.xlu0 %v1151, 8
      %v1249 = vpop.permute.xlu0 %1248
      %1250 = vrot.lane.b32.xlu0 %v1152, 8
      %v1251 = vpop.permute.xlu0 %1250
      %1252 = vrot.lane.b32.xlu0 %v1153, 8
      %v1253 = vpop.permute.xlu0 %1252
      %1254 = vrot.lane.b32.xlu0 %v1154, 8
      %v1255 = vpop.permute.xlu0 %1254
      %1256 = vrot.lane.b32.xlu0 %v1155, 8
      %v1257 = vpop.permute.xlu0 %1256
      %1258 = vrot.lane.b32.xlu0 %v1156, 8
      %v1259 = vpop.permute.xlu0 %1258
      %1260 = vrot.lane.b32.xlu0 %v1157, 8
      %v1261 = vpop.permute.xlu0 %1260
      %1262 = vrot.lane.b32.xlu0 %v1158, 8
      %v1263 = vpop.permute.xlu0 %1262
      %1264 = vrot.lane.b32.xlu0 %v1159, 8
      %v1265 = vpop.permute.xlu0 %1264
      %1266 = vrot.lane.b32.xlu0 %v1160, 8
      %v1267 = vpop.permute.xlu0 %1266
      %1268 = vrot.lane.b32.xlu0 %v1161, 8
      %v1269 = vpop.permute.xlu0 %1268
      %1270 = vrot.lane.b32.xlu0 %v1162, 8
      %v1271 = vpop.permute.xlu0 %1270
      %1272 = vrot.lane.b32.xlu0 %v1163, 8
      %v1273 = vpop.permute.xlu0 %1272
      %1274 = vrot.lane.b32.xlu0 %v1164, 8
      %v1275 = vpop.permute.xlu0 %1274
      %1276 = vrot.lane.b32.xlu0 %v1165, 8
      %v1277 = vpop.permute.xlu0 %1276
      %1278 = vrot.lane.b32.xlu0 %v1166, 8
      %v1279 = vpop.permute.xlu0 %1278
      %1280 = vrot.lane.b32.xlu0 %v1167, 8
      %v1281 = vpop.permute.xlu0 %1280
      %1282 = vrot.lane.b32.xlu0 %v1168, 8
      %v1283 = vpop.permute.xlu0 %1282
      %1284 = vrot.lane.b32.xlu0 %v1169, 8
      %v1285 = vpop.permute.xlu0 %1284
      %1286 = vrot.lane.b32.xlu0 %v1170, 8
      %v1287 = vpop.permute.xlu0 %1286
      %1288 = vrot.lane.b32.xlu0 %v1171, 8
      %v1289 = vpop.permute.xlu0 %1288
      %1290 = vrot.lane.b32.xlu0 %v1172, 8
      %v1291 = vpop.permute.xlu0 %1290
      %1292 = vrot.lane.b32.xlu0 %v1173, 8
      %v1293 = vpop.permute.xlu0 %1292
      %1294 = vrot.lane.b32.xlu0 %v1174, 8
      %v1295 = vpop.permute.xlu0 %1294
      %1296 = vrot.lane.b32.xlu0 %v1175, 8
      %v1297 = vpop.permute.xlu0 %1296
      %1298 = vrot.lane.b32.xlu0 %v1176, 8
      %v1299 = vpop.permute.xlu0 %1298
      %1300 = vrot.lane.b32.xlu0 %v1177, 8
      %v1301 = vpop.permute.xlu0 %1300
      %1302 = vrot.lane.b32.xlu0 %v1178, 8
      %v1303 = vpop.permute.xlu0 %1302
      %1304 = vrot.lane.b32.xlu0 %v1179, 8
      %v1305 = vpop.permute.xlu0 %1304
      %vm1348 = vcmask 97344
      %1349 = vst.msk [vmem:[#allocation3] sm:$0xff] %vm1348, %v1223
      %1350 = vst.msk [vmem:[#allocation3 + $0x10] sm:$0xff] %vm1348, %v1225
      %1351 = vst.msk [vmem:[#allocation3 + $0x20] sm:$0xff] %vm1348, %v1227
      %1352 = vst.msk [vmem:[#allocation3 + $0x30] sm:$0xff] %vm1348, %v1229
      %1353 = vst.msk [vmem:[#allocation3 + $0x40] sm:$0xff] %vm1348, %v1231
      %1354 = vst.msk [vmem:[#allocation3 + $0x50] sm:$0xff] %vm1348, %v1233
      %1355 = vst.msk [vmem:[#allocation3 + $0x60] sm:$0xff] %vm1348, %v1235
      %1356 = vst.msk [vmem:[#allocation3 + $0x70] sm:$0xff] %vm1348, %v1237
      %1357 = vst.msk [vmem:[#allocation3 + $0x80] sm:$0xff] %vm1348, %v1239
      %1358 = vst.msk [vmem:[#allocation3 + $0x90] sm:$0xff] %vm1348, %v1241
      %1359 = vst.msk [vmem:[#allocation3 + $0xa0] sm:$0xff] %vm1348, %v1243
      %1360 = vst.msk [vmem:[#allocation3 + $0xb0] sm:$0xff] %vm1348, %v1245
      %1361 = vst.msk [vmem:[#allocation3 + $0xc0] sm:$0xff] %vm1348, %v1247
      %1362 = vst.msk [vmem:[#allocation3 + $0xd0] sm:$0xff] %vm1348, %v1249
      %1363 = vst.msk [vmem:[#allocation3 + $0xe0] sm:$0xff] %vm1348, %v1251
      %1364 = vst.msk [vmem:[#allocation3 + $0xf0] sm:$0xff] %vm1348, %v1253
      %1365 = vst.msk [vmem:[#allocation3 + $0x100] sm:$0xff] %vm1348, %v1255
      %1366 = vst.msk [vmem:[#allocation3 + $0x110] sm:$0xff] %vm1348, %v1257
      %1367 = vst.msk [vmem:[#allocation3 + $0x120] sm:$0xff] %vm1348, %v1259
      %1368 = vst.msk [vmem:[#allocation3 + $0x130] sm:$0xff] %vm1348, %v1261
      %1369 = vst.msk [vmem:[#allocation3 + $0x140] sm:$0xff] %vm1348, %v1263
      %1370 = vst.msk [vmem:[#allocation3 + $0x150] sm:$0xff] %vm1348, %v1265
      %1371 = vst.msk [vmem:[#allocation3 + $0x160] sm:$0xff] %vm1348, %v1267
      %1372 = vst.msk [vmem:[#allocation3 + $0x170] sm:$0xff] %vm1348, %v1269
      %1373 = vst.msk [vmem:[#allocation3 + $0x180] sm:$0xff] %vm1348, %v1271
      %1374 = vst.msk [vmem:[#allocation3 + $0x190] sm:$0xff] %vm1348, %v1273
      %1375 = vst.msk [vmem:[#allocation3 + $0x1a0] sm:$0xff] %vm1348, %v1275
      %1376 = vst.msk [vmem:[#allocation3 + $0x1b0] sm:$0xff] %vm1348, %v1277
      %1377 = vst.msk [vmem:[#allocation3 + $0x1c0] sm:$0xff] %vm1348, %v1279
      %1378 = vst.msk [vmem:[#allocation3 + $0x1d0] sm:$0xff] %vm1348, %v1281
      %1379 = vst.msk [vmem:[#allocation3 + $0x1e0] sm:$0xff] %vm1348, %v1283
      %1380 = vst.msk [vmem:[#allocation3 + $0x1f0] sm:$0xff] %vm1348, %v1285
      %1381 = vst.msk [vmem:[#allocation3 + $0x200] sm:$0xff] %vm1348, %v1287
      %1382 = vst.msk [vmem:[#allocation3 + $0x210] sm:$0xff] %vm1348, %v1289
      %1383 = vst.msk [vmem:[#allocation3 + $0x220] sm:$0xff] %vm1348, %v1291
      %1384 = vst.msk [vmem:[#allocation3 + $0x230] sm:$0xff] %vm1348, %v1293
      %1385 = vst.msk [vmem:[#allocation3 + $0x240] sm:$0xff] %vm1348, %v1295
      %1386 = vst.msk [vmem:[#allocation3 + $0x250] sm:$0xff] %vm1348, %v1297
      %1387 = vst.msk [vmem:[#allocation3 + $0x260] sm:$0xff] %vm1348, %v1299
      %1388 = vst.msk [vmem:[#allocation3 + $0x270] sm:$0xff] %vm1348, %v1301
      %1389 = vst.msk [vmem:[#allocation3 + $0x280] sm:$0xff] %vm1348, %v1303
      %1390 = vst.msk [vmem:[#allocation3 + $0x290] sm:$0xff] %vm1348, %v1305
      %v1391 = vld [vmem:[%s408 + $0x1f] sm:$0xff]
      %v1392 = vld [vmem:[%s408 + $0x27] sm:$0xff]
      %v1393 = vld [vmem:[%s408 + $0x2f] sm:$0xff]
      %v1394 = vld [vmem:[%s408 + $0x37] sm:$0xff]
      %v1395 = vld [vmem:[%s408 + $0x3f] sm:$0xff]
      %v1396 = vld [vmem:[%s408 + $0x47] sm:$0xff]
      %v1397 = vld [vmem:[%s408 + $0x4f] sm:$0xff]
      %v1398 = vld [vmem:[%s408 + $0x57] sm:$0xff]
      %v1399 = vld [vmem:[%s408 + $0x5f] sm:$0xff]
      %v1400 = vld [vmem:[%s408 + $0x67] sm:$0xff]
      %v1401 = vld [vmem:[%s408 + $0x6f] sm:$0xff]
      %v1402 = vld [vmem:[%s408 + $0x77] sm:$0xff]
      %v1403 = vld [vmem:[%s408 + $0x7f] sm:$0xff]
      %v1404 = vld [vmem:[%s408 + $0x87] sm:$0xff]
      %v1405 = vld [vmem:[%s408 + $0x8f] sm:$0xff]
      %v1406 = vld [vmem:[%s408 + $0x97] sm:$0xff]
      %v1407 = vld [vmem:[%s408 + $0x9f] sm:$0xff]
      %v1408 = vld [vmem:[%s408 + $0xa7] sm:$0xff]
      %v1409 = vld [vmem:[%s408 + $0xaf] sm:$0xff]
      %v1410 = vld [vmem:[%s408 + $0xb7] sm:$0xff]
      %v1411 = vld [vmem:[%s408 + $0xbf] sm:$0xff]
      %v1412 = vld [vmem:[%s408 + $0xc7] sm:$0xff]
      %v1413 = vld [vmem:[%s408 + $0xcf] sm:$0xff]
      %v1414 = vld [vmem:[%s408 + $0xd7] sm:$0xff]
      %v1415 = vld [vmem:[%s408 + $0xdf] sm:$0xff]
      %v1416 = vld [vmem:[%s408 + $0xe7] sm:$0xff]
      %v1417 = vld [vmem:[%s408 + $0xef] sm:$0xff]
      %v1418 = vld [vmem:[%s408 + $0xf7] sm:$0xff]
      %v1419 = vld [vmem:[%s408 + $0xff] sm:$0xff]
      %v1420 = vld [vmem:[%s408 + $0x107] sm:$0xff]
      %v1421 = vld [vmem:[%s408 + $0x10f] sm:$0xff]
      %v1422 = vld [vmem:[%s408 + $0x117] sm:$0xff]
      %v1423 = vld [vmem:[%s408 + $0x11f] sm:$0xff]
      %v1424 = vld [vmem:[%s408 + $0x127] sm:$0xff]
      %v1425 = vld [vmem:[%s408 + $0x12f] sm:$0xff]
      %v1426 = vld [vmem:[%s408 + $0x137] sm:$0xff]
      %v1427 = vld [vmem:[%s408 + $0x13f] sm:$0xff]
      %v1428 = vld [vmem:[%s408 + $0x147] sm:$0xff]
      %v1429 = vld [vmem:[%s408 + $0x14f] sm:$0xff]
      %v1430 = vld [vmem:[%s408 + $0x157] sm:$0xff]
      %v1431 = vld [vmem:[%s408 + $0x15f] sm:$0xff]
      %v1432 = vld [vmem:[%s408 + $0x167] sm:$0xff]
      %1475 = vrot.lane.b32.xlu0 %v1391, 12
      %v1476 = vpop.permute.xlu0 %1475
      %1477 = vrot.lane.b32.xlu0 %v1392, 12
      %v1478 = vpop.permute.xlu0 %1477
      %1479 = vrot.lane.b32.xlu0 %v1393, 12
      %v1480 = vpop.permute.xlu0 %1479
      %1481 = vrot.lane.b32.xlu0 %v1394, 12
      %v1482 = vpop.permute.xlu0 %1481
      %1483 = vrot.lane.b32.xlu0 %v1395, 12
      %v1484 = vpop.permute.xlu0 %1483
      %1485 = vrot.lane.b32.xlu0 %v1396, 12
      %v1486 = vpop.permute.xlu0 %1485
      %1487 = vrot.lane.b32.xlu0 %v1397, 12
      %v1488 = vpop.permute.xlu0 %1487
      %1489 = vrot.lane.b32.xlu0 %v1398, 12
      %v1490 = vpop.permute.xlu0 %1489
      %1491 = vrot.lane.b32.xlu0 %v1399, 12
      %v1492 = vpop.permute.xlu0 %1491
      %1493 = vrot.lane.b32.xlu0 %v1400, 12
      %v1494 = vpop.permute.xlu0 %1493
      %1495 = vrot.lane.b32.xlu0 %v1401, 12
      %v1496 = vpop.permute.xlu0 %1495
      %1497 = vrot.lane.b32.xlu0 %v1402, 12
      %v1498 = vpop.permute.xlu0 %1497
      %1499 = vrot.lane.b32.xlu0 %v1403, 12
      %v1500 = vpop.permute.xlu0 %1499
      %1501 = vrot.lane.b32.xlu0 %v1404, 12
      %v1502 = vpop.permute.xlu0 %1501
      %1503 = vrot.lane.b32.xlu0 %v1405, 12
      %v1504 = vpop.permute.xlu0 %1503
      %1505 = vrot.lane.b32.xlu0 %v1406, 12
      %v1506 = vpop.permute.xlu0 %1505
      %1507 = vrot.lane.b32.xlu0 %v1407, 12
      %v1508 = vpop.permute.xlu0 %1507
      %1509 = vrot.lane.b32.xlu0 %v1408, 12
      %v1510 = vpop.permute.xlu0 %1509
      %1511 = vrot.lane.b32.xlu0 %v1409, 12
      %v1512 = vpop.permute.xlu0 %1511
      %1513 = vrot.lane.b32.xlu0 %v1410, 12
      %v1514 = vpop.permute.xlu0 %1513
      %1515 = vrot.lane.b32.xlu0 %v1411, 12
      %v1516 = vpop.permute.xlu0 %1515
      %1517 = vrot.lane.b32.xlu0 %v1412, 12
      %v1518 = vpop.permute.xlu0 %1517
      %1519 = vrot.lane.b32.xlu0 %v1413, 12
      %v1520 = vpop.permute.xlu0 %1519
      %1521 = vrot.lane.b32.xlu0 %v1414, 12
      %v1522 = vpop.permute.xlu0 %1521
      %1523 = vrot.lane.b32.xlu0 %v1415, 12
      %v1524 = vpop.permute.xlu0 %1523
      %1525 = vrot.lane.b32.xlu0 %v1416, 12
      %v1526 = vpop.permute.xlu0 %1525
      %1527 = vrot.lane.b32.xlu0 %v1417, 12
      %v1528 = vpop.permute.xlu0 %1527
      %1529 = vrot.lane.b32.xlu0 %v1418, 12
      %v1530 = vpop.permute.xlu0 %1529
      %1531 = vrot.lane.b32.xlu0 %v1419, 12
      %v1532 = vpop.permute.xlu0 %1531
      %1533 = vrot.lane.b32.xlu0 %v1420, 12
      %v1534 = vpop.permute.xlu0 %1533
      %1535 = vrot.lane.b32.xlu0 %v1421, 12
      %v1536 = vpop.permute.xlu0 %1535
      %1537 = vrot.lane.b32.xlu0 %v1422, 12
      %v1538 = vpop.permute.xlu0 %1537
      %1539 = vrot.lane.b32.xlu0 %v1423, 12
      %v1540 = vpop.permute.xlu0 %1539
      %1541 = vrot.lane.b32.xlu0 %v1424, 12
      %v1542 = vpop.permute.xlu0 %1541
      %1543 = vrot.lane.b32.xlu0 %v1425, 12
      %v1544 = vpop.permute.xlu0 %1543
      %1545 = vrot.lane.b32.xlu0 %v1426, 12
      %v1546 = vpop.permute.xlu0 %1545
      %1547 = vrot.lane.b32.xlu0 %v1427, 12
      %v1548 = vpop.permute.xlu0 %1547
      %1549 = vrot.lane.b32.xlu0 %v1428, 12
      %v1550 = vpop.permute.xlu0 %1549
      %1551 = vrot.lane.b32.xlu0 %v1429, 12
      %v1552 = vpop.permute.xlu0 %1551
      %1553 = vrot.lane.b32.xlu0 %v1430, 12
      %v1554 = vpop.permute.xlu0 %1553
      %1555 = vrot.lane.b32.xlu0 %v1431, 12
      %v1556 = vpop.permute.xlu0 %1555
      %1557 = vrot.lane.b32.xlu0 %v1432, 12
      %v1558 = vpop.permute.xlu0 %1557
      %vm1601 = vcmask 130144
      %1602 = vst.msk [vmem:[#allocation3] sm:$0xff] %vm1601, %v1476
      %1603 = vst.msk [vmem:[#allocation3 + $0x10] sm:$0xff] %vm1601, %v1478
      %1604 = vst.msk [vmem:[#allocation3 + $0x20] sm:$0xff] %vm1601, %v1480
      %1605 = vst.msk [vmem:[#allocation3 + $0x30] sm:$0xff] %vm1601, %v1482
      %1606 = vst.msk [vmem:[#allocation3 + $0x40] sm:$0xff] %vm1601, %v1484
      %1607 = vst.msk [vmem:[#allocation3 + $0x50] sm:$0xff] %vm1601, %v1486
      %1608 = vst.msk [vmem:[#allocation3 + $0x60] sm:$0xff] %vm1601, %v1488
      %1609 = vst.msk [vmem:[#allocation3 + $0x70] sm:$0xff] %vm1601, %v1490
      %1610 = vst.msk [vmem:[#allocation3 + $0x80] sm:$0xff] %vm1601, %v1492
      %1611 = vst.msk [vmem:[#allocation3 + $0x90] sm:$0xff] %vm1601, %v1494
      %1612 = vst.msk [vmem:[#allocation3 + $0xa0] sm:$0xff] %vm1601, %v1496
      %1613 = vst.msk [vmem:[#allocation3 + $0xb0] sm:$0xff] %vm1601, %v1498
      %1614 = vst.msk [vmem:[#allocation3 + $0xc0] sm:$0xff] %vm1601, %v1500
      %1615 = vst.msk [vmem:[#allocation3 + $0xd0] sm:$0xff] %vm1601, %v1502
      %1616 = vst.msk [vmem:[#allocation3 + $0xe0] sm:$0xff] %vm1601, %v1504
      %1617 = vst.msk [vmem:[#allocation3 + $0xf0] sm:$0xff] %vm1601, %v1506
      %1618 = vst.msk [vmem:[#allocation3 + $0x100] sm:$0xff] %vm1601, %v1508
      %1619 = vst.msk [vmem:[#allocation3 + $0x110] sm:$0xff] %vm1601, %v1510
      %1620 = vst.msk [vmem:[#allocation3 + $0x120] sm:$0xff] %vm1601, %v1512
      %1621 = vst.msk [vmem:[#allocation3 + $0x130] sm:$0xff] %vm1601, %v1514
      %1622 = vst.msk [vmem:[#allocation3 + $0x140] sm:$0xff] %vm1601, %v1516
      %1623 = vst.msk [vmem:[#allocation3 + $0x150] sm:$0xff] %vm1601, %v1518
      %1624 = vst.msk [vmem:[#allocation3 + $0x160] sm:$0xff] %vm1601, %v1520
      %1625 = vst.msk [vmem:[#allocation3 + $0x170] sm:$0xff] %vm1601, %v1522
      %1626 = vst.msk [vmem:[#allocation3 + $0x180] sm:$0xff] %vm1601, %v1524
      %1627 = vst.msk [vmem:[#allocation3 + $0x190] sm:$0xff] %vm1601, %v1526
      %1628 = vst.msk [vmem:[#allocation3 + $0x1a0] sm:$0xff] %vm1601, %v1528
      %1629 = vst.msk [vmem:[#allocation3 + $0x1b0] sm:$0xff] %vm1601, %v1530
      %1630 = vst.msk [vmem:[#allocation3 + $0x1c0] sm:$0xff] %vm1601, %v1532
      %1631 = vst.msk [vmem:[#allocation3 + $0x1d0] sm:$0xff] %vm1601, %v1534
      %1632 = vst.msk [vmem:[#allocation3 + $0x1e0] sm:$0xff] %vm1601, %v1536
      %1633 = vst.msk [vmem:[#allocation3 + $0x1f0] sm:$0xff] %vm1601, %v1538
      %1634 = vst.msk [vmem:[#allocation3 + $0x200] sm:$0xff] %vm1601, %v1540
      %1635 = vst.msk [vmem:[#allocation3 + $0x210] sm:$0xff] %vm1601, %v1542
      %1636 = vst.msk [vmem:[#allocation3 + $0x220] sm:$0xff] %vm1601, %v1544
      %1637 = vst.msk [vmem:[#allocation3 + $0x230] sm:$0xff] %vm1601, %v1546
      %1638 = vst.msk [vmem:[#allocation3 + $0x240] sm:$0xff] %vm1601, %v1548
      %1639 = vst.msk [vmem:[#allocation3 + $0x250] sm:$0xff] %vm1601, %v1550
      %1640 = vst.msk [vmem:[#allocation3 + $0x260] sm:$0xff] %vm1601, %v1552
      %1641 = vst.msk [vmem:[#allocation3 + $0x270] sm:$0xff] %vm1601, %v1554
      %1642 = vst.msk [vmem:[#allocation3 + $0x280] sm:$0xff] %vm1601, %v1556
      %1643 = vst.msk [vmem:[#allocation3 + $0x290] sm:$0xff] %vm1601, %v1558
      %v1644 = vld [vmem:[%s408 + $0x20] sm:$0xff]
      %v1645 = vld [vmem:[%s408 + $0x28] sm:$0xff]
      %v1646 = vld [vmem:[%s408 + $0x30] sm:$0xff]
      %v1647 = vld [vmem:[%s408 + $0x38] sm:$0xff]
      %v1648 = vld [vmem:[%s408 + $0x40] sm:$0xff]
      %v1649 = vld [vmem:[%s408 + $0x48] sm:$0xff]
      %v1650 = vld [vmem:[%s408 + $0x50] sm:$0xff]
      %v1651 = vld [vmem:[%s408 + $0x58] sm:$0xff]
      %v1652 = vld [vmem:[%s408 + $0x60] sm:$0xff]
      %v1653 = vld [vmem:[%s408 + $0x68] sm:$0xff]
      %v1654 = vld [vmem:[%s408 + $0x70] sm:$0xff]
      %v1655 = vld [vmem:[%s408 + $0x78] sm:$0xff]
      %v1656 = vld [vmem:[%s408 + $0x80] sm:$0xff]
      %v1657 = vld [vmem:[%s408 + $0x88] sm:$0xff]
      %v1658 = vld [vmem:[%s408 + $0x90] sm:$0xff]
      %v1659 = vld [vmem:[%s408 + $0x98] sm:$0xff]
      %v1660 = vld [vmem:[%s408 + $0xa0] sm:$0xff]
      %v1661 = vld [vmem:[%s408 + $0xa8] sm:$0xff]
      %v1662 = vld [vmem:[%s408 + $0xb0] sm:$0xff]
      %v1663 = vld [vmem:[%s408 + $0xb8] sm:$0xff]
      %v1664 = vld [vmem:[%s408 + $0xc0] sm:$0xff]
      %v1665 = vld [vmem:[%s408 + $0xc8] sm:$0xff]
      %v1666 = vld [vmem:[%s408 + $0xd0] sm:$0xff]
      %v1667 = vld [vmem:[%s408 + $0xd8] sm:$0xff]
      %v1668 = vld [vmem:[%s408 + $0xe0] sm:$0xff]
      %v1669 = vld [vmem:[%s408 + $0xe8] sm:$0xff]
      %v1670 = vld [vmem:[%s408 + $0xf0] sm:$0xff]
      %v1671 = vld [vmem:[%s408 + $0xf8] sm:$0xff]
      %v1672 = vld [vmem:[%s408 + $0x100] sm:$0xff]
      %v1673 = vld [vmem:[%s408 + $0x108] sm:$0xff]
      %v1674 = vld [vmem:[%s408 + $0x110] sm:$0xff]
      %v1675 = vld [vmem:[%s408 + $0x118] sm:$0xff]
      %v1676 = vld [vmem:[%s408 + $0x120] sm:$0xff]
      %v1677 = vld [vmem:[%s408 + $0x128] sm:$0xff]
      %v1678 = vld [vmem:[%s408 + $0x130] sm:$0xff]
      %v1679 = vld [vmem:[%s408 + $0x138] sm:$0xff]
      %v1680 = vld [vmem:[%s408 + $0x140] sm:$0xff]
      %v1681 = vld [vmem:[%s408 + $0x148] sm:$0xff]
      %v1682 = vld [vmem:[%s408 + $0x150] sm:$0xff]
      %v1683 = vld [vmem:[%s408 + $0x158] sm:$0xff]
      %v1684 = vld [vmem:[%s408 + $0x160] sm:$0xff]
      %v1685 = vld [vmem:[%s408 + $0x168] sm:$0xff]
      %1728 = vrot.lane.b32.xlu0 %v1644, 16
      %v1729 = vpop.permute.xlu0 %1728
      %1730 = vrot.lane.b32.xlu0 %v1645, 16
      %v1731 = vpop.permute.xlu0 %1730
      %1732 = vrot.lane.b32.xlu0 %v1646, 16
      %v1733 = vpop.permute.xlu0 %1732
      %1734 = vrot.lane.b32.xlu0 %v1647, 16
      %v1735 = vpop.permute.xlu0 %1734
      %1736 = vrot.lane.b32.xlu0 %v1648, 16
      %v1737 = vpop.permute.xlu0 %1736
      %1738 = vrot.lane.b32.xlu0 %v1649, 16
      %v1739 = vpop.permute.xlu0 %1738
      %1740 = vrot.lane.b32.xlu0 %v1650, 16
      %v1741 = vpop.permute.xlu0 %1740
      %1742 = vrot.lane.b32.xlu0 %v1651, 16
      %v1743 = vpop.permute.xlu0 %1742
      %1744 = vrot.lane.b32.xlu0 %v1652, 16
      %v1745 = vpop.permute.xlu0 %1744
      %1746 = vrot.lane.b32.xlu0 %v1653, 16
      %v1747 = vpop.permute.xlu0 %1746
      %1748 = vrot.lane.b32.xlu0 %v1654, 16
      %v1749 = vpop.permute.xlu0 %1748
      %1750 = vrot.lane.b32.xlu0 %v1655, 16
      %v1751 = vpop.permute.xlu0 %1750
      %1752 = vrot.lane.b32.xlu0 %v1656, 16
      %v1753 = vpop.permute.xlu0 %1752
      %1754 = vrot.lane.b32.xlu0 %v1657, 16
      %v1755 = vpop.permute.xlu0 %1754
      %1756 = vrot.lane.b32.xlu0 %v1658, 16
      %v1757 = vpop.permute.xlu0 %1756
      %1758 = vrot.lane.b32.xlu0 %v1659, 16
      %v1759 = vpop.permute.xlu0 %1758
      %1760 = vrot.lane.b32.xlu0 %v1660, 16
      %v1761 = vpop.permute.xlu0 %1760
      %1762 = vrot.lane.b32.xlu0 %v1661, 16
      %v1763 = vpop.permute.xlu0 %1762
      %1764 = vrot.lane.b32.xlu0 %v1662, 16
      %v1765 = vpop.permute.xlu0 %1764
      %1766 = vrot.lane.b32.xlu0 %v1663, 16
      %v1767 = vpop.permute.xlu0 %1766
      %1768 = vrot.lane.b32.xlu0 %v1664, 16
      %v1769 = vpop.permute.xlu0 %1768
      %1770 = vrot.lane.b32.xlu0 %v1665, 16
      %v1771 = vpop.permute.xlu0 %1770
      %1772 = vrot.lane.b32.xlu0 %v1666, 16
      %v1773 = vpop.permute.xlu0 %1772
      %1774 = vrot.lane.b32.xlu0 %v1667, 16
      %v1775 = vpop.permute.xlu0 %1774
      %1776 = vrot.lane.b32.xlu0 %v1668, 16
      %v1777 = vpop.permute.xlu0 %1776
      %1778 = vrot.lane.b32.xlu0 %v1669, 16
      %v1779 = vpop.permute.xlu0 %1778
      %1780 = vrot.lane.b32.xlu0 %v1670, 16
      %v1781 = vpop.permute.xlu0 %1780
      %1782 = vrot.lane.b32.xlu0 %v1671, 16
      %v1783 = vpop.permute.xlu0 %1782
      %1784 = vrot.lane.b32.xlu0 %v1672, 16
      %v1785 = vpop.permute.xlu0 %1784
      %1786 = vrot.lane.b32.xlu0 %v1673, 16
      %v1787 = vpop.permute.xlu0 %1786
      %1788 = vrot.lane.b32.xlu0 %v1674, 16
      %v1789 = vpop.permute.xlu0 %1788
      %1790 = vrot.lane.b32.xlu0 %v1675, 16
      %v1791 = vpop.permute.xlu0 %1790
      %1792 = vrot.lane.b32.xlu0 %v1676, 16
      %v1793 = vpop.permute.xlu0 %1792
      %1794 = vrot.lane.b32.xlu0 %v1677, 16
      %v1795 = vpop.permute.xlu0 %1794
      %1796 = vrot.lane.b32.xlu0 %v1678, 16
      %v1797 = vpop.permute.xlu0 %1796
      %1798 = vrot.lane.b32.xlu0 %v1679, 16
      %v1799 = vpop.permute.xlu0 %1798
      %1800 = vrot.lane.b32.xlu0 %v1680, 16
      %v1801 = vpop.permute.xlu0 %1800
      %1802 = vrot.lane.b32.xlu0 %v1681, 16
      %v1803 = vpop.permute.xlu0 %1802
      %1804 = vrot.lane.b32.xlu0 %v1682, 16
      %v1805 = vpop.permute.xlu0 %1804
      %1806 = vrot.lane.b32.xlu0 %v1683, 16
      %v1807 = vpop.permute.xlu0 %1806
      %1808 = vrot.lane.b32.xlu0 %v1684, 16
      %v1809 = vpop.permute.xlu0 %1808
      %1810 = vrot.lane.b32.xlu0 %v1685, 16
      %v1811 = vpop.permute.xlu0 %1810
      %vm1854 = vcmask 162944
      %1855 = vst.msk [vmem:[#allocation3] sm:$0xff] %vm1854, %v1729
      %1856 = vst.msk [vmem:[#allocation3 + $0x10] sm:$0xff] %vm1854, %v1731
      %1857 = vst.msk [vmem:[#allocation3 + $0x20] sm:$0xff] %vm1854, %v1733
      %1858 = vst.msk [vmem:[#allocation3 + $0x30] sm:$0xff] %vm1854, %v1735
      %1859 = vst.msk [vmem:[#allocation3 + $0x40] sm:$0xff] %vm1854, %v1737
      %1860 = vst.msk [vmem:[#allocation3 + $0x50] sm:$0xff] %vm1854, %v1739
      %1861 = vst.msk [vmem:[#allocation3 + $0x60] sm:$0xff] %vm1854, %v1741
      %1862 = vst.msk [vmem:[#allocation3 + $0x70] sm:$0xff] %vm1854, %v1743
      %1863 = vst.msk [vmem:[#allocation3 + $0x80] sm:$0xff] %vm1854, %v1745
      %1864 = vst.msk [vmem:[#allocation3 + $0x90] sm:$0xff] %vm1854, %v1747
      %1865 = vst.msk [vmem:[#allocation3 + $0xa0] sm:$0xff] %vm1854, %v1749
      %1866 = vst.msk [vmem:[#allocation3 + $0xb0] sm:$0xff] %vm1854, %v1751
      %1867 = vst.msk [vmem:[#allocation3 + $0xc0] sm:$0xff] %vm1854, %v1753
      %1868 = vst.msk [vmem:[#allocation3 + $0xd0] sm:$0xff] %vm1854, %v1755
      %1869 = vst.msk [vmem:[#allocation3 + $0xe0] sm:$0xff] %vm1854, %v1757
      %1870 = vst.msk [vmem:[#allocation3 + $0xf0] sm:$0xff] %vm1854, %v1759
      %1871 = vst.msk [vmem:[#allocation3 + $0x100] sm:$0xff] %vm1854, %v1761
      %1872 = vst.msk [vmem:[#allocation3 + $0x110] sm:$0xff] %vm1854, %v1763
      %1873 = vst.msk [vmem:[#allocation3 + $0x120] sm:$0xff] %vm1854, %v1765
      %1874 = vst.msk [vmem:[#allocation3 + $0x130] sm:$0xff] %vm1854, %v1767
      %1875 = vst.msk [vmem:[#allocation3 + $0x140] sm:$0xff] %vm1854, %v1769
      %1876 = vst.msk [vmem:[#allocation3 + $0x150] sm:$0xff] %vm1854, %v1771
      %1877 = vst.msk [vmem:[#allocation3 + $0x160] sm:$0xff] %vm1854, %v1773
      %1878 = vst.msk [vmem:[#allocation3 + $0x170] sm:$0xff] %vm1854, %v1775
      %1879 = vst.msk [vmem:[#allocation3 + $0x180] sm:$0xff] %vm1854, %v1777
      %1880 = vst.msk [vmem:[#allocation3 + $0x190] sm:$0xff] %vm1854, %v1779
      %1881 = vst.msk [vmem:[#allocation3 + $0x1a0] sm:$0xff] %vm1854, %v1781
      %1882 = vst.msk [vmem:[#allocation3 + $0x1b0] sm:$0xff] %vm1854, %v1783
      %1883 = vst.msk [vmem:[#allocation3 + $0x1c0] sm:$0xff] %vm1854, %v1785
      %1884 = vst.msk [vmem:[#allocation3 + $0x1d0] sm:$0xff] %vm1854, %v1787
      %1885 = vst.msk [vmem:[#allocation3 + $0x1e0] sm:$0xff] %vm1854, %v1789
      %1886 = vst.msk [vmem:[#allocation3 + $0x1f0] sm:$0xff] %vm1854, %v1791
      %1887 = vst.msk [vmem:[#allocation3 + $0x200] sm:$0xff] %vm1854, %v1793
      %1888 = vst.msk [vmem:[#allocation3 + $0x210] sm:$0xff] %vm1854, %v1795
      %1889 = vst.msk [vmem:[#allocation3 + $0x220] sm:$0xff] %vm1854, %v1797
      %1890 = vst.msk [vmem:[#allocation3 + $0x230] sm:$0xff] %vm1854, %v1799
      %1891 = vst.msk [vmem:[#allocation3 + $0x240] sm:$0xff] %vm1854, %v1801
      %1892 = vst.msk [vmem:[#allocation3 + $0x250] sm:$0xff] %vm1854, %v1803
      %1893 = vst.msk [vmem:[#allocation3 + $0x260] sm:$0xff] %vm1854, %v1805
      %1894 = vst.msk [vmem:[#allocation3 + $0x270] sm:$0xff] %vm1854, %v1807
      %1895 = vst.msk [vmem:[#allocation3 + $0x280] sm:$0xff] %vm1854, %v1809
      %1896 = vst.msk [vmem:[#allocation3 + $0x290] sm:$0xff] %vm1854, %v1811
      %v1897 = vld [vmem:[%s408 + $0x21] sm:$0xff]
      %v1898 = vld [vmem:[%s408 + $0x29] sm:$0xff]
      %v1899 = vld [vmem:[%s408 + $0x31] sm:$0xff]
      %v1900 = vld [vmem:[%s408 + $0x39] sm:$0xff]
      %v1901 = vld [vmem:[%s408 + $0x41] sm:$0xff]
      %v1902 = vld [vmem:[%s408 + $0x49] sm:$0xff]
      %v1903 = vld [vmem:[%s408 + $0x51] sm:$0xff]
      %v1904 = vld [vmem:[%s408 + $0x59] sm:$0xff]
      %v1905 = vld [vmem:[%s408 + $0x61] sm:$0xff]
      %v1906 = vld [vmem:[%s408 + $0x69] sm:$0xff]
      %v1907 = vld [vmem:[%s408 + $0x71] sm:$0xff]
      %v1908 = vld [vmem:[%s408 + $0x79] sm:$0xff]
      %v1909 = vld [vmem:[%s408 + $0x81] sm:$0xff]
      %v1910 = vld [vmem:[%s408 + $0x89] sm:$0xff]
      %v1911 = vld [vmem:[%s408 + $0x91] sm:$0xff]
      %v1912 = vld [vmem:[%s408 + $0x99] sm:$0xff]
      %v1913 = vld [vmem:[%s408 + $0xa1] sm:$0xff]
      %v1914 = vld [vmem:[%s408 + $0xa9] sm:$0xff]
      %v1915 = vld [vmem:[%s408 + $0xb1] sm:$0xff]
      %v1916 = vld [vmem:[%s408 + $0xb9] sm:$0xff]
      %v1917 = vld [vmem:[%s408 + $0xc1] sm:$0xff]
      %v1918 = vld [vmem:[%s408 + $0xc9] sm:$0xff]
      %v1919 = vld [vmem:[%s408 + $0xd1] sm:$0xff]
      %v1920 = vld [vmem:[%s408 + $0xd9] sm:$0xff]
      %v1921 = vld [vmem:[%s408 + $0xe1] sm:$0xff]
      %v1922 = vld [vmem:[%s408 + $0xe9] sm:$0xff]
      %v1923 = vld [vmem:[%s408 + $0xf1] sm:$0xff]
      %v1924 = vld [vmem:[%s408 + $0xf9] sm:$0xff]
      %v1925 = vld [vmem:[%s408 + $0x101] sm:$0xff]
      %v1926 = vld [vmem:[%s408 + $0x109] sm:$0xff]
      %v1927 = vld [vmem:[%s408 + $0x111] sm:$0xff]
      %v1928 = vld [vmem:[%s408 + $0x119] sm:$0xff]
      %v1929 = vld [vmem:[%s408 + $0x121] sm:$0xff]
      %v1930 = vld [vmem:[%s408 + $0x129] sm:$0xff]
      %v1931 = vld [vmem:[%s408 + $0x131] sm:$0xff]
      %v1932 = vld [vmem:[%s408 + $0x139] sm:$0xff]
      %v1933 = vld [vmem:[%s408 + $0x141] sm:$0xff]
      %v1934 = vld [vmem:[%s408 + $0x149] sm:$0xff]
      %v1935 = vld [vmem:[%s408 + $0x151] sm:$0xff]
      %v1936 = vld [vmem:[%s408 + $0x159] sm:$0xff]
      %v1937 = vld [vmem:[%s408 + $0x161] sm:$0xff]
      %v1938 = vld [vmem:[%s408 + $0x169] sm:$0xff]
      %1981 = vrot.lane.b32.xlu0 %v1897, 20
      %v1982 = vpop.permute.xlu0 %1981
      %1983 = vrot.lane.b32.xlu0 %v1898, 20
      %v1984 = vpop.permute.xlu0 %1983
      %1985 = vrot.lane.b32.xlu0 %v1899, 20
      %v1986 = vpop.permute.xlu0 %1985
      %1987 = vrot.lane.b32.xlu0 %v1900, 20
      %v1988 = vpop.permute.xlu0 %1987
      %1989 = vrot.lane.b32.xlu0 %v1901, 20
      %v1990 = vpop.permute.xlu0 %1989
      %1991 = vrot.lane.b32.xlu0 %v1902, 20
      %v1992 = vpop.permute.xlu0 %1991
      %1993 = vrot.lane.b32.xlu0 %v1903, 20
      %v1994 = vpop.permute.xlu0 %1993
      %1995 = vrot.lane.b32.xlu0 %v1904, 20
      %v1996 = vpop.permute.xlu0 %1995
      %1997 = vrot.lane.b32.xlu0 %v1905, 20
      %v1998 = vpop.permute.xlu0 %1997
      %1999 = vrot.lane.b32.xlu0 %v1906, 20
      %v2000 = vpop.permute.xlu0 %1999
      %2001 = vrot.lane.b32.xlu0 %v1907, 20
      %v2002 = vpop.permute.xlu0 %2001
      %2003 = vrot.lane.b32.xlu0 %v1908, 20
      %v2004 = vpop.permute.xlu0 %2003
      %2005 = vrot.lane.b32.xlu0 %v1909, 20
      %v2006 = vpop.permute.xlu0 %2005
      %2007 = vrot.lane.b32.xlu0 %v1910, 20
      %v2008 = vpop.permute.xlu0 %2007
      %2009 = vrot.lane.b32.xlu0 %v1911, 20
      %v2010 = vpop.permute.xlu0 %2009
      %2011 = vrot.lane.b32.xlu0 %v1912, 20
      %v2012 = vpop.permute.xlu0 %2011
      %2013 = vrot.lane.b32.xlu0 %v1913, 20
      %v2014 = vpop.permute.xlu0 %2013
      %2015 = vrot.lane.b32.xlu0 %v1914, 20
      %v2016 = vpop.permute.xlu0 %2015
      %2017 = vrot.lane.b32.xlu0 %v1915, 20
      %v2018 = vpop.permute.xlu0 %2017
      %2019 = vrot.lane.b32.xlu0 %v1916, 20
      %v2020 = vpop.permute.xlu0 %2019
      %2021 = vrot.lane.b32.xlu0 %v1917, 20
      %v2022 = vpop.permute.xlu0 %2021
      %2023 = vrot.lane.b32.xlu0 %v1918, 20
      %v2024 = vpop.permute.xlu0 %2023
      %2025 = vrot.lane.b32.xlu0 %v1919, 20
      %v2026 = vpop.permute.xlu0 %2025
      %2027 = vrot.lane.b32.xlu0 %v1920, 20
      %v2028 = vpop.permute.xlu0 %2027
      %2029 = vrot.lane.b32.xlu0 %v1921, 20
      %v2030 = vpop.permute.xlu0 %2029
      %2031 = vrot.lane.b32.xlu0 %v1922, 20
      %v2032 = vpop.permute.xlu0 %2031
      %2033 = vrot.lane.b32.xlu0 %v1923, 20
      %v2034 = vpop.permute.xlu0 %2033
      %2035 = vrot.lane.b32.xlu0 %v1924, 20
      %v2036 = vpop.permute.xlu0 %2035
      %2037 = vrot.lane.b32.xlu0 %v1925, 20
      %v2038 = vpop.permute.xlu0 %2037
      %2039 = vrot.lane.b32.xlu0 %v1926, 20
      %v2040 = vpop.permute.xlu0 %2039
      %2041 = vrot.lane.b32.xlu0 %v1927, 20
      %v2042 = vpop.permute.xlu0 %2041
      %2043 = vrot.lane.b32.xlu0 %v1928, 20
      %v2044 = vpop.permute.xlu0 %2043
      %2045 = vrot.lane.b32.xlu0 %v1929, 20
      %v2046 = vpop.permute.xlu0 %2045
      %2047 = vrot.lane.b32.xlu0 %v1930, 20
      %v2048 = vpop.permute.xlu0 %2047
      %2049 = vrot.lane.b32.xlu0 %v1931, 20
      %v2050 = vpop.permute.xlu0 %2049
      %2051 = vrot.lane.b32.xlu0 %v1932, 20
      %v2052 = vpop.permute.xlu0 %2051
      %2053 = vrot.lane.b32.xlu0 %v1933, 20
      %v2054 = vpop.permute.xlu0 %2053
      %2055 = vrot.lane.b32.xlu0 %v1934, 20
      %v2056 = vpop.permute.xlu0 %2055
      %2057 = vrot.lane.b32.xlu0 %v1935, 20
      %v2058 = vpop.permute.xlu0 %2057
      %2059 = vrot.lane.b32.xlu0 %v1936, 20
      %v2060 = vpop.permute.xlu0 %2059
      %2061 = vrot.lane.b32.xlu0 %v1937, 20
      %v2062 = vpop.permute.xlu0 %2061
      %2063 = vrot.lane.b32.xlu0 %v1938, 20
      %v2064 = vpop.permute.xlu0 %2063
      %vm2107 = vcmask 195744
      %2108 = vst.msk [vmem:[#allocation3] sm:$0xff] %vm2107, %v1982
      %2109 = vst.msk [vmem:[#allocation3 + $0x10] sm:$0xff] %vm2107, %v1984
      %2110 = vst.msk [vmem:[#allocation3 + $0x20] sm:$0xff] %vm2107, %v1986
      %2111 = vst.msk [vmem:[#allocation3 + $0x30] sm:$0xff] %vm2107, %v1988
      %2112 = vst.msk [vmem:[#allocation3 + $0x40] sm:$0xff] %vm2107, %v1990
      %2113 = vst.msk [vmem:[#allocation3 + $0x50] sm:$0xff] %vm2107, %v1992
      %2114 = vst.msk [vmem:[#allocation3 + $0x60] sm:$0xff] %vm2107, %v1994
      %2115 = vst.msk [vmem:[#allocation3 + $0x70] sm:$0xff] %vm2107, %v1996
      %2116 = vst.msk [vmem:[#allocation3 + $0x80] sm:$0xff] %vm2107, %v1998
      %2117 = vst.msk [vmem:[#allocation3 + $0x90] sm:$0xff] %vm2107, %v2000
      %2118 = vst.msk [vmem:[#allocation3 + $0xa0] sm:$0xff] %vm2107, %v2002
      %2119 = vst.msk [vmem:[#allocation3 + $0xb0] sm:$0xff] %vm2107, %v2004
      %2120 = vst.msk [vmem:[#allocation3 + $0xc0] sm:$0xff] %vm2107, %v2006
      %2121 = vst.msk [vmem:[#allocation3 + $0xd0] sm:$0xff] %vm2107, %v2008
      %2122 = vst.msk [vmem:[#allocation3 + $0xe0] sm:$0xff] %vm2107, %v2010
      %2123 = vst.msk [vmem:[#allocation3 + $0xf0] sm:$0xff] %vm2107, %v2012
      %2124 = vst.msk [vmem:[#allocation3 + $0x100] sm:$0xff] %vm2107, %v2014
      %2125 = vst.msk [vmem:[#allocation3 + $0x110] sm:$0xff] %vm2107, %v2016
      %2126 = vst.msk [vmem:[#allocation3 + $0x120] sm:$0xff] %vm2107, %v2018
      %2127 = vst.msk [vmem:[#allocation3 + $0x130] sm:$0xff] %vm2107, %v2020
      %2128 = vst.msk [vmem:[#allocation3 + $0x140] sm:$0xff] %vm2107, %v2022
      %2129 = vst.msk [vmem:[#allocation3 + $0x150] sm:$0xff] %vm2107, %v2024
      %2130 = vst.msk [vmem:[#allocation3 + $0x160] sm:$0xff] %vm2107, %v2026
      %2131 = vst.msk [vmem:[#allocation3 + $0x170] sm:$0xff] %vm2107, %v2028
      %2132 = vst.msk [vmem:[#allocation3 + $0x180] sm:$0xff] %vm2107, %v2030
      %2133 = vst.msk [vmem:[#allocation3 + $0x190] sm:$0xff] %vm2107, %v2032
      %2134 = vst.msk [vmem:[#allocation3 + $0x1a0] sm:$0xff] %vm2107, %v2034
      %2135 = vst.msk [vmem:[#allocation3 + $0x1b0] sm:$0xff] %vm2107, %v2036
      %2136 = vst.msk [vmem:[#allocation3 + $0x1c0] sm:$0xff] %vm2107, %v2038
      %2137 = vst.msk [vmem:[#allocation3 + $0x1d0] sm:$0xff] %vm2107, %v2040
      %2138 = vst.msk [vmem:[#allocation3 + $0x1e0] sm:$0xff] %vm2107, %v2042
      %2139 = vst.msk [vmem:[#allocation3 + $0x1f0] sm:$0xff] %vm2107, %v2044
      %2140 = vst.msk [vmem:[#allocation3 + $0x200] sm:$0xff] %vm2107, %v2046
      %2141 = vst.msk [vmem:[#allocation3 + $0x210] sm:$0xff] %vm2107, %v2048
      %2142 = vst.msk [vmem:[#allocation3 + $0x220] sm:$0xff] %vm2107, %v2050
      %2143 = vst.msk [vmem:[#allocation3 + $0x230] sm:$0xff] %vm2107, %v2052
      %2144 = vst.msk [vmem:[#allocation3 + $0x240] sm:$0xff] %vm2107, %v2054
      %2145 = vst.msk [vmem:[#allocation3 + $0x250] sm:$0xff] %vm2107, %v2056
      %2146 = vst.msk [vmem:[#allocation3 + $0x260] sm:$0xff] %vm2107, %v2058
      %2147 = vst.msk [vmem:[#allocation3 + $0x270] sm:$0xff] %vm2107, %v2060
      %2148 = vst.msk [vmem:[#allocation3 + $0x280] sm:$0xff] %vm2107, %v2062
      %2149 = vst.msk [vmem:[#allocation3 + $0x290] sm:$0xff] %vm2107, %v2064
      %v2150 = vld [vmem:[%s408 + $0x31] sm:$0xff]
      %v2151 = vld [vmem:[%s408 + $0x39] sm:$0xff]
      %v2152 = vld [vmem:[%s408 + $0x41] sm:$0xff]
      %v2153 = vld [vmem:[%s408 + $0x49] sm:$0xff]
      %v2154 = vld [vmem:[%s408 + $0x51] sm:$0xff]
      %v2155 = vld [vmem:[%s408 + $0x59] sm:$0xff]
      %v2156 = vld [vmem:[%s408 + $0x61] sm:$0xff]
      %v2157 = vld [vmem:[%s408 + $0x69] sm:$0xff]
      %v2158 = vld [vmem:[%s408 + $0x71] sm:$0xff]
      %v2159 = vld [vmem:[%s408 + $0x79] sm:$0xff]
      %v2160 = vld [vmem:[%s408 + $0x81] sm:$0xff]
      %v2161 = vld [vmem:[%s408 + $0x89] sm:$0xff]
      %v2162 = vld [vmem:[%s408 + $0x91] sm:$0xff]
      %v2163 = vld [vmem:[%s408 + $0x99] sm:$0xff]
      %v2164 = vld [vmem:[%s408 + $0xa1] sm:$0xff]
      %v2165 = vld [vmem:[%s408 + $0xa9] sm:$0xff]
      %v2166 = vld [vmem:[%s408 + $0xb1] sm:$0xff]
      %v2167 = vld [vmem:[%s408 + $0xb9] sm:$0xff]
      %v2168 = vld [vmem:[%s408 + $0xc1] sm:$0xff]
      %v2169 = vld [vmem:[%s408 + $0xc9] sm:$0xff]
      %v2170 = vld [vmem:[%s408 + $0xd1] sm:$0xff]
      %v2171 = vld [vmem:[%s408 + $0xd9] sm:$0xff]
      %v2172 = vld [vmem:[%s408 + $0xe1] sm:$0xff]
      %v2173 = vld [vmem:[%s408 + $0xe9] sm:$0xff]
      %v2174 = vld [vmem:[%s408 + $0xf1] sm:$0xff]
      %v2175 = vld [vmem:[%s408 + $0xf9] sm:$0xff]
      %v2176 = vld [vmem:[%s408 + $0x101] sm:$0xff]
      %v2177 = vld [vmem:[%s408 + $0x109] sm:$0xff]
      %v2178 = vld [vmem:[%s408 + $0x111] sm:$0xff]
      %v2179 = vld [vmem:[%s408 + $0x119] sm:$0xff]
      %v2180 = vld [vmem:[%s408 + $0x121] sm:$0xff]
      %v2181 = vld [vmem:[%s408 + $0x129] sm:$0xff]
      %v2182 = vld [vmem:[%s408 + $0x131] sm:$0xff]
      %v2183 = vld [vmem:[%s408 + $0x139] sm:$0xff]
      %v2184 = vld [vmem:[%s408 + $0x141] sm:$0xff]
      %v2185 = vld [vmem:[%s408 + $0x149] sm:$0xff]
      %v2186 = vld [vmem:[%s408 + $0x151] sm:$0xff]
      %v2187 = vld [vmem:[%s408 + $0x159] sm:$0xff]
      %v2188 = vld [vmem:[%s408 + $0x161] sm:$0xff]
      %v2189 = vld [vmem:[%s408 + $0x169] sm:$0xff]
      %v2190 = vld [vmem:[%s408 + $0x171] sm:$0xff]
      %v2191 = vld [vmem:[%s408 + $0x179] sm:$0xff]
      %2234 = vrot.lane.b32.xlu0 %v2150, 24
      %v2235 = vpop.permute.xlu0 %2234
      %2236 = vrot.lane.b32.xlu0 %v2151, 24
      %v2237 = vpop.permute.xlu0 %2236
      %2238 = vrot.lane.b32.xlu0 %v2152, 24
      %v2239 = vpop.permute.xlu0 %2238
      %2240 = vrot.lane.b32.xlu0 %v2153, 24
      %v2241 = vpop.permute.xlu0 %2240
      %2242 = vrot.lane.b32.xlu0 %v2154, 24
      %v2243 = vpop.permute.xlu0 %2242
      %2244 = vrot.lane.b32.xlu0 %v2155, 24
      %v2245 = vpop.permute.xlu0 %2244
      %2246 = vrot.lane.b32.xlu0 %v2156, 24
      %v2247 = vpop.permute.xlu0 %2246
      %2248 = vrot.lane.b32.xlu0 %v2157, 24
      %v2249 = vpop.permute.xlu0 %2248
      %2250 = vrot.lane.b32.xlu0 %v2158, 24
      %v2251 = vpop.permute.xlu0 %2250
      %2252 = vrot.lane.b32.xlu0 %v2159, 24
      %v2253 = vpop.permute.xlu0 %2252
      %2254 = vrot.lane.b32.xlu0 %v2160, 24
      %v2255 = vpop.permute.xlu0 %2254
      %2256 = vrot.lane.b32.xlu0 %v2161, 24
      %v2257 = vpop.permute.xlu0 %2256
      %2258 = vrot.lane.b32.xlu0 %v2162, 24
      %v2259 = vpop.permute.xlu0 %2258
      %2260 = vrot.lane.b32.xlu0 %v2163, 24
      %v2261 = vpop.permute.xlu0 %2260
      %2262 = vrot.lane.b32.xlu0 %v2164, 24
      %v2263 = vpop.permute.xlu0 %2262
      %2264 = vrot.lane.b32.xlu0 %v2165, 24
      %v2265 = vpop.permute.xlu0 %2264
      %2266 = vrot.lane.b32.xlu0 %v2166, 24
      %v2267 = vpop.permute.xlu0 %2266
      %2268 = vrot.lane.b32.xlu0 %v2167, 24
      %v2269 = vpop.permute.xlu0 %2268
      %2270 = vrot.lane.b32.xlu0 %v2168, 24
      %v2271 = vpop.permute.xlu0 %2270
      %2272 = vrot.lane.b32.xlu0 %v2169, 24
      %v2273 = vpop.permute.xlu0 %2272
      %2274 = vrot.lane.b32.xlu0 %v2170, 24
      %v2275 = vpop.permute.xlu0 %2274
      %2276 = vrot.lane.b32.xlu0 %v2171, 24
      %v2277 = vpop.permute.xlu0 %2276
      %2278 = vrot.lane.b32.xlu0 %v2172, 24
      %v2279 = vpop.permute.xlu0 %2278
      %2280 = vrot.lane.b32.xlu0 %v2173, 24
      %v2281 = vpop.permute.xlu0 %2280
      %2282 = vrot.lane.b32.xlu0 %v2174, 24
      %v2283 = vpop.permute.xlu0 %2282
      %2284 = vrot.lane.b32.xlu0 %v2175, 24
      %v2285 = vpop.permute.xlu0 %2284
      %2286 = vrot.lane.b32.xlu0 %v2176, 24
      %v2287 = vpop.permute.xlu0 %2286
      %2288 = vrot.lane.b32.xlu0 %v2177, 24
      %v2289 = vpop.permute.xlu0 %2288
      %2290 = vrot.lane.b32.xlu0 %v2178, 24
      %v2291 = vpop.permute.xlu0 %2290
      %2292 = vrot.lane.b32.xlu0 %v2179, 24
      %v2293 = vpop.permute.xlu0 %2292
      %2294 = vrot.lane.b32.xlu0 %v2180, 24
      %v2295 = vpop.permute.xlu0 %2294
      %2296 = vrot.lane.b32.xlu0 %v2181, 24
      %v2297 = vpop.permute.xlu0 %2296
      %2298 = vrot.lane.b32.xlu0 %v2182, 24
      %v2299 = vpop.permute.xlu0 %2298
      %2300 = vrot.lane.b32.xlu0 %v2183, 24
      %v2301 = vpop.permute.xlu0 %2300
      %2302 = vrot.lane.b32.xlu0 %v2184, 24
      %v2303 = vpop.permute.xlu0 %2302
      %2304 = vrot.lane.b32.xlu0 %v2185, 24
      %v2305 = vpop.permute.xlu0 %2304
      %2306 = vrot.lane.b32.xlu0 %v2186, 24
      %v2307 = vpop.permute.xlu0 %2306
      %2308 = vrot.lane.b32.xlu0 %v2187, 24
      %v2309 = vpop.permute.xlu0 %2308
      %2310 = vrot.lane.b32.xlu0 %v2188, 24
      %v2311 = vpop.permute.xlu0 %2310
      %2312 = vrot.lane.b32.xlu0 %v2189, 24
      %v2313 = vpop.permute.xlu0 %2312
      %2314 = vrot.lane.b32.xlu0 %v2190, 24
      %v2315 = vpop.permute.xlu0 %2314
      %2316 = vrot.lane.b32.xlu0 %v2191, 24
      %v2317 = vpop.permute.xlu0 %2316
      %vm2360 = vcmask 228544
      %2361 = vst.msk [vmem:[#allocation3] sm:$0xff] %vm2360, %v2235
      %2362 = vst.msk [vmem:[#allocation3 + $0x10] sm:$0xff] %vm2360, %v2237
      %2363 = vst.msk [vmem:[#allocation3 + $0x20] sm:$0xff] %vm2360, %v2239
      %2364 = vst.msk [vmem:[#allocation3 + $0x30] sm:$0xff] %vm2360, %v2241
      %2365 = vst.msk [vmem:[#allocation3 + $0x40] sm:$0xff] %vm2360, %v2243
      %2366 = vst.msk [vmem:[#allocation3 + $0x50] sm:$0xff] %vm2360, %v2245
      %2367 = vst.msk [vmem:[#allocation3 + $0x60] sm:$0xff] %vm2360, %v2247
      %2368 = vst.msk [vmem:[#allocation3 + $0x70] sm:$0xff] %vm2360, %v2249
      %2369 = vst.msk [vmem:[#allocation3 + $0x80] sm:$0xff] %vm2360, %v2251
      %2370 = vst.msk [vmem:[#allocation3 + $0x90] sm:$0xff] %vm2360, %v2253
      %2371 = vst.msk [vmem:[#allocation3 + $0xa0] sm:$0xff] %vm2360, %v2255
      %2372 = vst.msk [vmem:[#allocation3 + $0xb0] sm:$0xff] %vm2360, %v2257
      %2373 = vst.msk [vmem:[#allocation3 + $0xc0] sm:$0xff] %vm2360, %v2259
      %2374 = vst.msk [vmem:[#allocation3 + $0xd0] sm:$0xff] %vm2360, %v2261
      %2375 = vst.msk [vmem:[#allocation3 + $0xe0] sm:$0xff] %vm2360, %v2263
      %2376 = vst.msk [vmem:[#allocation3 + $0xf0] sm:$0xff] %vm2360, %v2265
      %2377 = vst.msk [vmem:[#allocation3 + $0x100] sm:$0xff] %vm2360, %v2267
      %2378 = vst.msk [vmem:[#allocation3 + $0x110] sm:$0xff] %vm2360, %v2269
      %2379 = vst.msk [vmem:[#allocation3 + $0x120] sm:$0xff] %vm2360, %v2271
      %2380 = vst.msk [vmem:[#allocation3 + $0x130] sm:$0xff] %vm2360, %v2273
      %2381 = vst.msk [vmem:[#allocation3 + $0x140] sm:$0xff] %vm2360, %v2275
      %2382 = vst.msk [vmem:[#allocation3 + $0x150] sm:$0xff] %vm2360, %v2277
      %2383 = vst.msk [vmem:[#allocation3 + $0x160] sm:$0xff] %vm2360, %v2279
      %2384 = vst.msk [vmem:[#allocation3 + $0x170] sm:$0xff] %vm2360, %v2281
      %2385 = vst.msk [vmem:[#allocation3 + $0x180] sm:$0xff] %vm2360, %v2283
      %2386 = vst.msk [vmem:[#allocation3 + $0x190] sm:$0xff] %vm2360, %v2285
      %2387 = vst.msk [vmem:[#allocation3 + $0x1a0] sm:$0xff] %vm2360, %v2287
      %2388 = vst.msk [vmem:[#allocation3 + $0x1b0] sm:$0xff] %vm2360, %v2289
      %2389 = vst.msk [vmem:[#allocation3 + $0x1c0] sm:$0xff] %vm2360, %v2291
      %2390 = vst.msk [vmem:[#allocation3 + $0x1d0] sm:$0xff] %vm2360, %v2293
      %2391 = vst.msk [vmem:[#allocation3 + $0x1e0] sm:$0xff] %vm2360, %v2295
      %2392 = vst.msk [vmem:[#allocation3 + $0x1f0] sm:$0xff] %vm2360, %v2297
      %2393 = vst.msk [vmem:[#allocation3 + $0x200] sm:$0xff] %vm2360, %v2299
      %2394 = vst.msk [vmem:[#allocation3 + $0x210] sm:$0xff] %vm2360, %v2301
      %2395 = vst.msk [vmem:[#allocation3 + $0x220] sm:$0xff] %vm2360, %v2303
      %2396 = vst.msk [vmem:[#allocation3 + $0x230] sm:$0xff] %vm2360, %v2305
      %2397 = vst.msk [vmem:[#allocation3 + $0x240] sm:$0xff] %vm2360, %v2307
      %2398 = vst.msk [vmem:[#allocation3 + $0x250] sm:$0xff] %vm2360, %v2309
      %2399 = vst.msk [vmem:[#allocation3 + $0x260] sm:$0xff] %vm2360, %v2311
      %2400 = vst.msk [vmem:[#allocation3 + $0x270] sm:$0xff] %vm2360, %v2313
      %2401 = vst.msk [vmem:[#allocation3 + $0x280] sm:$0xff] %vm2360, %v2315
      %2402 = vst.msk [vmem:[#allocation3 + $0x290] sm:$0xff] %vm2360, %v2317
      %v2403 = vld [vmem:[%s408 + $0x32] sm:$0xff]
      %v2404 = vld [vmem:[%s408 + $0x3a] sm:$0xff]
      %v2405 = vld [vmem:[%s408 + $0x42] sm:$0xff]
      %v2406 = vld [vmem:[%s408 + $0x4a] sm:$0xff]
      %v2407 = vld [vmem:[%s408 + $0x52] sm:$0xff]
      %v2408 = vld [vmem:[%s408 + $0x5a] sm:$0xff]
      %v2409 = vld [vmem:[%s408 + $0x62] sm:$0xff]
      %v2410 = vld [vmem:[%s408 + $0x6a] sm:$0xff]
      %v2411 = vld [vmem:[%s408 + $0x72] sm:$0xff]
      %v2412 = vld [vmem:[%s408 + $0x7a] sm:$0xff]
      %v2413 = vld [vmem:[%s408 + $0x82] sm:$0xff]
      %v2414 = vld [vmem:[%s408 + $0x8a] sm:$0xff]
      %v2415 = vld [vmem:[%s408 + $0x92] sm:$0xff]
      %v2416 = vld [vmem:[%s408 + $0x9a] sm:$0xff]
      %v2417 = vld [vmem:[%s408 + $0xa2] sm:$0xff]
      %v2418 = vld [vmem:[%s408 + $0xaa] sm:$0xff]
      %v2419 = vld [vmem:[%s408 + $0xb2] sm:$0xff]
      %v2420 = vld [vmem:[%s408 + $0xba] sm:$0xff]
      %v2421 = vld [vmem:[%s408 + $0xc2] sm:$0xff]
      %v2422 = vld [vmem:[%s408 + $0xca] sm:$0xff]
      %v2423 = vld [vmem:[%s408 + $0xd2] sm:$0xff]
      %v2424 = vld [vmem:[%s408 + $0xda] sm:$0xff]
      %v2425 = vld [vmem:[%s408 + $0xe2] sm:$0xff]
      %v2426 = vld [vmem:[%s408 + $0xea] sm:$0xff]
      %v2427 = vld [vmem:[%s408 + $0xf2] sm:$0xff]
      %v2428 = vld [vmem:[%s408 + $0xfa] sm:$0xff]
      %v2429 = vld [vmem:[%s408 + $0x102] sm:$0xff]
      %v2430 = vld [vmem:[%s408 + $0x10a] sm:$0xff]
      %v2431 = vld [vmem:[%s408 + $0x112] sm:$0xff]
      %v2432 = vld [vmem:[%s408 + $0x11a] sm:$0xff]
      %v2433 = vld [vmem:[%s408 + $0x122] sm:$0xff]
      %v2434 = vld [vmem:[%s408 + $0x12a] sm:$0xff]
      %v2435 = vld [vmem:[%s408 + $0x132] sm:$0xff]
      %v2436 = vld [vmem:[%s408 + $0x13a] sm:$0xff]
      %v2437 = vld [vmem:[%s408 + $0x142] sm:$0xff]
      %v2438 = vld [vmem:[%s408 + $0x14a] sm:$0xff]
      %v2439 = vld [vmem:[%s408 + $0x152] sm:$0xff]
      %v2440 = vld [vmem:[%s408 + $0x15a] sm:$0xff]
      %v2441 = vld [vmem:[%s408 + $0x162] sm:$0xff]
      %v2442 = vld [vmem:[%s408 + $0x16a] sm:$0xff]
      %v2443 = vld [vmem:[%s408 + $0x172] sm:$0xff]
      %v2444 = vld [vmem:[%s408 + $0x17a] sm:$0xff]
      %2487 = vrot.lane.b32.xlu0 %v2403, 28
      %v2488 = vpop.permute.xlu0 %2487
      %2489 = vrot.lane.b32.xlu0 %v2404, 28
      %v2490 = vpop.permute.xlu0 %2489
      %2491 = vrot.lane.b32.xlu0 %v2405, 28
      %v2492 = vpop.permute.xlu0 %2491
      %2493 = vrot.lane.b32.xlu0 %v2406, 28
      %v2494 = vpop.permute.xlu0 %2493
      %2495 = vrot.lane.b32.xlu0 %v2407, 28
      %v2496 = vpop.permute.xlu0 %2495
      %2497 = vrot.lane.b32.xlu0 %v2408, 28
      %v2498 = vpop.permute.xlu0 %2497
      %2499 = vrot.lane.b32.xlu0 %v2409, 28
      %v2500 = vpop.permute.xlu0 %2499
      %2501 = vrot.lane.b32.xlu0 %v2410, 28
      %v2502 = vpop.permute.xlu0 %2501
      %2503 = vrot.lane.b32.xlu0 %v2411, 28
      %v2504 = vpop.permute.xlu0 %2503
      %2505 = vrot.lane.b32.xlu0 %v2412, 28
      %v2506 = vpop.permute.xlu0 %2505
      %2507 = vrot.lane.b32.xlu0 %v2413, 28
      %v2508 = vpop.permute.xlu0 %2507
      %2509 = vrot.lane.b32.xlu0 %v2414, 28
      %v2510 = vpop.permute.xlu0 %2509
      %2511 = vrot.lane.b32.xlu0 %v2415, 28
      %v2512 = vpop.permute.xlu0 %2511
      %2513 = vrot.lane.b32.xlu0 %v2416, 28
      %v2514 = vpop.permute.xlu0 %2513
      %2515 = vrot.lane.b32.xlu0 %v2417, 28
      %v2516 = vpop.permute.xlu0 %2515
      %2517 = vrot.lane.b32.xlu0 %v2418, 28
      %v2518 = vpop.permute.xlu0 %2517
      %2519 = vrot.lane.b32.xlu0 %v2419, 28
      %v2520 = vpop.permute.xlu0 %2519
      %2521 = vrot.lane.b32.xlu0 %v2420, 28
      %v2522 = vpop.permute.xlu0 %2521
      %2523 = vrot.lane.b32.xlu0 %v2421, 28
      %v2524 = vpop.permute.xlu0 %2523
      %2525 = vrot.lane.b32.xlu0 %v2422, 28
      %v2526 = vpop.permute.xlu0 %2525
      %2527 = vrot.lane.b32.xlu0 %v2423, 28
      %v2528 = vpop.permute.xlu0 %2527
      %2529 = vrot.lane.b32.xlu0 %v2424, 28
      %v2530 = vpop.permute.xlu0 %2529
      %2531 = vrot.lane.b32.xlu0 %v2425, 28
      %v2532 = vpop.permute.xlu0 %2531
      %2533 = vrot.lane.b32.xlu0 %v2426, 28
      %v2534 = vpop.permute.xlu0 %2533
      %2535 = vrot.lane.b32.xlu0 %v2427, 28
      %v2536 = vpop.permute.xlu0 %2535
      %2537 = vrot.lane.b32.xlu0 %v2428, 28
      %v2538 = vpop.permute.xlu0 %2537
      %2539 = vrot.lane.b32.xlu0 %v2429, 28
      %v2540 = vpop.permute.xlu0 %2539
      %2541 = vrot.lane.b32.xlu0 %v2430, 28
      %v2542 = vpop.permute.xlu0 %2541
      %2543 = vrot.lane.b32.xlu0 %v2431, 28
      %v2544 = vpop.permute.xlu0 %2543
      %2545 = vrot.lane.b32.xlu0 %v2432, 28
      %v2546 = vpop.permute.xlu0 %2545
      %2547 = vrot.lane.b32.xlu0 %v2433, 28
      %v2548 = vpop.permute.xlu0 %2547
      %2549 = vrot.lane.b32.xlu0 %v2434, 28
      %v2550 = vpop.permute.xlu0 %2549
      %2551 = vrot.lane.b32.xlu0 %v2435, 28
      %v2552 = vpop.permute.xlu0 %2551
      %2553 = vrot.lane.b32.xlu0 %v2436, 28
      %v2554 = vpop.permute.xlu0 %2553
      %2555 = vrot.lane.b32.xlu0 %v2437, 28
      %v2556 = vpop.permute.xlu0 %2555
      %2557 = vrot.lane.b32.xlu0 %v2438, 28
      %v2558 = vpop.permute.xlu0 %2557
      %2559 = vrot.lane.b32.xlu0 %v2439, 28
      %v2560 = vpop.permute.xlu0 %2559
      %2561 = vrot.lane.b32.xlu0 %v2440, 28
      %v2562 = vpop.permute.xlu0 %2561
      %2563 = vrot.lane.b32.xlu0 %v2441, 28
      %v2564 = vpop.permute.xlu0 %2563
      %2565 = vrot.lane.b32.xlu0 %v2442, 28
      %v2566 = vpop.permute.xlu0 %2565
      %2567 = vrot.lane.b32.xlu0 %v2443, 28
      %v2568 = vpop.permute.xlu0 %2567
      %2569 = vrot.lane.b32.xlu0 %v2444, 28
      %v2570 = vpop.permute.xlu0 %2569
      %vm2613 = vcmask 261344
      %2614 = vst.msk [vmem:[#allocation3] sm:$0xff] %vm2613, %v2488
      %2615 = vst.msk [vmem:[#allocation3 + $0x10] sm:$0xff] %vm2613, %v2490
      %2616 = vst.msk [vmem:[#allocation3 + $0x20] sm:$0xff] %vm2613, %v2492
      %2617 = vst.msk [vmem:[#allocation3 + $0x30] sm:$0xff] %vm2613, %v2494
      %2618 = vst.msk [vmem:[#allocation3 + $0x40] sm:$0xff] %vm2613, %v2496
      %2619 = vst.msk [vmem:[#allocation3 + $0x50] sm:$0xff] %vm2613, %v2498
      %2620 = vst.msk [vmem:[#allocation3 + $0x60] sm:$0xff] %vm2613, %v2500
      %2621 = vst.msk [vmem:[#allocation3 + $0x70] sm:$0xff] %vm2613, %v2502
      %2622 = vst.msk [vmem:[#allocation3 + $0x80] sm:$0xff] %vm2613, %v2504
      %2623 = vst.msk [vmem:[#allocation3 + $0x90] sm:$0xff] %vm2613, %v2506
      %2624 = vst.msk [vmem:[#allocation3 + $0xa0] sm:$0xff] %vm2613, %v2508
      %2625 = vst.msk [vmem:[#allocation3 + $0xb0] sm:$0xff] %vm2613, %v2510
      %2626 = vst.msk [vmem:[#allocation3 + $0xc0] sm:$0xff] %vm2613, %v2512
      %2627 = vst.msk [vmem:[#allocation3 + $0xd0] sm:$0xff] %vm2613, %v2514
      %2628 = vst.msk [vmem:[#allocation3 + $0xe0] sm:$0xff] %vm2613, %v2516
      %2629 = vst.msk [vmem:[#allocation3 + $0xf0] sm:$0xff] %vm2613, %v2518
      %2630 = vst.msk [vmem:[#allocation3 + $0x100] sm:$0xff] %vm2613, %v2520
      %2631 = vst.msk [vmem:[#allocation3 + $0x110] sm:$0xff] %vm2613, %v2522
      %2632 = vst.msk [vmem:[#allocation3 + $0x120] sm:$0xff] %vm2613, %v2524
      %2633 = vst.msk [vmem:[#allocation3 + $0x130] sm:$0xff] %vm2613, %v2526
      %2634 = vst.msk [vmem:[#allocation3 + $0x140] sm:$0xff] %vm2613, %v2528
      %2635 = vst.msk [vmem:[#allocation3 + $0x150] sm:$0xff] %vm2613, %v2530
      %2636 = vst.msk [vmem:[#allocation3 + $0x160] sm:$0xff] %vm2613, %v2532
      %2637 = vst.msk [vmem:[#allocation3 + $0x170] sm:$0xff] %vm2613, %v2534
      %2638 = vst.msk [vmem:[#allocation3 + $0x180] sm:$0xff] %vm2613, %v2536
      %2639 = vst.msk [vmem:[#allocation3 + $0x190] sm:$0xff] %vm2613, %v2538
      %2640 = vst.msk [vmem:[#allocation3 + $0x1a0] sm:$0xff] %vm2613, %v2540
      %2641 = vst.msk [vmem:[#allocation3 + $0x1b0] sm:$0xff] %vm2613, %v2542
      %2642 = vst.msk [vmem:[#allocation3 + $0x1c0] sm:$0xff] %vm2613, %v2544
      %2643 = vst.msk [vmem:[#allocation3 + $0x1d0] sm:$0xff] %vm2613, %v2546
      %2644 = vst.msk [vmem:[#allocation3 + $0x1e0] sm:$0xff] %vm2613, %v2548
      %2645 = vst.msk [vmem:[#allocation3 + $0x1f0] sm:$0xff] %vm2613, %v2550
      %2646 = vst.msk [vmem:[#allocation3 + $0x200] sm:$0xff] %vm2613, %v2552
      %2647 = vst.msk [vmem:[#allocation3 + $0x210] sm:$0xff] %vm2613, %v2554
      %2648 = vst.msk [vmem:[#allocation3 + $0x220] sm:$0xff] %vm2613, %v2556
      %2649 = vst.msk [vmem:[#allocation3 + $0x230] sm:$0xff] %vm2613, %v2558
      %2650 = vst.msk [vmem:[#allocation3 + $0x240] sm:$0xff] %vm2613, %v2560
      %2651 = vst.msk [vmem:[#allocation3 + $0x250] sm:$0xff] %vm2613, %v2562
      %2652 = vst.msk [vmem:[#allocation3 + $0x260] sm:$0xff] %vm2613, %v2564
      %2653 = vst.msk [vmem:[#allocation3 + $0x270] sm:$0xff] %vm2613, %v2566
      %2654 = vst.msk [vmem:[#allocation3 + $0x280] sm:$0xff] %vm2613, %v2568
      %2655 = vst.msk [vmem:[#allocation3 + $0x290] sm:$0xff] %vm2613, %v2570
      %v2656 = vld [vmem:[%s408 + $0x33] sm:$0xff]
      %v2657 = vld [vmem:[%s408 + $0x3b] sm:$0xff]
      %v2658 = vld [vmem:[%s408 + $0x43] sm:$0xff]
      %v2659 = vld [vmem:[%s408 + $0x4b] sm:$0xff]
      %v2660 = vld [vmem:[%s408 + $0x53] sm:$0xff]
      %v2661 = vld [vmem:[%s408 + $0x5b] sm:$0xff]
      %v2662 = vld [vmem:[%s408 + $0x63] sm:$0xff]
      %v2663 = vld [vmem:[%s408 + $0x6b] sm:$0xff]
      %v2664 = vld [vmem:[%s408 + $0x73] sm:$0xff]
      %v2665 = vld [vmem:[%s408 + $0x7b] sm:$0xff]
      %v2666 = vld [vmem:[%s408 + $0x83] sm:$0xff]
      %v2667 = vld [vmem:[%s408 + $0x8b] sm:$0xff]
      %v2668 = vld [vmem:[%s408 + $0x93] sm:$0xff]
      %v2669 = vld [vmem:[%s408 + $0x9b] sm:$0xff]
      %v2670 = vld [vmem:[%s408 + $0xa3] sm:$0xff]
      %v2671 = vld [vmem:[%s408 + $0xab] sm:$0xff]
      %v2672 = vld [vmem:[%s408 + $0xb3] sm:$0xff]
      %v2673 = vld [vmem:[%s408 + $0xbb] sm:$0xff]
      %v2674 = vld [vmem:[%s408 + $0xc3] sm:$0xff]
      %v2675 = vld [vmem:[%s408 + $0xcb] sm:$0xff]
      %v2676 = vld [vmem:[%s408 + $0xd3] sm:$0xff]
      %v2677 = vld [vmem:[%s408 + $0xdb] sm:$0xff]
      %v2678 = vld [vmem:[%s408 + $0xe3] sm:$0xff]
      %v2679 = vld [vmem:[%s408 + $0xeb] sm:$0xff]
      %v2680 = vld [vmem:[%s408 + $0xf3] sm:$0xff]
      %v2681 = vld [vmem:[%s408 + $0xfb] sm:$0xff]
      %v2682 = vld [vmem:[%s408 + $0x103] sm:$0xff]
      %v2683 = vld [vmem:[%s408 + $0x10b] sm:$0xff]
      %v2684 = vld [vmem:[%s408 + $0x113] sm:$0xff]
      %v2685 = vld [vmem:[%s408 + $0x11b] sm:$0xff]
      %v2686 = vld [vmem:[%s408 + $0x123] sm:$0xff]
      %v2687 = vld [vmem:[%s408 + $0x12b] sm:$0xff]
      %v2688 = vld [vmem:[%s408 + $0x133] sm:$0xff]
      %v2689 = vld [vmem:[%s408 + $0x13b] sm:$0xff]
      %v2690 = vld [vmem:[%s408 + $0x143] sm:$0xff]
      %v2691 = vld [vmem:[%s408 + $0x14b] sm:$0xff]
      %v2692 = vld [vmem:[%s408 + $0x153] sm:$0xff]
      %v2693 = vld [vmem:[%s408 + $0x15b] sm:$0xff]
      %v2694 = vld [vmem:[%s408 + $0x163] sm:$0xff]
      %v2695 = vld [vmem:[%s408 + $0x16b] sm:$0xff]
      %v2696 = vld [vmem:[%s408 + $0x173] sm:$0xff]
      %v2697 = vld [vmem:[%s408 + $0x17b] sm:$0xff]
      %2740 = vrot.lane.b32.xlu0 %v2656, 32
      %v2741 = vpop.permute.xlu0 %2740
      %2742 = vrot.lane.b32.xlu0 %v2657, 32
      %v2743 = vpop.permute.xlu0 %2742
      %2744 = vrot.lane.b32.xlu0 %v2658, 32
      %v2745 = vpop.permute.xlu0 %2744
      %2746 = vrot.lane.b32.xlu0 %v2659, 32
      %v2747 = vpop.permute.xlu0 %2746
      %2748 = vrot.lane.b32.xlu0 %v2660, 32
      %v2749 = vpop.permute.xlu0 %2748
      %2750 = vrot.lane.b32.xlu0 %v2661, 32
      %v2751 = vpop.permute.xlu0 %2750
      %2752 = vrot.lane.b32.xlu0 %v2662, 32
      %v2753 = vpop.permute.xlu0 %2752
      %2754 = vrot.lane.b32.xlu0 %v2663, 32
      %v2755 = vpop.permute.xlu0 %2754
      %2756 = vrot.lane.b32.xlu0 %v2664, 32
      %v2757 = vpop.permute.xlu0 %2756
      %2758 = vrot.lane.b32.xlu0 %v2665, 32
      %v2759 = vpop.permute.xlu0 %2758
      %2760 = vrot.lane.b32.xlu0 %v2666, 32
      %v2761 = vpop.permute.xlu0 %2760
      %2762 = vrot.lane.b32.xlu0 %v2667, 32
      %v2763 = vpop.permute.xlu0 %2762
      %2764 = vrot.lane.b32.xlu0 %v2668, 32
      %v2765 = vpop.permute.xlu0 %2764
      %2766 = vrot.lane.b32.xlu0 %v2669, 32
      %v2767 = vpop.permute.xlu0 %2766
      %2768 = vrot.lane.b32.xlu0 %v2670, 32
      %v2769 = vpop.permute.xlu0 %2768
      %2770 = vrot.lane.b32.xlu0 %v2671, 32
      %v2771 = vpop.permute.xlu0 %2770
      %2772 = vrot.lane.b32.xlu0 %v2672, 32
      %v2773 = vpop.permute.xlu0 %2772
      %2774 = vrot.lane.b32.xlu0 %v2673, 32
      %v2775 = vpop.permute.xlu0 %2774
      %2776 = vrot.lane.b32.xlu0 %v2674, 32
      %v2777 = vpop.permute.xlu0 %2776
      %2778 = vrot.lane.b32.xlu0 %v2675, 32
      %v2779 = vpop.permute.xlu0 %2778
      %2780 = vrot.lane.b32.xlu0 %v2676, 32
      %v2781 = vpop.permute.xlu0 %2780
      %2782 = vrot.lane.b32.xlu0 %v2677, 32
      %v2783 = vpop.permute.xlu0 %2782
      %2784 = vrot.lane.b32.xlu0 %v2678, 32
      %v2785 = vpop.permute.xlu0 %2784
      %2786 = vrot.lane.b32.xlu0 %v2679, 32
      %v2787 = vpop.permute.xlu0 %2786
      %2788 = vrot.lane.b32.xlu0 %v2680, 32
      %v2789 = vpop.permute.xlu0 %2788
      %2790 = vrot.lane.b32.xlu0 %v2681, 32
      %v2791 = vpop.permute.xlu0 %2790
      %2792 = vrot.lane.b32.xlu0 %v2682, 32
      %v2793 = vpop.permute.xlu0 %2792
      %2794 = vrot.lane.b32.xlu0 %v2683, 32
      %v2795 = vpop.permute.xlu0 %2794
      %2796 = vrot.lane.b32.xlu0 %v2684, 32
      %v2797 = vpop.permute.xlu0 %2796
      %2798 = vrot.lane.b32.xlu0 %v2685, 32
      %v2799 = vpop.permute.xlu0 %2798
      %2800 = vrot.lane.b32.xlu0 %v2686, 32
      %v2801 = vpop.permute.xlu0 %2800
      %2802 = vrot.lane.b32.xlu0 %v2687, 32
      %v2803 = vpop.permute.xlu0 %2802
      %2804 = vrot.lane.b32.xlu0 %v2688, 32
      %v2805 = vpop.permute.xlu0 %2804
      %2806 = vrot.lane.b32.xlu0 %v2689, 32
      %v2807 = vpop.permute.xlu0 %2806
      %2808 = vrot.lane.b32.xlu0 %v2690, 32
      %v2809 = vpop.permute.xlu0 %2808
      %2810 = vrot.lane.b32.xlu0 %v2691, 32
      %v2811 = vpop.permute.xlu0 %2810
      %2812 = vrot.lane.b32.xlu0 %v2692, 32
      %v2813 = vpop.permute.xlu0 %2812
      %2814 = vrot.lane.b32.xlu0 %v2693, 32
      %v2815 = vpop.permute.xlu0 %2814
      %2816 = vrot.lane.b32.xlu0 %v2694, 32
      %v2817 = vpop.permute.xlu0 %2816
      %2818 = vrot.lane.b32.xlu0 %v2695, 32
      %v2819 = vpop.permute.xlu0 %2818
      %2820 = vrot.lane.b32.xlu0 %v2696, 32
      %v2821 = vpop.permute.xlu0 %2820
      %2822 = vrot.lane.b32.xlu0 %v2697, 32
      %v2823 = vpop.permute.xlu0 %2822
      %vm2866 = vcmask 294144
      %2867 = vst.msk [vmem:[#allocation3] sm:$0xff] %vm2866, %v2741
      %2868 = vst.msk [vmem:[#allocation3 + $0x10] sm:$0xff] %vm2866, %v2743
      %2869 = vst.msk [vmem:[#allocation3 + $0x20] sm:$0xff] %vm2866, %v2745
      %2870 = vst.msk [vmem:[#allocation3 + $0x30] sm:$0xff] %vm2866, %v2747
      %2871 = vst.msk [vmem:[#allocation3 + $0x40] sm:$0xff] %vm2866, %v2749
      %2872 = vst.msk [vmem:[#allocation3 + $0x50] sm:$0xff] %vm2866, %v2751
      %2873 = vst.msk [vmem:[#allocation3 + $0x60] sm:$0xff] %vm2866, %v2753
      %2874 = vst.msk [vmem:[#allocation3 + $0x70] sm:$0xff] %vm2866, %v2755
      %2875 = vst.msk [vmem:[#allocation3 + $0x80] sm:$0xff] %vm2866, %v2757
      %2876 = vst.msk [vmem:[#allocation3 + $0x90] sm:$0xff] %vm2866, %v2759
      %2877 = vst.msk [vmem:[#allocation3 + $0xa0] sm:$0xff] %vm2866, %v2761
      %2878 = vst.msk [vmem:[#allocation3 + $0xb0] sm:$0xff] %vm2866, %v2763
      %2879 = vst.msk [vmem:[#allocation3 + $0xc0] sm:$0xff] %vm2866, %v2765
      %2880 = vst.msk [vmem:[#allocation3 + $0xd0] sm:$0xff] %vm2866, %v2767
      %2881 = vst.msk [vmem:[#allocation3 + $0xe0] sm:$0xff] %vm2866, %v2769
      %2882 = vst.msk [vmem:[#allocation3 + $0xf0] sm:$0xff] %vm2866, %v2771
      %2883 = vst.msk [vmem:[#allocation3 + $0x100] sm:$0xff] %vm2866, %v2773
      %2884 = vst.msk [vmem:[#allocation3 + $0x110] sm:$0xff] %vm2866, %v2775
      %2885 = vst.msk [vmem:[#allocation3 + $0x120] sm:$0xff] %vm2866, %v2777
      %2886 = vst.msk [vmem:[#allocation3 + $0x130] sm:$0xff] %vm2866, %v2779
      %2887 = vst.msk [vmem:[#allocation3 + $0x140] sm:$0xff] %vm2866, %v2781
      %2888 = vst.msk [vmem:[#allocation3 + $0x150] sm:$0xff] %vm2866, %v2783
      %2889 = vst.msk [vmem:[#allocation3 + $0x160] sm:$0xff] %vm2866, %v2785
      %2890 = vst.msk [vmem:[#allocation3 + $0x170] sm:$0xff] %vm2866, %v2787
      %2891 = vst.msk [vmem:[#allocation3 + $0x180] sm:$0xff] %vm2866, %v2789
      %2892 = vst.msk [vmem:[#allocation3 + $0x190] sm:$0xff] %vm2866, %v2791
      %2893 = vst.msk [vmem:[#allocation3 + $0x1a0] sm:$0xff] %vm2866, %v2793
      %2894 = vst.msk [vmem:[#allocation3 + $0x1b0] sm:$0xff] %vm2866, %v2795
      %2895 = vst.msk [vmem:[#allocation3 + $0x1c0] sm:$0xff] %vm2866, %v2797
      %2896 = vst.msk [vmem:[#allocation3 + $0x1d0] sm:$0xff] %vm2866, %v2799
      %2897 = vst.msk [vmem:[#allocation3 + $0x1e0] sm:$0xff] %vm2866, %v2801
      %2898 = vst.msk [vmem:[#allocation3 + $0x1f0] sm:$0xff] %vm2866, %v2803
      %2899 = vst.msk [vmem:[#allocation3 + $0x200] sm:$0xff] %vm2866, %v2805
      %2900 = vst.msk [vmem:[#allocation3 + $0x210] sm:$0xff] %vm2866, %v2807
      %2901 = vst.msk [vmem:[#allocation3 + $0x220] sm:$0xff] %vm2866, %v2809
      %2902 = vst.msk [vmem:[#allocation3 + $0x230] sm:$0xff] %vm2866, %v2811
      %2903 = vst.msk [vmem:[#allocation3 + $0x240] sm:$0xff] %vm2866, %v2813
      %2904 = vst.msk [vmem:[#allocation3 + $0x250] sm:$0xff] %vm2866, %v2815
      %2905 = vst.msk [vmem:[#allocation3 + $0x260] sm:$0xff] %vm2866, %v2817
      %2906 = vst.msk [vmem:[#allocation3 + $0x270] sm:$0xff] %vm2866, %v2819
      %2907 = vst.msk [vmem:[#allocation3 + $0x280] sm:$0xff] %vm2866, %v2821
      %2908 = vst.msk [vmem:[#allocation3 + $0x290] sm:$0xff] %vm2866, %v2823
      %v2909 = vld [vmem:[#allocation3] sm:$0xff]
      %v2910 = vld [vmem:[#allocation3 + $0x10] sm:$0xff]
      %v2911 = vld [vmem:[#allocation3 + $0x20] sm:$0xff]
      %v2912 = vld [vmem:[#allocation3 + $0x30] sm:$0xff]
      %v2913 = vld [vmem:[#allocation3 + $0x40] sm:$0xff]
      %v2914 = vld [vmem:[#allocation3 + $0x50] sm:$0xff]
      %v2915 = vld [vmem:[#allocation3 + $0x60] sm:$0xff]
      %v2916 = vld [vmem:[#allocation3 + $0x70] sm:$0xff]
      %v2917 = vld [vmem:[#allocation3 + $0x80] sm:$0xff]
      %v2918 = vld [vmem:[#allocation3 + $0x90] sm:$0xff]
      %v2919 = vld [vmem:[#allocation3 + $0xa0] sm:$0xff]
      %v2920 = vld [vmem:[#allocation3 + $0xb0] sm:$0xff]
      %v2921 = vld [vmem:[#allocation3 + $0xc0] sm:$0xff]
      %v2922 = vld [vmem:[#allocation3 + $0xd0] sm:$0xff]
      %v2923 = vld [vmem:[#allocation3 + $0xe0] sm:$0xff]
      %v2924 = vld [vmem:[#allocation3 + $0xf0] sm:$0xff]
      %v2925 = vld [vmem:[#allocation3 + $0x100] sm:$0xff]
      %v2926 = vld [vmem:[#allocation3 + $0x110] sm:$0xff]
      %v2927 = vld [vmem:[#allocation3 + $0x120] sm:$0xff]
      %v2928 = vld [vmem:[#allocation3 + $0x130] sm:$0xff]
      %v2929 = vld [vmem:[#allocation3 + $0x140] sm:$0xff]
      %v2930 = vld [vmem:[#allocation3 + $0x150] sm:$0xff]
      %v2931 = vld [vmem:[#allocation3 + $0x160] sm:$0xff]
      %v2932 = vld [vmem:[#allocation3 + $0x170] sm:$0xff]
      %v2933 = vld [vmem:[#allocation3 + $0x180] sm:$0xff]
      %v2934 = vld [vmem:[#allocation3 + $0x190] sm:$0xff]
      %v2935 = vld [vmem:[#allocation3 + $0x1a0] sm:$0xff]
      %v2936 = vld [vmem:[#allocation3 + $0x1b0] sm:$0xff]
      %v2937 = vld [vmem:[#allocation3 + $0x1c0] sm:$0xff]
      %v2938 = vld [vmem:[#allocation3 + $0x1d0] sm:$0xff]
      %v2939 = vld [vmem:[#allocation3 + $0x1e0] sm:$0xff]
      %v2940 = vld [vmem:[#allocation3 + $0x1f0] sm:$0xff]
      %v2941 = vld [vmem:[#allocation3 + $0x200] sm:$0xff]
      %v2942 = vld [vmem:[#allocation3 + $0x210] sm:$0xff]
      %v2943 = vld [vmem:[#allocation3 + $0x220] sm:$0xff]
      %v2944 = vld [vmem:[#allocation3 + $0x230] sm:$0xff]
      %v2945 = vld [vmem:[#allocation3 + $0x240] sm:$0xff]
      %v2946 = vld [vmem:[#allocation3 + $0x250] sm:$0xff]
      %v2947 = vld [vmem:[#allocation3 + $0x260] sm:$0xff]
      %v2948 = vld [vmem:[#allocation3 + $0x270] sm:$0xff]
      %v2949 = vld [vmem:[#allocation3 + $0x280] sm:$0xff]
      %v2950 = vld [vmem:[#allocation3 + $0x290] sm:$0xff]
      %v2951 = vld [vmem:[%s2] sm:$0xff]
      %v2952 = vld [vmem:[%s2 + $0x8] sm:$0xff]
      %v2953 = vld [vmem:[%s2 + $0x10] sm:$0xff]
      %v2954 = vld [vmem:[%s2 + $0x18] sm:$0xff]
      %v2955 = vld [vmem:[%s2 + $0x20] sm:$0xff]
      %v2956 = vld [vmem:[%s2 + $0x28] sm:$0xff]
      %v2957 = vld [vmem:[%s2 + $0x30] sm:$0xff]
      %v2958 = vld [vmem:[%s2 + $0x38] sm:$0xff]
      %v2959 = vld [vmem:[%s2 + $0x40] sm:$0xff]
      %v2960 = vld [vmem:[%s2 + $0x48] sm:$0xff]
      %v2961 = vld [vmem:[%s2 + $0x50] sm:$0xff]
      %v2962 = vld [vmem:[%s2 + $0x58] sm:$0xff]
      %v2963 = vld [vmem:[%s2 + $0x60] sm:$0xff]
      %v2964 = vld [vmem:[%s2 + $0x68] sm:$0xff]
      %v2965 = vld [vmem:[%s2 + $0x70] sm:$0xff]
      %v2966 = vld [vmem:[%s2 + $0x78] sm:$0xff]
      %v2967 = vld [vmem:[%s3] sm:$0x1]
      %v2969 = vlaneseq
      %v2970 = vshrl.u32 %v2969, 7
      %v2971 = vsub.s32 0, %v2970
      %v2972 = vrot.slane %v2967, %v2971
      %2974 = vmatprep.subr.mxu0 0.0
      %2975 = vmatpush1.msra.mxu0 %v2966
      %2976 = vmatprep.subr.mxu0 0.0
      %2977 = vmatpush1.msra.mxu0 %v2965
      %2978 = vmatprep.subr.mxu0 0.0
      %2979 = vmatpush1.msra.mxu0 %v2964
      %2980 = vmatprep.subr.mxu0 0.0
      %2981 = vmatpush1.msra.mxu0 %v2963
      %2982 = vmatprep.subr.mxu0 0.0
      %2983 = vmatpush1.msra.mxu0 %v2962
      %2984 = vmatprep.subr.mxu0 0.0
      %2985 = vmatpush1.msra.mxu0 %v2961
      %2986 = vmatprep.subr.mxu0 0.0
      %2987 = vmatpush1.msra.mxu0 %v2960
      %2988 = vmatprep.subr.mxu0 0.0
      %2989 = vmatpush1.msra.mxu0 %v2959
      %2990 = vmatprep.subr.mxu0 0.0
      %2991 = vmatpush1.msra.mxu0 %v2958
      %2992 = vmatprep.subr.mxu0 0.0
      %2993 = vmatpush1.msra.mxu0 %v2957
      %2994 = vmatprep.subr.mxu0 0.0
      %2995 = vmatpush1.msra.mxu0 %v2956
      %2996 = vmatprep.subr.mxu0 0.0
      %2997 = vmatpush1.msra.mxu0 %v2955
      %2998 = vmatprep.subr.mxu0 0.0
      %2999 = vmatpush1.msra.mxu0 %v2954
      %3000 = vmatprep.subr.mxu0 0.0
      %3001 = vmatpush1.msra.mxu0 %v2953
      %3002 = vmatprep.subr.mxu0 0.0
      %3003 = vmatpush1.msra.mxu0 %v2952
      %3004 = vmatprep.subr.mxu0 0.0
      %3005 = vmatpush1.msra.mxu0 %v2951
      %3006 = vmatprep.subr.mxu0 0.0
      %3007 = vmatpush2.msra.mxu0 0.0
      %3008 = vmatprep.subr.mxu0 0.0
      %3009 = vmatpush2.msra.mxu0 0.0
      %3010 = vmatprep.subr.mxu0 0.0
      %3011 = vmatpush2.msra.mxu0 0.0
      %3012 = vmatprep.subr.mxu0 0.0
      %3013 = vmatpush2.msra.mxu0 0.0
      %3014 = vmatprep.subr.mxu0 0.0
      %3015 = vmatpush2.msra.mxu0 0.0
      %3016 = vmatprep.subr.mxu0 0.0
      %3017 = vmatpush2.msra.mxu0 0.0
      %3018 = vmatprep.subr.mxu0 0.0
      %3019 = vmatpush2.msra.mxu0 0.0
      %3020 = vmatprep.subr.mxu0 0.0
      %3021 = vmatpush2.msra.mxu0 0.0
      %3022 = vmatprep.subr.mxu0 0.0
      %3023 = vmatpush2.msra.mxu0 0.0
      %3024 = vmatprep.subr.mxu0 0.0
      %3025 = vmatpush2.msra.mxu0 0.0
      %3026 = vmatprep.subr.mxu0 0.0
      %3027 = vmatpush2.msra.mxu0 0.0
      %3028 = vmatprep.subr.mxu0 0.0
      %3029 = vmatpush2.msra.mxu0 0.0
      %3030 = vmatprep.subr.mxu0 0.0
      %3031 = vmatpush2.msra.mxu0 0.0
      %3032 = vmatprep.subr.mxu0 0.0
      %3033 = vmatpush2.msra.mxu0 0.0
      %3034 = vmatprep.subr.mxu0 0.0
      %3035 = vmatpush2.msra.mxu0 0.0
      %3036 = vmatprep.subr.mxu0 0.0
      %3037 = vmatpush2.msra.mxu0 0.0
      %3038 = vmatprep.mubr.f32.mxu0 0.0
      %3039 = vmatmul.mubr.f32.gmra.mxu0 %v2909
      %v3040 = vpop.f32.mrf.mxu0
      %v3041 = vadd.f32 %v2972, %v3040
      %v3042 = vpop.f32.mrf.mxu0
      %3043 = vmatprep.mubr.f32.mxu0 0.0
      %3044 = vmatmul.mubr.f32.gmra.mxu0 %v2910
      %v3045 = vpop.f32.mrf.mxu0
      %v3046 = vadd.f32 %v2972, %v3045
      %v3047 = vpop.f32.mrf.mxu0
      %3048 = vmatprep.mubr.f32.mxu0 0.0
      %3049 = vmatmul.mubr.f32.gmra.mxu0 %v2911
      %v3050 = vpop.f32.mrf.mxu0
      %v3051 = vadd.f32 %v2972, %v3050
      %v3052 = vpop.f32.mrf.mxu0
      %3053 = vmatprep.mubr.f32.mxu0 0.0
      %3054 = vmatmul.mubr.f32.gmra.mxu0 %v2912
      %v3055 = vpop.f32.mrf.mxu0
      %v3056 = vadd.f32 %v2972, %v3055
      %v3057 = vpop.f32.mrf.mxu0
      %3058 = vmatprep.mubr.f32.mxu0 0.0
      %3059 = vmatmul.mubr.f32.gmra.mxu0 %v2913
      %v3060 = vpop.f32.mrf.mxu0
      %v3061 = vadd.f32 %v2972, %v3060
      %v3062 = vpop.f32.mrf.mxu0
      %3063 = vmatprep.mubr.f32.mxu0 0.0
      %3064 = vmatmul.mubr.f32.gmra.mxu0 %v2914
      %v3065 = vpop.f32.mrf.mxu0
      %v3066 = vadd.f32 %v2972, %v3065
      %v3067 = vpop.f32.mrf.mxu0
      %3068 = vmatprep.mubr.f32.mxu0 0.0
      %3069 = vmatmul.mubr.f32.gmra.mxu0 %v2915
      %v3070 = vpop.f32.mrf.mxu0
      %v3071 = vadd.f32 %v2972, %v3070
      %v3072 = vpop.f32.mrf.mxu0
      %3073 = vmatprep.mubr.f32.mxu0 0.0
      %3074 = vmatmul.mubr.f32.gmra.mxu0 %v2916
      %v3075 = vpop.f32.mrf.mxu0
      %v3076 = vadd.f32 %v2972, %v3075
      %v3077 = vpop.f32.mrf.mxu0
      %3078 = vmatprep.mubr.f32.mxu0 0.0
      %3079 = vmatmul.mubr.f32.gmra.mxu0 %v2917
      %v3080 = vpop.f32.mrf.mxu0
      %v3081 = vadd.f32 %v2972, %v3080
      %v3082 = vpop.f32.mrf.mxu0
      %3083 = vmatprep.mubr.f32.mxu0 0.0
      %3084 = vmatmul.mubr.f32.gmra.mxu0 %v2918
      %v3085 = vpop.f32.mrf.mxu0
      %v3086 = vadd.f32 %v2972, %v3085
      %v3087 = vpop.f32.mrf.mxu0
      %3088 = vmatprep.mubr.f32.mxu0 0.0
      %3089 = vmatmul.mubr.f32.gmra.mxu0 %v2919
      %v3090 = vpop.f32.mrf.mxu0
      %v3091 = vadd.f32 %v2972, %v3090
      %v3092 = vpop.f32.mrf.mxu0
      %3093 = vmatprep.mubr.f32.mxu0 0.0
      %3094 = vmatmul.mubr.f32.gmra.mxu0 %v2920
      %v3095 = vpop.f32.mrf.mxu0
      %v3096 = vadd.f32 %v2972, %v3095
      %v3097 = vpop.f32.mrf.mxu0
      %3098 = vmatprep.mubr.f32.mxu0 0.0
      %3099 = vmatmul.mubr.f32.gmra.mxu0 %v2921
      %v3100 = vpop.f32.mrf.mxu0
      %v3101 = vadd.f32 %v2972, %v3100
      %v3102 = vpop.f32.mrf.mxu0
      %3103 = vmatprep.mubr.f32.mxu0 0.0
      %3104 = vmatmul.mubr.f32.gmra.mxu0 %v2922
      %v3105 = vpop.f32.mrf.mxu0
      %v3106 = vadd.f32 %v2972, %v3105
      %v3107 = vpop.f32.mrf.mxu0
      %3108 = vmatprep.mubr.f32.mxu0 0.0
      %3109 = vmatmul.mubr.f32.gmra.mxu0 %v2923
      %v3110 = vpop.f32.mrf.mxu0
      %v3111 = vadd.f32 %v2972, %v3110
      %v3112 = vpop.f32.mrf.mxu0
      %3113 = vmatprep.mubr.f32.mxu0 0.0
      %3114 = vmatmul.mubr.f32.gmra.mxu0 %v2924
      %v3115 = vpop.f32.mrf.mxu0
      %v3116 = vadd.f32 %v2972, %v3115
      %v3117 = vpop.f32.mrf.mxu0
      %3118 = vmatprep.mubr.f32.mxu0 0.0
      %3119 = vmatmul.mubr.f32.gmra.mxu0 %v2925
      %v3120 = vpop.f32.mrf.mxu0
      %v3121 = vadd.f32 %v2972, %v3120
      %v3122 = vpop.f32.mrf.mxu0
      %3123 = vmatprep.mubr.f32.mxu0 0.0
      %3124 = vmatmul.mubr.f32.gmra.mxu0 %v2926
      %v3125 = vpop.f32.mrf.mxu0
      %v3126 = vadd.f32 %v2972, %v3125
      %v3127 = vpop.f32.mrf.mxu0
      %3128 = vmatprep.mubr.f32.mxu0 0.0
      %3129 = vmatmul.mubr.f32.gmra.mxu0 %v2927
      %v3130 = vpop.f32.mrf.mxu0
      %v3131 = vadd.f32 %v2972, %v3130
      %v3132 = vpop.f32.mrf.mxu0
      %3133 = vmatprep.mubr.f32.mxu0 0.0
      %3134 = vmatmul.mubr.f32.gmra.mxu0 %v2928
      %v3135 = vpop.f32.mrf.mxu0
      %v3136 = vadd.f32 %v2972, %v3135
      %v3137 = vpop.f32.mrf.mxu0
      %3138 = vmatprep.mubr.f32.mxu0 0.0
      %3139 = vmatmul.mubr.f32.gmra.mxu0 %v2929
      %v3140 = vpop.f32.mrf.mxu0
      %v3141 = vadd.f32 %v2972, %v3140
      %v3142 = vpop.f32.mrf.mxu0
      %3143 = vmatprep.mubr.f32.mxu0 0.0
      %3144 = vmatmul.mubr.f32.gmra.mxu0 %v2930
      %v3145 = vpop.f32.mrf.mxu0
      %v3146 = vadd.f32 %v2972, %v3145
      %v3147 = vpop.f32.mrf.mxu0
      %3148 = vmatprep.mubr.f32.mxu0 0.0
      %3149 = vmatmul.mubr.f32.gmra.mxu0 %v2931
      %v3150 = vpop.f32.mrf.mxu0
      %v3151 = vadd.f32 %v2972, %v3150
      %v3152 = vpop.f32.mrf.mxu0
      %3153 = vmatprep.mubr.f32.mxu0 0.0
      %3154 = vmatmul.mubr.f32.gmra.mxu0 %v2932
      %v3155 = vpop.f32.mrf.mxu0
      %v3156 = vadd.f32 %v2972, %v3155
      %v3157 = vpop.f32.mrf.mxu0
      %3158 = vmatprep.mubr.f32.mxu0 0.0
      %3159 = vmatmul.mubr.f32.gmra.mxu0 %v2933
      %v3160 = vpop.f32.mrf.mxu0
      %v3161 = vadd.f32 %v2972, %v3160
      %v3162 = vpop.f32.mrf.mxu0
      %3163 = vmatprep.mubr.f32.mxu0 0.0
      %3164 = vmatmul.mubr.f32.gmra.mxu0 %v2934
      %v3165 = vpop.f32.mrf.mxu0
      %v3166 = vadd.f32 %v2972, %v3165
      %v3167 = vpop.f32.mrf.mxu0
      %3168 = vmatprep.mubr.f32.mxu0 0.0
      %3169 = vmatmul.mubr.f32.gmra.mxu0 %v2935
      %v3170 = vpop.f32.mrf.mxu0
      %v3171 = vadd.f32 %v2972, %v3170
      %v3172 = vpop.f32.mrf.mxu0
      %3173 = vmatprep.mubr.f32.mxu0 0.0
      %3174 = vmatmul.mubr.f32.gmra.mxu0 %v2936
      %v3175 = vpop.f32.mrf.mxu0
      %v3176 = vadd.f32 %v2972, %v3175
      %v3177 = vpop.f32.mrf.mxu0
      %3178 = vmatprep.mubr.f32.mxu0 0.0
      %3179 = vmatmul.mubr.f32.gmra.mxu0 %v2937
      %v3180 = vpop.f32.mrf.mxu0
      %v3181 = vadd.f32 %v2972, %v3180
      %v3182 = vpop.f32.mrf.mxu0
      %3183 = vmatprep.mubr.f32.mxu0 0.0
      %3184 = vmatmul.mubr.f32.gmra.mxu0 %v2938
      %v3185 = vpop.f32.mrf.mxu0
      %v3186 = vadd.f32 %v2972, %v3185
      %v3187 = vpop.f32.mrf.mxu0
      %3188 = vmatprep.mubr.f32.mxu0 0.0
      %3189 = vmatmul.mubr.f32.gmra.mxu0 %v2939
      %v3190 = vpop.f32.mrf.mxu0
      %v3191 = vadd.f32 %v2972, %v3190
      %v3192 = vpop.f32.mrf.mxu0
      %3193 = vmatprep.mubr.f32.mxu0 0.0
      %3194 = vmatmul.mubr.f32.gmra.mxu0 %v2940
      %v3195 = vpop.f32.mrf.mxu0
      %v3196 = vadd.f32 %v2972, %v3195
      %v3197 = vpop.f32.mrf.mxu0
      %3198 = vmatprep.mubr.f32.mxu0 0.0
      %3199 = vmatmul.mubr.f32.gmra.mxu0 %v2941
      %v3200 = vpop.f32.mrf.mxu0
      %v3201 = vadd.f32 %v2972, %v3200
      %v3202 = vpop.f32.mrf.mxu0
      %3203 = vmatprep.mubr.f32.mxu0 0.0
      %3204 = vmatmul.mubr.f32.gmra.mxu0 %v2942
      %v3205 = vpop.f32.mrf.mxu0
      %v3206 = vadd.f32 %v2972, %v3205
      %v3207 = vpop.f32.mrf.mxu0
      %3208 = vmatprep.mubr.f32.mxu0 0.0
      %3209 = vmatmul.mubr.f32.gmra.mxu0 %v2943
      %v3210 = vpop.f32.mrf.mxu0
      %v3211 = vadd.f32 %v2972, %v3210
      %v3212 = vpop.f32.mrf.mxu0
      %3213 = vmatprep.mubr.f32.mxu0 0.0
      %3214 = vmatmul.mubr.f32.gmra.mxu0 %v2944
      %v3215 = vpop.f32.mrf.mxu0
      %v3216 = vadd.f32 %v2972, %v3215
      %v3217 = vpop.f32.mrf.mxu0
      %3218 = vmatprep.mubr.f32.mxu0 0.0
      %3219 = vmatmul.mubr.f32.gmra.mxu0 %v2945
      %v3220 = vpop.f32.mrf.mxu0
      %v3221 = vadd.f32 %v2972, %v3220
      %v3222 = vpop.f32.mrf.mxu0
      %3223 = vmatprep.mubr.f32.mxu0 0.0
      %3224 = vmatmul.mubr.f32.gmra.mxu0 %v2946
      %v3225 = vpop.f32.mrf.mxu0
      %v3226 = vadd.f32 %v2972, %v3225
      %v3227 = vpop.f32.mrf.mxu0
      %3228 = vmatprep.mubr.f32.mxu0 0.0
      %3229 = vmatmul.mubr.f32.gmra.mxu0 %v2947
      %v3230 = vpop.f32.mrf.mxu0
      %v3231 = vadd.f32 %v2972, %v3230
      %v3232 = vpop.f32.mrf.mxu0
      %3233 = vmatprep.mubr.f32.mxu0 0.0
      %3234 = vmatmul.mubr.f32.gmra.mxu0 %v2948
      %v3235 = vpop.f32.mrf.mxu0
      %v3236 = vadd.f32 %v2972, %v3235
      %v3237 = vpop.f32.mrf.mxu0
      %3238 = vmatprep.mubr.f32.mxu0 0.0
      %3239 = vmatmul.mubr.f32.gmra.mxu0 %v2949
      %v3240 = vpop.f32.mrf.mxu0
      %v3241 = vadd.f32 %v2972, %v3240
      %v3242 = vpop.f32.mrf.mxu0
      %3243 = vmatprep.mubr.f32.mxu0 0.0
      %3244 = vmatmul.mubr.f32.gmra.mxu0 %v2950
      %v3245 = vpop.f32.mrf.mxu0
      %v3246 = vadd.f32 %v2972, %v3245
      %v3247 = vpop.f32.mrf.mxu0
      %3248 = vdwg.mxu0
      %v3249 = vtanh.pop %v3041
      %v3250 = vtanh.pop %v3046
      %v3251 = vtanh.pop %v3051
      %v3252 = vtanh.pop %v3056
      %v3253 = vtanh.pop %v3061
      %v3254 = vtanh.pop %v3066
      %v3255 = vtanh.pop %v3071
      %v3256 = vtanh.pop %v3076
      %v3257 = vtanh.pop %v3081
      %v3258 = vtanh.pop %v3086
      %v3259 = vtanh.pop %v3091
      %v3260 = vtanh.pop %v3096
      %v3261 = vtanh.pop %v3101
      %v3262 = vtanh.pop %v3106
      %v3263 = vtanh.pop %v3111
      %v3264 = vtanh.pop %v3116
      %v3265 = vtanh.pop %v3121
      %v3266 = vtanh.pop %v3126
      %v3267 = vtanh.pop %v3131
      %v3268 = vtanh.pop %v3136
      %v3269 = vtanh.pop %v3141
      %v3270 = vtanh.pop %v3146
      %v3271 = vtanh.pop %v3151
      %v3272 = vtanh.pop %v3156
      %v3273 = vtanh.pop %v3161
      %v3274 = vtanh.pop %v3166
      %v3275 = vtanh.pop %v3171
      %v3276 = vtanh.pop %v3176
      %v3277 = vtanh.pop %v3181
      %v3278 = vtanh.pop %v3186
      %v3279 = vtanh.pop %v3191
      %v3280 = vtanh.pop %v3196
      %v3281 = vtanh.pop %v3201
      %v3282 = vtanh.pop %v3206
      %v3283 = vtanh.pop %v3211
      %v3284 = vtanh.pop %v3216
      %v3285 = vtanh.pop %v3221
      %v3286 = vtanh.pop %v3226
      %v3287 = vtanh.pop %v3231
      %v3288 = vtanh.pop %v3236
      %v3289 = vtanh.pop %v3241
      %v3290 = vtanh.pop %v3246
      %v3291 = vsel %vm758, %v3249, 0.0
      %v3292 = vsel %vm759, %v3250, 0.0
      %v3293 = vsel %vm760, %v3251, 0.0
      %v3294 = vsel %vm761, %v3252, 0.0
      %v3295 = vsel %vm762, %v3253, 0.0
      %v3296 = vsel %vm763, %v3254, 0.0
      %v3297 = vsel %vm764, %v3255, 0.0
      %v3298 = vsel %vm765, %v3256, 0.0
      %v3299 = vsel %vm766, %v3257, 0.0
      %v3300 = vsel %vm767, %v3258, 0.0
      %v3301 = vsel %vm768, %v3259, 0.0
      %v3302 = vsel %vm769, %v3260, 0.0
      %v3303 = vsel %vm770, %v3261, 0.0
      %v3304 = vsel %vm771, %v3262, 0.0
      %v3305 = vsel %vm772, %v3263, 0.0
      %v3306 = vsel %vm773, %v3264, 0.0
      %v3307 = vsel %vm774, %v3265, 0.0
      %v3308 = vsel %vm775, %v3266, 0.0
      %v3309 = vsel %vm776, %v3267, 0.0
      %v3310 = vsel %vm777, %v3268, 0.0
      %v3311 = vsel %vm778, %v3269, 0.0
      %v3312 = vsel %vm779, %v3270, 0.0
      %v3313 = vsel %vm780, %v3271, 0.0
      %v3314 = vsel %vm781, %v3272, 0.0
      %v3315 = vsel %vm782, %v3273, 0.0
      %v3316 = vsel %vm783, %v3274, 0.0
      %v3317 = vsel %vm784, %v3275, 0.0
      %v3318 = vsel %vm785, %v3276, 0.0
      %v3319 = vsel %vm786, %v3277, 0.0
      %v3320 = vsel %vm787, %v3278, 0.0
      %v3321 = vsel %vm788, %v3279, 0.0
      %v3322 = vsel %vm789, %v3280, 0.0
      %v3323 = vsel %vm790, %v3281, 0.0
      %v3324 = vsel %vm791, %v3282, 0.0
      %v3325 = vsel %vm792, %v3283, 0.0
      %v3326 = vsel %vm793, %v3284, 0.0
      %v3327 = vsel %vm794, %v3285, 0.0
      %v3328 = vsel %vm795, %v3286, 0.0
      %v3329 = vsel %vm796, %v3287, 0.0
      %v3330 = vsel %vm797, %v3288, 0.0
      %v3331 = vsel %vm798, %v3289, 0.0
      %v3332 = vsel %vm799, %v3290, 0.0
      %3333 = vst [vmem:[#allocation2 + $0x20] sm:$0xff] %v3291
      %3334 = vst [vmem:[#allocation2 + $0x28] sm:$0xff] %v3292
      %3335 = vst [vmem:[#allocation2 + $0x30] sm:$0xff] %v3293
      %3336 = vst [vmem:[#allocation2 + $0x38] sm:$0xff] %v3294
      %3337 = vst [vmem:[#allocation2 + $0x40] sm:$0xff] %v3295
      %3338 = vst [vmem:[#allocation2 + $0x48] sm:$0xff] %v3296
      %3339 = vst [vmem:[#allocation2 + $0x50] sm:$0xff] %v3297
      %3340 = vst [vmem:[#allocation2 + $0x58] sm:$0xff] %v3298
      %3341 = vst [vmem:[#allocation2 + $0x60] sm:$0xff] %v3299
      %3342 = vst [vmem:[#allocation2 + $0x68] sm:$0xff] %v3300
      %3343 = vst [vmem:[#allocation2 + $0x70] sm:$0xff] %v3301
      %3344 = vst [vmem:[#allocation2 + $0x78] sm:$0xff] %v3302
      %3345 = vst [vmem:[#allocation2 + $0x80] sm:$0xff] %v3303
      %3346 = vst [vmem:[#allocation2 + $0x88] sm:$0xff] %v3304
      %3347 = vst [vmem:[#allocation2 + $0x90] sm:$0xff] %v3305
      %3348 = vst [vmem:[#allocation2 + $0x98] sm:$0xff] %v3306
      %3349 = vst [vmem:[#allocation2 + $0xa0] sm:$0xff] %v3307
      %3350 = vst [vmem:[#allocation2 + $0xa8] sm:$0xff] %v3308
      %3351 = vst [vmem:[#allocation2 + $0xb0] sm:$0xff] %v3309
      %3352 = vst [vmem:[#allocation2 + $0xb8] sm:$0xff] %v3310
      %3353 = vst [vmem:[#allocation2 + $0xc0] sm:$0xff] %v3311
      %3354 = vst [vmem:[#allocation2 + $0xc8] sm:$0xff] %v3312
      %3355 = vst [vmem:[#allocation2 + $0xd0] sm:$0xff] %v3313
      %3356 = vst [vmem:[#allocation2 + $0xd8] sm:$0xff] %v3314
      %3357 = vst [vmem:[#allocation2 + $0xe0] sm:$0xff] %v3315
      %3358 = vst [vmem:[#allocation2 + $0xe8] sm:$0xff] %v3316
      %3359 = vst [vmem:[#allocation2 + $0xf0] sm:$0xff] %v3317
      %3360 = vst [vmem:[#allocation2 + $0xf8] sm:$0xff] %v3318
      %3361 = vst [vmem:[#allocation2 + $0x100] sm:$0xff] %v3319
      %3362 = vst [vmem:[#allocation2 + $0x108] sm:$0xff] %v3320
      %3363 = vst [vmem:[#allocation2 + $0x110] sm:$0xff] %v3321
      %3364 = vst [vmem:[#allocation2 + $0x118] sm:$0xff] %v3322
      %3365 = vst [vmem:[#allocation2 + $0x120] sm:$0xff] %v3323
      %3366 = vst [vmem:[#allocation2 + $0x128] sm:$0xff] %v3324
      %3367 = vst [vmem:[#allocation2 + $0x130] sm:$0xff] %v3325
      %3368 = vst [vmem:[#allocation2 + $0x138] sm:$0xff] %v3326
      %3369 = vst [vmem:[#allocation2 + $0x140] sm:$0xff] %v3327
      %3370 = vst [vmem:[#allocation2 + $0x148] sm:$0xff] %v3328
      %3371 = vst [vmem:[#allocation2 + $0x150] sm:$0xff] %v3329
      %3372 = vst [vmem:[#allocation2 + $0x158] sm:$0xff] %v3330
      %3373 = vst [vmem:[#allocation2 + $0x160] sm:$0xff] %v3331
      %3374 = vst [vmem:[#allocation2 + $0x168] sm:$0xff] %v3332
      %v3375 = vld [vmem:[#allocation2 + $0xd] sm:$0xff]
      %v3376 = vld [vmem:[#allocation2 + $0x15] sm:$0xff]
      %v3377 = vld [vmem:[#allocation2 + $0x1d] sm:$0xff]
      %v3378 = vld [vmem:[#allocation2 + $0x25] sm:$0xff]
      %v3379 = vld [vmem:[#allocation2 + $0x2d] sm:$0xff]
      %v3380 = vld [vmem:[#allocation2 + $0x35] sm:$0xff]
      %v3381 = vld [vmem:[#allocation2 + $0x3d] sm:$0xff]
      %v3382 = vld [vmem:[#allocation2 + $0x45] sm:$0xff]
      %v3383 = vld [vmem:[#allocation2 + $0x4d] sm:$0xff]
      %v3384 = vld [vmem:[#allocation2 + $0x55] sm:$0xff]
      %v3385 = vld [vmem:[#allocation2 + $0x5d] sm:$0xff]
      %v3386 = vld [vmem:[#allocation2 + $0x65] sm:$0xff]
      %v3387 = vld [vmem:[#allocation2 + $0x6d] sm:$0xff]
      %v3388 = vld [vmem:[#allocation2 + $0x75] sm:$0xff]
      %v3389 = vld [vmem:[#allocation2 + $0x7d] sm:$0xff]
      %v3390 = vld [vmem:[#allocation2 + $0x85] sm:$0xff]
      %v3391 = vld [vmem:[#allocation2 + $0x8d] sm:$0xff]
      %v3392 = vld [vmem:[#allocation2 + $0x95] sm:$0xff]
      %v3393 = vld [vmem:[#allocation2 + $0x9d] sm:$0xff]
      %v3394 = vld [vmem:[#allocation2 + $0xa5] sm:$0xff]
      %v3395 = vld [vmem:[#allocation2 + $0xad] sm:$0xff]
      %v3396 = vld [vmem:[#allocation2 + $0xb5] sm:$0xff]
      %v3397 = vld [vmem:[#allocation2 + $0xbd] sm:$0xff]
      %v3398 = vld [vmem:[#allocation2 + $0xc5] sm:$0xff]
      %v3399 = vld [vmem:[#allocation2 + $0xcd] sm:$0xff]
      %v3400 = vld [vmem:[#allocation2 + $0xd5] sm:$0xff]
      %v3401 = vld [vmem:[#allocation2 + $0xdd] sm:$0xff]
      %v3402 = vld [vmem:[#allocation2 + $0xe5] sm:$0xff]
      %v3403 = vld [vmem:[#allocation2 + $0xed] sm:$0xff]
      %v3404 = vld [vmem:[#allocation2 + $0xf5] sm:$0xff]
      %v3405 = vld [vmem:[#allocation2 + $0xfd] sm:$0xff]
      %v3406 = vld [vmem:[#allocation2 + $0x105] sm:$0xff]
      %v3407 = vld [vmem:[#allocation2 + $0x10d] sm:$0xff]
      %v3408 = vld [vmem:[#allocation2 + $0x115] sm:$0xff]
      %v3409 = vld [vmem:[#allocation2 + $0x11d] sm:$0xff]
      %v3410 = vld [vmem:[#allocation2 + $0x125] sm:$0xff]
      %v3411 = vld [vmem:[#allocation2 + $0x12d] sm:$0xff]
      %v3412 = vld [vmem:[#allocation2 + $0x135] sm:$0xff]
      %v3413 = vld [vmem:[#allocation2 + $0x13d] sm:$0xff]
      %v3414 = vld [vmem:[#allocation2 + $0x145] sm:$0xff]
      %v3415 = vld [vmem:[#allocation2 + $0x14d] sm:$0xff]
      %v3416 = vld [vmem:[#allocation2 + $0x155] sm:$0xff]
      %vm3417 = vcmask 130048
      %3418 = vst.msk [vmem:[#allocation3] sm:$0xff] %vm3417, %v3375
      %3419 = vst.msk [vmem:[#allocation3 + $0x10] sm:$0xff] %vm3417, %v3376
      %3420 = vst.msk [vmem:[#allocation3 + $0x20] sm:$0xff] %vm3417, %v3377
      %3421 = vst.msk [vmem:[#allocation3 + $0x30] sm:$0xff] %vm3417, %v3378
      %3422 = vst.msk [vmem:[#allocation3 + $0x40] sm:$0xff] %vm3417, %v3379
      %3423 = vst.msk [vmem:[#allocation3 + $0x50] sm:$0xff] %vm3417, %v3380
      %3424 = vst.msk [vmem:[#allocation3 + $0x60] sm:$0xff] %vm3417, %v3381
      %3425 = vst.msk [vmem:[#allocation3 + $0x70] sm:$0xff] %vm3417, %v3382
      %3426 = vst.msk [vmem:[#allocation3 + $0x80] sm:$0xff] %vm3417, %v3383
      %3427 = vst.msk [vmem:[#allocation3 + $0x90] sm:$0xff] %vm3417, %v3384
      %3428 = vst.msk [vmem:[#allocation3 + $0xa0] sm:$0xff] %vm3417, %v3385
      %3429 = vst.msk [vmem:[#allocation3 + $0xb0] sm:$0xff] %vm3417, %v3386
      %3430 = vst.msk [vmem:[#allocation3 + $0xc0] sm:$0xff] %vm3417, %v3387
      %3431 = vst.msk [vmem:[#allocation3 + $0xd0] sm:$0xff] %vm3417, %v3388
      %3432 = vst.msk [vmem:[#allocation3 + $0xe0] sm:$0xff] %vm3417, %v3389
      %3433 = vst.msk [vmem:[#allocation3 + $0xf0] sm:$0xff] %vm3417, %v3390
      %3434 = vst.msk [vmem:[#allocation3 + $0x100] sm:$0xff] %vm3417, %v3391
      %3435 = vst.msk [vmem:[#allocation3 + $0x110] sm:$0xff] %vm3417, %v3392
      %3436 = vst.msk [vmem:[#allocation3 + $0x120] sm:$0xff] %vm3417, %v3393
      %3437 = vst.msk [vmem:[#allocation3 + $0x130] sm:$0xff] %vm3417, %v3394
      %3438 = vst.msk [vmem:[#allocation3 + $0x140] sm:$0xff] %vm3417, %v3395
      %3439 = vst.msk [vmem:[#allocation3 + $0x150] sm:$0xff] %vm3417, %v3396
      %3440 = vst.msk [vmem:[#allocation3 + $0x160] sm:$0xff] %vm3417, %v3397
      %3441 = vst.msk [vmem:[#allocation3 + $0x170] sm:$0xff] %vm3417, %v3398
      %3442 = vst.msk [vmem:[#allocation3 + $0x180] sm:$0xff] %vm3417, %v3399
      %3443 = vst.msk [vmem:[#allocation3 + $0x190] sm:$0xff] %vm3417, %v3400
      %3444 = vst.msk [vmem:[#allocation3 + $0x1a0] sm:$0xff] %vm3417, %v3401
      %3445 = vst.msk [vmem:[#allocation3 + $0x1b0] sm:$0xff] %vm3417, %v3402
      %3446 = vst.msk [vmem:[#allocation3 + $0x1c0] sm:$0xff] %vm3417, %v3403
      %3447 = vst.msk [vmem:[#allocation3 + $0x1d0] sm:$0xff] %vm3417, %v3404
      %3448 = vst.msk [vmem:[#allocation3 + $0x1e0] sm:$0xff] %vm3417, %v3405
      %3449 = vst.msk [vmem:[#allocation3 + $0x1f0] sm:$0xff] %vm3417, %v3406
      %3450 = vst.msk [vmem:[#allocation3 + $0x200] sm:$0xff] %vm3417, %v3407
      %3451 = vst.msk [vmem:[#allocation3 + $0x210] sm:$0xff] %vm3417, %v3408
      %3452 = vst.msk [vmem:[#allocation3 + $0x220] sm:$0xff] %vm3417, %v3409
      %3453 = vst.msk [vmem:[#allocation3 + $0x230] sm:$0xff] %vm3417, %v3410
      %3454 = vst.msk [vmem:[#allocation3 + $0x240] sm:$0xff] %vm3417, %v3411
      %3455 = vst.msk [vmem:[#allocation3 + $0x250] sm:$0xff] %vm3417, %v3412
      %3456 = vst.msk [vmem:[#allocation3 + $0x260] sm:$0xff] %vm3417, %v3413
      %3457 = vst.msk [vmem:[#allocation3 + $0x270] sm:$0xff] %vm3417, %v3414
      %3458 = vst.msk [vmem:[#allocation3 + $0x280] sm:$0xff] %vm3417, %v3415
      %3459 = vst.msk [vmem:[#allocation3 + $0x290] sm:$0xff] %vm3417, %v3416
      %v3460 = vld [vmem:[#allocation2 + $0xe] sm:$0xff]
      %v3461 = vld [vmem:[#allocation2 + $0x16] sm:$0xff]
      %v3462 = vld [vmem:[#allocation2 + $0x1e] sm:$0xff]
      %v3463 = vld [vmem:[#allocation2 + $0x26] sm:$0xff]
      %v3464 = vld [vmem:[#allocation2 + $0x2e] sm:$0xff]
      %v3465 = vld [vmem:[#allocation2 + $0x36] sm:$0xff]
      %v3466 = vld [vmem:[#allocation2 + $0x3e] sm:$0xff]
      %v3467 = vld [vmem:[#allocation2 + $0x46] sm:$0xff]
      %v3468 = vld [vmem:[#allocation2 + $0x4e] sm:$0xff]
      %v3469 = vld [vmem:[#allocation2 + $0x56] sm:$0xff]
      %v3470 = vld [vmem:[#allocation2 + $0x5e] sm:$0xff]
      %v3471 = vld [vmem:[#allocation2 + $0x66] sm:$0xff]
      %v3472 = vld [vmem:[#allocation2 + $0x6e] sm:$0xff]
      %v3473 = vld [vmem:[#allocation2 + $0x76] sm:$0xff]
      %v3474 = vld [vmem:[#allocation2 + $0x7e] sm:$0xff]
      %v3475 = vld [vmem:[#allocation2 + $0x86] sm:$0xff]
      %v3476 = vld [vmem:[#allocation2 + $0x8e] sm:$0xff]
      %v3477 = vld [vmem:[#allocation2 + $0x96] sm:$0xff]
      %v3478 = vld [vmem:[#allocation2 + $0x9e] sm:$0xff]
      %v3479 = vld [vmem:[#allocation2 + $0xa6] sm:$0xff]
      %v3480 = vld [vmem:[#allocation2 + $0xae] sm:$0xff]
      %v3481 = vld [vmem:[#allocation2 + $0xb6] sm:$0xff]
      %v3482 = vld [vmem:[#allocation2 + $0xbe] sm:$0xff]
      %v3483 = vld [vmem:[#allocation2 + $0xc6] sm:$0xff]
      %v3484 = vld [vmem:[#allocation2 + $0xce] sm:$0xff]
      %v3485 = vld [vmem:[#allocation2 + $0xd6] sm:$0xff]
      %v3486 = vld [vmem:[#allocation2 + $0xde] sm:$0xff]
      %v3487 = vld [vmem:[#allocation2 + $0xe6] sm:$0xff]
      %v3488 = vld [vmem:[#allocation2 + $0xee] sm:$0xff]
      %v3489 = vld [vmem:[#allocation2 + $0xf6] sm:$0xff]
      %v3490 = vld [vmem:[#allocation2 + $0xfe] sm:$0xff]
      %v3491 = vld [vmem:[#allocation2 + $0x106] sm:$0xff]
      %v3492 = vld [vmem:[#allocation2 + $0x10e] sm:$0xff]
      %v3493 = vld [vmem:[#allocation2 + $0x116] sm:$0xff]
      %v3494 = vld [vmem:[#allocation2 + $0x11e] sm:$0xff]
      %v3495 = vld [vmem:[#allocation2 + $0x126] sm:$0xff]
      %v3496 = vld [vmem:[#allocation2 + $0x12e] sm:$0xff]
      %v3497 = vld [vmem:[#allocation2 + $0x136] sm:$0xff]
      %v3498 = vld [vmem:[#allocation2 + $0x13e] sm:$0xff]
      %v3499 = vld [vmem:[#allocation2 + $0x146] sm:$0xff]
      %v3500 = vld [vmem:[#allocation2 + $0x14e] sm:$0xff]
      %v3501 = vld [vmem:[#allocation2 + $0x156] sm:$0xff]
      %3544 = vrot.lane.b32.xlu0 %v3460, 16
      %v3545 = vpop.permute.xlu0 %3544
      %3546 = vrot.lane.b32.xlu0 %v3461, 16
      %v3547 = vpop.permute.xlu0 %3546
      %3548 = vrot.lane.b32.xlu0 %v3462, 16
      %v3549 = vpop.permute.xlu0 %3548
      %3550 = vrot.lane.b32.xlu0 %v3463, 16
      %v3551 = vpop.permute.xlu0 %3550
      %3552 = vrot.lane.b32.xlu0 %v3464, 16
      %v3553 = vpop.permute.xlu0 %3552
      %3554 = vrot.lane.b32.xlu0 %v3465, 16
      %v3555 = vpop.permute.xlu0 %3554
      %3556 = vrot.lane.b32.xlu0 %v3466, 16
      %v3557 = vpop.permute.xlu0 %3556
      %3558 = vrot.lane.b32.xlu0 %v3467, 16
      %v3559 = vpop.permute.xlu0 %3558
      %3560 = vrot.lane.b32.xlu0 %v3468, 16
      %v3561 = vpop.permute.xlu0 %3560
      %3562 = vrot.lane.b32.xlu0 %v3469, 16
      %v3563 = vpop.permute.xlu0 %3562
      %3564 = vrot.lane.b32.xlu0 %v3470, 16
      %v3565 = vpop.permute.xlu0 %3564
      %3566 = vrot.lane.b32.xlu0 %v3471, 16
      %v3567 = vpop.permute.xlu0 %3566
      %3568 = vrot.lane.b32.xlu0 %v3472, 16
      %v3569 = vpop.permute.xlu0 %3568
      %3570 = vrot.lane.b32.xlu0 %v3473, 16
      %v3571 = vpop.permute.xlu0 %3570
      %3572 = vrot.lane.b32.xlu0 %v3474, 16
      %v3573 = vpop.permute.xlu0 %3572
      %3574 = vrot.lane.b32.xlu0 %v3475, 16
      %v3575 = vpop.permute.xlu0 %3574
      %3576 = vrot.lane.b32.xlu0 %v3476, 16
      %v3577 = vpop.permute.xlu0 %3576
      %3578 = vrot.lane.b32.xlu0 %v3477, 16
      %v3579 = vpop.permute.xlu0 %3578
      %3580 = vrot.lane.b32.xlu0 %v3478, 16
      %v3581 = vpop.permute.xlu0 %3580
      %3582 = vrot.lane.b32.xlu0 %v3479, 16
      %v3583 = vpop.permute.xlu0 %3582
      %3584 = vrot.lane.b32.xlu0 %v3480, 16
      %v3585 = vpop.permute.xlu0 %3584
      %3586 = vrot.lane.b32.xlu0 %v3481, 16
      %v3587 = vpop.permute.xlu0 %3586
      %3588 = vrot.lane.b32.xlu0 %v3482, 16
      %v3589 = vpop.permute.xlu0 %3588
      %3590 = vrot.lane.b32.xlu0 %v3483, 16
      %v3591 = vpop.permute.xlu0 %3590
      %3592 = vrot.lane.b32.xlu0 %v3484, 16
      %v3593 = vpop.permute.xlu0 %3592
      %3594 = vrot.lane.b32.xlu0 %v3485, 16
      %v3595 = vpop.permute.xlu0 %3594
      %3596 = vrot.lane.b32.xlu0 %v3486, 16
      %v3597 = vpop.permute.xlu0 %3596
      %3598 = vrot.lane.b32.xlu0 %v3487, 16
      %v3599 = vpop.permute.xlu0 %3598
      %3600 = vrot.lane.b32.xlu0 %v3488, 16
      %v3601 = vpop.permute.xlu0 %3600
      %3602 = vrot.lane.b32.xlu0 %v3489, 16
      %v3603 = vpop.permute.xlu0 %3602
      %3604 = vrot.lane.b32.xlu0 %v3490, 16
      %v3605 = vpop.permute.xlu0 %3604
      %3606 = vrot.lane.b32.xlu0 %v3491, 16
      %v3607 = vpop.permute.xlu0 %3606
      %3608 = vrot.lane.b32.xlu0 %v3492, 16
      %v3609 = vpop.permute.xlu0 %3608
      %3610 = vrot.lane.b32.xlu0 %v3493, 16
      %v3611 = vpop.permute.xlu0 %3610
      %3612 = vrot.lane.b32.xlu0 %v3494, 16
      %v3613 = vpop.permute.xlu0 %3612
      %3614 = vrot.lane.b32.xlu0 %v3495, 16
      %v3615 = vpop.permute.xlu0 %3614
      %3616 = vrot.lane.b32.xlu0 %v3496, 16
      %v3617 = vpop.permute.xlu0 %3616
      %3618 = vrot.lane.b32.xlu0 %v3497, 16
      %v3619 = vpop.permute.xlu0 %3618
      %3620 = vrot.lane.b32.xlu0 %v3498, 16
      %v3621 = vpop.permute.xlu0 %3620
      %3622 = vrot.lane.b32.xlu0 %v3499, 16
      %v3623 = vpop.permute.xlu0 %3622
      %3624 = vrot.lane.b32.xlu0 %v3500, 16
      %v3625 = vpop.permute.xlu0 %3624
      %3626 = vrot.lane.b32.xlu0 %v3501, 16
      %v3627 = vpop.permute.xlu0 %3626
      %vm3670 = vcmask 261248
      %3671 = vst.msk [vmem:[#allocation3] sm:$0xff] %vm3670, %v3545
      %3672 = vst.msk [vmem:[#allocation3 + $0x10] sm:$0xff] %vm3670, %v3547
      %3673 = vst.msk [vmem:[#allocation3 + $0x20] sm:$0xff] %vm3670, %v3549
      %3674 = vst.msk [vmem:[#allocation3 + $0x30] sm:$0xff] %vm3670, %v3551
      %3675 = vst.msk [vmem:[#allocation3 + $0x40] sm:$0xff] %vm3670, %v3553
      %3676 = vst.msk [vmem:[#allocation3 + $0x50] sm:$0xff] %vm3670, %v3555
      %3677 = vst.msk [vmem:[#allocation3 + $0x60] sm:$0xff] %vm3670, %v3557
      %3678 = vst.msk [vmem:[#allocation3 + $0x70] sm:$0xff] %vm3670, %v3559
      %3679 = vst.msk [vmem:[#allocation3 + $0x80] sm:$0xff] %vm3670, %v3561
      %3680 = vst.msk [vmem:[#allocation3 + $0x90] sm:$0xff] %vm3670, %v3563
      %3681 = vst.msk [vmem:[#allocation3 + $0xa0] sm:$0xff] %vm3670, %v3565
      %3682 = vst.msk [vmem:[#allocation3 + $0xb0] sm:$0xff] %vm3670, %v3567
      %3683 = vst.msk [vmem:[#allocation3 + $0xc0] sm:$0xff] %vm3670, %v3569
      %3684 = vst.msk [vmem:[#allocation3 + $0xd0] sm:$0xff] %vm3670, %v3571
      %3685 = vst.msk [vmem:[#allocation3 + $0xe0] sm:$0xff] %vm3670, %v3573
      %3686 = vst.msk [vmem:[#allocation3 + $0xf0] sm:$0xff] %vm3670, %v3575
      %3687 = vst.msk [vmem:[#allocation3 + $0x100] sm:$0xff] %vm3670, %v3577
      %3688 = vst.msk [vmem:[#allocation3 + $0x110] sm:$0xff] %vm3670, %v3579
      %3689 = vst.msk [vmem:[#allocation3 + $0x120] sm:$0xff] %vm3670, %v3581
      %3690 = vst.msk [vmem:[#allocation3 + $0x130] sm:$0xff] %vm3670, %v3583
      %3691 = vst.msk [vmem:[#allocation3 + $0x140] sm:$0xff] %vm3670, %v3585
      %3692 = vst.msk [vmem:[#allocation3 + $0x150] sm:$0xff] %vm3670, %v3587
      %3693 = vst.msk [vmem:[#allocation3 + $0x160] sm:$0xff] %vm3670, %v3589
      %3694 = vst.msk [vmem:[#allocation3 + $0x170] sm:$0xff] %vm3670, %v3591
      %3695 = vst.msk [vmem:[#allocation3 + $0x180] sm:$0xff] %vm3670, %v3593
      %3696 = vst.msk [vmem:[#allocation3 + $0x190] sm:$0xff] %vm3670, %v3595
      %3697 = vst.msk [vmem:[#allocation3 + $0x1a0] sm:$0xff] %vm3670, %v3597
      %3698 = vst.msk [vmem:[#allocation3 + $0x1b0] sm:$0xff] %vm3670, %v3599
      %3699 = vst.msk [vmem:[#allocation3 + $0x1c0] sm:$0xff] %vm3670, %v3601
      %3700 = vst.msk [vmem:[#allocation3 + $0x1d0] sm:$0xff] %vm3670, %v3603
      %3701 = vst.msk [vmem:[#allocation3 + $0x1e0] sm:$0xff] %vm3670, %v3605
      %3702 = vst.msk [vmem:[#allocation3 + $0x1f0] sm:$0xff] %vm3670, %v3607
      %3703 = vst.msk [vmem:[#allocation3 + $0x200] sm:$0xff] %vm3670, %v3609
      %3704 = vst.msk [vmem:[#allocation3 + $0x210] sm:$0xff] %vm3670, %v3611
      %3705 = vst.msk [vmem:[#allocation3 + $0x220] sm:$0xff] %vm3670, %v3613
      %3706 = vst.msk [vmem:[#allocation3 + $0x230] sm:$0xff] %vm3670, %v3615
      %3707 = vst.msk [vmem:[#allocation3 + $0x240] sm:$0xff] %vm3670, %v3617
      %3708 = vst.msk [vmem:[#allocation3 + $0x250] sm:$0xff] %vm3670, %v3619
      %3709 = vst.msk [vmem:[#allocation3 + $0x260] sm:$0xff] %vm3670, %v3621
      %3710 = vst.msk [vmem:[#allocation3 + $0x270] sm:$0xff] %vm3670, %v3623
      %3711 = vst.msk [vmem:[#allocation3 + $0x280] sm:$0xff] %vm3670, %v3625
      %3712 = vst.msk [vmem:[#allocation3 + $0x290] sm:$0xff] %vm3670, %v3627
      %v3713 = vld [vmem:[#allocation2 + $0xf] sm:$0xff]
      %v3714 = vld [vmem:[#allocation2 + $0x17] sm:$0xff]
      %v3715 = vld [vmem:[#allocation2 + $0x1f] sm:$0xff]
      %v3716 = vld [vmem:[#allocation2 + $0x27] sm:$0xff]
      %v3717 = vld [vmem:[#allocation2 + $0x2f] sm:$0xff]
      %v3718 = vld [vmem:[#allocation2 + $0x37] sm:$0xff]
      %v3719 = vld [vmem:[#allocation2 + $0x3f] sm:$0xff]
      %v3720 = vld [vmem:[#allocation2 + $0x47] sm:$0xff]
      %v3721 = vld [vmem:[#allocation2 + $0x4f] sm:$0xff]
      %v3722 = vld [vmem:[#allocation2 + $0x57] sm:$0xff]
      %v3723 = vld [vmem:[#allocation2 + $0x5f] sm:$0xff]
      %v3724 = vld [vmem:[#allocation2 + $0x67] sm:$0xff]
      %v3725 = vld [vmem:[#allocation2 + $0x6f] sm:$0xff]
      %v3726 = vld [vmem:[#allocation2 + $0x77] sm:$0xff]
      %v3727 = vld [vmem:[#allocation2 + $0x7f] sm:$0xff]
      %v3728 = vld [vmem:[#allocation2 + $0x87] sm:$0xff]
      %v3729 = vld [vmem:[#allocation2 + $0x8f] sm:$0xff]
      %v3730 = vld [vmem:[#allocation2 + $0x97] sm:$0xff]
      %v3731 = vld [vmem:[#allocation2 + $0x9f] sm:$0xff]
      %v3732 = vld [vmem:[#allocation2 + $0xa7] sm:$0xff]
      %v3733 = vld [vmem:[#allocation2 + $0xaf] sm:$0xff]
      %v3734 = vld [vmem:[#allocation2 + $0xb7] sm:$0xff]
      %v3735 = vld [vmem:[#allocation2 + $0xbf] sm:$0xff]
      %v3736 = vld [vmem:[#allocation2 + $0xc7] sm:$0xff]
      %v3737 = vld [vmem:[#allocation2 + $0xcf] sm:$0xff]
      %v3738 = vld [vmem:[#allocation2 + $0xd7] sm:$0xff]
      %v3739 = vld [vmem:[#allocation2 + $0xdf] sm:$0xff]
      %v3740 = vld [vmem:[#allocation2 + $0xe7] sm:$0xff]
      %v3741 = vld [vmem:[#allocation2 + $0xef] sm:$0xff]
      %v3742 = vld [vmem:[#allocation2 + $0xf7] sm:$0xff]
      %v3743 = vld [vmem:[#allocation2 + $0xff] sm:$0xff]
      %v3744 = vld [vmem:[#allocation2 + $0x107] sm:$0xff]
      %v3745 = vld [vmem:[#allocation2 + $0x10f] sm:$0xff]
      %v3746 = vld [vmem:[#allocation2 + $0x117] sm:$0xff]
      %v3747 = vld [vmem:[#allocation2 + $0x11f] sm:$0xff]
      %v3748 = vld [vmem:[#allocation2 + $0x127] sm:$0xff]
      %v3749 = vld [vmem:[#allocation2 + $0x12f] sm:$0xff]
      %v3750 = vld [vmem:[#allocation2 + $0x137] sm:$0xff]
      %v3751 = vld [vmem:[#allocation2 + $0x13f] sm:$0xff]
      %v3752 = vld [vmem:[#allocation2 + $0x147] sm:$0xff]
      %v3753 = vld [vmem:[#allocation2 + $0x14f] sm:$0xff]
      %v3754 = vld [vmem:[#allocation2 + $0x157] sm:$0xff]
      %3797 = vrot.lane.b32.xlu0 %v3713, 32
      %v3798 = vpop.permute.xlu0 %3797
      %3799 = vrot.lane.b32.xlu0 %v3714, 32
      %v3800 = vpop.permute.xlu0 %3799
      %3801 = vrot.lane.b32.xlu0 %v3715, 32
      %v3802 = vpop.permute.xlu0 %3801
      %3803 = vrot.lane.b32.xlu0 %v3716, 32
      %v3804 = vpop.permute.xlu0 %3803
      %3805 = vrot.lane.b32.xlu0 %v3717, 32
      %v3806 = vpop.permute.xlu0 %3805
      %3807 = vrot.lane.b32.xlu0 %v3718, 32
      %v3808 = vpop.permute.xlu0 %3807
      %3809 = vrot.lane.b32.xlu0 %v3719, 32
      %v3810 = vpop.permute.xlu0 %3809
      %3811 = vrot.lane.b32.xlu0 %v3720, 32
      %v3812 = vpop.permute.xlu0 %3811
      %3813 = vrot.lane.b32.xlu0 %v3721, 32
      %v3814 = vpop.permute.xlu0 %3813
      %3815 = vrot.lane.b32.xlu0 %v3722, 32
      %v3816 = vpop.permute.xlu0 %3815
      %3817 = vrot.lane.b32.xlu0 %v3723, 32
      %v3818 = vpop.permute.xlu0 %3817
      %3819 = vrot.lane.b32.xlu0 %v3724, 32
      %v3820 = vpop.permute.xlu0 %3819
      %3821 = vrot.lane.b32.xlu0 %v3725, 32
      %v3822 = vpop.permute.xlu0 %3821
      %3823 = vrot.lane.b32.xlu0 %v3726, 32
      %v3824 = vpop.permute.xlu0 %3823
      %3825 = vrot.lane.b32.xlu0 %v3727, 32
      %v3826 = vpop.permute.xlu0 %3825
      %3827 = vrot.lane.b32.xlu0 %v3728, 32
      %v3828 = vpop.permute.xlu0 %3827
      %3829 = vrot.lane.b32.xlu0 %v3729, 32
      %v3830 = vpop.permute.xlu0 %3829
      %3831 = vrot.lane.b32.xlu0 %v3730, 32
      %v3832 = vpop.permute.xlu0 %3831
      %3833 = vrot.lane.b32.xlu0 %v3731, 32
      %v3834 = vpop.permute.xlu0 %3833
      %3835 = vrot.lane.b32.xlu0 %v3732, 32
      %v3836 = vpop.permute.xlu0 %3835
      %3837 = vrot.lane.b32.xlu0 %v3733, 32
      %v3838 = vpop.permute.xlu0 %3837
      %3839 = vrot.lane.b32.xlu0 %v3734, 32
      %v3840 = vpop.permute.xlu0 %3839
      %3841 = vrot.lane.b32.xlu0 %v3735, 32
      %v3842 = vpop.permute.xlu0 %3841
      %3843 = vrot.lane.b32.xlu0 %v3736, 32
      %v3844 = vpop.permute.xlu0 %3843
      %3845 = vrot.lane.b32.xlu0 %v3737, 32
      %v3846 = vpop.permute.xlu0 %3845
      %3847 = vrot.lane.b32.xlu0 %v3738, 32
      %v3848 = vpop.permute.xlu0 %3847
      %3849 = vrot.lane.b32.xlu0 %v3739, 32
      %v3850 = vpop.permute.xlu0 %3849
      %3851 = vrot.lane.b32.xlu0 %v3740, 32
      %v3852 = vpop.permute.xlu0 %3851
      %3853 = vrot.lane.b32.xlu0 %v3741, 32
      %v3854 = vpop.permute.xlu0 %3853
      %3855 = vrot.lane.b32.xlu0 %v3742, 32
      %v3856 = vpop.permute.xlu0 %3855
      %3857 = vrot.lane.b32.xlu0 %v3743, 32
      %v3858 = vpop.permute.xlu0 %3857
      %3859 = vrot.lane.b32.xlu0 %v3744, 32
      %v3860 = vpop.permute.xlu0 %3859
      %3861 = vrot.lane.b32.xlu0 %v3745, 32
      %v3862 = vpop.permute.xlu0 %3861
      %3863 = vrot.lane.b32.xlu0 %v3746, 32
      %v3864 = vpop.permute.xlu0 %3863
      %3865 = vrot.lane.b32.xlu0 %v3747, 32
      %v3866 = vpop.permute.xlu0 %3865
      %3867 = vrot.lane.b32.xlu0 %v3748, 32
      %v3868 = vpop.permute.xlu0 %3867
      %3869 = vrot.lane.b32.xlu0 %v3749, 32
      %v3870 = vpop.permute.xlu0 %3869
      %3871 = vrot.lane.b32.xlu0 %v3750, 32
      %v3872 = vpop.permute.xlu0 %3871
      %3873 = vrot.lane.b32.xlu0 %v3751, 32
      %v3874 = vpop.permute.xlu0 %3873
      %3875 = vrot.lane.b32.xlu0 %v3752, 32
      %v3876 = vpop.permute.xlu0 %3875
      %3877 = vrot.lane.b32.xlu0 %v3753, 32
      %v3878 = vpop.permute.xlu0 %3877
      %3879 = vrot.lane.b32.xlu0 %v3754, 32
      %v3880 = vpop.permute.xlu0 %3879
      %vm3923 = vcmask 392448
      %3924 = vst.msk [vmem:[#allocation3] sm:$0xff] %vm3923, %v3798
      %3925 = vst.msk [vmem:[#allocation3 + $0x10] sm:$0xff] %vm3923, %v3800
      %3926 = vst.msk [vmem:[#allocation3 + $0x20] sm:$0xff] %vm3923, %v3802
      %3927 = vst.msk [vmem:[#allocation3 + $0x30] sm:$0xff] %vm3923, %v3804
      %3928 = vst.msk [vmem:[#allocation3 + $0x40] sm:$0xff] %vm3923, %v3806
      %3929 = vst.msk [vmem:[#allocation3 + $0x50] sm:$0xff] %vm3923, %v3808
      %3930 = vst.msk [vmem:[#allocation3 + $0x60] sm:$0xff] %vm3923, %v3810
      %3931 = vst.msk [vmem:[#allocation3 + $0x70] sm:$0xff] %vm3923, %v3812
      %3932 = vst.msk [vmem:[#allocation3 + $0x80] sm:$0xff] %vm3923, %v3814
      %3933 = vst.msk [vmem:[#allocation3 + $0x90] sm:$0xff] %vm3923, %v3816
      %3934 = vst.msk [vmem:[#allocation3 + $0xa0] sm:$0xff] %vm3923, %v3818
      %3935 = vst.msk [vmem:[#allocation3 + $0xb0] sm:$0xff] %vm3923, %v3820
      %3936 = vst.msk [vmem:[#allocation3 + $0xc0] sm:$0xff] %vm3923, %v3822
      %3937 = vst.msk [vmem:[#allocation3 + $0xd0] sm:$0xff] %vm3923, %v3824
      %3938 = vst.msk [vmem:[#allocation3 + $0xe0] sm:$0xff] %vm3923, %v3826
      %3939 = vst.msk [vmem:[#allocation3 + $0xf0] sm:$0xff] %vm3923, %v3828
      %3940 = vst.msk [vmem:[#allocation3 + $0x100] sm:$0xff] %vm3923, %v3830
      %3941 = vst.msk [vmem:[#allocation3 + $0x110] sm:$0xff] %vm3923, %v3832
      %3942 = vst.msk [vmem:[#allocation3 + $0x120] sm:$0xff] %vm3923, %v3834
      %3943 = vst.msk [vmem:[#allocation3 + $0x130] sm:$0xff] %vm3923, %v3836
      %3944 = vst.msk [vmem:[#allocation3 + $0x140] sm:$0xff] %vm3923, %v3838
      %3945 = vst.msk [vmem:[#allocation3 + $0x150] sm:$0xff] %vm3923, %v3840
      %3946 = vst.msk [vmem:[#allocation3 + $0x160] sm:$0xff] %vm3923, %v3842
      %3947 = vst.msk [vmem:[#allocation3 + $0x170] sm:$0xff] %vm3923, %v3844
      %3948 = vst.msk [vmem:[#allocation3 + $0x180] sm:$0xff] %vm3923, %v3846
      %3949 = vst.msk [vmem:[#allocation3 + $0x190] sm:$0xff] %vm3923, %v3848
      %3950 = vst.msk [vmem:[#allocation3 + $0x1a0] sm:$0xff] %vm3923, %v3850
      %3951 = vst.msk [vmem:[#allocation3 + $0x1b0] sm:$0xff] %vm3923, %v3852
      %3952 = vst.msk [vmem:[#allocation3 + $0x1c0] sm:$0xff] %vm3923, %v3854
      %3953 = vst.msk [vmem:[#allocation3 + $0x1d0] sm:$0xff] %vm3923, %v3856
      %3954 = vst.msk [vmem:[#allocation3 + $0x1e0] sm:$0xff] %vm3923, %v3858
      %3955 = vst.msk [vmem:[#allocation3 + $0x1f0] sm:$0xff] %vm3923, %v3860
      %3956 = vst.msk [vmem:[#allocation3 + $0x200] sm:$0xff] %vm3923, %v3862
      %3957 = vst.msk [vmem:[#allocation3 + $0x210] sm:$0xff] %vm3923, %v3864
      %3958 = vst.msk [vmem:[#allocation3 + $0x220] sm:$0xff] %vm3923, %v3866
      %3959 = vst.msk [vmem:[#allocation3 + $0x230] sm:$0xff] %vm3923, %v3868
      %3960 = vst.msk [vmem:[#allocation3 + $0x240] sm:$0xff] %vm3923, %v3870
      %3961 = vst.msk [vmem:[#allocation3 + $0x250] sm:$0xff] %vm3923, %v3872
      %3962 = vst.msk [vmem:[#allocation3 + $0x260] sm:$0xff] %vm3923, %v3874
      %3963 = vst.msk [vmem:[#allocation3 + $0x270] sm:$0xff] %vm3923, %v3876
      %3964 = vst.msk [vmem:[#allocation3 + $0x280] sm:$0xff] %vm3923, %v3878
      %3965 = vst.msk [vmem:[#allocation3 + $0x290] sm:$0xff] %vm3923, %v3880
      %v3966 = vld [vmem:[#allocation2 + $0x1f] sm:$0xff]
      %v3967 = vld [vmem:[#allocation2 + $0x27] sm:$0xff]
      %v3968 = vld [vmem:[#allocation2 + $0x2f] sm:$0xff]
      %v3969 = vld [vmem:[#allocation2 + $0x37] sm:$0xff]
      %v3970 = vld [vmem:[#allocation2 + $0x3f] sm:$0xff]
      %v3971 = vld [vmem:[#allocation2 + $0x47] sm:$0xff]
      %v3972 = vld [vmem:[#allocation2 + $0x4f] sm:$0xff]
      %v3973 = vld [vmem:[#allocation2 + $0x57] sm:$0xff]
      %v3974 = vld [vmem:[#allocation2 + $0x5f] sm:$0xff]
      %v3975 = vld [vmem:[#allocation2 + $0x67] sm:$0xff]
      %v3976 = vld [vmem:[#allocation2 + $0x6f] sm:$0xff]
      %v3977 = vld [vmem:[#allocation2 + $0x77] sm:$0xff]
      %v3978 = vld [vmem:[#allocation2 + $0x7f] sm:$0xff]
      %v3979 = vld [vmem:[#allocation2 + $0x87] sm:$0xff]
      %v3980 = vld [vmem:[#allocation2 + $0x8f] sm:$0xff]
      %v3981 = vld [vmem:[#allocation2 + $0x97] sm:$0xff]
      %v3982 = vld [vmem:[#allocation2 + $0x9f] sm:$0xff]
      %v3983 = vld [vmem:[#allocation2 + $0xa7] sm:$0xff]
      %v3984 = vld [vmem:[#allocation2 + $0xaf] sm:$0xff]
      %v3985 = vld [vmem:[#allocation2 + $0xb7] sm:$0xff]
      %v3986 = vld [vmem:[#allocation2 + $0xbf] sm:$0xff]
      %v3987 = vld [vmem:[#allocation2 + $0xc7] sm:$0xff]
      %v3988 = vld [vmem:[#allocation2 + $0xcf] sm:$0xff]
      %v3989 = vld [vmem:[#allocation2 + $0xd7] sm:$0xff]
      %v3990 = vld [vmem:[#allocation2 + $0xdf] sm:$0xff]
      %v3991 = vld [vmem:[#allocation2 + $0xe7] sm:$0xff]
      %v3992 = vld [vmem:[#allocation2 + $0xef] sm:$0xff]
      %v3993 = vld [vmem:[#allocation2 + $0xf7] sm:$0xff]
      %v3994 = vld [vmem:[#allocation2 + $0xff] sm:$0xff]
      %v3995 = vld [vmem:[#allocation2 + $0x107] sm:$0xff]
      %v3996 = vld [vmem:[#allocation2 + $0x10f] sm:$0xff]
      %v3997 = vld [vmem:[#allocation2 + $0x117] sm:$0xff]
      %v3998 = vld [vmem:[#allocation2 + $0x11f] sm:$0xff]
      %v3999 = vld [vmem:[#allocation2 + $0x127] sm:$0xff]
      %v4000 = vld [vmem:[#allocation2 + $0x12f] sm:$0xff]
      %v4001 = vld [vmem:[#allocation2 + $0x137] sm:$0xff]
      %v4002 = vld [vmem:[#allocation2 + $0x13f] sm:$0xff]
      %v4003 = vld [vmem:[#allocation2 + $0x147] sm:$0xff]
      %v4004 = vld [vmem:[#allocation2 + $0x14f] sm:$0xff]
      %v4005 = vld [vmem:[#allocation2 + $0x157] sm:$0xff]
      %v4006 = vld [vmem:[#allocation2 + $0x15f] sm:$0xff]
      %v4007 = vld [vmem:[#allocation2 + $0x167] sm:$0xff]
      %4050 = vrot.lane.b32.xlu0 %v3966, 48
      %v4051 = vpop.permute.xlu0 %4050
      %4052 = vrot.lane.b32.xlu0 %v3967, 48
      %v4053 = vpop.permute.xlu0 %4052
      %4054 = vrot.lane.b32.xlu0 %v3968, 48
      %v4055 = vpop.permute.xlu0 %4054
      %4056 = vrot.lane.b32.xlu0 %v3969, 48
      %v4057 = vpop.permute.xlu0 %4056
      %4058 = vrot.lane.b32.xlu0 %v3970, 48
      %v4059 = vpop.permute.xlu0 %4058
      %4060 = vrot.lane.b32.xlu0 %v3971, 48
      %v4061 = vpop.permute.xlu0 %4060
      %4062 = vrot.lane.b32.xlu0 %v3972, 48
      %v4063 = vpop.permute.xlu0 %4062
      %4064 = vrot.lane.b32.xlu0 %v3973, 48
      %v4065 = vpop.permute.xlu0 %4064
      %4066 = vrot.lane.b32.xlu0 %v3974, 48
      %v4067 = vpop.permute.xlu0 %4066
      %4068 = vrot.lane.b32.xlu0 %v3975, 48
      %v4069 = vpop.permute.xlu0 %4068
      %4070 = vrot.lane.b32.xlu0 %v3976, 48
      %v4071 = vpop.permute.xlu0 %4070
      %4072 = vrot.lane.b32.xlu0 %v3977, 48
      %v4073 = vpop.permute.xlu0 %4072
      %4074 = vrot.lane.b32.xlu0 %v3978, 48
      %v4075 = vpop.permute.xlu0 %4074
      %4076 = vrot.lane.b32.xlu0 %v3979, 48
      %v4077 = vpop.permute.xlu0 %4076
      %4078 = vrot.lane.b32.xlu0 %v3980, 48
      %v4079 = vpop.permute.xlu0 %4078
      %4080 = vrot.lane.b32.xlu0 %v3981, 48
      %v4081 = vpop.permute.xlu0 %4080
      %4082 = vrot.lane.b32.xlu0 %v3982, 48
      %v4083 = vpop.permute.xlu0 %4082
      %4084 = vrot.lane.b32.xlu0 %v3983, 48
      %v4085 = vpop.permute.xlu0 %4084
      %4086 = vrot.lane.b32.xlu0 %v3984, 48
      %v4087 = vpop.permute.xlu0 %4086
      %4088 = vrot.lane.b32.xlu0 %v3985, 48
      %v4089 = vpop.permute.xlu0 %4088
      %4090 = vrot.lane.b32.xlu0 %v3986, 48
      %v4091 = vpop.permute.xlu0 %4090
      %4092 = vrot.lane.b32.xlu0 %v3987, 48
      %v4093 = vpop.permute.xlu0 %4092
      %4094 = vrot.lane.b32.xlu0 %v3988, 48
      %v4095 = vpop.permute.xlu0 %4094
      %4096 = vrot.lane.b32.xlu0 %v3989, 48
      %v4097 = vpop.permute.xlu0 %4096
      %4098 = vrot.lane.b32.xlu0 %v3990, 48
      %v4099 = vpop.permute.xlu0 %4098
      %4100 = vrot.lane.b32.xlu0 %v3991, 48
      %v4101 = vpop.permute.xlu0 %4100
      %4102 = vrot.lane.b32.xlu0 %v3992, 48
      %v4103 = vpop.permute.xlu0 %4102
      %4104 = vrot.lane.b32.xlu0 %v3993, 48
      %v4105 = vpop.permute.xlu0 %4104
      %4106 = vrot.lane.b32.xlu0 %v3994, 48
      %v4107 = vpop.permute.xlu0 %4106
      %4108 = vrot.lane.b32.xlu0 %v3995, 48
      %v4109 = vpop.permute.xlu0 %4108
      %4110 = vrot.lane.b32.xlu0 %v3996, 48
      %v4111 = vpop.permute.xlu0 %4110
      %4112 = vrot.lane.b32.xlu0 %v3997, 48
      %v4113 = vpop.permute.xlu0 %4112
      %4114 = vrot.lane.b32.xlu0 %v3998, 48
      %v4115 = vpop.permute.xlu0 %4114
      %4116 = vrot.lane.b32.xlu0 %v3999, 48
      %v4117 = vpop.permute.xlu0 %4116
      %4118 = vrot.lane.b32.xlu0 %v4000, 48
      %v4119 = vpop.permute.xlu0 %4118
      %4120 = vrot.lane.b32.xlu0 %v4001, 48
      %v4121 = vpop.permute.xlu0 %4120
      %4122 = vrot.lane.b32.xlu0 %v4002, 48
      %v4123 = vpop.permute.xlu0 %4122
      %4124 = vrot.lane.b32.xlu0 %v4003, 48
      %v4125 = vpop.permute.xlu0 %4124
      %4126 = vrot.lane.b32.xlu0 %v4004, 48
      %v4127 = vpop.permute.xlu0 %4126
      %4128 = vrot.lane.b32.xlu0 %v4005, 48
      %v4129 = vpop.permute.xlu0 %4128
      %4130 = vrot.lane.b32.xlu0 %v4006, 48
      %v4131 = vpop.permute.xlu0 %4130
      %4132 = vrot.lane.b32.xlu0 %v4007, 48
      %v4133 = vpop.permute.xlu0 %4132
      %vm4176 = vcmask 523648
      %4177 = vst.msk [vmem:[#allocation3] sm:$0xff] %vm4176, %v4051
      %4178 = vst.msk [vmem:[#allocation3 + $0x10] sm:$0xff] %vm4176, %v4053
      %4179 = vst.msk [vmem:[#allocation3 + $0x20] sm:$0xff] %vm4176, %v4055
      %4180 = vst.msk [vmem:[#allocation3 + $0x30] sm:$0xff] %vm4176, %v4057
      %4181 = vst.msk [vmem:[#allocation3 + $0x40] sm:$0xff] %vm4176, %v4059
      %4182 = vst.msk [vmem:[#allocation3 + $0x50] sm:$0xff] %vm4176, %v4061
      %4183 = vst.msk [vmem:[#allocation3 + $0x60] sm:$0xff] %vm4176, %v4063
      %4184 = vst.msk [vmem:[#allocation3 + $0x70] sm:$0xff] %vm4176, %v4065
      %4185 = vst.msk [vmem:[#allocation3 + $0x80] sm:$0xff] %vm4176, %v4067
      %4186 = vst.msk [vmem:[#allocation3 + $0x90] sm:$0xff] %vm4176, %v4069
      %4187 = vst.msk [vmem:[#allocation3 + $0xa0] sm:$0xff] %vm4176, %v4071
      %4188 = vst.msk [vmem:[#allocation3 + $0xb0] sm:$0xff] %vm4176, %v4073
      %4189 = vst.msk [vmem:[#allocation3 + $0xc0] sm:$0xff] %vm4176, %v4075
      %4190 = vst.msk [vmem:[#allocation3 + $0xd0] sm:$0xff] %vm4176, %v4077
      %4191 = vst.msk [vmem:[#allocation3 + $0xe0] sm:$0xff] %vm4176, %v4079
      %4192 = vst.msk [vmem:[#allocation3 + $0xf0] sm:$0xff] %vm4176, %v4081
      %4193 = vst.msk [vmem:[#allocation3 + $0x100] sm:$0xff] %vm4176, %v4083
      %4194 = vst.msk [vmem:[#allocation3 + $0x110] sm:$0xff] %vm4176, %v4085
      %4195 = vst.msk [vmem:[#allocation3 + $0x120] sm:$0xff] %vm4176, %v4087
      %4196 = vst.msk [vmem:[#allocation3 + $0x130] sm:$0xff] %vm4176, %v4089
      %4197 = vst.msk [vmem:[#allocation3 + $0x140] sm:$0xff] %vm4176, %v4091
      %4198 = vst.msk [vmem:[#allocation3 + $0x150] sm:$0xff] %vm4176, %v4093
      %4199 = vst.msk [vmem:[#allocation3 + $0x160] sm:$0xff] %vm4176, %v4095
      %4200 = vst.msk [vmem:[#allocation3 + $0x170] sm:$0xff] %vm4176, %v4097
      %4201 = vst.msk [vmem:[#allocation3 + $0x180] sm:$0xff] %vm4176, %v4099
      %4202 = vst.msk [vmem:[#allocation3 + $0x190] sm:$0xff] %vm4176, %v4101
      %4203 = vst.msk [vmem:[#allocation3 + $0x1a0] sm:$0xff] %vm4176, %v4103
      %4204 = vst.msk [vmem:[#allocation3 + $0x1b0] sm:$0xff] %vm4176, %v4105
      %4205 = vst.msk [vmem:[#allocation3 + $0x1c0] sm:$0xff] %vm4176, %v4107
      %4206 = vst.msk [vmem:[#allocation3 + $0x1d0] sm:$0xff] %vm4176, %v4109
      %4207 = vst.msk [vmem:[#allocation3 + $0x1e0] sm:$0xff] %vm4176, %v4111
      %4208 = vst.msk [vmem:[#allocation3 + $0x1f0] sm:$0xff] %vm4176, %v4113
      %4209 = vst.msk [vmem:[#allocation3 + $0x200] sm:$0xff] %vm4176, %v4115
      %4210 = vst.msk [vmem:[#allocation3 + $0x210] sm:$0xff] %vm4176, %v4117
      %4211 = vst.msk [vmem:[#allocation3 + $0x220] sm:$0xff] %vm4176, %v4119
      %4212 = vst.msk [vmem:[#allocation3 + $0x230] sm:$0xff] %vm4176, %v4121
      %4213 = vst.msk [vmem:[#allocation3 + $0x240] sm:$0xff] %vm4176, %v4123
      %4214 = vst.msk [vmem:[#allocation3 + $0x250] sm:$0xff] %vm4176, %v4125
      %4215 = vst.msk [vmem:[#allocation3 + $0x260] sm:$0xff] %vm4176, %v4127
      %4216 = vst.msk [vmem:[#allocation3 + $0x270] sm:$0xff] %vm4176, %v4129
      %4217 = vst.msk [vmem:[#allocation3 + $0x280] sm:$0xff] %vm4176, %v4131
      %4218 = vst.msk [vmem:[#allocation3 + $0x290] sm:$0xff] %vm4176, %v4133
      %v4219 = vld [vmem:[#allocation2 + $0x20] sm:$0xff]
      %v4220 = vld [vmem:[#allocation2 + $0x28] sm:$0xff]
      %v4221 = vld [vmem:[#allocation2 + $0x30] sm:$0xff]
      %v4222 = vld [vmem:[#allocation2 + $0x38] sm:$0xff]
      %v4223 = vld [vmem:[#allocation2 + $0x40] sm:$0xff]
      %v4224 = vld [vmem:[#allocation2 + $0x48] sm:$0xff]
      %v4225 = vld [vmem:[#allocation2 + $0x50] sm:$0xff]
      %v4226 = vld [vmem:[#allocation2 + $0x58] sm:$0xff]
      %v4227 = vld [vmem:[#allocation2 + $0x60] sm:$0xff]
      %v4228 = vld [vmem:[#allocation2 + $0x68] sm:$0xff]
      %v4229 = vld [vmem:[#allocation2 + $0x70] sm:$0xff]
      %v4230 = vld [vmem:[#allocation2 + $0x78] sm:$0xff]
      %v4231 = vld [vmem:[#allocation2 + $0x80] sm:$0xff]
      %v4232 = vld [vmem:[#allocation2 + $0x88] sm:$0xff]
      %v4233 = vld [vmem:[#allocation2 + $0x90] sm:$0xff]
      %v4234 = vld [vmem:[#allocation2 + $0x98] sm:$0xff]
      %v4235 = vld [vmem:[#allocation2 + $0xa0] sm:$0xff]
      %v4236 = vld [vmem:[#allocation2 + $0xa8] sm:$0xff]
      %v4237 = vld [vmem:[#allocation2 + $0xb0] sm:$0xff]
      %v4238 = vld [vmem:[#allocation2 + $0xb8] sm:$0xff]
      %v4239 = vld [vmem:[#allocation2 + $0xc0] sm:$0xff]
      %v4240 = vld [vmem:[#allocation2 + $0xc8] sm:$0xff]
      %v4241 = vld [vmem:[#allocation2 + $0xd0] sm:$0xff]
      %v4242 = vld [vmem:[#allocation2 + $0xd8] sm:$0xff]
      %v4243 = vld [vmem:[#allocation2 + $0xe0] sm:$0xff]
      %v4244 = vld [vmem:[#allocation2 + $0xe8] sm:$0xff]
      %v4245 = vld [vmem:[#allocation2 + $0xf0] sm:$0xff]
      %v4246 = vld [vmem:[#allocation2 + $0xf8] sm:$0xff]
      %v4247 = vld [vmem:[#allocation2 + $0x100] sm:$0xff]
      %v4248 = vld [vmem:[#allocation2 + $0x108] sm:$0xff]
      %v4249 = vld [vmem:[#allocation2 + $0x110] sm:$0xff]
      %v4250 = vld [vmem:[#allocation2 + $0x118] sm:$0xff]
      %v4251 = vld [vmem:[#allocation2 + $0x120] sm:$0xff]
      %v4252 = vld [vmem:[#allocation2 + $0x128] sm:$0xff]
      %v4253 = vld [vmem:[#allocation2 + $0x130] sm:$0xff]
      %v4254 = vld [vmem:[#allocation2 + $0x138] sm:$0xff]
      %v4255 = vld [vmem:[#allocation2 + $0x140] sm:$0xff]
      %v4256 = vld [vmem:[#allocation2 + $0x148] sm:$0xff]
      %v4257 = vld [vmem:[#allocation2 + $0x150] sm:$0xff]
      %v4258 = vld [vmem:[#allocation2 + $0x158] sm:$0xff]
      %v4259 = vld [vmem:[#allocation2 + $0x160] sm:$0xff]
      %v4260 = vld [vmem:[#allocation2 + $0x168] sm:$0xff]
      %4303 = vrot.lane.b32.xlu0 %v4219, 64
      %v4304 = vpop.permute.xlu0 %4303
      %4305 = vrot.lane.b32.xlu0 %v4220, 64
      %v4306 = vpop.permute.xlu0 %4305
      %4307 = vrot.lane.b32.xlu0 %v4221, 64
      %v4308 = vpop.permute.xlu0 %4307
      %4309 = vrot.lane.b32.xlu0 %v4222, 64
      %v4310 = vpop.permute.xlu0 %4309
      %4311 = vrot.lane.b32.xlu0 %v4223, 64
      %v4312 = vpop.permute.xlu0 %4311
      %4313 = vrot.lane.b32.xlu0 %v4224, 64
      %v4314 = vpop.permute.xlu0 %4313
      %4315 = vrot.lane.b32.xlu0 %v4225, 64
      %v4316 = vpop.permute.xlu0 %4315
      %4317 = vrot.lane.b32.xlu0 %v4226, 64
      %v4318 = vpop.permute.xlu0 %4317
      %4319 = vrot.lane.b32.xlu0 %v4227, 64
      %v4320 = vpop.permute.xlu0 %4319
      %4321 = vrot.lane.b32.xlu0 %v4228, 64
      %v4322 = vpop.permute.xlu0 %4321
      %4323 = vrot.lane.b32.xlu0 %v4229, 64
      %v4324 = vpop.permute.xlu0 %4323
      %4325 = vrot.lane.b32.xlu0 %v4230, 64
      %v4326 = vpop.permute.xlu0 %4325
      %4327 = vrot.lane.b32.xlu0 %v4231, 64
      %v4328 = vpop.permute.xlu0 %4327
      %4329 = vrot.lane.b32.xlu0 %v4232, 64
      %v4330 = vpop.permute.xlu0 %4329
      %4331 = vrot.lane.b32.xlu0 %v4233, 64
      %v4332 = vpop.permute.xlu0 %4331
      %4333 = vrot.lane.b32.xlu0 %v4234, 64
      %v4334 = vpop.permute.xlu0 %4333
      %4335 = vrot.lane.b32.xlu0 %v4235, 64
      %v4336 = vpop.permute.xlu0 %4335
      %4337 = vrot.lane.b32.xlu0 %v4236, 64
      %v4338 = vpop.permute.xlu0 %4337
      %4339 = vrot.lane.b32.xlu0 %v4237, 64
      %v4340 = vpop.permute.xlu0 %4339
      %4341 = vrot.lane.b32.xlu0 %v4238, 64
      %v4342 = vpop.permute.xlu0 %4341
      %4343 = vrot.lane.b32.xlu0 %v4239, 64
      %v4344 = vpop.permute.xlu0 %4343
      %4345 = vrot.lane.b32.xlu0 %v4240, 64
      %v4346 = vpop.permute.xlu0 %4345
      %4347 = vrot.lane.b32.xlu0 %v4241, 64
      %v4348 = vpop.permute.xlu0 %4347
      %4349 = vrot.lane.b32.xlu0 %v4242, 64
      %v4350 = vpop.permute.xlu0 %4349
      %4351 = vrot.lane.b32.xlu0 %v4243, 64
      %v4352 = vpop.permute.xlu0 %4351
      %4353 = vrot.lane.b32.xlu0 %v4244, 64
      %v4354 = vpop.permute.xlu0 %4353
      %4355 = vrot.lane.b32.xlu0 %v4245, 64
      %v4356 = vpop.permute.xlu0 %4355
      %4357 = vrot.lane.b32.xlu0 %v4246, 64
      %v4358 = vpop.permute.xlu0 %4357
      %4359 = vrot.lane.b32.xlu0 %v4247, 64
      %v4360 = vpop.permute.xlu0 %4359
      %4361 = vrot.lane.b32.xlu0 %v4248, 64
      %v4362 = vpop.permute.xlu0 %4361
      %4363 = vrot.lane.b32.xlu0 %v4249, 64
      %v4364 = vpop.permute.xlu0 %4363
      %4365 = vrot.lane.b32.xlu0 %v4250, 64
      %v4366 = vpop.permute.xlu0 %4365
      %4367 = vrot.lane.b32.xlu0 %v4251, 64
      %v4368 = vpop.permute.xlu0 %4367
      %4369 = vrot.lane.b32.xlu0 %v4252, 64
      %v4370 = vpop.permute.xlu0 %4369
      %4371 = vrot.lane.b32.xlu0 %v4253, 64
      %v4372 = vpop.permute.xlu0 %4371
      %4373 = vrot.lane.b32.xlu0 %v4254, 64
      %v4374 = vpop.permute.xlu0 %4373
      %4375 = vrot.lane.b32.xlu0 %v4255, 64
      %v4376 = vpop.permute.xlu0 %4375
      %4377 = vrot.lane.b32.xlu0 %v4256, 64
      %v4378 = vpop.permute.xlu0 %4377
      %4379 = vrot.lane.b32.xlu0 %v4257, 64
      %v4380 = vpop.permute.xlu0 %4379
      %4381 = vrot.lane.b32.xlu0 %v4258, 64
      %v4382 = vpop.permute.xlu0 %4381
      %4383 = vrot.lane.b32.xlu0 %v4259, 64
      %v4384 = vpop.permute.xlu0 %4383
      %4385 = vrot.lane.b32.xlu0 %v4260, 64
      %v4386 = vpop.permute.xlu0 %4385
      %vm4429 = vcmask 654848
      %4430 = vst.msk [vmem:[#allocation3] sm:$0xff] %vm4429, %v4304
      %4431 = vst.msk [vmem:[#allocation3 + $0x10] sm:$0xff] %vm4429, %v4306
      %4432 = vst.msk [vmem:[#allocation3 + $0x20] sm:$0xff] %vm4429, %v4308
      %4433 = vst.msk [vmem:[#allocation3 + $0x30] sm:$0xff] %vm4429, %v4310
      %4434 = vst.msk [vmem:[#allocation3 + $0x40] sm:$0xff] %vm4429, %v4312
      %4435 = vst.msk [vmem:[#allocation3 + $0x50] sm:$0xff] %vm4429, %v4314
      %4436 = vst.msk [vmem:[#allocation3 + $0x60] sm:$0xff] %vm4429, %v4316
      %4437 = vst.msk [vmem:[#allocation3 + $0x70] sm:$0xff] %vm4429, %v4318
      %4438 = vst.msk [vmem:[#allocation3 + $0x80] sm:$0xff] %vm4429, %v4320
      %4439 = vst.msk [vmem:[#allocation3 + $0x90] sm:$0xff] %vm4429, %v4322
      %4440 = vst.msk [vmem:[#allocation3 + $0xa0] sm:$0xff] %vm4429, %v4324
      %4441 = vst.msk [vmem:[#allocation3 + $0xb0] sm:$0xff] %vm4429, %v4326
      %4442 = vst.msk [vmem:[#allocation3 + $0xc0] sm:$0xff] %vm4429, %v4328
      %4443 = vst.msk [vmem:[#allocation3 + $0xd0] sm:$0xff] %vm4429, %v4330
      %4444 = vst.msk [vmem:[#allocation3 + $0xe0] sm:$0xff] %vm4429, %v4332
      %4445 = vst.msk [vmem:[#allocation3 + $0xf0] sm:$0xff] %vm4429, %v4334
      %4446 = vst.msk [vmem:[#allocation3 + $0x100] sm:$0xff] %vm4429, %v4336
      %4447 = vst.msk [vmem:[#allocation3 + $0x110] sm:$0xff] %vm4429, %v4338
      %4448 = vst.msk [vmem:[#allocation3 + $0x120] sm:$0xff] %vm4429, %v4340
      %4449 = vst.msk [vmem:[#allocation3 + $0x130] sm:$0xff] %vm4429, %v4342
      %4450 = vst.msk [vmem:[#allocation3 + $0x140] sm:$0xff] %vm4429, %v4344
      %4451 = vst.msk [vmem:[#allocation3 + $0x150] sm:$0xff] %vm4429, %v4346
      %4452 = vst.msk [vmem:[#allocation3 + $0x160] sm:$0xff] %vm4429, %v4348
      %4453 = vst.msk [vmem:[#allocation3 + $0x170] sm:$0xff] %vm4429, %v4350
      %4454 = vst.msk [vmem:[#allocation3 + $0x180] sm:$0xff] %vm4429, %v4352
      %4455 = vst.msk [vmem:[#allocation3 + $0x190] sm:$0xff] %vm4429, %v4354
      %4456 = vst.msk [vmem:[#allocation3 + $0x1a0] sm:$0xff] %vm4429, %v4356
      %4457 = vst.msk [vmem:[#allocation3 + $0x1b0] sm:$0xff] %vm4429, %v4358
      %4458 = vst.msk [vmem:[#allocation3 + $0x1c0] sm:$0xff] %vm4429, %v4360
      %4459 = vst.msk [vmem:[#allocation3 + $0x1d0] sm:$0xff] %vm4429, %v4362
      %4460 = vst.msk [vmem:[#allocation3 + $0x1e0] sm:$0xff] %vm4429, %v4364
      %4461 = vst.msk [vmem:[#allocation3 + $0x1f0] sm:$0xff] %vm4429, %v4366
      %4462 = vst.msk [vmem:[#allocation3 + $0x200] sm:$0xff] %vm4429, %v4368
      %4463 = vst.msk [vmem:[#allocation3 + $0x210] sm:$0xff] %vm4429, %v4370
      %4464 = vst.msk [vmem:[#allocation3 + $0x220] sm:$0xff] %vm4429, %v4372
      %4465 = vst.msk [vmem:[#allocation3 + $0x230] sm:$0xff] %vm4429, %v4374
      %4466 = vst.msk [vmem:[#allocation3 + $0x240] sm:$0xff] %vm4429, %v4376
      %4467 = vst.msk [vmem:[#allocation3 + $0x250] sm:$0xff] %vm4429, %v4378
      %4468 = vst.msk [vmem:[#allocation3 + $0x260] sm:$0xff] %vm4429, %v4380
      %4469 = vst.msk [vmem:[#allocation3 + $0x270] sm:$0xff] %vm4429, %v4382
      %4470 = vst.msk [vmem:[#allocation3 + $0x280] sm:$0xff] %vm4429, %v4384
      %4471 = vst.msk [vmem:[#allocation3 + $0x290] sm:$0xff] %vm4429, %v4386
      %v4472 = vld [vmem:[#allocation2 + $0x21] sm:$0xff]
      %v4473 = vld [vmem:[#allocation2 + $0x29] sm:$0xff]
      %v4474 = vld [vmem:[#allocation2 + $0x31] sm:$0xff]
      %v4475 = vld [vmem:[#allocation2 + $0x39] sm:$0xff]
      %v4476 = vld [vmem:[#allocation2 + $0x41] sm:$0xff]
      %v4477 = vld [vmem:[#allocation2 + $0x49] sm:$0xff]
      %v4478 = vld [vmem:[#allocation2 + $0x51] sm:$0xff]
      %v4479 = vld [vmem:[#allocation2 + $0x59] sm:$0xff]
      %v4480 = vld [vmem:[#allocation2 + $0x61] sm:$0xff]
      %v4481 = vld [vmem:[#allocation2 + $0x69] sm:$0xff]
      %v4482 = vld [vmem:[#allocation2 + $0x71] sm:$0xff]
      %v4483 = vld [vmem:[#allocation2 + $0x79] sm:$0xff]
      %v4484 = vld [vmem:[#allocation2 + $0x81] sm:$0xff]
      %v4485 = vld [vmem:[#allocation2 + $0x89] sm:$0xff]
      %v4486 = vld [vmem:[#allocation2 + $0x91] sm:$0xff]
      %v4487 = vld [vmem:[#allocation2 + $0x99] sm:$0xff]
      %v4488 = vld [vmem:[#allocation2 + $0xa1] sm:$0xff]
      %v4489 = vld [vmem:[#allocation2 + $0xa9] sm:$0xff]
      %v4490 = vld [vmem:[#allocation2 + $0xb1] sm:$0xff]
      %v4491 = vld [vmem:[#allocation2 + $0xb9] sm:$0xff]
      %v4492 = vld [vmem:[#allocation2 + $0xc1] sm:$0xff]
      %v4493 = vld [vmem:[#allocation2 + $0xc9] sm:$0xff]
      %v4494 = vld [vmem:[#allocation2 + $0xd1] sm:$0xff]
      %v4495 = vld [vmem:[#allocation2 + $0xd9] sm:$0xff]
      %v4496 = vld [vmem:[#allocation2 + $0xe1] sm:$0xff]
      %v4497 = vld [vmem:[#allocation2 + $0xe9] sm:$0xff]
      %v4498 = vld [vmem:[#allocation2 + $0xf1] sm:$0xff]
      %v4499 = vld [vmem:[#allocation2 + $0xf9] sm:$0xff]
      %v4500 = vld [vmem:[#allocation2 + $0x101] sm:$0xff]
      %v4501 = vld [vmem:[#allocation2 + $0x109] sm:$0xff]
      %v4502 = vld [vmem:[#allocation2 + $0x111] sm:$0xff]
      %v4503 = vld [vmem:[#allocation2 + $0x119] sm:$0xff]
      %v4504 = vld [vmem:[#allocation2 + $0x121] sm:$0xff]
      %v4505 = vld [vmem:[#allocation2 + $0x129] sm:$0xff]
      %v4506 = vld [vmem:[#allocation2 + $0x131] sm:$0xff]
      %v4507 = vld [vmem:[#allocation2 + $0x139] sm:$0xff]
      %v4508 = vld [vmem:[#allocation2 + $0x141] sm:$0xff]
      %v4509 = vld [vmem:[#allocation2 + $0x149] sm:$0xff]
      %v4510 = vld [vmem:[#allocation2 + $0x151] sm:$0xff]
      %v4511 = vld [vmem:[#allocation2 + $0x159] sm:$0xff]
      %v4512 = vld [vmem:[#allocation2 + $0x161] sm:$0xff]
      %v4513 = vld [vmem:[#allocation2 + $0x169] sm:$0xff]
      %4556 = vrot.lane.b32.xlu0 %v4472, 80
      %v4557 = vpop.permute.xlu0 %4556
      %4558 = vrot.lane.b32.xlu0 %v4473, 80
      %v4559 = vpop.permute.xlu0 %4558
      %4560 = vrot.lane.b32.xlu0 %v4474, 80
      %v4561 = vpop.permute.xlu0 %4560
      %4562 = vrot.lane.b32.xlu0 %v4475, 80
      %v4563 = vpop.permute.xlu0 %4562
      %4564 = vrot.lane.b32.xlu0 %v4476, 80
      %v4565 = vpop.permute.xlu0 %4564
      %4566 = vrot.lane.b32.xlu0 %v4477, 80
      %v4567 = vpop.permute.xlu0 %4566
      %4568 = vrot.lane.b32.xlu0 %v4478, 80
      %v4569 = vpop.permute.xlu0 %4568
      %4570 = vrot.lane.b32.xlu0 %v4479, 80
      %v4571 = vpop.permute.xlu0 %4570
      %4572 = vrot.lane.b32.xlu0 %v4480, 80
      %v4573 = vpop.permute.xlu0 %4572
      %4574 = vrot.lane.b32.xlu0 %v4481, 80
      %v4575 = vpop.permute.xlu0 %4574
      %4576 = vrot.lane.b32.xlu0 %v4482, 80
      %v4577 = vpop.permute.xlu0 %4576
      %4578 = vrot.lane.b32.xlu0 %v4483, 80
      %v4579 = vpop.permute.xlu0 %4578
      %4580 = vrot.lane.b32.xlu0 %v4484, 80
      %v4581 = vpop.permute.xlu0 %4580
      %4582 = vrot.lane.b32.xlu0 %v4485, 80
      %v4583 = vpop.permute.xlu0 %4582
      %4584 = vrot.lane.b32.xlu0 %v4486, 80
      %v4585 = vpop.permute.xlu0 %4584
      %4586 = vrot.lane.b32.xlu0 %v4487, 80
      %v4587 = vpop.permute.xlu0 %4586
      %4588 = vrot.lane.b32.xlu0 %v4488, 80
      %v4589 = vpop.permute.xlu0 %4588
      %4590 = vrot.lane.b32.xlu0 %v4489, 80
      %v4591 = vpop.permute.xlu0 %4590
      %4592 = vrot.lane.b32.xlu0 %v4490, 80
      %v4593 = vpop.permute.xlu0 %4592
      %4594 = vrot.lane.b32.xlu0 %v4491, 80
      %v4595 = vpop.permute.xlu0 %4594
      %4596 = vrot.lane.b32.xlu0 %v4492, 80
      %v4597 = vpop.permute.xlu0 %4596
      %4598 = vrot.lane.b32.xlu0 %v4493, 80
      %v4599 = vpop.permute.xlu0 %4598
      %4600 = vrot.lane.b32.xlu0 %v4494, 80
      %v4601 = vpop.permute.xlu0 %4600
      %4602 = vrot.lane.b32.xlu0 %v4495, 80
      %v4603 = vpop.permute.xlu0 %4602
      %4604 = vrot.lane.b32.xlu0 %v4496, 80
      %v4605 = vpop.permute.xlu0 %4604
      %4606 = vrot.lane.b32.xlu0 %v4497, 80
      %v4607 = vpop.permute.xlu0 %4606
      %4608 = vrot.lane.b32.xlu0 %v4498, 80
      %v4609 = vpop.permute.xlu0 %4608
      %4610 = vrot.lane.b32.xlu0 %v4499, 80
      %v4611 = vpop.permute.xlu0 %4610
      %4612 = vrot.lane.b32.xlu0 %v4500, 80
      %v4613 = vpop.permute.xlu0 %4612
      %4614 = vrot.lane.b32.xlu0 %v4501, 80
      %v4615 = vpop.permute.xlu0 %4614
      %4616 = vrot.lane.b32.xlu0 %v4502, 80
      %v4617 = vpop.permute.xlu0 %4616
      %4618 = vrot.lane.b32.xlu0 %v4503, 80
      %v4619 = vpop.permute.xlu0 %4618
      %4620 = vrot.lane.b32.xlu0 %v4504, 80
      %v4621 = vpop.permute.xlu0 %4620
      %4622 = vrot.lane.b32.xlu0 %v4505, 80
      %v4623 = vpop.permute.xlu0 %4622
      %4624 = vrot.lane.b32.xlu0 %v4506, 80
      %v4625 = vpop.permute.xlu0 %4624
      %4626 = vrot.lane.b32.xlu0 %v4507, 80
      %v4627 = vpop.permute.xlu0 %4626
      %4628 = vrot.lane.b32.xlu0 %v4508, 80
      %v4629 = vpop.permute.xlu0 %4628
      %4630 = vrot.lane.b32.xlu0 %v4509, 80
      %v4631 = vpop.permute.xlu0 %4630
      %4632 = vrot.lane.b32.xlu0 %v4510, 80
      %v4633 = vpop.permute.xlu0 %4632
      %4634 = vrot.lane.b32.xlu0 %v4511, 80
      %v4635 = vpop.permute.xlu0 %4634
      %4636 = vrot.lane.b32.xlu0 %v4512, 80
      %v4637 = vpop.permute.xlu0 %4636
      %4638 = vrot.lane.b32.xlu0 %v4513, 80
      %v4639 = vpop.permute.xlu0 %4638
      %vm4682 = vcmask 786048
      %4683 = vst.msk [vmem:[#allocation3] sm:$0xff] %vm4682, %v4557
      %4684 = vst.msk [vmem:[#allocation3 + $0x10] sm:$0xff] %vm4682, %v4559
      %4685 = vst.msk [vmem:[#allocation3 + $0x20] sm:$0xff] %vm4682, %v4561
      %4686 = vst.msk [vmem:[#allocation3 + $0x30] sm:$0xff] %vm4682, %v4563
      %4687 = vst.msk [vmem:[#allocation3 + $0x40] sm:$0xff] %vm4682, %v4565
      %4688 = vst.msk [vmem:[#allocation3 + $0x50] sm:$0xff] %vm4682, %v4567
      %4689 = vst.msk [vmem:[#allocation3 + $0x60] sm:$0xff] %vm4682, %v4569
      %4690 = vst.msk [vmem:[#allocation3 + $0x70] sm:$0xff] %vm4682, %v4571
      %4691 = vst.msk [vmem:[#allocation3 + $0x80] sm:$0xff] %vm4682, %v4573
      %4692 = vst.msk [vmem:[#allocation3 + $0x90] sm:$0xff] %vm4682, %v4575
      %4693 = vst.msk [vmem:[#allocation3 + $0xa0] sm:$0xff] %vm4682, %v4577
      %4694 = vst.msk [vmem:[#allocation3 + $0xb0] sm:$0xff] %vm4682, %v4579
      %4695 = vst.msk [vmem:[#allocation3 + $0xc0] sm:$0xff] %vm4682, %v4581
      %4696 = vst.msk [vmem:[#allocation3 + $0xd0] sm:$0xff] %vm4682, %v4583
      %4697 = vst.msk [vmem:[#allocation3 + $0xe0] sm:$0xff] %vm4682, %v4585
      %4698 = vst.msk [vmem:[#allocation3 + $0xf0] sm:$0xff] %vm4682, %v4587
      %4699 = vst.msk [vmem:[#allocation3 + $0x100] sm:$0xff] %vm4682, %v4589
      %4700 = vst.msk [vmem:[#allocation3 + $0x110] sm:$0xff] %vm4682, %v4591
      %4701 = vst.msk [vmem:[#allocation3 + $0x120] sm:$0xff] %vm4682, %v4593
      %4702 = vst.msk [vmem:[#allocation3 + $0x130] sm:$0xff] %vm4682, %v4595
      %4703 = vst.msk [vmem:[#allocation3 + $0x140] sm:$0xff] %vm4682, %v4597
      %4704 = vst.msk [vmem:[#allocation3 + $0x150] sm:$0xff] %vm4682, %v4599
      %4705 = vst.msk [vmem:[#allocation3 + $0x160] sm:$0xff] %vm4682, %v4601
      %4706 = vst.msk [vmem:[#allocation3 + $0x170] sm:$0xff] %vm4682, %v4603
      %4707 = vst.msk [vmem:[#allocation3 + $0x180] sm:$0xff] %vm4682, %v4605
      %4708 = vst.msk [vmem:[#allocation3 + $0x190] sm:$0xff] %vm4682, %v4607
      %4709 = vst.msk [vmem:[#allocation3 + $0x1a0] sm:$0xff] %vm4682, %v4609
      %4710 = vst.msk [vmem:[#allocation3 + $0x1b0] sm:$0xff] %vm4682, %v4611
      %4711 = vst.msk [vmem:[#allocation3 + $0x1c0] sm:$0xff] %vm4682, %v4613
      %4712 = vst.msk [vmem:[#allocation3 + $0x1d0] sm:$0xff] %vm4682, %v4615
      %4713 = vst.msk [vmem:[#allocation3 + $0x1e0] sm:$0xff] %vm4682, %v4617
      %4714 = vst.msk [vmem:[#allocation3 + $0x1f0] sm:$0xff] %vm4682, %v4619
      %4715 = vst.msk [vmem:[#allocation3 + $0x200] sm:$0xff] %vm4682, %v4621
      %4716 = vst.msk [vmem:[#allocation3 + $0x210] sm:$0xff] %vm4682, %v4623
      %4717 = vst.msk [vmem:[#allocation3 + $0x220] sm:$0xff] %vm4682, %v4625
      %4718 = vst.msk [vmem:[#allocation3 + $0x230] sm:$0xff] %vm4682, %v4627
      %4719 = vst.msk [vmem:[#allocation3 + $0x240] sm:$0xff] %vm4682, %v4629
      %4720 = vst.msk [vmem:[#allocation3 + $0x250] sm:$0xff] %vm4682, %v4631
      %4721 = vst.msk [vmem:[#allocation3 + $0x260] sm:$0xff] %vm4682, %v4633
      %4722 = vst.msk [vmem:[#allocation3 + $0x270] sm:$0xff] %vm4682, %v4635
      %4723 = vst.msk [vmem:[#allocation3 + $0x280] sm:$0xff] %vm4682, %v4637
      %4724 = vst.msk [vmem:[#allocation3 + $0x290] sm:$0xff] %vm4682, %v4639
      %v4725 = vld [vmem:[#allocation2 + $0x31] sm:$0xff]
      %v4726 = vld [vmem:[#allocation2 + $0x39] sm:$0xff]
      %v4727 = vld [vmem:[#allocation2 + $0x41] sm:$0xff]
      %v4728 = vld [vmem:[#allocation2 + $0x49] sm:$0xff]
      %v4729 = vld [vmem:[#allocation2 + $0x51] sm:$0xff]
      %v4730 = vld [vmem:[#allocation2 + $0x59] sm:$0xff]
      %v4731 = vld [vmem:[#allocation2 + $0x61] sm:$0xff]
      %v4732 = vld [vmem:[#allocation2 + $0x69] sm:$0xff]
      %v4733 = vld [vmem:[#allocation2 + $0x71] sm:$0xff]
      %v4734 = vld [vmem:[#allocation2 + $0x79] sm:$0xff]
      %v4735 = vld [vmem:[#allocation2 + $0x81] sm:$0xff]
      %v4736 = vld [vmem:[#allocation2 + $0x89] sm:$0xff]
      %v4737 = vld [vmem:[#allocation2 + $0x91] sm:$0xff]
      %v4738 = vld [vmem:[#allocation2 + $0x99] sm:$0xff]
      %v4739 = vld [vmem:[#allocation2 + $0xa1] sm:$0xff]
      %v4740 = vld [vmem:[#allocation2 + $0xa9] sm:$0xff]
      %v4741 = vld [vmem:[#allocation2 + $0xb1] sm:$0xff]
      %v4742 = vld [vmem:[#allocation2 + $0xb9] sm:$0xff]
      %v4743 = vld [vmem:[#allocation2 + $0xc1] sm:$0xff]
      %v4744 = vld [vmem:[#allocation2 + $0xc9] sm:$0xff]
      %v4745 = vld [vmem:[#allocation2 + $0xd1] sm:$0xff]
      %v4746 = vld [vmem:[#allocation2 + $0xd9] sm:$0xff]
      %v4747 = vld [vmem:[#allocation2 + $0xe1] sm:$0xff]
      %v4748 = vld [vmem:[#allocation2 + $0xe9] sm:$0xff]
      %v4749 = vld [vmem:[#allocation2 + $0xf1] sm:$0xff]
      %v4750 = vld [vmem:[#allocation2 + $0xf9] sm:$0xff]
      %v4751 = vld [vmem:[#allocation2 + $0x101] sm:$0xff]
      %v4752 = vld [vmem:[#allocation2 + $0x109] sm:$0xff]
      %v4753 = vld [vmem:[#allocation2 + $0x111] sm:$0xff]
      %v4754 = vld [vmem:[#allocation2 + $0x119] sm:$0xff]
      %v4755 = vld [vmem:[#allocation2 + $0x121] sm:$0xff]
      %v4756 = vld [vmem:[#allocation2 + $0x129] sm:$0xff]
      %v4757 = vld [vmem:[#allocation2 + $0x131] sm:$0xff]
      %v4758 = vld [vmem:[#allocation2 + $0x139] sm:$0xff]
      %v4759 = vld [vmem:[#allocation2 + $0x141] sm:$0xff]
      %v4760 = vld [vmem:[#allocation2 + $0x149] sm:$0xff]
      %v4761 = vld [vmem:[#allocation2 + $0x151] sm:$0xff]
      %v4762 = vld [vmem:[#allocation2 + $0x159] sm:$0xff]
      %v4763 = vld [vmem:[#allocation2 + $0x161] sm:$0xff]
      %v4764 = vld [vmem:[#allocation2 + $0x169] sm:$0xff]
      %v4765 = vld [vmem:[#allocation2 + $0x171] sm:$0xff]
      %v4766 = vld [vmem:[#allocation2 + $0x179] sm:$0xff]
      %4809 = vrot.lane.b32.xlu0 %v4725, 96
      %v4810 = vpop.permute.xlu0 %4809
      %4811 = vrot.lane.b32.xlu0 %v4726, 96
      %v4812 = vpop.permute.xlu0 %4811
      %4813 = vrot.lane.b32.xlu0 %v4727, 96
      %v4814 = vpop.permute.xlu0 %4813
      %4815 = vrot.lane.b32.xlu0 %v4728, 96
      %v4816 = vpop.permute.xlu0 %4815
      %4817 = vrot.lane.b32.xlu0 %v4729, 96
      %v4818 = vpop.permute.xlu0 %4817
      %4819 = vrot.lane.b32.xlu0 %v4730, 96
      %v4820 = vpop.permute.xlu0 %4819
      %4821 = vrot.lane.b32.xlu0 %v4731, 96
      %v4822 = vpop.permute.xlu0 %4821
      %4823 = vrot.lane.b32.xlu0 %v4732, 96
      %v4824 = vpop.permute.xlu0 %4823
      %4825 = vrot.lane.b32.xlu0 %v4733, 96
      %v4826 = vpop.permute.xlu0 %4825
      %4827 = vrot.lane.b32.xlu0 %v4734, 96
      %v4828 = vpop.permute.xlu0 %4827
      %4829 = vrot.lane.b32.xlu0 %v4735, 96
      %v4830 = vpop.permute.xlu0 %4829
      %4831 = vrot.lane.b32.xlu0 %v4736, 96
      %v4832 = vpop.permute.xlu0 %4831
      %4833 = vrot.lane.b32.xlu0 %v4737, 96
      %v4834 = vpop.permute.xlu0 %4833
      %4835 = vrot.lane.b32.xlu0 %v4738, 96
      %v4836 = vpop.permute.xlu0 %4835
      %4837 = vrot.lane.b32.xlu0 %v4739, 96
      %v4838 = vpop.permute.xlu0 %4837
      %4839 = vrot.lane.b32.xlu0 %v4740, 96
      %v4840 = vpop.permute.xlu0 %4839
      %4841 = vrot.lane.b32.xlu0 %v4741, 96
      %v4842 = vpop.permute.xlu0 %4841
      %4843 = vrot.lane.b32.xlu0 %v4742, 96
      %v4844 = vpop.permute.xlu0 %4843
      %4845 = vrot.lane.b32.xlu0 %v4743, 96
      %v4846 = vpop.permute.xlu0 %4845
      %4847 = vrot.lane.b32.xlu0 %v4744, 96
      %v4848 = vpop.permute.xlu0 %4847
      %4849 = vrot.lane.b32.xlu0 %v4745, 96
      %v4850 = vpop.permute.xlu0 %4849
      %4851 = vrot.lane.b32.xlu0 %v4746, 96
      %v4852 = vpop.permute.xlu0 %4851
      %4853 = vrot.lane.b32.xlu0 %v4747, 96
      %v4854 = vpop.permute.xlu0 %4853
      %4855 = vrot.lane.b32.xlu0 %v4748, 96
      %v4856 = vpop.permute.xlu0 %4855
      %4857 = vrot.lane.b32.xlu0 %v4749, 96
      %v4858 = vpop.permute.xlu0 %4857
      %4859 = vrot.lane.b32.xlu0 %v4750, 96
      %v4860 = vpop.permute.xlu0 %4859
      %4861 = vrot.lane.b32.xlu0 %v4751, 96
      %v4862 = vpop.permute.xlu0 %4861
      %4863 = vrot.lane.b32.xlu0 %v4752, 96
      %v4864 = vpop.permute.xlu0 %4863
      %4865 = vrot.lane.b32.xlu0 %v4753, 96
      %v4866 = vpop.permute.xlu0 %4865
      %4867 = vrot.lane.b32.xlu0 %v4754, 96
      %v4868 = vpop.permute.xlu0 %4867
      %4869 = vrot.lane.b32.xlu0 %v4755, 96
      %v4870 = vpop.permute.xlu0 %4869
      %4871 = vrot.lane.b32.xlu0 %v4756, 96
      %v4872 = vpop.permute.xlu0 %4871
      %4873 = vrot.lane.b32.xlu0 %v4757, 96
      %v4874 = vpop.permute.xlu0 %4873
      %4875 = vrot.lane.b32.xlu0 %v4758, 96
      %v4876 = vpop.permute.xlu0 %4875
      %4877 = vrot.lane.b32.xlu0 %v4759, 96
      %v4878 = vpop.permute.xlu0 %4877
      %4879 = vrot.lane.b32.xlu0 %v4760, 96
      %v4880 = vpop.permute.xlu0 %4879
      %4881 = vrot.lane.b32.xlu0 %v4761, 96
      %v4882 = vpop.permute.xlu0 %4881
      %4883 = vrot.lane.b32.xlu0 %v4762, 96
      %v4884 = vpop.permute.xlu0 %4883
      %4885 = vrot.lane.b32.xlu0 %v4763, 96
      %v4886 = vpop.permute.xlu0 %4885
      %4887 = vrot.lane.b32.xlu0 %v4764, 96
      %v4888 = vpop.permute.xlu0 %4887
      %4889 = vrot.lane.b32.xlu0 %v4765, 96
      %v4890 = vpop.permute.xlu0 %4889
      %4891 = vrot.lane.b32.xlu0 %v4766, 96
      %v4892 = vpop.permute.xlu0 %4891
      %vm4935 = vcmask 917248
      %4936 = vst.msk [vmem:[#allocation3] sm:$0xff] %vm4935, %v4810
      %4937 = vst.msk [vmem:[#allocation3 + $0x10] sm:$0xff] %vm4935, %v4812
      %4938 = vst.msk [vmem:[#allocation3 + $0x20] sm:$0xff] %vm4935, %v4814
      %4939 = vst.msk [vmem:[#allocation3 + $0x30] sm:$0xff] %vm4935, %v4816
      %4940 = vst.msk [vmem:[#allocation3 + $0x40] sm:$0xff] %vm4935, %v4818
      %4941 = vst.msk [vmem:[#allocation3 + $0x50] sm:$0xff] %vm4935, %v4820
      %4942 = vst.msk [vmem:[#allocation3 + $0x60] sm:$0xff] %vm4935, %v4822
      %4943 = vst.msk [vmem:[#allocation3 + $0x70] sm:$0xff] %vm4935, %v4824
      %4944 = vst.msk [vmem:[#allocation3 + $0x80] sm:$0xff] %vm4935, %v4826
      %4945 = vst.msk [vmem:[#allocation3 + $0x90] sm:$0xff] %vm4935, %v4828
      %4946 = vst.msk [vmem:[#allocation3 + $0xa0] sm:$0xff] %vm4935, %v4830
      %4947 = vst.msk [vmem:[#allocation3 + $0xb0] sm:$0xff] %vm4935, %v4832
      %4948 = vst.msk [vmem:[#allocation3 + $0xc0] sm:$0xff] %vm4935, %v4834
      %4949 = vst.msk [vmem:[#allocation3 + $0xd0] sm:$0xff] %vm4935, %v4836
      %4950 = vst.msk [vmem:[#allocation3 + $0xe0] sm:$0xff] %vm4935, %v4838
      %4951 = vst.msk [vmem:[#allocation3 + $0xf0] sm:$0xff] %vm4935, %v4840
      %4952 = vst.msk [vmem:[#allocation3 + $0x100] sm:$0xff] %vm4935, %v4842
      %4953 = vst.msk [vmem:[#allocation3 + $0x110] sm:$0xff] %vm4935, %v4844
      %4954 = vst.msk [vmem:[#allocation3 + $0x120] sm:$0xff] %vm4935, %v4846
      %4955 = vst.msk [vmem:[#allocation3 + $0x130] sm:$0xff] %vm4935, %v4848
      %4956 = vst.msk [vmem:[#allocation3 + $0x140] sm:$0xff] %vm4935, %v4850
      %4957 = vst.msk [vmem:[#allocation3 + $0x150] sm:$0xff] %vm4935, %v4852
      %4958 = vst.msk [vmem:[#allocation3 + $0x160] sm:$0xff] %vm4935, %v4854
      %4959 = vst.msk [vmem:[#allocation3 + $0x170] sm:$0xff] %vm4935, %v4856
      %4960 = vst.msk [vmem:[#allocation3 + $0x180] sm:$0xff] %vm4935, %v4858
      %4961 = vst.msk [vmem:[#allocation3 + $0x190] sm:$0xff] %vm4935, %v4860
      %4962 = vst.msk [vmem:[#allocation3 + $0x1a0] sm:$0xff] %vm4935, %v4862
      %4963 = vst.msk [vmem:[#allocation3 + $0x1b0] sm:$0xff] %vm4935, %v4864
      %4964 = vst.msk [vmem:[#allocation3 + $0x1c0] sm:$0xff] %vm4935, %v4866
      %4965 = vst.msk [vmem:[#allocation3 + $0x1d0] sm:$0xff] %vm4935, %v4868
      %4966 = vst.msk [vmem:[#allocation3 + $0x1e0] sm:$0xff] %vm4935, %v4870
      %4967 = vst.msk [vmem:[#allocation3 + $0x1f0] sm:$0xff] %vm4935, %v4872
      %4968 = vst.msk [vmem:[#allocation3 + $0x200] sm:$0xff] %vm4935, %v4874
      %4969 = vst.msk [vmem:[#allocation3 + $0x210] sm:$0xff] %vm4935, %v4876
      %4970 = vst.msk [vmem:[#allocation3 + $0x220] sm:$0xff] %vm4935, %v4878
      %4971 = vst.msk [vmem:[#allocation3 + $0x230] sm:$0xff] %vm4935, %v4880
      %4972 = vst.msk [vmem:[#allocation3 + $0x240] sm:$0xff] %vm4935, %v4882
      %4973 = vst.msk [vmem:[#allocation3 + $0x250] sm:$0xff] %vm4935, %v4884
      %4974 = vst.msk [vmem:[#allocation3 + $0x260] sm:$0xff] %vm4935, %v4886
      %4975 = vst.msk [vmem:[#allocation3 + $0x270] sm:$0xff] %vm4935, %v4888
      %4976 = vst.msk [vmem:[#allocation3 + $0x280] sm:$0xff] %vm4935, %v4890
      %4977 = vst.msk [vmem:[#allocation3 + $0x290] sm:$0xff] %vm4935, %v4892
      %v4978 = vld [vmem:[#allocation2 + $0x32] sm:$0xff]
      %v4979 = vld [vmem:[#allocation2 + $0x3a] sm:$0xff]
      %v4980 = vld [vmem:[#allocation2 + $0x42] sm:$0xff]
      %v4981 = vld [vmem:[#allocation2 + $0x4a] sm:$0xff]
      %v4982 = vld [vmem:[#allocation2 + $0x52] sm:$0xff]
      %v4983 = vld [vmem:[#allocation2 + $0x5a] sm:$0xff]
      %v4984 = vld [vmem:[#allocation2 + $0x62] sm:$0xff]
      %v4985 = vld [vmem:[#allocation2 + $0x6a] sm:$0xff]
      %v4986 = vld [vmem:[#allocation2 + $0x72] sm:$0xff]
      %v4987 = vld [vmem:[#allocation2 + $0x7a] sm:$0xff]
      %v4988 = vld [vmem:[#allocation2 + $0x82] sm:$0xff]
      %v4989 = vld [vmem:[#allocation2 + $0x8a] sm:$0xff]
      %v4990 = vld [vmem:[#allocation2 + $0x92] sm:$0xff]
      %v4991 = vld [vmem:[#allocation2 + $0x9a] sm:$0xff]
      %v4992 = vld [vmem:[#allocation2 + $0xa2] sm:$0xff]
      %v4993 = vld [vmem:[#allocation2 + $0xaa] sm:$0xff]
      %v4994 = vld [vmem:[#allocation2 + $0xb2] sm:$0xff]
      %v4995 = vld [vmem:[#allocation2 + $0xba] sm:$0xff]
      %v4996 = vld [vmem:[#allocation2 + $0xc2] sm:$0xff]
      %v4997 = vld [vmem:[#allocation2 + $0xca] sm:$0xff]
      %v4998 = vld [vmem:[#allocation2 + $0xd2] sm:$0xff]
      %v4999 = vld [vmem:[#allocation2 + $0xda] sm:$0xff]
      %v5000 = vld [vmem:[#allocation2 + $0xe2] sm:$0xff]
      %v5001 = vld [vmem:[#allocation2 + $0xea] sm:$0xff]
      %v5002 = vld [vmem:[#allocation2 + $0xf2] sm:$0xff]
      %v5003 = vld [vmem:[#allocation2 + $0xfa] sm:$0xff]
      %v5004 = vld [vmem:[#allocation2 + $0x102] sm:$0xff]
      %v5005 = vld [vmem:[#allocation2 + $0x10a] sm:$0xff]
      %v5006 = vld [vmem:[#allocation2 + $0x112] sm:$0xff]
      %v5007 = vld [vmem:[#allocation2 + $0x11a] sm:$0xff]
      %v5008 = vld [vmem:[#allocation2 + $0x122] sm:$0xff]
      %v5009 = vld [vmem:[#allocation2 + $0x12a] sm:$0xff]
      %v5010 = vld [vmem:[#allocation2 + $0x132] sm:$0xff]
      %v5011 = vld [vmem:[#allocation2 + $0x13a] sm:$0xff]
      %v5012 = vld [vmem:[#allocation2 + $0x142] sm:$0xff]
      %v5013 = vld [vmem:[#allocation2 + $0x14a] sm:$0xff]
      %v5014 = vld [vmem:[#allocation2 + $0x152] sm:$0xff]
      %v5015 = vld [vmem:[#allocation2 + $0x15a] sm:$0xff]
      %v5016 = vld [vmem:[#allocation2 + $0x162] sm:$0xff]
      %v5017 = vld [vmem:[#allocation2 + $0x16a] sm:$0xff]
      %v5018 = vld [vmem:[#allocation2 + $0x172] sm:$0xff]
      %v5019 = vld [vmem:[#allocation2 + $0x17a] sm:$0xff]
      %5062 = vrot.lane.b32.xlu0 %v4978, 112
      %v5063 = vpop.permute.xlu0 %5062
      %5064 = vrot.lane.b32.xlu0 %v4979, 112
      %v5065 = vpop.permute.xlu0 %5064
      %5066 = vrot.lane.b32.xlu0 %v4980, 112
      %v5067 = vpop.permute.xlu0 %5066
      %5068 = vrot.lane.b32.xlu0 %v4981, 112
      %v5069 = vpop.permute.xlu0 %5068
      %5070 = vrot.lane.b32.xlu0 %v4982, 112
      %v5071 = vpop.permute.xlu0 %5070
      %5072 = vrot.lane.b32.xlu0 %v4983, 112
      %v5073 = vpop.permute.xlu0 %5072
      %5074 = vrot.lane.b32.xlu0 %v4984, 112
      %v5075 = vpop.permute.xlu0 %5074
      %5076 = vrot.lane.b32.xlu0 %v4985, 112
      %v5077 = vpop.permute.xlu0 %5076
      %5078 = vrot.lane.b32.xlu0 %v4986, 112
      %v5079 = vpop.permute.xlu0 %5078
      %5080 = vrot.lane.b32.xlu0 %v4987, 112
      %v5081 = vpop.permute.xlu0 %5080
      %5082 = vrot.lane.b32.xlu0 %v4988, 112
      %v5083 = vpop.permute.xlu0 %5082
      %5084 = vrot.lane.b32.xlu0 %v4989, 112
      %v5085 = vpop.permute.xlu0 %5084
      %5086 = vrot.lane.b32.xlu0 %v4990, 112
      %v5087 = vpop.permute.xlu0 %5086
      %5088 = vrot.lane.b32.xlu0 %v4991, 112
      %v5089 = vpop.permute.xlu0 %5088
      %5090 = vrot.lane.b32.xlu0 %v4992, 112
      %v5091 = vpop.permute.xlu0 %5090
      %5092 = vrot.lane.b32.xlu0 %v4993, 112
      %v5093 = vpop.permute.xlu0 %5092
      %5094 = vrot.lane.b32.xlu0 %v4994, 112
      %v5095 = vpop.permute.xlu0 %5094
      %5096 = vrot.lane.b32.xlu0 %v4995, 112
      %v5097 = vpop.permute.xlu0 %5096
      %5098 = vrot.lane.b32.xlu0 %v4996, 112
      %v5099 = vpop.permute.xlu0 %5098
      %5100 = vrot.lane.b32.xlu0 %v4997, 112
      %v5101 = vpop.permute.xlu0 %5100
      %5102 = vrot.lane.b32.xlu0 %v4998, 112
      %v5103 = vpop.permute.xlu0 %5102
      %5104 = vrot.lane.b32.xlu0 %v4999, 112
      %v5105 = vpop.permute.xlu0 %5104
      %5106 = vrot.lane.b32.xlu0 %v5000, 112
      %v5107 = vpop.permute.xlu0 %5106
      %5108 = vrot.lane.b32.xlu0 %v5001, 112
      %v5109 = vpop.permute.xlu0 %5108
      %5110 = vrot.lane.b32.xlu0 %v5002, 112
      %v5111 = vpop.permute.xlu0 %5110
      %5112 = vrot.lane.b32.xlu0 %v5003, 112
      %v5113 = vpop.permute.xlu0 %5112
      %5114 = vrot.lane.b32.xlu0 %v5004, 112
      %v5115 = vpop.permute.xlu0 %5114
      %5116 = vrot.lane.b32.xlu0 %v5005, 112
      %v5117 = vpop.permute.xlu0 %5116
      %5118 = vrot.lane.b32.xlu0 %v5006, 112
      %v5119 = vpop.permute.xlu0 %5118
      %5120 = vrot.lane.b32.xlu0 %v5007, 112
      %v5121 = vpop.permute.xlu0 %5120
      %5122 = vrot.lane.b32.xlu0 %v5008, 112
      %v5123 = vpop.permute.xlu0 %5122
      %5124 = vrot.lane.b32.xlu0 %v5009, 112
      %v5125 = vpop.permute.xlu0 %5124
      %5126 = vrot.lane.b32.xlu0 %v5010, 112
      %v5127 = vpop.permute.xlu0 %5126
      %5128 = vrot.lane.b32.xlu0 %v5011, 112
      %v5129 = vpop.permute.xlu0 %5128
      %5130 = vrot.lane.b32.xlu0 %v5012, 112
      %v5131 = vpop.permute.xlu0 %5130
      %5132 = vrot.lane.b32.xlu0 %v5013, 112
      %v5133 = vpop.permute.xlu0 %5132
      %5134 = vrot.lane.b32.xlu0 %v5014, 112
      %v5135 = vpop.permute.xlu0 %5134
      %5136 = vrot.lane.b32.xlu0 %v5015, 112
      %v5137 = vpop.permute.xlu0 %5136
      %5138 = vrot.lane.b32.xlu0 %v5016, 112
      %v5139 = vpop.permute.xlu0 %5138
      %5140 = vrot.lane.b32.xlu0 %v5017, 112
      %v5141 = vpop.permute.xlu0 %5140
      %5142 = vrot.lane.b32.xlu0 %v5018, 112
      %v5143 = vpop.permute.xlu0 %5142
      %5144 = vrot.lane.b32.xlu0 %v5019, 112
      %v5145 = vpop.permute.xlu0 %5144
      %vm5188 = vcmask 1048448
      %5189 = vst.msk [vmem:[#allocation3] sm:$0xff] %vm5188, %v5063
      %5190 = vst.msk [vmem:[#allocation3 + $0x10] sm:$0xff] %vm5188, %v5065
      %5191 = vst.msk [vmem:[#allocation3 + $0x20] sm:$0xff] %vm5188, %v5067
      %5192 = vst.msk [vmem:[#allocation3 + $0x30] sm:$0xff] %vm5188, %v5069
      %5193 = vst.msk [vmem:[#allocation3 + $0x40] sm:$0xff] %vm5188, %v5071
      %5194 = vst.msk [vmem:[#allocation3 + $0x50] sm:$0xff] %vm5188, %v5073
      %5195 = vst.msk [vmem:[#allocation3 + $0x60] sm:$0xff] %vm5188, %v5075
      %5196 = vst.msk [vmem:[#allocation3 + $0x70] sm:$0xff] %vm5188, %v5077
      %5197 = vst.msk [vmem:[#allocation3 + $0x80] sm:$0xff] %vm5188, %v5079
      %5198 = vst.msk [vmem:[#allocation3 + $0x90] sm:$0xff] %vm5188, %v5081
      %5199 = vst.msk [vmem:[#allocation3 + $0xa0] sm:$0xff] %vm5188, %v5083
      %5200 = vst.msk [vmem:[#allocation3 + $0xb0] sm:$0xff] %vm5188, %v5085
      %5201 = vst.msk [vmem:[#allocation3 + $0xc0] sm:$0xff] %vm5188, %v5087
      %5202 = vst.msk [vmem:[#allocation3 + $0xd0] sm:$0xff] %vm5188, %v5089
      %5203 = vst.msk [vmem:[#allocation3 + $0xe0] sm:$0xff] %vm5188, %v5091
      %5204 = vst.msk [vmem:[#allocation3 + $0xf0] sm:$0xff] %vm5188, %v5093
      %5205 = vst.msk [vmem:[#allocation3 + $0x100] sm:$0xff] %vm5188, %v5095
      %5206 = vst.msk [vmem:[#allocation3 + $0x110] sm:$0xff] %vm5188, %v5097
      %5207 = vst.msk [vmem:[#allocation3 + $0x120] sm:$0xff] %vm5188, %v5099
      %5208 = vst.msk [vmem:[#allocation3 + $0x130] sm:$0xff] %vm5188, %v5101
      %5209 = vst.msk [vmem:[#allocation3 + $0x140] sm:$0xff] %vm5188, %v5103
      %5210 = vst.msk [vmem:[#allocation3 + $0x150] sm:$0xff] %vm5188, %v5105
      %5211 = vst.msk [vmem:[#allocation3 + $0x160] sm:$0xff] %vm5188, %v5107
      %5212 = vst.msk [vmem:[#allocation3 + $0x170] sm:$0xff] %vm5188, %v5109
      %5213 = vst.msk [vmem:[#allocation3 + $0x180] sm:$0xff] %vm5188, %v5111
      %5214 = vst.msk [vmem:[#allocation3 + $0x190] sm:$0xff] %vm5188, %v5113
      %5215 = vst.msk [vmem:[#allocation3 + $0x1a0] sm:$0xff] %vm5188, %v5115
      %5216 = vst.msk [vmem:[#allocation3 + $0x1b0] sm:$0xff] %vm5188, %v5117
      %5217 = vst.msk [vmem:[#allocation3 + $0x1c0] sm:$0xff] %vm5188, %v5119
      %5218 = vst.msk [vmem:[#allocation3 + $0x1d0] sm:$0xff] %vm5188, %v5121
      %5219 = vst.msk [vmem:[#allocation3 + $0x1e0] sm:$0xff] %vm5188, %v5123
      %5220 = vst.msk [vmem:[#allocation3 + $0x1f0] sm:$0xff] %vm5188, %v5125
      %5221 = vst.msk [vmem:[#allocation3 + $0x200] sm:$0xff] %vm5188, %v5127
      %5222 = vst.msk [vmem:[#allocation3 + $0x210] sm:$0xff] %vm5188, %v5129
      %5223 = vst.msk [vmem:[#allocation3 + $0x220] sm:$0xff] %vm5188, %v5131
      %5224 = vst.msk [vmem:[#allocation3 + $0x230] sm:$0xff] %vm5188, %v5133
      %5225 = vst.msk [vmem:[#allocation3 + $0x240] sm:$0xff] %vm5188, %v5135
      %5226 = vst.msk [vmem:[#allocation3 + $0x250] sm:$0xff] %vm5188, %v5137
      %5227 = vst.msk [vmem:[#allocation3 + $0x260] sm:$0xff] %vm5188, %v5139
      %5228 = vst.msk [vmem:[#allocation3 + $0x270] sm:$0xff] %vm5188, %v5141
      %5229 = vst.msk [vmem:[#allocation3 + $0x280] sm:$0xff] %vm5188, %v5143
      %5230 = vst.msk [vmem:[#allocation3 + $0x290] sm:$0xff] %vm5188, %v5145
      %v5231 = vld [vmem:[#allocation2 + $0x33] sm:$0xff]
      %v5232 = vld [vmem:[#allocation2 + $0x3b] sm:$0xff]
      %v5233 = vld [vmem:[#allocation2 + $0x43] sm:$0xff]
      %v5234 = vld [vmem:[#allocation2 + $0x4b] sm:$0xff]
      %v5235 = vld [vmem:[#allocation2 + $0x53] sm:$0xff]
      %v5236 = vld [vmem:[#allocation2 + $0x5b] sm:$0xff]
      %v5237 = vld [vmem:[#allocation2 + $0x63] sm:$0xff]
      %v5238 = vld [vmem:[#allocation2 + $0x6b] sm:$0xff]
      %v5239 = vld [vmem:[#allocation2 + $0x73] sm:$0xff]
      %v5240 = vld [vmem:[#allocation2 + $0x7b] sm:$0xff]
      %v5241 = vld [vmem:[#allocation2 + $0x83] sm:$0xff]
      %v5242 = vld [vmem:[#allocation2 + $0x8b] sm:$0xff]
      %v5243 = vld [vmem:[#allocation2 + $0x93] sm:$0xff]
      %v5244 = vld [vmem:[#allocation2 + $0x9b] sm:$0xff]
      %v5245 = vld [vmem:[#allocation2 + $0xa3] sm:$0xff]
      %v5246 = vld [vmem:[#allocation2 + $0xab] sm:$0xff]
      %v5247 = vld [vmem:[#allocation2 + $0xb3] sm:$0xff]
      %v5248 = vld [vmem:[#allocation2 + $0xbb] sm:$0xff]
      %v5249 = vld [vmem:[#allocation2 + $0xc3] sm:$0xff]
      %v5250 = vld [vmem:[#allocation2 + $0xcb] sm:$0xff]
      %v5251 = vld [vmem:[#allocation2 + $0xd3] sm:$0xff]
      %v5252 = vld [vmem:[#allocation2 + $0xdb] sm:$0xff]
      %v5253 = vld [vmem:[#allocation2 + $0xe3] sm:$0xff]
      %v5254 = vld [vmem:[#allocation2 + $0xeb] sm:$0xff]
      %v5255 = vld [vmem:[#allocation2 + $0xf3] sm:$0xff]
      %v5256 = vld [vmem:[#allocation2 + $0xfb] sm:$0xff]
      %v5257 = vld [vmem:[#allocation2 + $0x103] sm:$0xff]
      %v5258 = vld [vmem:[#allocation2 + $0x10b] sm:$0xff]
      %v5259 = vld [vmem:[#allocation2 + $0x113] sm:$0xff]
      %v5260 = vld [vmem:[#allocation2 + $0x11b] sm:$0xff]
      %v5261 = vld [vmem:[#allocation2 + $0x123] sm:$0xff]
      %v5262 = vld [vmem:[#allocation2 + $0x12b] sm:$0xff]
      %v5263 = vld [vmem:[#allocation2 + $0x133] sm:$0xff]
      %v5264 = vld [vmem:[#allocation2 + $0x13b] sm:$0xff]
      %v5265 = vld [vmem:[#allocation2 + $0x143] sm:$0xff]
      %v5266 = vld [vmem:[#allocation2 + $0x14b] sm:$0xff]
      %v5267 = vld [vmem:[#allocation2 + $0x153] sm:$0xff]
      %v5268 = vld [vmem:[#allocation2 + $0x15b] sm:$0xff]
      %v5269 = vld [vmem:[#allocation2 + $0x163] sm:$0xff]
      %v5270 = vld [vmem:[#allocation2 + $0x16b] sm:$0xff]
      %v5271 = vld [vmem:[#allocation2 + $0x173] sm:$0xff]
      %v5272 = vld [vmem:[#allocation2 + $0x17b] sm:$0xff]
      %5273 = vst.msk [vmem:[#allocation3 + $0x8] sm:$0xff] %vm3417, %v5231
      %5274 = vst.msk [vmem:[#allocation3 + $0x18] sm:$0xff] %vm3417, %v5232
      %5275 = vst.msk [vmem:[#allocation3 + $0x28] sm:$0xff] %vm3417, %v5233
      %5276 = vst.msk [vmem:[#allocation3 + $0x38] sm:$0xff] %vm3417, %v5234
      %5277 = vst.msk [vmem:[#allocation3 + $0x48] sm:$0xff] %vm3417, %v5235
      %5278 = vst.msk [vmem:[#allocation3 + $0x58] sm:$0xff] %vm3417, %v5236
      %5279 = vst.msk [vmem:[#allocation3 + $0x68] sm:$0xff] %vm3417, %v5237
      %5280 = vst.msk [vmem:[#allocation3 + $0x78] sm:$0xff] %vm3417, %v5238
      %5281 = vst.msk [vmem:[#allocation3 + $0x88] sm:$0xff] %vm3417, %v5239
      %5282 = vst.msk [vmem:[#allocation3 + $0x98] sm:$0xff] %vm3417, %v5240
      %5283 = vst.msk [vmem:[#allocation3 + $0xa8] sm:$0xff] %vm3417, %v5241
      %5284 = vst.msk [vmem:[#allocation3 + $0xb8] sm:$0xff] %vm3417, %v5242
      %5285 = vst.msk [vmem:[#allocation3 + $0xc8] sm:$0xff] %vm3417, %v5243
      %5286 = vst.msk [vmem:[#allocation3 + $0xd8] sm:$0xff] %vm3417, %v5244
      %5287 = vst.msk [vmem:[#allocation3 + $0xe8] sm:$0xff] %vm3417, %v5245
      %5288 = vst.msk [vmem:[#allocation3 + $0xf8] sm:$0xff] %vm3417, %v5246
      %5289 = vst.msk [vmem:[#allocation3 + $0x108] sm:$0xff] %vm3417, %v5247
      %5290 = vst.msk [vmem:[#allocation3 + $0x118] sm:$0xff] %vm3417, %v5248
      %5291 = vst.msk [vmem:[#allocation3 + $0x128] sm:$0xff] %vm3417, %v5249
      %5292 = vst.msk [vmem:[#allocation3 + $0x138] sm:$0xff] %vm3417, %v5250
      %5293 = vst.msk [vmem:[#allocation3 + $0x148] sm:$0xff] %vm3417, %v5251
      %5294 = vst.msk [vmem:[#allocation3 + $0x158] sm:$0xff] %vm3417, %v5252
      %5295 = vst.msk [vmem:[#allocation3 + $0x168] sm:$0xff] %vm3417, %v5253
      %5296 = vst.msk [vmem:[#allocation3 + $0x178] sm:$0xff] %vm3417, %v5254
      %5297 = vst.msk [vmem:[#allocation3 + $0x188] sm:$0xff] %vm3417, %v5255
      %5298 = vst.msk [vmem:[#allocation3 + $0x198] sm:$0xff] %vm3417, %v5256
      %5299 = vst.msk [vmem:[#allocation3 + $0x1a8] sm:$0xff] %vm3417, %v5257
      %5300 = vst.msk [vmem:[#allocation3 + $0x1b8] sm:$0xff] %vm3417, %v5258
      %5301 = vst.msk [vmem:[#allocation3 + $0x1c8] sm:$0xff] %vm3417, %v5259
      %5302 = vst.msk [vmem:[#allocation3 + $0x1d8] sm:$0xff] %vm3417, %v5260
      %5303 = vst.msk [vmem:[#allocation3 + $0x1e8] sm:$0xff] %vm3417, %v5261
      %5304 = vst.msk [vmem:[#allocation3 + $0x1f8] sm:$0xff] %vm3417, %v5262
      %5305 = vst.msk [vmem:[#allocation3 + $0x208] sm:$0xff] %vm3417, %v5263
      %5306 = vst.msk [vmem:[#allocation3 + $0x218] sm:$0xff] %vm3417, %v5264
      %5307 = vst.msk [vmem:[#allocation3 + $0x228] sm:$0xff] %vm3417, %v5265
      %5308 = vst.msk [vmem:[#allocation3 + $0x238] sm:$0xff] %vm3417, %v5266
      %5309 = vst.msk [vmem:[#allocation3 + $0x248] sm:$0xff] %vm3417, %v5267
      %5310 = vst.msk [vmem:[#allocation3 + $0x258] sm:$0xff] %vm3417, %v5268
      %5311 = vst.msk [vmem:[#allocation3 + $0x268] sm:$0xff] %vm3417, %v5269
      %5312 = vst.msk [vmem:[#allocation3 + $0x278] sm:$0xff] %vm3417, %v5270
      %5313 = vst.msk [vmem:[#allocation3 + $0x288] sm:$0xff] %vm3417, %v5271
      %5314 = vst.msk [vmem:[#allocation3 + $0x298] sm:$0xff] %vm3417, %v5272
      %v5315 = vld [vmem:[#allocation3] sm:$0xff]
      %v5316 = vld [vmem:[#allocation3 + $0x8] sm:$0xff]
      %v5317 = vld [vmem:[#allocation3 + $0x10] sm:$0xff]
      %v5318 = vld [vmem:[#allocation3 + $0x18] sm:$0xff]
      %v5319 = vld [vmem:[#allocation3 + $0x20] sm:$0xff]
      %v5320 = vld [vmem:[#allocation3 + $0x28] sm:$0xff]
      %v5321 = vld [vmem:[#allocation3 + $0x30] sm:$0xff]
      %v5322 = vld [vmem:[#allocation3 + $0x38] sm:$0xff]
      %v5323 = vld [vmem:[#allocation3 + $0x40] sm:$0xff]
      %v5324 = vld [vmem:[#allocation3 + $0x48] sm:$0xff]
      %v5325 = vld [vmem:[#allocation3 + $0x50] sm:$0xff]
      %v5326 = vld [vmem:[#allocation3 + $0x58] sm:$0xff]
      %v5327 = vld [vmem:[#allocation3 + $0x60] sm:$0xff]
      %v5328 = vld [vmem:[#allocation3 + $0x68] sm:$0xff]
      %v5329 = vld [vmem:[#allocation3 + $0x70] sm:$0xff]
      %v5330 = vld [vmem:[#allocation3 + $0x78] sm:$0xff]
      %v5331 = vld [vmem:[#allocation3 + $0x80] sm:$0xff]
      %v5332 = vld [vmem:[#allocation3 + $0x88] sm:$0xff]
      %v5333 = vld [vmem:[#allocation3 + $0x90] sm:$0xff]
      %v5334 = vld [vmem:[#allocation3 + $0x98] sm:$0xff]
      %v5335 = vld [vmem:[#allocation3 + $0xa0] sm:$0xff]
      %v5336 = vld [vmem:[#allocation3 + $0xa8] sm:$0xff]
      %v5337 = vld [vmem:[#allocation3 + $0xb0] sm:$0xff]
      %v5338 = vld [vmem:[#allocation3 + $0xb8] sm:$0xff]
      %v5339 = vld [vmem:[#allocation3 + $0xc0] sm:$0xff]
      %v5340 = vld [vmem:[#allocation3 + $0xc8] sm:$0xff]
      %v5341 = vld [vmem:[#allocation3 + $0xd0] sm:$0xff]
      %v5342 = vld [vmem:[#allocation3 + $0xd8] sm:$0xff]
      %v5343 = vld [vmem:[#allocation3 + $0xe0] sm:$0xff]
      %v5344 = vld [vmem:[#allocation3 + $0xe8] sm:$0xff]
      %v5345 = vld [vmem:[#allocation3 + $0xf0] sm:$0xff]
      %v5346 = vld [vmem:[#allocation3 + $0xf8] sm:$0xff]
      %v5347 = vld [vmem:[#allocation3 + $0x100] sm:$0xff]
      %v5348 = vld [vmem:[#allocation3 + $0x108] sm:$0xff]
      %v5349 = vld [vmem:[#allocation3 + $0x110] sm:$0xff]
      %v5350 = vld [vmem:[#allocation3 + $0x118] sm:$0xff]
      %v5351 = vld [vmem:[#allocation3 + $0x120] sm:$0xff]
      %v5352 = vld [vmem:[#allocation3 + $0x128] sm:$0xff]
      %v5353 = vld [vmem:[#allocation3 + $0x130] sm:$0xff]
      %v5354 = vld [vmem:[#allocation3 + $0x138] sm:$0xff]
      %v5355 = vld [vmem:[#allocation3 + $0x140] sm:$0xff]
      %v5356 = vld [vmem:[#allocation3 + $0x148] sm:$0xff]
      %v5357 = vld [vmem:[#allocation3 + $0x150] sm:$0xff]
      %v5358 = vld [vmem:[#allocation3 + $0x158] sm:$0xff]
      %v5359 = vld [vmem:[#allocation3 + $0x160] sm:$0xff]
      %v5360 = vld [vmem:[#allocation3 + $0x168] sm:$0xff]
      %v5361 = vld [vmem:[#allocation3 + $0x170] sm:$0xff]
      %v5362 = vld [vmem:[#allocation3 + $0x178] sm:$0xff]
      %v5363 = vld [vmem:[#allocation3 + $0x180] sm:$0xff]
      %v5364 = vld [vmem:[#allocation3 + $0x188] sm:$0xff]
      %v5365 = vld [vmem:[#allocation3 + $0x190] sm:$0xff]
      %v5366 = vld [vmem:[#allocation3 + $0x198] sm:$0xff]
      %v5367 = vld [vmem:[#allocation3 + $0x1a0] sm:$0xff]
      %v5368 = vld [vmem:[#allocation3 + $0x1a8] sm:$0xff]
      %v5369 = vld [vmem:[#allocation3 + $0x1b0] sm:$0xff]
      %v5370 = vld [vmem:[#allocation3 + $0x1b8] sm:$0xff]
      %v5371 = vld [vmem:[#allocation3 + $0x1c0] sm:$0xff]
      %v5372 = vld [vmem:[#allocation3 + $0x1c8] sm:$0xff]
      %v5373 = vld [vmem:[#allocation3 + $0x1d0] sm:$0xff]
      %v5374 = vld [vmem:[#allocation3 + $0x1d8] sm:$0xff]
      %v5375 = vld [vmem:[#allocation3 + $0x1e0] sm:$0xff]
      %v5376 = vld [vmem:[#allocation3 + $0x1e8] sm:$0xff]
      %v5377 = vld [vmem:[#allocation3 + $0x1f0] sm:$0xff]
      %v5378 = vld [vmem:[#allocation3 + $0x1f8] sm:$0xff]
      %v5379 = vld [vmem:[#allocation3 + $0x200] sm:$0xff]
      %v5380 = vld [vmem:[#allocation3 + $0x208] sm:$0xff]
      %v5381 = vld [vmem:[#allocation3 + $0x210] sm:$0xff]
      %v5382 = vld [vmem:[#allocation3 + $0x218] sm:$0xff]
      %v5383 = vld [vmem:[#allocation3 + $0x220] sm:$0xff]
      %v5384 = vld [vmem:[#allocation3 + $0x228] sm:$0xff]
      %v5385 = vld [vmem:[#allocation3 + $0x230] sm:$0xff]
      %v5386 = vld [vmem:[#allocation3 + $0x238] sm:$0xff]
      %v5387 = vld [vmem:[#allocation3 + $0x240] sm:$0xff]
      %v5388 = vld [vmem:[#allocation3 + $0x248] sm:$0xff]
      %v5389 = vld [vmem:[#allocation3 + $0x250] sm:$0xff]
      %v5390 = vld [vmem:[#allocation3 + $0x258] sm:$0xff]
      %v5391 = vld [vmem:[#allocation3 + $0x260] sm:$0xff]
      %v5392 = vld [vmem:[#allocation3 + $0x268] sm:$0xff]
      %v5393 = vld [vmem:[#allocation3 + $0x270] sm:$0xff]
      %v5394 = vld [vmem:[#allocation3 + $0x278] sm:$0xff]
      %v5395 = vld [vmem:[#allocation3 + $0x280] sm:$0xff]
      %v5396 = vld [vmem:[#allocation3 + $0x288] sm:$0xff]
      %v5397 = vld [vmem:[#allocation3 + $0x290] sm:$0xff]
      %v5398 = vld [vmem:[#allocation3 + $0x298] sm:$0xff]
      %v5399 = vld [vmem:[%s4] sm:$0xff]
      %v5400 = vld [vmem:[%s4 + $0x8] sm:$0xff]
      %v5401 = vld [vmem:[%s4 + $0x10] sm:$0xff]
      %v5402 = vld [vmem:[%s4 + $0x18] sm:$0xff]
      %v5403 = vld [vmem:[%s4 + $0x20] sm:$0xff]
      %v5404 = vld [vmem:[%s4 + $0x28] sm:$0xff]
      %v5405 = vld [vmem:[%s4 + $0x30] sm:$0xff]
      %v5406 = vld [vmem:[%s4 + $0x38] sm:$0xff]
      %v5407 = vld [vmem:[%s4 + $0x40] sm:$0xff]
      %v5408 = vld [vmem:[%s4 + $0x48] sm:$0xff]
      %v5409 = vld [vmem:[%s4 + $0x50] sm:$0xff]
      %v5410 = vld [vmem:[%s4 + $0x58] sm:$0xff]
      %v5411 = vld [vmem:[%s4 + $0x60] sm:$0xff]
      %v5412 = vld [vmem:[%s4 + $0x68] sm:$0xff]
      %v5413 = vld [vmem:[%s4 + $0x70] sm:$0xff]
      %v5414 = vld [vmem:[%s4 + $0x78] sm:$0xff]
      %v5415 = vld [vmem:[%s4 + $0x80] sm:$0xff]
      %v5416 = vld [vmem:[%s4 + $0x88] sm:$0xff]
      %v5417 = vld [vmem:[%s4 + $0x90] sm:$0xff]
      %v5418 = vld [vmem:[%s4 + $0x98] sm:$0xff]
      %v5419 = vld [vmem:[%s4 + $0xa0] sm:$0xff]
      %v5420 = vld [vmem:[%s4 + $0xa8] sm:$0xff]
      %v5421 = vld [vmem:[%s4 + $0xb0] sm:$0xff]
      %v5422 = vld [vmem:[%s4 + $0xb8] sm:$0xff]
      %v5423 = vld [vmem:[%s4 + $0xc0] sm:$0xff]
      %v5424 = vld [vmem:[%s4 + $0xc8] sm:$0xff]
      %v5425 = vld [vmem:[%s4 + $0xd0] sm:$0xff]
      %v5426 = vld [vmem:[%s4 + $0xd8] sm:$0xff]
      %v5427 = vld [vmem:[%s4 + $0xe0] sm:$0xff]
      %v5428 = vld [vmem:[%s4 + $0xe8] sm:$0xff]
      %v5429 = vld [vmem:[%s4 + $0xf0] sm:$0xff]
      %v5430 = vld [vmem:[%s4 + $0xf8] sm:$0xff]
      %v5431 = vld [vmem:[%s5] sm:$0x1]
      %v5433 = vlaneseq
      %v5434 = vshrl.u32 %v5433, 7
      %v5435 = vsub.s32 0, %v5434
      %v5436 = vrot.slane %v5431, %v5435
      %5438 = vmatprep.subr.mxu0 0.0
      %5439 = vmatpush1.msra.mxu0 %v5414
      %5440 = vmatprep.subr.mxu0 0.0
      %5441 = vmatpush1.msra.mxu0 %v5413
      %5442 = vmatprep.subr.mxu0 0.0
      %5443 = vmatpush1.msra.mxu0 %v5412
      %5444 = vmatprep.subr.mxu0 0.0
      %5445 = vmatpush1.msra.mxu0 %v5411
      %5446 = vmatprep.subr.mxu0 0.0
      %5447 = vmatpush1.msra.mxu0 %v5410
      %5448 = vmatprep.subr.mxu0 0.0
      %5449 = vmatpush1.msra.mxu0 %v5409
      %5450 = vmatprep.subr.mxu0 0.0
      %5451 = vmatpush1.msra.mxu0 %v5408
      %5452 = vmatprep.subr.mxu0 0.0
      %5453 = vmatpush1.msra.mxu0 %v5407
      %5454 = vmatprep.subr.mxu0 0.0
      %5455 = vmatpush1.msra.mxu0 %v5406
      %5456 = vmatprep.subr.mxu0 0.0
      %5457 = vmatpush1.msra.mxu0 %v5405
      %5458 = vmatprep.subr.mxu0 0.0
      %5459 = vmatpush1.msra.mxu0 %v5404
      %5460 = vmatprep.subr.mxu0 0.0
      %5461 = vmatpush1.msra.mxu0 %v5403
      %5462 = vmatprep.subr.mxu0 0.0
      %5463 = vmatpush1.msra.mxu0 %v5402
      %5464 = vmatprep.subr.mxu0 0.0
      %5465 = vmatpush1.msra.mxu0 %v5401
      %5466 = vmatprep.subr.mxu0 0.0
      %5467 = vmatpush1.msra.mxu0 %v5400
      %5468 = vmatprep.subr.mxu0 0.0
      %5469 = vmatpush1.msra.mxu0 %v5399
      %5470 = vmatprep.subr.mxu0 0.0
      %5471 = vmatpush2.msra.mxu0 %v5430
      %5472 = vmatprep.subr.mxu0 0.0
      %5473 = vmatpush2.msra.mxu0 %v5429
      %5474 = vmatprep.subr.mxu0 0.0
      %5475 = vmatpush2.msra.mxu0 %v5428
      %5476 = vmatprep.subr.mxu0 0.0
      %5477 = vmatpush2.msra.mxu0 %v5427
      %5478 = vmatprep.subr.mxu0 0.0
      %5479 = vmatpush2.msra.mxu0 %v5426
      %5480 = vmatprep.subr.mxu0 0.0
      %5481 = vmatpush2.msra.mxu0 %v5425
      %5482 = vmatprep.subr.mxu0 0.0
      %5483 = vmatpush2.msra.mxu0 %v5424
      %5484 = vmatprep.subr.mxu0 0.0
      %5485 = vmatpush2.msra.mxu0 %v5423
      %5486 = vmatprep.subr.mxu0 0.0
      %5487 = vmatpush2.msra.mxu0 %v5422
      %5488 = vmatprep.subr.mxu0 0.0
      %5489 = vmatpush2.msra.mxu0 %v5421
      %5490 = vmatprep.subr.mxu0 0.0
      %5491 = vmatpush2.msra.mxu0 %v5420
      %5492 = vmatprep.subr.mxu0 0.0
      %5493 = vmatpush2.msra.mxu0 %v5419
      %5494 = vmatprep.subr.mxu0 0.0
      %5495 = vmatpush2.msra.mxu0 %v5418
      %5496 = vmatprep.subr.mxu0 0.0
      %5497 = vmatpush2.msra.mxu0 %v5417
      %5498 = vmatprep.subr.mxu0 0.0
      %5499 = vmatpush2.msra.mxu0 %v5416
      %5500 = vmatprep.subr.mxu0 0.0
      %5501 = vmatpush2.msra.mxu0 %v5415
      %5502 = vmatprep.mubr.f32.mxu0 %v5316
      %5503 = vmatmul.mubr.f32.gmra.mxu0 %v5315
      %v5504 = vpop.f32.mrf.mxu0
      %v5505 = vadd.f32 %v5436, %v5504
      %v5506 = vpop.f32.mrf.mxu0
      %5507 = vmatprep.mubr.f32.mxu0 %v5318
      %5508 = vmatmul.mubr.f32.gmra.mxu0 %v5317
      %v5509 = vpop.f32.mrf.mxu0
      %v5510 = vadd.f32 %v5436, %v5509
      %v5511 = vpop.f32.mrf.mxu0
      %5512 = vmatprep.mubr.f32.mxu0 %v5320
      %5513 = vmatmul.mubr.f32.gmra.mxu0 %v5319
      %v5514 = vpop.f32.mrf.mxu0
      %v5515 = vadd.f32 %v5436, %v5514
      %v5516 = vpop.f32.mrf.mxu0
      %5517 = vmatprep.mubr.f32.mxu0 %v5322
      %5518 = vmatmul.mubr.f32.gmra.mxu0 %v5321
      %v5519 = vpop.f32.mrf.mxu0
      %v5520 = vadd.f32 %v5436, %v5519
      %v5521 = vpop.f32.mrf.mxu0
      %5522 = vmatprep.mubr.f32.mxu0 %v5324
      %5523 = vmatmul.mubr.f32.gmra.mxu0 %v5323
      %v5524 = vpop.f32.mrf.mxu0
      %v5525 = vadd.f32 %v5436, %v5524
      %v5526 = vpop.f32.mrf.mxu0
      %5527 = vmatprep.mubr.f32.mxu0 %v5326
      %5528 = vmatmul.mubr.f32.gmra.mxu0 %v5325
      %v5529 = vpop.f32.mrf.mxu0
      %v5530 = vadd.f32 %v5436, %v5529
      %v5531 = vpop.f32.mrf.mxu0
      %5532 = vmatprep.mubr.f32.mxu0 %v5328
      %5533 = vmatmul.mubr.f32.gmra.mxu0 %v5327
      %v5534 = vpop.f32.mrf.mxu0
      %v5535 = vadd.f32 %v5436, %v5534
      %v5536 = vpop.f32.mrf.mxu0
      %5537 = vmatprep.mubr.f32.mxu0 %v5330
      %5538 = vmatmul.mubr.f32.gmra.mxu0 %v5329
      %v5539 = vpop.f32.mrf.mxu0
      %v5540 = vadd.f32 %v5436, %v5539
      %v5541 = vpop.f32.mrf.mxu0
      %5542 = vmatprep.mubr.f32.mxu0 %v5332
      %5543 = vmatmul.mubr.f32.gmra.mxu0 %v5331
      %v5544 = vpop.f32.mrf.mxu0
      %v5545 = vadd.f32 %v5436, %v5544
      %v5546 = vpop.f32.mrf.mxu0
      %5547 = vmatprep.mubr.f32.mxu0 %v5334
      %5548 = vmatmul.mubr.f32.gmra.mxu0 %v5333
      %v5549 = vpop.f32.mrf.mxu0
      %v5550 = vadd.f32 %v5436, %v5549
      %v5551 = vpop.f32.mrf.mxu0
      %5552 = vmatprep.mubr.f32.mxu0 %v5336
      %5553 = vmatmul.mubr.f32.gmra.mxu0 %v5335
      %v5554 = vpop.f32.mrf.mxu0
      %v5555 = vadd.f32 %v5436, %v5554
      %v5556 = vpop.f32.mrf.mxu0
      %5557 = vmatprep.mubr.f32.mxu0 %v5338
      %5558 = vmatmul.mubr.f32.gmra.mxu0 %v5337
      %v5559 = vpop.f32.mrf.mxu0
      %v5560 = vadd.f32 %v5436, %v5559
      %v5561 = vpop.f32.mrf.mxu0
      %5562 = vmatprep.mubr.f32.mxu0 %v5340
      %5563 = vmatmul.mubr.f32.gmra.mxu0 %v5339
      %v5564 = vpop.f32.mrf.mxu0
      %v5565 = vadd.f32 %v5436, %v5564
      %v5566 = vpop.f32.mrf.mxu0
      %5567 = vmatprep.mubr.f32.mxu0 %v5342
      %5568 = vmatmul.mubr.f32.gmra.mxu0 %v5341
      %v5569 = vpop.f32.mrf.mxu0
      %v5570 = vadd.f32 %v5436, %v5569
      %v5571 = vpop.f32.mrf.mxu0
      %5572 = vmatprep.mubr.f32.mxu0 %v5344
      %5573 = vmatmul.mubr.f32.gmra.mxu0 %v5343
      %v5574 = vpop.f32.mrf.mxu0
      %v5575 = vadd.f32 %v5436, %v5574
      %v5576 = vpop.f32.mrf.mxu0
      %5577 = vmatprep.mubr.f32.mxu0 %v5346
      %5578 = vmatmul.mubr.f32.gmra.mxu0 %v5345
      %v5579 = vpop.f32.mrf.mxu0
      %v5580 = vadd.f32 %v5436, %v5579
      %v5581 = vpop.f32.mrf.mxu0
      %5582 = vmatprep.mubr.f32.mxu0 %v5348
      %5583 = vmatmul.mubr.f32.gmra.mxu0 %v5347
      %v5584 = vpop.f32.mrf.mxu0
      %v5585 = vadd.f32 %v5436, %v5584
      %v5586 = vpop.f32.mrf.mxu0
      %5587 = vmatprep.mubr.f32.mxu0 %v5350
      %5588 = vmatmul.mubr.f32.gmra.mxu0 %v5349
      %v5589 = vpop.f32.mrf.mxu0
      %v5590 = vadd.f32 %v5436, %v5589
      %v5591 = vpop.f32.mrf.mxu0
      %5592 = vmatprep.mubr.f32.mxu0 %v5352
      %5593 = vmatmul.mubr.f32.gmra.mxu0 %v5351
      %v5594 = vpop.f32.mrf.mxu0
      %v5595 = vadd.f32 %v5436, %v5594
      %v5596 = vpop.f32.mrf.mxu0
      %5597 = vmatprep.mubr.f32.mxu0 %v5354
      %5598 = vmatmul.mubr.f32.gmra.mxu0 %v5353
      %v5599 = vpop.f32.mrf.mxu0
      %v5600 = vadd.f32 %v5436, %v5599
      %v5601 = vpop.f32.mrf.mxu0
      %5602 = vmatprep.mubr.f32.mxu0 %v5356
      %5603 = vmatmul.mubr.f32.gmra.mxu0 %v5355
      %v5604 = vpop.f32.mrf.mxu0
      %v5605 = vadd.f32 %v5436, %v5604
      %v5606 = vpop.f32.mrf.mxu0
      %5607 = vmatprep.mubr.f32.mxu0 %v5358
      %5608 = vmatmul.mubr.f32.gmra.mxu0 %v5357
      %v5609 = vpop.f32.mrf.mxu0
      %v5610 = vadd.f32 %v5436, %v5609
      %v5611 = vpop.f32.mrf.mxu0
      %5612 = vmatprep.mubr.f32.mxu0 %v5360
      %5613 = vmatmul.mubr.f32.gmra.mxu0 %v5359
      %v5614 = vpop.f32.mrf.mxu0
      %v5615 = vadd.f32 %v5436, %v5614
      %v5616 = vpop.f32.mrf.mxu0
      %5617 = vmatprep.mubr.f32.mxu0 %v5362
      %5618 = vmatmul.mubr.f32.gmra.mxu0 %v5361
      %v5619 = vpop.f32.mrf.mxu0
      %v5620 = vadd.f32 %v5436, %v5619
      %v5621 = vpop.f32.mrf.mxu0
      %5622 = vmatprep.mubr.f32.mxu0 %v5364
      %5623 = vmatmul.mubr.f32.gmra.mxu0 %v5363
      %v5624 = vpop.f32.mrf.mxu0
      %v5625 = vadd.f32 %v5436, %v5624
      %v5626 = vpop.f32.mrf.mxu0
      %5627 = vmatprep.mubr.f32.mxu0 %v5366
      %5628 = vmatmul.mubr.f32.gmra.mxu0 %v5365
      %v5629 = vpop.f32.mrf.mxu0
      %v5630 = vadd.f32 %v5436, %v5629
      %v5631 = vpop.f32.mrf.mxu0
      %5632 = vmatprep.mubr.f32.mxu0 %v5368
      %5633 = vmatmul.mubr.f32.gmra.mxu0 %v5367
      %v5634 = vpop.f32.mrf.mxu0
      %v5635 = vadd.f32 %v5436, %v5634
      %v5636 = vpop.f32.mrf.mxu0
      %5637 = vmatprep.mubr.f32.mxu0 %v5370
      %5638 = vmatmul.mubr.f32.gmra.mxu0 %v5369
      %v5639 = vpop.f32.mrf.mxu0
      %v5640 = vadd.f32 %v5436, %v5639
      %v5641 = vpop.f32.mrf.mxu0
      %5642 = vmatprep.mubr.f32.mxu0 %v5372
      %5643 = vmatmul.mubr.f32.gmra.mxu0 %v5371
      %v5644 = vpop.f32.mrf.mxu0
      %v5645 = vadd.f32 %v5436, %v5644
      %v5646 = vpop.f32.mrf.mxu0
      %5647 = vmatprep.mubr.f32.mxu0 %v5374
      %5648 = vmatmul.mubr.f32.gmra.mxu0 %v5373
      %v5649 = vpop.f32.mrf.mxu0
      %v5650 = vadd.f32 %v5436, %v5649
      %v5651 = vpop.f32.mrf.mxu0
      %5652 = vmatprep.mubr.f32.mxu0 %v5376
      %5653 = vmatmul.mubr.f32.gmra.mxu0 %v5375
      %v5654 = vpop.f32.mrf.mxu0
      %v5655 = vadd.f32 %v5436, %v5654
      %v5656 = vpop.f32.mrf.mxu0
      %5657 = vmatprep.mubr.f32.mxu0 %v5378
      %5658 = vmatmul.mubr.f32.gmra.mxu0 %v5377
      %v5659 = vpop.f32.mrf.mxu0
      %v5660 = vadd.f32 %v5436, %v5659
      %v5661 = vpop.f32.mrf.mxu0
      %5662 = vmatprep.mubr.f32.mxu0 %v5380
      %5663 = vmatmul.mubr.f32.gmra.mxu0 %v5379
      %v5664 = vpop.f32.mrf.mxu0
      %v5665 = vadd.f32 %v5436, %v5664
      %v5666 = vpop.f32.mrf.mxu0
      %5667 = vmatprep.mubr.f32.mxu0 %v5382
      %5668 = vmatmul.mubr.f32.gmra.mxu0 %v5381
      %v5669 = vpop.f32.mrf.mxu0
      %v5670 = vadd.f32 %v5436, %v5669
      %v5671 = vpop.f32.mrf.mxu0
      %5672 = vmatprep.mubr.f32.mxu0 %v5384
      %5673 = vmatmul.mubr.f32.gmra.mxu0 %v5383
      %v5674 = vpop.f32.mrf.mxu0
      %v5675 = vadd.f32 %v5436, %v5674
      %v5676 = vpop.f32.mrf.mxu0
      %5677 = vmatprep.mubr.f32.mxu0 %v5386
      %5678 = vmatmul.mubr.f32.gmra.mxu0 %v5385
      %v5679 = vpop.f32.mrf.mxu0
      %v5680 = vadd.f32 %v5436, %v5679
      %v5681 = vpop.f32.mrf.mxu0
      %5682 = vmatprep.mubr.f32.mxu0 %v5388
      %5683 = vmatmul.mubr.f32.gmra.mxu0 %v5387
      %v5684 = vpop.f32.mrf.mxu0
      %v5685 = vadd.f32 %v5436, %v5684
      %v5686 = vpop.f32.mrf.mxu0
      %5687 = vmatprep.mubr.f32.mxu0 %v5390
      %5688 = vmatmul.mubr.f32.gmra.mxu0 %v5389
      %v5689 = vpop.f32.mrf.mxu0
      %v5690 = vadd.f32 %v5436, %v5689
      %v5691 = vpop.f32.mrf.mxu0
      %5692 = vmatprep.mubr.f32.mxu0 %v5392
      %5693 = vmatmul.mubr.f32.gmra.mxu0 %v5391
      %v5694 = vpop.f32.mrf.mxu0
      %v5695 = vadd.f32 %v5436, %v5694
      %v5696 = vpop.f32.mrf.mxu0
      %5697 = vmatprep.mubr.f32.mxu0 %v5394
      %5698 = vmatmul.mubr.f32.gmra.mxu0 %v5393
      %v5699 = vpop.f32.mrf.mxu0
      %v5700 = vadd.f32 %v5436, %v5699
      %v5701 = vpop.f32.mrf.mxu0
      %5702 = vmatprep.mubr.f32.mxu0 %v5396
      %5703 = vmatmul.mubr.f32.gmra.mxu0 %v5395
      %v5704 = vpop.f32.mrf.mxu0
      %v5705 = vadd.f32 %v5436, %v5704
      %v5706 = vpop.f32.mrf.mxu0
      %5707 = vmatprep.mubr.f32.mxu0 %v5398
      %5708 = vmatmul.mubr.f32.gmra.mxu0 %v5397
      %v5709 = vpop.f32.mrf.mxu0
      %v5710 = vadd.f32 %v5436, %v5709
      %v5711 = vpop.f32.mrf.mxu0
      %5712 = vdwg.mxu0
      %v5713 = vtanh.pop %v5505
      %v5714 = vtanh.pop %v5510
      %v5715 = vtanh.pop %v5515
      %v5716 = vtanh.pop %v5520
      %v5717 = vtanh.pop %v5525
      %v5718 = vtanh.pop %v5530
      %v5719 = vtanh.pop %v5535
      %v5720 = vtanh.pop %v5540
      %v5721 = vtanh.pop %v5545
      %v5722 = vtanh.pop %v5550
      %v5723 = vtanh.pop %v5555
      %v5724 = vtanh.pop %v5560
      %v5725 = vtanh.pop %v5565
      %v5726 = vtanh.pop %v5570
      %v5727 = vtanh.pop %v5575
      %v5728 = vtanh.pop %v5580
      %v5729 = vtanh.pop %v5585
      %v5730 = vtanh.pop %v5590
      %v5731 = vtanh.pop %v5595
      %v5732 = vtanh.pop %v5600
      %v5733 = vtanh.pop %v5605
      %v5734 = vtanh.pop %v5610
      %v5735 = vtanh.pop %v5615
      %v5736 = vtanh.pop %v5620
      %v5737 = vtanh.pop %v5625
      %v5738 = vtanh.pop %v5630
      %v5739 = vtanh.pop %v5635
      %v5740 = vtanh.pop %v5640
      %v5741 = vtanh.pop %v5645
      %v5742 = vtanh.pop %v5650
      %v5743 = vtanh.pop %v5655
      %v5744 = vtanh.pop %v5660
      %v5745 = vtanh.pop %v5665
      %v5746 = vtanh.pop %v5670
      %v5747 = vtanh.pop %v5675
      %v5748 = vtanh.pop %v5680
      %v5749 = vtanh.pop %v5685
      %v5750 = vtanh.pop %v5690
      %v5751 = vtanh.pop %v5695
      %v5752 = vtanh.pop %v5700
      %v5753 = vtanh.pop %v5705
      %v5754 = vtanh.pop %v5710
      %v5755 = vsel %vm758, %v5713, 0.0
      %v5756 = vsel %vm759, %v5714, 0.0
      %v5757 = vsel %vm760, %v5715, 0.0
      %v5758 = vsel %vm761, %v5716, 0.0
      %v5759 = vsel %vm762, %v5717, 0.0
      %v5760 = vsel %vm763, %v5718, 0.0
      %v5761 = vsel %vm764, %v5719, 0.0
      %v5762 = vsel %vm765, %v5720, 0.0
      %v5763 = vsel %vm766, %v5721, 0.0
      %v5764 = vsel %vm767, %v5722, 0.0
      %v5765 = vsel %vm768, %v5723, 0.0
      %v5766 = vsel %vm769, %v5724, 0.0
      %v5767 = vsel %vm770, %v5725, 0.0
      %v5768 = vsel %vm771, %v5726, 0.0
      %v5769 = vsel %vm772, %v5727, 0.0
      %v5770 = vsel %vm773, %v5728, 0.0
      %v5771 = vsel %vm774, %v5729, 0.0
      %v5772 = vsel %vm775, %v5730, 0.0
      %v5773 = vsel %vm776, %v5731, 0.0
      %v5774 = vsel %vm777, %v5732, 0.0
      %v5775 = vsel %vm778, %v5733, 0.0
      %v5776 = vsel %vm779, %v5734, 0.0
      %v5777 = vsel %vm780, %v5735, 0.0
      %v5778 = vsel %vm781, %v5736, 0.0
      %v5779 = vsel %vm782, %v5737, 0.0
      %v5780 = vsel %vm783, %v5738, 0.0
      %v5781 = vsel %vm784, %v5739, 0.0
      %v5782 = vsel %vm785, %v5740, 0.0
      %v5783 = vsel %vm786, %v5741, 0.0
      %v5784 = vsel %vm787, %v5742, 0.0
      %v5785 = vsel %vm788, %v5743, 0.0
      %v5786 = vsel %vm789, %v5744, 0.0
      %v5787 = vsel %vm790, %v5745, 0.0
      %v5788 = vsel %vm791, %v5746, 0.0
      %v5789 = vsel %vm792, %v5747, 0.0
      %v5790 = vsel %vm793, %v5748, 0.0
      %v5791 = vsel %vm794, %v5749, 0.0
      %v5792 = vsel %vm795, %v5750, 0.0
      %v5793 = vsel %vm796, %v5751, 0.0
      %v5794 = vsel %vm797, %v5752, 0.0
      %v5795 = vsel %vm798, %v5753, 0.0
      %v5796 = vsel %vm799, %v5754, 0.0
      %5797 = vst [vmem:[#allocation2 + $0x20] sm:$0xff] %v5755
      %5798 = vst [vmem:[#allocation2 + $0x28] sm:$0xff] %v5756
      %5799 = vst [vmem:[#allocation2 + $0x30] sm:$0xff] %v5757
      %5800 = vst [vmem:[#allocation2 + $0x38] sm:$0xff] %v5758
      %5801 = vst [vmem:[#allocation2 + $0x40] sm:$0xff] %v5759
      %5802 = vst [vmem:[#allocation2 + $0x48] sm:$0xff] %v5760
      %5803 = vst [vmem:[#allocation2 + $0x50] sm:$0xff] %v5761
      %5804 = vst [vmem:[#allocation2 + $0x58] sm:$0xff] %v5762
      %5805 = vst [vmem:[#allocation2 + $0x60] sm:$0xff] %v5763
      %5806 = vst [vmem:[#allocation2 + $0x68] sm:$0xff] %v5764
      %5807 = vst [vmem:[#allocation2 + $0x70] sm:$0xff] %v5765
      %5808 = vst [vmem:[#allocation2 + $0x78] sm:$0xff] %v5766
      %5809 = vst [vmem:[#allocation2 + $0x80] sm:$0xff] %v5767
      %5810 = vst [vmem:[#allocation2 + $0x88] sm:$0xff] %v5768
      %5811 = vst [vmem:[#allocation2 + $0x90] sm:$0xff] %v5769
      %5812 = vst [vmem:[#allocation2 + $0x98] sm:$0xff] %v5770
      %5813 = vst [vmem:[#allocation2 + $0xa0] sm:$0xff] %v5771
      %5814 = vst [vmem:[#allocation2 + $0xa8] sm:$0xff] %v5772
      %5815 = vst [vmem:[#allocation2 + $0xb0] sm:$0xff] %v5773
      %5816 = vst [vmem:[#allocation2 + $0xb8] sm:$0xff] %v5774
      %5817 = vst [vmem:[#allocation2 + $0xc0] sm:$0xff] %v5775
      %5818 = vst [vmem:[#allocation2 + $0xc8] sm:$0xff] %v5776
      %5819 = vst [vmem:[#allocation2 + $0xd0] sm:$0xff] %v5777
      %5820 = vst [vmem:[#allocation2 + $0xd8] sm:$0xff] %v5778
      %5821 = vst [vmem:[#allocation2 + $0xe0] sm:$0xff] %v5779
      %5822 = vst [vmem:[#allocation2 + $0xe8] sm:$0xff] %v5780
      %5823 = vst [vmem:[#allocation2 + $0xf0] sm:$0xff] %v5781
      %5824 = vst [vmem:[#allocation2 + $0xf8] sm:$0xff] %v5782
      %5825 = vst [vmem:[#allocation2 + $0x100] sm:$0xff] %v5783
      %5826 = vst [vmem:[#allocation2 + $0x108] sm:$0xff] %v5784
      %5827 = vst [vmem:[#allocation2 + $0x110] sm:$0xff] %v5785
      %5828 = vst [vmem:[#allocation2 + $0x118] sm:$0xff] %v5786
      %5829 = vst [vmem:[#allocation2 + $0x120] sm:$0xff] %v5787
      %5830 = vst [vmem:[#allocation2 + $0x128] sm:$0xff] %v5788
      %5831 = vst [vmem:[#allocation2 + $0x130] sm:$0xff] %v5789
      %5832 = vst [vmem:[#allocation2 + $0x138] sm:$0xff] %v5790
      %5833 = vst [vmem:[#allocation2 + $0x140] sm:$0xff] %v5791
      %5834 = vst [vmem:[#allocation2 + $0x148] sm:$0xff] %v5792
      %5835 = vst [vmem:[#allocation2 + $0x150] sm:$0xff] %v5793
      %5836 = vst [vmem:[#allocation2 + $0x158] sm:$0xff] %v5794
      %5837 = vst [vmem:[#allocation2 + $0x160] sm:$0xff] %v5795
      %5838 = vst [vmem:[#allocation2 + $0x168] sm:$0xff] %v5796
      %v5839 = vld [vmem:[#allocation2 + $0xd] sm:$0xff]
      %v5840 = vld [vmem:[#allocation2 + $0x15] sm:$0xff]
      %v5841 = vld [vmem:[#allocation2 + $0x1d] sm:$0xff]
      %v5842 = vld [vmem:[#allocation2 + $0x25] sm:$0xff]
      %v5843 = vld [vmem:[#allocation2 + $0x2d] sm:$0xff]
      %v5844 = vld [vmem:[#allocation2 + $0x35] sm:$0xff]
      %v5845 = vld [vmem:[#allocation2 + $0x3d] sm:$0xff]
      %v5846 = vld [vmem:[#allocation2 + $0x45] sm:$0xff]
      %v5847 = vld [vmem:[#allocation2 + $0x4d] sm:$0xff]
      %v5848 = vld [vmem:[#allocation2 + $0x55] sm:$0xff]
      %v5849 = vld [vmem:[#allocation2 + $0x5d] sm:$0xff]
      %v5850 = vld [vmem:[#allocation2 + $0x65] sm:$0xff]
      %v5851 = vld [vmem:[#allocation2 + $0x6d] sm:$0xff]
      %v5852 = vld [vmem:[#allocation2 + $0x75] sm:$0xff]
      %v5853 = vld [vmem:[#allocation2 + $0x7d] sm:$0xff]
      %v5854 = vld [vmem:[#allocation2 + $0x85] sm:$0xff]
      %v5855 = vld [vmem:[#allocation2 + $0x8d] sm:$0xff]
      %v5856 = vld [vmem:[#allocation2 + $0x95] sm:$0xff]
      %v5857 = vld [vmem:[#allocation2 + $0x9d] sm:$0xff]
      %v5858 = vld [vmem:[#allocation2 + $0xa5] sm:$0xff]
      %v5859 = vld [vmem:[#allocation2 + $0xad] sm:$0xff]
      %v5860 = vld [vmem:[#allocation2 + $0xb5] sm:$0xff]
      %v5861 = vld [vmem:[#allocation2 + $0xbd] sm:$0xff]
      %v5862 = vld [vmem:[#allocation2 + $0xc5] sm:$0xff]
      %v5863 = vld [vmem:[#allocation2 + $0xcd] sm:$0xff]
      %v5864 = vld [vmem:[#allocation2 + $0xd5] sm:$0xff]
      %v5865 = vld [vmem:[#allocation2 + $0xdd] sm:$0xff]
      %v5866 = vld [vmem:[#allocation2 + $0xe5] sm:$0xff]
      %v5867 = vld [vmem:[#allocation2 + $0xed] sm:$0xff]
      %v5868 = vld [vmem:[#allocation2 + $0xf5] sm:$0xff]
      %v5869 = vld [vmem:[#allocation2 + $0xfd] sm:$0xff]
      %v5870 = vld [vmem:[#allocation2 + $0x105] sm:$0xff]
      %v5871 = vld [vmem:[#allocation2 + $0x10d] sm:$0xff]
      %v5872 = vld [vmem:[#allocation2 + $0x115] sm:$0xff]
      %v5873 = vld [vmem:[#allocation2 + $0x11d] sm:$0xff]
      %v5874 = vld [vmem:[#allocation2 + $0x125] sm:$0xff]
      %v5875 = vld [vmem:[#allocation2 + $0x12d] sm:$0xff]
      %v5876 = vld [vmem:[#allocation2 + $0x135] sm:$0xff]
      %v5877 = vld [vmem:[#allocation2 + $0x13d] sm:$0xff]
      %v5878 = vld [vmem:[#allocation2 + $0x145] sm:$0xff]
      %v5879 = vld [vmem:[#allocation2 + $0x14d] sm:$0xff]
      %v5880 = vld [vmem:[#allocation2 + $0x155] sm:$0xff]
      %5881 = vst.msk [vmem:[#allocation3] sm:$0xff] %vm3417, %v5839
      %5882 = vst.msk [vmem:[#allocation3 + $0x10] sm:$0xff] %vm3417, %v5840
      %5883 = vst.msk [vmem:[#allocation3 + $0x20] sm:$0xff] %vm3417, %v5841
      %5884 = vst.msk [vmem:[#allocation3 + $0x30] sm:$0xff] %vm3417, %v5842
      %5885 = vst.msk [vmem:[#allocation3 + $0x40] sm:$0xff] %vm3417, %v5843
      %5886 = vst.msk [vmem:[#allocation3 + $0x50] sm:$0xff] %vm3417, %v5844
      %5887 = vst.msk [vmem:[#allocation3 + $0x60] sm:$0xff] %vm3417, %v5845
      %5888 = vst.msk [vmem:[#allocation3 + $0x70] sm:$0xff] %vm3417, %v5846
      %5889 = vst.msk [vmem:[#allocation3 + $0x80] sm:$0xff] %vm3417, %v5847
      %5890 = vst.msk [vmem:[#allocation3 + $0x90] sm:$0xff] %vm3417, %v5848
      %5891 = vst.msk [vmem:[#allocation3 + $0xa0] sm:$0xff] %vm3417, %v5849
      %5892 = vst.msk [vmem:[#allocation3 + $0xb0] sm:$0xff] %vm3417, %v5850
      %5893 = vst.msk [vmem:[#allocation3 + $0xc0] sm:$0xff] %vm3417, %v5851
      %5894 = vst.msk [vmem:[#allocation3 + $0xd0] sm:$0xff] %vm3417, %v5852
      %5895 = vst.msk [vmem:[#allocation3 + $0xe0] sm:$0xff] %vm3417, %v5853
      %5896 = vst.msk [vmem:[#allocation3 + $0xf0] sm:$0xff] %vm3417, %v5854
      %5897 = vst.msk [vmem:[#allocation3 + $0x100] sm:$0xff] %vm3417, %v5855
      %5898 = vst.msk [vmem:[#allocation3 + $0x110] sm:$0xff] %vm3417, %v5856
      %5899 = vst.msk [vmem:[#allocation3 + $0x120] sm:$0xff] %vm3417, %v5857
      %5900 = vst.msk [vmem:[#allocation3 + $0x130] sm:$0xff] %vm3417, %v5858
      %5901 = vst.msk [vmem:[#allocation3 + $0x140] sm:$0xff] %vm3417, %v5859
      %5902 = vst.msk [vmem:[#allocation3 + $0x150] sm:$0xff] %vm3417, %v5860
      %5903 = vst.msk [vmem:[#allocation3 + $0x160] sm:$0xff] %vm3417, %v5861
      %5904 = vst.msk [vmem:[#allocation3 + $0x170] sm:$0xff] %vm3417, %v5862
      %5905 = vst.msk [vmem:[#allocation3 + $0x180] sm:$0xff] %vm3417, %v5863
      %5906 = vst.msk [vmem:[#allocation3 + $0x190] sm:$0xff] %vm3417, %v5864
      %5907 = vst.msk [vmem:[#allocation3 + $0x1a0] sm:$0xff] %vm3417, %v5865
      %5908 = vst.msk [vmem:[#allocation3 + $0x1b0] sm:$0xff] %vm3417, %v5866
      %5909 = vst.msk [vmem:[#allocation3 + $0x1c0] sm:$0xff] %vm3417, %v5867
      %5910 = vst.msk [vmem:[#allocation3 + $0x1d0] sm:$0xff] %vm3417, %v5868
      %5911 = vst.msk [vmem:[#allocation3 + $0x1e0] sm:$0xff] %vm3417, %v5869
      %5912 = vst.msk [vmem:[#allocation3 + $0x1f0] sm:$0xff] %vm3417, %v5870
      %5913 = vst.msk [vmem:[#allocation3 + $0x200] sm:$0xff] %vm3417, %v5871
      %5914 = vst.msk [vmem:[#allocation3 + $0x210] sm:$0xff] %vm3417, %v5872
      %5915 = vst.msk [vmem:[#allocation3 + $0x220] sm:$0xff] %vm3417, %v5873
      %5916 = vst.msk [vmem:[#allocation3 + $0x230] sm:$0xff] %vm3417, %v5874
      %5917 = vst.msk [vmem:[#allocation3 + $0x240] sm:$0xff] %vm3417, %v5875
      %5918 = vst.msk [vmem:[#allocation3 + $0x250] sm:$0xff] %vm3417, %v5876
      %5919 = vst.msk [vmem:[#allocation3 + $0x260] sm:$0xff] %vm3417, %v5877
      %5920 = vst.msk [vmem:[#allocation3 + $0x270] sm:$0xff] %vm3417, %v5878
      %5921 = vst.msk [vmem:[#allocation3 + $0x280] sm:$0xff] %vm3417, %v5879
      %5922 = vst.msk [vmem:[#allocation3 + $0x290] sm:$0xff] %vm3417, %v5880
      %v5923 = vld [vmem:[#allocation2 + $0xe] sm:$0xff]
      %v5924 = vld [vmem:[#allocation2 + $0x16] sm:$0xff]
      %v5925 = vld [vmem:[#allocation2 + $0x1e] sm:$0xff]
      %v5926 = vld [vmem:[#allocation2 + $0x26] sm:$0xff]
      %v5927 = vld [vmem:[#allocation2 + $0x2e] sm:$0xff]
      %v5928 = vld [vmem:[#allocation2 + $0x36] sm:$0xff]
      %v5929 = vld [vmem:[#allocation2 + $0x3e] sm:$0xff]
      %v5930 = vld [vmem:[#allocation2 + $0x46] sm:$0xff]
      %v5931 = vld [vmem:[#allocation2 + $0x4e] sm:$0xff]
      %v5932 = vld [vmem:[#allocation2 + $0x56] sm:$0xff]
      %v5933 = vld [vmem:[#allocation2 + $0x5e] sm:$0xff]
      %v5934 = vld [vmem:[#allocation2 + $0x66] sm:$0xff]
      %v5935 = vld [vmem:[#allocation2 + $0x6e] sm:$0xff]
      %v5936 = vld [vmem:[#allocation2 + $0x76] sm:$0xff]
      %v5937 = vld [vmem:[#allocation2 + $0x7e] sm:$0xff]
      %v5938 = vld [vmem:[#allocation2 + $0x86] sm:$0xff]
      %v5939 = vld [vmem:[#allocation2 + $0x8e] sm:$0xff]
      %v5940 = vld [vmem:[#allocation2 + $0x96] sm:$0xff]
      %v5941 = vld [vmem:[#allocation2 + $0x9e] sm:$0xff]
      %v5942 = vld [vmem:[#allocation2 + $0xa6] sm:$0xff]
      %v5943 = vld [vmem:[#allocation2 + $0xae] sm:$0xff]
      %v5944 = vld [vmem:[#allocation2 + $0xb6] sm:$0xff]
      %v5945 = vld [vmem:[#allocation2 + $0xbe] sm:$0xff]
      %v5946 = vld [vmem:[#allocation2 + $0xc6] sm:$0xff]
      %v5947 = vld [vmem:[#allocation2 + $0xce] sm:$0xff]
      %v5948 = vld [vmem:[#allocation2 + $0xd6] sm:$0xff]
      %v5949 = vld [vmem:[#allocation2 + $0xde] sm:$0xff]
      %v5950 = vld [vmem:[#allocation2 + $0xe6] sm:$0xff]
      %v5951 = vld [vmem:[#allocation2 + $0xee] sm:$0xff]
      %v5952 = vld [vmem:[#allocation2 + $0xf6] sm:$0xff]
      %v5953 = vld [vmem:[#allocation2 + $0xfe] sm:$0xff]
      %v5954 = vld [vmem:[#allocation2 + $0x106] sm:$0xff]
      %v5955 = vld [vmem:[#allocation2 + $0x10e] sm:$0xff]
      %v5956 = vld [vmem:[#allocation2 + $0x116] sm:$0xff]
      %v5957 = vld [vmem:[#allocation2 + $0x11e] sm:$0xff]
      %v5958 = vld [vmem:[#allocation2 + $0x126] sm:$0xff]
      %v5959 = vld [vmem:[#allocation2 + $0x12e] sm:$0xff]
      %v5960 = vld [vmem:[#allocation2 + $0x136] sm:$0xff]
      %v5961 = vld [vmem:[#allocation2 + $0x13e] sm:$0xff]
      %v5962 = vld [vmem:[#allocation2 + $0x146] sm:$0xff]
      %v5963 = vld [vmem:[#allocation2 + $0x14e] sm:$0xff]
      %v5964 = vld [vmem:[#allocation2 + $0x156] sm:$0xff]
      %6007 = vrot.lane.b32.xlu0 %v5923, 16
      %v6008 = vpop.permute.xlu0 %6007
      %6009 = vrot.lane.b32.xlu0 %v5924, 16
      %v6010 = vpop.permute.xlu0 %6009
      %6011 = vrot.lane.b32.xlu0 %v5925, 16
      %v6012 = vpop.permute.xlu0 %6011
      %6013 = vrot.lane.b32.xlu0 %v5926, 16
      %v6014 = vpop.permute.xlu0 %6013
      %6015 = vrot.lane.b32.xlu0 %v5927, 16
      %v6016 = vpop.permute.xlu0 %6015
      %6017 = vrot.lane.b32.xlu0 %v5928, 16
      %v6018 = vpop.permute.xlu0 %6017
      %6019 = vrot.lane.b32.xlu0 %v5929, 16
      %v6020 = vpop.permute.xlu0 %6019
      %6021 = vrot.lane.b32.xlu0 %v5930, 16
      %v6022 = vpop.permute.xlu0 %6021
      %6023 = vrot.lane.b32.xlu0 %v5931, 16
      %v6024 = vpop.permute.xlu0 %6023
      %6025 = vrot.lane.b32.xlu0 %v5932, 16
      %v6026 = vpop.permute.xlu0 %6025
      %6027 = vrot.lane.b32.xlu0 %v5933, 16
      %v6028 = vpop.permute.xlu0 %6027
      %6029 = vrot.lane.b32.xlu0 %v5934, 16
      %v6030 = vpop.permute.xlu0 %6029
      %6031 = vrot.lane.b32.xlu0 %v5935, 16
      %v6032 = vpop.permute.xlu0 %6031
      %6033 = vrot.lane.b32.xlu0 %v5936, 16
      %v6034 = vpop.permute.xlu0 %6033
      %6035 = vrot.lane.b32.xlu0 %v5937, 16
      %v6036 = vpop.permute.xlu0 %6035
      %6037 = vrot.lane.b32.xlu0 %v5938, 16
      %v6038 = vpop.permute.xlu0 %6037
      %6039 = vrot.lane.b32.xlu0 %v5939, 16
      %v6040 = vpop.permute.xlu0 %6039
      %6041 = vrot.lane.b32.xlu0 %v5940, 16
      %v6042 = vpop.permute.xlu0 %6041
      %6043 = vrot.lane.b32.xlu0 %v5941, 16
      %v6044 = vpop.permute.xlu0 %6043
      %6045 = vrot.lane.b32.xlu0 %v5942, 16
      %v6046 = vpop.permute.xlu0 %6045
      %6047 = vrot.lane.b32.xlu0 %v5943, 16
      %v6048 = vpop.permute.xlu0 %6047
      %6049 = vrot.lane.b32.xlu0 %v5944, 16
      %v6050 = vpop.permute.xlu0 %6049
      %6051 = vrot.lane.b32.xlu0 %v5945, 16
      %v6052 = vpop.permute.xlu0 %6051
      %6053 = vrot.lane.b32.xlu0 %v5946, 16
      %v6054 = vpop.permute.xlu0 %6053
      %6055 = vrot.lane.b32.xlu0 %v5947, 16
      %v6056 = vpop.permute.xlu0 %6055
      %6057 = vrot.lane.b32.xlu0 %v5948, 16
      %v6058 = vpop.permute.xlu0 %6057
      %6059 = vrot.lane.b32.xlu0 %v5949, 16
      %v6060 = vpop.permute.xlu0 %6059
      %6061 = vrot.lane.b32.xlu0 %v5950, 16
      %v6062 = vpop.permute.xlu0 %6061
      %6063 = vrot.lane.b32.xlu0 %v5951, 16
      %v6064 = vpop.permute.xlu0 %6063
      %6065 = vrot.lane.b32.xlu0 %v5952, 16
      %v6066 = vpop.permute.xlu0 %6065
      %6067 = vrot.lane.b32.xlu0 %v5953, 16
      %v6068 = vpop.permute.xlu0 %6067
      %6069 = vrot.lane.b32.xlu0 %v5954, 16
      %v6070 = vpop.permute.xlu0 %6069
      %6071 = vrot.lane.b32.xlu0 %v5955, 16
      %v6072 = vpop.permute.xlu0 %6071
      %6073 = vrot.lane.b32.xlu0 %v5956, 16
      %v6074 = vpop.permute.xlu0 %6073
      %6075 = vrot.lane.b32.xlu0 %v5957, 16
      %v6076 = vpop.permute.xlu0 %6075
      %6077 = vrot.lane.b32.xlu0 %v5958, 16
      %v6078 = vpop.permute.xlu0 %6077
      %6079 = vrot.lane.b32.xlu0 %v5959, 16
      %v6080 = vpop.permute.xlu0 %6079
      %6081 = vrot.lane.b32.xlu0 %v5960, 16
      %v6082 = vpop.permute.xlu0 %6081
      %6083 = vrot.lane.b32.xlu0 %v5961, 16
      %v6084 = vpop.permute.xlu0 %6083
      %6085 = vrot.lane.b32.xlu0 %v5962, 16
      %v6086 = vpop.permute.xlu0 %6085
      %6087 = vrot.lane.b32.xlu0 %v5963, 16
      %v6088 = vpop.permute.xlu0 %6087
      %6089 = vrot.lane.b32.xlu0 %v5964, 16
      %v6090 = vpop.permute.xlu0 %6089
      %6133 = vst.msk [vmem:[#allocation3] sm:$0xff] %vm3670, %v6008
      %6134 = vst.msk [vmem:[#allocation3 + $0x10] sm:$0xff] %vm3670, %v6010
      %6135 = vst.msk [vmem:[#allocation3 + $0x20] sm:$0xff] %vm3670, %v6012
      %6136 = vst.msk [vmem:[#allocation3 + $0x30] sm:$0xff] %vm3670, %v6014
      %6137 = vst.msk [vmem:[#allocation3 + $0x40] sm:$0xff] %vm3670, %v6016
      %6138 = vst.msk [vmem:[#allocation3 + $0x50] sm:$0xff] %vm3670, %v6018
      %6139 = vst.msk [vmem:[#allocation3 + $0x60] sm:$0xff] %vm3670, %v6020
      %6140 = vst.msk [vmem:[#allocation3 + $0x70] sm:$0xff] %vm3670, %v6022
      %6141 = vst.msk [vmem:[#allocation3 + $0x80] sm:$0xff] %vm3670, %v6024
      %6142 = vst.msk [vmem:[#allocation3 + $0x90] sm:$0xff] %vm3670, %v6026
      %6143 = vst.msk [vmem:[#allocation3 + $0xa0] sm:$0xff] %vm3670, %v6028
      %6144 = vst.msk [vmem:[#allocation3 + $0xb0] sm:$0xff] %vm3670, %v6030
      %6145 = vst.msk [vmem:[#allocation3 + $0xc0] sm:$0xff] %vm3670, %v6032
      %6146 = vst.msk [vmem:[#allocation3 + $0xd0] sm:$0xff] %vm3670, %v6034
      %6147 = vst.msk [vmem:[#allocation3 + $0xe0] sm:$0xff] %vm3670, %v6036
      %6148 = vst.msk [vmem:[#allocation3 + $0xf0] sm:$0xff] %vm3670, %v6038
      %6149 = vst.msk [vmem:[#allocation3 + $0x100] sm:$0xff] %vm3670, %v6040
      %6150 = vst.msk [vmem:[#allocation3 + $0x110] sm:$0xff] %vm3670, %v6042
      %6151 = vst.msk [vmem:[#allocation3 + $0x120] sm:$0xff] %vm3670, %v6044
      %6152 = vst.msk [vmem:[#allocation3 + $0x130] sm:$0xff] %vm3670, %v6046
      %6153 = vst.msk [vmem:[#allocation3 + $0x140] sm:$0xff] %vm3670, %v6048
      %6154 = vst.msk [vmem:[#allocation3 + $0x150] sm:$0xff] %vm3670, %v6050
      %6155 = vst.msk [vmem:[#allocation3 + $0x160] sm:$0xff] %vm3670, %v6052
      %6156 = vst.msk [vmem:[#allocation3 + $0x170] sm:$0xff] %vm3670, %v6054
      %6157 = vst.msk [vmem:[#allocation3 + $0x180] sm:$0xff] %vm3670, %v6056
      %6158 = vst.msk [vmem:[#allocation3 + $0x190] sm:$0xff] %vm3670, %v6058
      %6159 = vst.msk [vmem:[#allocation3 + $0x1a0] sm:$0xff] %vm3670, %v6060
      %6160 = vst.msk [vmem:[#allocation3 + $0x1b0] sm:$0xff] %vm3670, %v6062
      %6161 = vst.msk [vmem:[#allocation3 + $0x1c0] sm:$0xff] %vm3670, %v6064
      %6162 = vst.msk [vmem:[#allocation3 + $0x1d0] sm:$0xff] %vm3670, %v6066
      %6163 = vst.msk [vmem:[#allocation3 + $0x1e0] sm:$0xff] %vm3670, %v6068
      %6164 = vst.msk [vmem:[#allocation3 + $0x1f0] sm:$0xff] %vm3670, %v6070
      %6165 = vst.msk [vmem:[#allocation3 + $0x200] sm:$0xff] %vm3670, %v6072
      %6166 = vst.msk [vmem:[#allocation3 + $0x210] sm:$0xff] %vm3670, %v6074
      %6167 = vst.msk [vmem:[#allocation3 + $0x220] sm:$0xff] %vm3670, %v6076
      %6168 = vst.msk [vmem:[#allocation3 + $0x230] sm:$0xff] %vm3670, %v6078
      %6169 = vst.msk [vmem:[#allocation3 + $0x240] sm:$0xff] %vm3670, %v6080
      %6170 = vst.msk [vmem:[#allocation3 + $0x250] sm:$0xff] %vm3670, %v6082
      %6171 = vst.msk [vmem:[#allocation3 + $0x260] sm:$0xff] %vm3670, %v6084
      %6172 = vst.msk [vmem:[#allocation3 + $0x270] sm:$0xff] %vm3670, %v6086
      %6173 = vst.msk [vmem:[#allocation3 + $0x280] sm:$0xff] %vm3670, %v6088
      %6174 = vst.msk [vmem:[#allocation3 + $0x290] sm:$0xff] %vm3670, %v6090
      %v6175 = vld [vmem:[#allocation2 + $0xf] sm:$0xff]
      %v6176 = vld [vmem:[#allocation2 + $0x17] sm:$0xff]
      %v6177 = vld [vmem:[#allocation2 + $0x1f] sm:$0xff]
      %v6178 = vld [vmem:[#allocation2 + $0x27] sm:$0xff]
      %v6179 = vld [vmem:[#allocation2 + $0x2f] sm:$0xff]
      %v6180 = vld [vmem:[#allocation2 + $0x37] sm:$0xff]
      %v6181 = vld [vmem:[#allocation2 + $0x3f] sm:$0xff]
      %v6182 = vld [vmem:[#allocation2 + $0x47] sm:$0xff]
      %v6183 = vld [vmem:[#allocation2 + $0x4f] sm:$0xff]
      %v6184 = vld [vmem:[#allocation2 + $0x57] sm:$0xff]
      %v6185 = vld [vmem:[#allocation2 + $0x5f] sm:$0xff]
      %v6186 = vld [vmem:[#allocation2 + $0x67] sm:$0xff]
      %v6187 = vld [vmem:[#allocation2 + $0x6f] sm:$0xff]
      %v6188 = vld [vmem:[#allocation2 + $0x77] sm:$0xff]
      %v6189 = vld [vmem:[#allocation2 + $0x7f] sm:$0xff]
      %v6190 = vld [vmem:[#allocation2 + $0x87] sm:$0xff]
      %v6191 = vld [vmem:[#allocation2 + $0x8f] sm:$0xff]
      %v6192 = vld [vmem:[#allocation2 + $0x97] sm:$0xff]
      %v6193 = vld [vmem:[#allocation2 + $0x9f] sm:$0xff]
      %v6194 = vld [vmem:[#allocation2 + $0xa7] sm:$0xff]
      %v6195 = vld [vmem:[#allocation2 + $0xaf] sm:$0xff]
      %v6196 = vld [vmem:[#allocation2 + $0xb7] sm:$0xff]
      %v6197 = vld [vmem:[#allocation2 + $0xbf] sm:$0xff]
      %v6198 = vld [vmem:[#allocation2 + $0xc7] sm:$0xff]
      %v6199 = vld [vmem:[#allocation2 + $0xcf] sm:$0xff]
      %v6200 = vld [vmem:[#allocation2 + $0xd7] sm:$0xff]
      %v6201 = vld [vmem:[#allocation2 + $0xdf] sm:$0xff]
      %v6202 = vld [vmem:[#allocation2 + $0xe7] sm:$0xff]
      %v6203 = vld [vmem:[#allocation2 + $0xef] sm:$0xff]
      %v6204 = vld [vmem:[#allocation2 + $0xf7] sm:$0xff]
      %v6205 = vld [vmem:[#allocation2 + $0xff] sm:$0xff]
      %v6206 = vld [vmem:[#allocation2 + $0x107] sm:$0xff]
      %v6207 = vld [vmem:[#allocation2 + $0x10f] sm:$0xff]
      %v6208 = vld [vmem:[#allocation2 + $0x117] sm:$0xff]
      %v6209 = vld [vmem:[#allocation2 + $0x11f] sm:$0xff]
      %v6210 = vld [vmem:[#allocation2 + $0x127] sm:$0xff]
      %v6211 = vld [vmem:[#allocation2 + $0x12f] sm:$0xff]
      %v6212 = vld [vmem:[#allocation2 + $0x137] sm:$0xff]
      %v6213 = vld [vmem:[#allocation2 + $0x13f] sm:$0xff]
      %v6214 = vld [vmem:[#allocation2 + $0x147] sm:$0xff]
      %v6215 = vld [vmem:[#allocation2 + $0x14f] sm:$0xff]
      %v6216 = vld [vmem:[#allocation2 + $0x157] sm:$0xff]
      %6259 = vrot.lane.b32.xlu0 %v6175, 32
      %v6260 = vpop.permute.xlu0 %6259
      %6261 = vrot.lane.b32.xlu0 %v6176, 32
      %v6262 = vpop.permute.xlu0 %6261
      %6263 = vrot.lane.b32.xlu0 %v6177, 32
      %v6264 = vpop.permute.xlu0 %6263
      %6265 = vrot.lane.b32.xlu0 %v6178, 32
      %v6266 = vpop.permute.xlu0 %6265
      %6267 = vrot.lane.b32.xlu0 %v6179, 32
      %v6268 = vpop.permute.xlu0 %6267
      %6269 = vrot.lane.b32.xlu0 %v6180, 32
      %v6270 = vpop.permute.xlu0 %6269
      %6271 = vrot.lane.b32.xlu0 %v6181, 32
      %v6272 = vpop.permute.xlu0 %6271
      %6273 = vrot.lane.b32.xlu0 %v6182, 32
      %v6274 = vpop.permute.xlu0 %6273
      %6275 = vrot.lane.b32.xlu0 %v6183, 32
      %v6276 = vpop.permute.xlu0 %6275
      %6277 = vrot.lane.b32.xlu0 %v6184, 32
      %v6278 = vpop.permute.xlu0 %6277
      %6279 = vrot.lane.b32.xlu0 %v6185, 32
      %v6280 = vpop.permute.xlu0 %6279
      %6281 = vrot.lane.b32.xlu0 %v6186, 32
      %v6282 = vpop.permute.xlu0 %6281
      %6283 = vrot.lane.b32.xlu0 %v6187, 32
      %v6284 = vpop.permute.xlu0 %6283
      %6285 = vrot.lane.b32.xlu0 %v6188, 32
      %v6286 = vpop.permute.xlu0 %6285
      %6287 = vrot.lane.b32.xlu0 %v6189, 32
      %v6288 = vpop.permute.xlu0 %6287
      %6289 = vrot.lane.b32.xlu0 %v6190, 32
      %v6290 = vpop.permute.xlu0 %6289
      %6291 = vrot.lane.b32.xlu0 %v6191, 32
      %v6292 = vpop.permute.xlu0 %6291
      %6293 = vrot.lane.b32.xlu0 %v6192, 32
      %v6294 = vpop.permute.xlu0 %6293
      %6295 = vrot.lane.b32.xlu0 %v6193, 32
      %v6296 = vpop.permute.xlu0 %6295
      %6297 = vrot.lane.b32.xlu0 %v6194, 32
      %v6298 = vpop.permute.xlu0 %6297
      %6299 = vrot.lane.b32.xlu0 %v6195, 32
      %v6300 = vpop.permute.xlu0 %6299
      %6301 = vrot.lane.b32.xlu0 %v6196, 32
      %v6302 = vpop.permute.xlu0 %6301
      %6303 = vrot.lane.b32.xlu0 %v6197, 32
      %v6304 = vpop.permute.xlu0 %6303
      %6305 = vrot.lane.b32.xlu0 %v6198, 32
      %v6306 = vpop.permute.xlu0 %6305
      %6307 = vrot.lane.b32.xlu0 %v6199, 32
      %v6308 = vpop.permute.xlu0 %6307
      %6309 = vrot.lane.b32.xlu0 %v6200, 32
      %v6310 = vpop.permute.xlu0 %6309
      %6311 = vrot.lane.b32.xlu0 %v6201, 32
      %v6312 = vpop.permute.xlu0 %6311
      %6313 = vrot.lane.b32.xlu0 %v6202, 32
      %v6314 = vpop.permute.xlu0 %6313
      %6315 = vrot.lane.b32.xlu0 %v6203, 32
      %v6316 = vpop.permute.xlu0 %6315
      %6317 = vrot.lane.b32.xlu0 %v6204, 32
      %v6318 = vpop.permute.xlu0 %6317
      %6319 = vrot.lane.b32.xlu0 %v6205, 32
      %v6320 = vpop.permute.xlu0 %6319
      %6321 = vrot.lane.b32.xlu0 %v6206, 32
      %v6322 = vpop.permute.xlu0 %6321
      %6323 = vrot.lane.b32.xlu0 %v6207, 32
      %v6324 = vpop.permute.xlu0 %6323
      %6325 = vrot.lane.b32.xlu0 %v6208, 32
      %v6326 = vpop.permute.xlu0 %6325
      %6327 = vrot.lane.b32.xlu0 %v6209, 32
      %v6328 = vpop.permute.xlu0 %6327
      %6329 = vrot.lane.b32.xlu0 %v6210, 32
      %v6330 = vpop.permute.xlu0 %6329
      %6331 = vrot.lane.b32.xlu0 %v6211, 32
      %v6332 = vpop.permute.xlu0 %6331
      %6333 = vrot.lane.b32.xlu0 %v6212, 32
      %v6334 = vpop.permute.xlu0 %6333
      %6335 = vrot.lane.b32.xlu0 %v6213, 32
      %v6336 = vpop.permute.xlu0 %6335
      %6337 = vrot.lane.b32.xlu0 %v6214, 32
      %v6338 = vpop.permute.xlu0 %6337
      %6339 = vrot.lane.b32.xlu0 %v6215, 32
      %v6340 = vpop.permute.xlu0 %6339
      %6341 = vrot.lane.b32.xlu0 %v6216, 32
      %v6342 = vpop.permute.xlu0 %6341
      %6385 = vst.msk [vmem:[#allocation3] sm:$0xff] %vm3923, %v6260
      %6386 = vst.msk [vmem:[#allocation3 + $0x10] sm:$0xff] %vm3923, %v6262
      %6387 = vst.msk [vmem:[#allocation3 + $0x20] sm:$0xff] %vm3923, %v6264
      %6388 = vst.msk [vmem:[#allocation3 + $0x30] sm:$0xff] %vm3923, %v6266
      %6389 = vst.msk [vmem:[#allocation3 + $0x40] sm:$0xff] %vm3923, %v6268
      %6390 = vst.msk [vmem:[#allocation3 + $0x50] sm:$0xff] %vm3923, %v6270
      %6391 = vst.msk [vmem:[#allocation3 + $0x60] sm:$0xff] %vm3923, %v6272
      %6392 = vst.msk [vmem:[#allocation3 + $0x70] sm:$0xff] %vm3923, %v6274
      %6393 = vst.msk [vmem:[#allocation3 + $0x80] sm:$0xff] %vm3923, %v6276
      %6394 = vst.msk [vmem:[#allocation3 + $0x90] sm:$0xff] %vm3923, %v6278
      %6395 = vst.msk [vmem:[#allocation3 + $0xa0] sm:$0xff] %vm3923, %v6280
      %6396 = vst.msk [vmem:[#allocation3 + $0xb0] sm:$0xff] %vm3923, %v6282
      %6397 = vst.msk [vmem:[#allocation3 + $0xc0] sm:$0xff] %vm3923, %v6284
      %6398 = vst.msk [vmem:[#allocation3 + $0xd0] sm:$0xff] %vm3923, %v6286
      %6399 = vst.msk [vmem:[#allocation3 + $0xe0] sm:$0xff] %vm3923, %v6288
      %6400 = vst.msk [vmem:[#allocation3 + $0xf0] sm:$0xff] %vm3923, %v6290
      %6401 = vst.msk [vmem:[#allocation3 + $0x100] sm:$0xff] %vm3923, %v6292
      %6402 = vst.msk [vmem:[#allocation3 + $0x110] sm:$0xff] %vm3923, %v6294
      %6403 = vst.msk [vmem:[#allocation3 + $0x120] sm:$0xff] %vm3923, %v6296
      %6404 = vst.msk [vmem:[#allocation3 + $0x130] sm:$0xff] %vm3923, %v6298
      %6405 = vst.msk [vmem:[#allocation3 + $0x140] sm:$0xff] %vm3923, %v6300
      %6406 = vst.msk [vmem:[#allocation3 + $0x150] sm:$0xff] %vm3923, %v6302
      %6407 = vst.msk [vmem:[#allocation3 + $0x160] sm:$0xff] %vm3923, %v6304
      %6408 = vst.msk [vmem:[#allocation3 + $0x170] sm:$0xff] %vm3923, %v6306
      %6409 = vst.msk [vmem:[#allocation3 + $0x180] sm:$0xff] %vm3923, %v6308
      %6410 = vst.msk [vmem:[#allocation3 + $0x190] sm:$0xff] %vm3923, %v6310
      %6411 = vst.msk [vmem:[#allocation3 + $0x1a0] sm:$0xff] %vm3923, %v6312
      %6412 = vst.msk [vmem:[#allocation3 + $0x1b0] sm:$0xff] %vm3923, %v6314
      %6413 = vst.msk [vmem:[#allocation3 + $0x1c0] sm:$0xff] %vm3923, %v6316
      %6414 = vst.msk [vmem:[#allocation3 + $0x1d0] sm:$0xff] %vm3923, %v6318
      %6415 = vst.msk [vmem:[#allocation3 + $0x1e0] sm:$0xff] %vm3923, %v6320
      %6416 = vst.msk [vmem:[#allocation3 + $0x1f0] sm:$0xff] %vm3923, %v6322
      %6417 = vst.msk [vmem:[#allocation3 + $0x200] sm:$0xff] %vm3923, %v6324
      %6418 = vst.msk [vmem:[#allocation3 + $0x210] sm:$0xff] %vm3923, %v6326
      %6419 = vst.msk [vmem:[#allocation3 + $0x220] sm:$0xff] %vm3923, %v6328
      %6420 = vst.msk [vmem:[#allocation3 + $0x230] sm:$0xff] %vm3923, %v6330
      %6421 = vst.msk [vmem:[#allocation3 + $0x240] sm:$0xff] %vm3923, %v6332
      %6422 = vst.msk [vmem:[#allocation3 + $0x250] sm:$0xff] %vm3923, %v6334
      %6423 = vst.msk [vmem:[#allocation3 + $0x260] sm:$0xff] %vm3923, %v6336
      %6424 = vst.msk [vmem:[#allocation3 + $0x270] sm:$0xff] %vm3923, %v6338
      %6425 = vst.msk [vmem:[#allocation3 + $0x280] sm:$0xff] %vm3923, %v6340
      %6426 = vst.msk [vmem:[#allocation3 + $0x290] sm:$0xff] %vm3923, %v6342
      %v6427 = vld [vmem:[#allocation2 + $0x1f] sm:$0xff]
      %v6428 = vld [vmem:[#allocation2 + $0x27] sm:$0xff]
      %v6429 = vld [vmem:[#allocation2 + $0x2f] sm:$0xff]
      %v6430 = vld [vmem:[#allocation2 + $0x37] sm:$0xff]
      %v6431 = vld [vmem:[#allocation2 + $0x3f] sm:$0xff]
      %v6432 = vld [vmem:[#allocation2 + $0x47] sm:$0xff]
      %v6433 = vld [vmem:[#allocation2 + $0x4f] sm:$0xff]
      %v6434 = vld [vmem:[#allocation2 + $0x57] sm:$0xff]
      %v6435 = vld [vmem:[#allocation2 + $0x5f] sm:$0xff]
      %v6436 = vld [vmem:[#allocation2 + $0x67] sm:$0xff]
      %v6437 = vld [vmem:[#allocation2 + $0x6f] sm:$0xff]
      %v6438 = vld [vmem:[#allocation2 + $0x77] sm:$0xff]
      %v6439 = vld [vmem:[#allocation2 + $0x7f] sm:$0xff]
      %v6440 = vld [vmem:[#allocation2 + $0x87] sm:$0xff]
      %v6441 = vld [vmem:[#allocation2 + $0x8f] sm:$0xff]
      %v6442 = vld [vmem:[#allocation2 + $0x97] sm:$0xff]
      %v6443 = vld [vmem:[#allocation2 + $0x9f] sm:$0xff]
      %v6444 = vld [vmem:[#allocation2 + $0xa7] sm:$0xff]
      %v6445 = vld [vmem:[#allocation2 + $0xaf] sm:$0xff]
      %v6446 = vld [vmem:[#allocation2 + $0xb7] sm:$0xff]
      %v6447 = vld [vmem:[#allocation2 + $0xbf] sm:$0xff]
      %v6448 = vld [vmem:[#allocation2 + $0xc7] sm:$0xff]
      %v6449 = vld [vmem:[#allocation2 + $0xcf] sm:$0xff]
      %v6450 = vld [vmem:[#allocation2 + $0xd7] sm:$0xff]
      %v6451 = vld [vmem:[#allocation2 + $0xdf] sm:$0xff]
      %v6452 = vld [vmem:[#allocation2 + $0xe7] sm:$0xff]
      %v6453 = vld [vmem:[#allocation2 + $0xef] sm:$0xff]
      %v6454 = vld [vmem:[#allocation2 + $0xf7] sm:$0xff]
      %v6455 = vld [vmem:[#allocation2 + $0xff] sm:$0xff]
      %v6456 = vld [vmem:[#allocation2 + $0x107] sm:$0xff]
      %v6457 = vld [vmem:[#allocation2 + $0x10f] sm:$0xff]
      %v6458 = vld [vmem:[#allocation2 + $0x117] sm:$0xff]
      %v6459 = vld [vmem:[#allocation2 + $0x11f] sm:$0xff]
      %v6460 = vld [vmem:[#allocation2 + $0x127] sm:$0xff]
      %v6461 = vld [vmem:[#allocation2 + $0x12f] sm:$0xff]
      %v6462 = vld [vmem:[#allocation2 + $0x137] sm:$0xff]
      %v6463 = vld [vmem:[#allocation2 + $0x13f] sm:$0xff]
      %v6464 = vld [vmem:[#allocation2 + $0x147] sm:$0xff]
      %v6465 = vld [vmem:[#allocation2 + $0x14f] sm:$0xff]
      %v6466 = vld [vmem:[#allocation2 + $0x157] sm:$0xff]
      %v6467 = vld [vmem:[#allocation2 + $0x15f] sm:$0xff]
      %v6468 = vld [vmem:[#allocation2 + $0x167] sm:$0xff]
      %6511 = vrot.lane.b32.xlu0 %v6427, 48
      %v6512 = vpop.permute.xlu0 %6511
      %6513 = vrot.lane.b32.xlu0 %v6428, 48
      %v6514 = vpop.permute.xlu0 %6513
      %6515 = vrot.lane.b32.xlu0 %v6429, 48
      %v6516 = vpop.permute.xlu0 %6515
      %6517 = vrot.lane.b32.xlu0 %v6430, 48
      %v6518 = vpop.permute.xlu0 %6517
      %6519 = vrot.lane.b32.xlu0 %v6431, 48
      %v6520 = vpop.permute.xlu0 %6519
      %6521 = vrot.lane.b32.xlu0 %v6432, 48
      %v6522 = vpop.permute.xlu0 %6521
      %6523 = vrot.lane.b32.xlu0 %v6433, 48
      %v6524 = vpop.permute.xlu0 %6523
      %6525 = vrot.lane.b32.xlu0 %v6434, 48
      %v6526 = vpop.permute.xlu0 %6525
      %6527 = vrot.lane.b32.xlu0 %v6435, 48
      %v6528 = vpop.permute.xlu0 %6527
      %6529 = vrot.lane.b32.xlu0 %v6436, 48
      %v6530 = vpop.permute.xlu0 %6529
      %6531 = vrot.lane.b32.xlu0 %v6437, 48
      %v6532 = vpop.permute.xlu0 %6531
      %6533 = vrot.lane.b32.xlu0 %v6438, 48
      %v6534 = vpop.permute.xlu0 %6533
      %6535 = vrot.lane.b32.xlu0 %v6439, 48
      %v6536 = vpop.permute.xlu0 %6535
      %6537 = vrot.lane.b32.xlu0 %v6440, 48
      %v6538 = vpop.permute.xlu0 %6537
      %6539 = vrot.lane.b32.xlu0 %v6441, 48
      %v6540 = vpop.permute.xlu0 %6539
      %6541 = vrot.lane.b32.xlu0 %v6442, 48
      %v6542 = vpop.permute.xlu0 %6541
      %6543 = vrot.lane.b32.xlu0 %v6443, 48
      %v6544 = vpop.permute.xlu0 %6543
      %6545 = vrot.lane.b32.xlu0 %v6444, 48
      %v6546 = vpop.permute.xlu0 %6545
      %6547 = vrot.lane.b32.xlu0 %v6445, 48
      %v6548 = vpop.permute.xlu0 %6547
      %6549 = vrot.lane.b32.xlu0 %v6446, 48
      %v6550 = vpop.permute.xlu0 %6549
      %6551 = vrot.lane.b32.xlu0 %v6447, 48
      %v6552 = vpop.permute.xlu0 %6551
      %6553 = vrot.lane.b32.xlu0 %v6448, 48
      %v6554 = vpop.permute.xlu0 %6553
      %6555 = vrot.lane.b32.xlu0 %v6449, 48
      %v6556 = vpop.permute.xlu0 %6555
      %6557 = vrot.lane.b32.xlu0 %v6450, 48
      %v6558 = vpop.permute.xlu0 %6557
      %6559 = vrot.lane.b32.xlu0 %v6451, 48
      %v6560 = vpop.permute.xlu0 %6559
      %6561 = vrot.lane.b32.xlu0 %v6452, 48
      %v6562 = vpop.permute.xlu0 %6561
      %6563 = vrot.lane.b32.xlu0 %v6453, 48
      %v6564 = vpop.permute.xlu0 %6563
      %6565 = vrot.lane.b32.xlu0 %v6454, 48
      %v6566 = vpop.permute.xlu0 %6565
      %6567 = vrot.lane.b32.xlu0 %v6455, 48
      %v6568 = vpop.permute.xlu0 %6567
      %6569 = vrot.lane.b32.xlu0 %v6456, 48
      %v6570 = vpop.permute.xlu0 %6569
      %6571 = vrot.lane.b32.xlu0 %v6457, 48
      %v6572 = vpop.permute.xlu0 %6571
      %6573 = vrot.lane.b32.xlu0 %v6458, 48
      %v6574 = vpop.permute.xlu0 %6573
      %6575 = vrot.lane.b32.xlu0 %v6459, 48
      %v6576 = vpop.permute.xlu0 %6575
      %6577 = vrot.lane.b32.xlu0 %v6460, 48
      %v6578 = vpop.permute.xlu0 %6577
      %6579 = vrot.lane.b32.xlu0 %v6461, 48
      %v6580 = vpop.permute.xlu0 %6579
      %6581 = vrot.lane.b32.xlu0 %v6462, 48
      %v6582 = vpop.permute.xlu0 %6581
      %6583 = vrot.lane.b32.xlu0 %v6463, 48
      %v6584 = vpop.permute.xlu0 %6583
      %6585 = vrot.lane.b32.xlu0 %v6464, 48
      %v6586 = vpop.permute.xlu0 %6585
      %6587 = vrot.lane.b32.xlu0 %v6465, 48
      %v6588 = vpop.permute.xlu0 %6587
      %6589 = vrot.lane.b32.xlu0 %v6466, 48
      %v6590 = vpop.permute.xlu0 %6589
      %6591 = vrot.lane.b32.xlu0 %v6467, 48
      %v6592 = vpop.permute.xlu0 %6591
      %6593 = vrot.lane.b32.xlu0 %v6468, 48
      %v6594 = vpop.permute.xlu0 %6593
      %6637 = vst.msk [vmem:[#allocation3] sm:$0xff] %vm4176, %v6512
      %6638 = vst.msk [vmem:[#allocation3 + $0x10] sm:$0xff] %vm4176, %v6514
      %6639 = vst.msk [vmem:[#allocation3 + $0x20] sm:$0xff] %vm4176, %v6516
      %6640 = vst.msk [vmem:[#allocation3 + $0x30] sm:$0xff] %vm4176, %v6518
      %6641 = vst.msk [vmem:[#allocation3 + $0x40] sm:$0xff] %vm4176, %v6520
      %6642 = vst.msk [vmem:[#allocation3 + $0x50] sm:$0xff] %vm4176, %v6522
      %6643 = vst.msk [vmem:[#allocation3 + $0x60] sm:$0xff] %vm4176, %v6524
      %6644 = vst.msk [vmem:[#allocation3 + $0x70] sm:$0xff] %vm4176, %v6526
      %6645 = vst.msk [vmem:[#allocation3 + $0x80] sm:$0xff] %vm4176, %v6528
      %6646 = vst.msk [vmem:[#allocation3 + $0x90] sm:$0xff] %vm4176, %v6530
      %6647 = vst.msk [vmem:[#allocation3 + $0xa0] sm:$0xff] %vm4176, %v6532
      %6648 = vst.msk [vmem:[#allocation3 + $0xb0] sm:$0xff] %vm4176, %v6534
      %6649 = vst.msk [vmem:[#allocation3 + $0xc0] sm:$0xff] %vm4176, %v6536
      %6650 = vst.msk [vmem:[#allocation3 + $0xd0] sm:$0xff] %vm4176, %v6538
      %6651 = vst.msk [vmem:[#allocation3 + $0xe0] sm:$0xff] %vm4176, %v6540
      %6652 = vst.msk [vmem:[#allocation3 + $0xf0] sm:$0xff] %vm4176, %v6542
      %6653 = vst.msk [vmem:[#allocation3 + $0x100] sm:$0xff] %vm4176, %v6544
      %6654 = vst.msk [vmem:[#allocation3 + $0x110] sm:$0xff] %vm4176, %v6546
      %6655 = vst.msk [vmem:[#allocation3 + $0x120] sm:$0xff] %vm4176, %v6548
      %6656 = vst.msk [vmem:[#allocation3 + $0x130] sm:$0xff] %vm4176, %v6550
      %6657 = vst.msk [vmem:[#allocation3 + $0x140] sm:$0xff] %vm4176, %v6552
      %6658 = vst.msk [vmem:[#allocation3 + $0x150] sm:$0xff] %vm4176, %v6554
      %6659 = vst.msk [vmem:[#allocation3 + $0x160] sm:$0xff] %vm4176, %v6556
      %6660 = vst.msk [vmem:[#allocation3 + $0x170] sm:$0xff] %vm4176, %v6558
      %6661 = vst.msk [vmem:[#allocation3 + $0x180] sm:$0xff] %vm4176, %v6560
      %6662 = vst.msk [vmem:[#allocation3 + $0x190] sm:$0xff] %vm4176, %v6562
      %6663 = vst.msk [vmem:[#allocation3 + $0x1a0] sm:$0xff] %vm4176, %v6564
      %6664 = vst.msk [vmem:[#allocation3 + $0x1b0] sm:$0xff] %vm4176, %v6566
      %6665 = vst.msk [vmem:[#allocation3 + $0x1c0] sm:$0xff] %vm4176, %v6568
      %6666 = vst.msk [vmem:[#allocation3 + $0x1d0] sm:$0xff] %vm4176, %v6570
      %6667 = vst.msk [vmem:[#allocation3 + $0x1e0] sm:$0xff] %vm4176, %v6572
      %6668 = vst.msk [vmem:[#allocation3 + $0x1f0] sm:$0xff] %vm4176, %v6574
      %6669 = vst.msk [vmem:[#allocation3 + $0x200] sm:$0xff] %vm4176, %v6576
      %6670 = vst.msk [vmem:[#allocation3 + $0x210] sm:$0xff] %vm4176, %v6578
      %6671 = vst.msk [vmem:[#allocation3 + $0x220] sm:$0xff] %vm4176, %v6580
      %6672 = vst.msk [vmem:[#allocation3 + $0x230] sm:$0xff] %vm4176, %v6582
      %6673 = vst.msk [vmem:[#allocation3 + $0x240] sm:$0xff] %vm4176, %v6584
      %6674 = vst.msk [vmem:[#allocation3 + $0x250] sm:$0xff] %vm4176, %v6586
      %6675 = vst.msk [vmem:[#allocation3 + $0x260] sm:$0xff] %vm4176, %v6588
      %6676 = vst.msk [vmem:[#allocation3 + $0x270] sm:$0xff] %vm4176, %v6590
      %6677 = vst.msk [vmem:[#allocation3 + $0x280] sm:$0xff] %vm4176, %v6592
      %6678 = vst.msk [vmem:[#allocation3 + $0x290] sm:$0xff] %vm4176, %v6594
      %v6679 = vld [vmem:[#allocation2 + $0x20] sm:$0xff]
      %v6680 = vld [vmem:[#allocation2 + $0x28] sm:$0xff]
      %v6681 = vld [vmem:[#allocation2 + $0x30] sm:$0xff]
      %v6682 = vld [vmem:[#allocation2 + $0x38] sm:$0xff]
      %v6683 = vld [vmem:[#allocation2 + $0x40] sm:$0xff]
      %v6684 = vld [vmem:[#allocation2 + $0x48] sm:$0xff]
      %v6685 = vld [vmem:[#allocation2 + $0x50] sm:$0xff]
      %v6686 = vld [vmem:[#allocation2 + $0x58] sm:$0xff]
      %v6687 = vld [vmem:[#allocation2 + $0x60] sm:$0xff]
      %v6688 = vld [vmem:[#allocation2 + $0x68] sm:$0xff]
      %v6689 = vld [vmem:[#allocation2 + $0x70] sm:$0xff]
      %v6690 = vld [vmem:[#allocation2 + $0x78] sm:$0xff]
      %v6691 = vld [vmem:[#allocation2 + $0x80] sm:$0xff]
      %v6692 = vld [vmem:[#allocation2 + $0x88] sm:$0xff]
      %v6693 = vld [vmem:[#allocation2 + $0x90] sm:$0xff]
      %v6694 = vld [vmem:[#allocation2 + $0x98] sm:$0xff]
      %v6695 = vld [vmem:[#allocation2 + $0xa0] sm:$0xff]
      %v6696 = vld [vmem:[#allocation2 + $0xa8] sm:$0xff]
      %v6697 = vld [vmem:[#allocation2 + $0xb0] sm:$0xff]
      %v6698 = vld [vmem:[#allocation2 + $0xb8] sm:$0xff]
      %v6699 = vld [vmem:[#allocation2 + $0xc0] sm:$0xff]
      %v6700 = vld [vmem:[#allocation2 + $0xc8] sm:$0xff]
      %v6701 = vld [vmem:[#allocation2 + $0xd0] sm:$0xff]
      %v6702 = vld [vmem:[#allocation2 + $0xd8] sm:$0xff]
      %v6703 = vld [vmem:[#allocation2 + $0xe0] sm:$0xff]
      %v6704 = vld [vmem:[#allocation2 + $0xe8] sm:$0xff]
      %v6705 = vld [vmem:[#allocation2 + $0xf0] sm:$0xff]
      %v6706 = vld [vmem:[#allocation2 + $0xf8] sm:$0xff]
      %v6707 = vld [vmem:[#allocation2 + $0x100] sm:$0xff]
      %v6708 = vld [vmem:[#allocation2 + $0x108] sm:$0xff]
      %v6709 = vld [vmem:[#allocation2 + $0x110] sm:$0xff]
      %v6710 = vld [vmem:[#allocation2 + $0x118] sm:$0xff]
      %v6711 = vld [vmem:[#allocation2 + $0x120] sm:$0xff]
      %v6712 = vld [vmem:[#allocation2 + $0x128] sm:$0xff]
      %v6713 = vld [vmem:[#allocation2 + $0x130] sm:$0xff]
      %v6714 = vld [vmem:[#allocation2 + $0x138] sm:$0xff]
      %v6715 = vld [vmem:[#allocation2 + $0x140] sm:$0xff]
      %v6716 = vld [vmem:[#allocation2 + $0x148] sm:$0xff]
      %v6717 = vld [vmem:[#allocation2 + $0x150] sm:$0xff]
      %v6718 = vld [vmem:[#allocation2 + $0x158] sm:$0xff]
      %v6719 = vld [vmem:[#allocation2 + $0x160] sm:$0xff]
      %v6720 = vld [vmem:[#allocation2 + $0x168] sm:$0xff]
      %6763 = vrot.lane.b32.xlu0 %v6679, 64
      %v6764 = vpop.permute.xlu0 %6763
      %6765 = vrot.lane.b32.xlu0 %v6680, 64
      %v6766 = vpop.permute.xlu0 %6765
      %6767 = vrot.lane.b32.xlu0 %v6681, 64
      %v6768 = vpop.permute.xlu0 %6767
      %6769 = vrot.lane.b32.xlu0 %v6682, 64
      %v6770 = vpop.permute.xlu0 %6769
      %6771 = vrot.lane.b32.xlu0 %v6683, 64
      %v6772 = vpop.permute.xlu0 %6771
      %6773 = vrot.lane.b32.xlu0 %v6684, 64
      %v6774 = vpop.permute.xlu0 %6773
      %6775 = vrot.lane.b32.xlu0 %v6685, 64
      %v6776 = vpop.permute.xlu0 %6775
      %6777 = vrot.lane.b32.xlu0 %v6686, 64
      %v6778 = vpop.permute.xlu0 %6777
      %6779 = vrot.lane.b32.xlu0 %v6687, 64
      %v6780 = vpop.permute.xlu0 %6779
      %6781 = vrot.lane.b32.xlu0 %v6688, 64
      %v6782 = vpop.permute.xlu0 %6781
      %6783 = vrot.lane.b32.xlu0 %v6689, 64
      %v6784 = vpop.permute.xlu0 %6783
      %6785 = vrot.lane.b32.xlu0 %v6690, 64
      %v6786 = vpop.permute.xlu0 %6785
      %6787 = vrot.lane.b32.xlu0 %v6691, 64
      %v6788 = vpop.permute.xlu0 %6787
      %6789 = vrot.lane.b32.xlu0 %v6692, 64
      %v6790 = vpop.permute.xlu0 %6789
      %6791 = vrot.lane.b32.xlu0 %v6693, 64
      %v6792 = vpop.permute.xlu0 %6791
      %6793 = vrot.lane.b32.xlu0 %v6694, 64
      %v6794 = vpop.permute.xlu0 %6793
      %6795 = vrot.lane.b32.xlu0 %v6695, 64
      %v6796 = vpop.permute.xlu0 %6795
      %6797 = vrot.lane.b32.xlu0 %v6696, 64
      %v6798 = vpop.permute.xlu0 %6797
      %6799 = vrot.lane.b32.xlu0 %v6697, 64
      %v6800 = vpop.permute.xlu0 %6799
      %6801 = vrot.lane.b32.xlu0 %v6698, 64
      %v6802 = vpop.permute.xlu0 %6801
      %6803 = vrot.lane.b32.xlu0 %v6699, 64
      %v6804 = vpop.permute.xlu0 %6803
      %6805 = vrot.lane.b32.xlu0 %v6700, 64
      %v6806 = vpop.permute.xlu0 %6805
      %6807 = vrot.lane.b32.xlu0 %v6701, 64
      %v6808 = vpop.permute.xlu0 %6807
      %6809 = vrot.lane.b32.xlu0 %v6702, 64
      %v6810 = vpop.permute.xlu0 %6809
      %6811 = vrot.lane.b32.xlu0 %v6703, 64
      %v6812 = vpop.permute.xlu0 %6811
      %6813 = vrot.lane.b32.xlu0 %v6704, 64
      %v6814 = vpop.permute.xlu0 %6813
      %6815 = vrot.lane.b32.xlu0 %v6705, 64
      %v6816 = vpop.permute.xlu0 %6815
      %6817 = vrot.lane.b32.xlu0 %v6706, 64
      %v6818 = vpop.permute.xlu0 %6817
      %6819 = vrot.lane.b32.xlu0 %v6707, 64
      %v6820 = vpop.permute.xlu0 %6819
      %6821 = vrot.lane.b32.xlu0 %v6708, 64
      %v6822 = vpop.permute.xlu0 %6821
      %6823 = vrot.lane.b32.xlu0 %v6709, 64
      %v6824 = vpop.permute.xlu0 %6823
      %6825 = vrot.lane.b32.xlu0 %v6710, 64
      %v6826 = vpop.permute.xlu0 %6825
      %6827 = vrot.lane.b32.xlu0 %v6711, 64
      %v6828 = vpop.permute.xlu0 %6827
      %6829 = vrot.lane.b32.xlu0 %v6712, 64
      %v6830 = vpop.permute.xlu0 %6829
      %6831 = vrot.lane.b32.xlu0 %v6713, 64
      %v6832 = vpop.permute.xlu0 %6831
      %6833 = vrot.lane.b32.xlu0 %v6714, 64
      %v6834 = vpop.permute.xlu0 %6833
      %6835 = vrot.lane.b32.xlu0 %v6715, 64
      %v6836 = vpop.permute.xlu0 %6835
      %6837 = vrot.lane.b32.xlu0 %v6716, 64
      %v6838 = vpop.permute.xlu0 %6837
      %6839 = vrot.lane.b32.xlu0 %v6717, 64
      %v6840 = vpop.permute.xlu0 %6839
      %6841 = vrot.lane.b32.xlu0 %v6718, 64
      %v6842 = vpop.permute.xlu0 %6841
      %6843 = vrot.lane.b32.xlu0 %v6719, 64
      %v6844 = vpop.permute.xlu0 %6843
      %6845 = vrot.lane.b32.xlu0 %v6720, 64
      %v6846 = vpop.permute.xlu0 %6845
      %6889 = vst.msk [vmem:[#allocation3] sm:$0xff] %vm4429, %v6764
      %6890 = vst.msk [vmem:[#allocation3 + $0x10] sm:$0xff] %vm4429, %v6766
      %6891 = vst.msk [vmem:[#allocation3 + $0x20] sm:$0xff] %vm4429, %v6768
      %6892 = vst.msk [vmem:[#allocation3 + $0x30] sm:$0xff] %vm4429, %v6770
      %6893 = vst.msk [vmem:[#allocation3 + $0x40] sm:$0xff] %vm4429, %v6772
      %6894 = vst.msk [vmem:[#allocation3 + $0x50] sm:$0xff] %vm4429, %v6774
      %6895 = vst.msk [vmem:[#allocation3 + $0x60] sm:$0xff] %vm4429, %v6776
      %6896 = vst.msk [vmem:[#allocation3 + $0x70] sm:$0xff] %vm4429, %v6778
      %6897 = vst.msk [vmem:[#allocation3 + $0x80] sm:$0xff] %vm4429, %v6780
      %6898 = vst.msk [vmem:[#allocation3 + $0x90] sm:$0xff] %vm4429, %v6782
      %6899 = vst.msk [vmem:[#allocation3 + $0xa0] sm:$0xff] %vm4429, %v6784
      %6900 = vst.msk [vmem:[#allocation3 + $0xb0] sm:$0xff] %vm4429, %v6786
      %6901 = vst.msk [vmem:[#allocation3 + $0xc0] sm:$0xff] %vm4429, %v6788
      %6902 = vst.msk [vmem:[#allocation3 + $0xd0] sm:$0xff] %vm4429, %v6790
      %6903 = vst.msk [vmem:[#allocation3 + $0xe0] sm:$0xff] %vm4429, %v6792
      %6904 = vst.msk [vmem:[#allocation3 + $0xf0] sm:$0xff] %vm4429, %v6794
      %6905 = vst.msk [vmem:[#allocation3 + $0x100] sm:$0xff] %vm4429, %v6796
      %6906 = vst.msk [vmem:[#allocation3 + $0x110] sm:$0xff] %vm4429, %v6798
      %6907 = vst.msk [vmem:[#allocation3 + $0x120] sm:$0xff] %vm4429, %v6800
      %6908 = vst.msk [vmem:[#allocation3 + $0x130] sm:$0xff] %vm4429, %v6802
      %6909 = vst.msk [vmem:[#allocation3 + $0x140] sm:$0xff] %vm4429, %v6804
      %6910 = vst.msk [vmem:[#allocation3 + $0x150] sm:$0xff] %vm4429, %v6806
      %6911 = vst.msk [vmem:[#allocation3 + $0x160] sm:$0xff] %vm4429, %v6808
      %6912 = vst.msk [vmem:[#allocation3 + $0x170] sm:$0xff] %vm4429, %v6810
      %6913 = vst.msk [vmem:[#allocation3 + $0x180] sm:$0xff] %vm4429, %v6812
      %6914 = vst.msk [vmem:[#allocation3 + $0x190] sm:$0xff] %vm4429, %v6814
      %6915 = vst.msk [vmem:[#allocation3 + $0x1a0] sm:$0xff] %vm4429, %v6816
      %6916 = vst.msk [vmem:[#allocation3 + $0x1b0] sm:$0xff] %vm4429, %v6818
      %6917 = vst.msk [vmem:[#allocation3 + $0x1c0] sm:$0xff] %vm4429, %v6820
      %6918 = vst.msk [vmem:[#allocation3 + $0x1d0] sm:$0xff] %vm4429, %v6822
      %6919 = vst.msk [vmem:[#allocation3 + $0x1e0] sm:$0xff] %vm4429, %v6824
      %6920 = vst.msk [vmem:[#allocation3 + $0x1f0] sm:$0xff] %vm4429, %v6826
      %6921 = vst.msk [vmem:[#allocation3 + $0x200] sm:$0xff] %vm4429, %v6828
      %6922 = vst.msk [vmem:[#allocation3 + $0x210] sm:$0xff] %vm4429, %v6830
      %6923 = vst.msk [vmem:[#allocation3 + $0x220] sm:$0xff] %vm4429, %v6832
      %6924 = vst.msk [vmem:[#allocation3 + $0x230] sm:$0xff] %vm4429, %v6834
      %6925 = vst.msk [vmem:[#allocation3 + $0x240] sm:$0xff] %vm4429, %v6836
      %6926 = vst.msk [vmem:[#allocation3 + $0x250] sm:$0xff] %vm4429, %v6838
      %6927 = vst.msk [vmem:[#allocation3 + $0x260] sm:$0xff] %vm4429, %v6840
      %6928 = vst.msk [vmem:[#allocation3 + $0x270] sm:$0xff] %vm4429, %v6842
      %6929 = vst.msk [vmem:[#allocation3 + $0x280] sm:$0xff] %vm4429, %v6844
      %6930 = vst.msk [vmem:[#allocation3 + $0x290] sm:$0xff] %vm4429, %v6846
      %v6931 = vld [vmem:[#allocation2 + $0x21] sm:$0xff]
      %v6932 = vld [vmem:[#allocation2 + $0x29] sm:$0xff]
      %v6933 = vld [vmem:[#allocation2 + $0x31] sm:$0xff]
      %v6934 = vld [vmem:[#allocation2 + $0x39] sm:$0xff]
      %v6935 = vld [vmem:[#allocation2 + $0x41] sm:$0xff]
      %v6936 = vld [vmem:[#allocation2 + $0x49] sm:$0xff]
      %v6937 = vld [vmem:[#allocation2 + $0x51] sm:$0xff]
      %v6938 = vld [vmem:[#allocation2 + $0x59] sm:$0xff]
      %v6939 = vld [vmem:[#allocation2 + $0x61] sm:$0xff]
      %v6940 = vld [vmem:[#allocation2 + $0x69] sm:$0xff]
      %v6941 = vld [vmem:[#allocation2 + $0x71] sm:$0xff]
      %v6942 = vld [vmem:[#allocation2 + $0x79] sm:$0xff]
      %v6943 = vld [vmem:[#allocation2 + $0x81] sm:$0xff]
      %v6944 = vld [vmem:[#allocation2 + $0x89] sm:$0xff]
      %v6945 = vld [vmem:[#allocation2 + $0x91] sm:$0xff]
      %v6946 = vld [vmem:[#allocation2 + $0x99] sm:$0xff]
      %v6947 = vld [vmem:[#allocation2 + $0xa1] sm:$0xff]
      %v6948 = vld [vmem:[#allocation2 + $0xa9] sm:$0xff]
      %v6949 = vld [vmem:[#allocation2 + $0xb1] sm:$0xff]
      %v6950 = vld [vmem:[#allocation2 + $0xb9] sm:$0xff]
      %v6951 = vld [vmem:[#allocation2 + $0xc1] sm:$0xff]
      %v6952 = vld [vmem:[#allocation2 + $0xc9] sm:$0xff]
      %v6953 = vld [vmem:[#allocation2 + $0xd1] sm:$0xff]
      %v6954 = vld [vmem:[#allocation2 + $0xd9] sm:$0xff]
      %v6955 = vld [vmem:[#allocation2 + $0xe1] sm:$0xff]
      %v6956 = vld [vmem:[#allocation2 + $0xe9] sm:$0xff]
      %v6957 = vld [vmem:[#allocation2 + $0xf1] sm:$0xff]
      %v6958 = vld [vmem:[#allocation2 + $0xf9] sm:$0xff]
      %v6959 = vld [vmem:[#allocation2 + $0x101] sm:$0xff]
      %v6960 = vld [vmem:[#allocation2 + $0x109] sm:$0xff]
      %v6961 = vld [vmem:[#allocation2 + $0x111] sm:$0xff]
      %v6962 = vld [vmem:[#allocation2 + $0x119] sm:$0xff]
      %v6963 = vld [vmem:[#allocation2 + $0x121] sm:$0xff]
      %v6964 = vld [vmem:[#allocation2 + $0x129] sm:$0xff]
      %v6965 = vld [vmem:[#allocation2 + $0x131] sm:$0xff]
      %v6966 = vld [vmem:[#allocation2 + $0x139] sm:$0xff]
      %v6967 = vld [vmem:[#allocation2 + $0x141] sm:$0xff]
      %v6968 = vld [vmem:[#allocation2 + $0x149] sm:$0xff]
      %v6969 = vld [vmem:[#allocation2 + $0x151] sm:$0xff]
      %v6970 = vld [vmem:[#allocation2 + $0x159] sm:$0xff]
      %v6971 = vld [vmem:[#allocation2 + $0x161] sm:$0xff]
      %v6972 = vld [vmem:[#allocation2 + $0x169] sm:$0xff]
      %7015 = vrot.lane.b32.xlu0 %v6931, 80
      %v7016 = vpop.permute.xlu0 %7015
      %7017 = vrot.lane.b32.xlu0 %v6932, 80
      %v7018 = vpop.permute.xlu0 %7017
      %7019 = vrot.lane.b32.xlu0 %v6933, 80
      %v7020 = vpop.permute.xlu0 %7019
      %7021 = vrot.lane.b32.xlu0 %v6934, 80
      %v7022 = vpop.permute.xlu0 %7021
      %7023 = vrot.lane.b32.xlu0 %v6935, 80
      %v7024 = vpop.permute.xlu0 %7023
      %7025 = vrot.lane.b32.xlu0 %v6936, 80
      %v7026 = vpop.permute.xlu0 %7025
      %7027 = vrot.lane.b32.xlu0 %v6937, 80
      %v7028 = vpop.permute.xlu0 %7027
      %7029 = vrot.lane.b32.xlu0 %v6938, 80
      %v7030 = vpop.permute.xlu0 %7029
      %7031 = vrot.lane.b32.xlu0 %v6939, 80
      %v7032 = vpop.permute.xlu0 %7031
      %7033 = vrot.lane.b32.xlu0 %v6940, 80
      %v7034 = vpop.permute.xlu0 %7033
      %7035 = vrot.lane.b32.xlu0 %v6941, 80
      %v7036 = vpop.permute.xlu0 %7035
      %7037 = vrot.lane.b32.xlu0 %v6942, 80
      %v7038 = vpop.permute.xlu0 %7037
      %7039 = vrot.lane.b32.xlu0 %v6943, 80
      %v7040 = vpop.permute.xlu0 %7039
      %7041 = vrot.lane.b32.xlu0 %v6944, 80
      %v7042 = vpop.permute.xlu0 %7041
      %7043 = vrot.lane.b32.xlu0 %v6945, 80
      %v7044 = vpop.permute.xlu0 %7043
      %7045 = vrot.lane.b32.xlu0 %v6946, 80
      %v7046 = vpop.permute.xlu0 %7045
      %7047 = vrot.lane.b32.xlu0 %v6947, 80
      %v7048 = vpop.permute.xlu0 %7047
      %7049 = vrot.lane.b32.xlu0 %v6948, 80
      %v7050 = vpop.permute.xlu0 %7049
      %7051 = vrot.lane.b32.xlu0 %v6949, 80
      %v7052 = vpop.permute.xlu0 %7051
      %7053 = vrot.lane.b32.xlu0 %v6950, 80
      %v7054 = vpop.permute.xlu0 %7053
      %7055 = vrot.lane.b32.xlu0 %v6951, 80
      %v7056 = vpop.permute.xlu0 %7055
      %7057 = vrot.lane.b32.xlu0 %v6952, 80
      %v7058 = vpop.permute.xlu0 %7057
      %7059 = vrot.lane.b32.xlu0 %v6953, 80
      %v7060 = vpop.permute.xlu0 %7059
      %7061 = vrot.lane.b32.xlu0 %v6954, 80
      %v7062 = vpop.permute.xlu0 %7061
      %7063 = vrot.lane.b32.xlu0 %v6955, 80
      %v7064 = vpop.permute.xlu0 %7063
      %7065 = vrot.lane.b32.xlu0 %v6956, 80
      %v7066 = vpop.permute.xlu0 %7065
      %7067 = vrot.lane.b32.xlu0 %v6957, 80
      %v7068 = vpop.permute.xlu0 %7067
      %7069 = vrot.lane.b32.xlu0 %v6958, 80
      %v7070 = vpop.permute.xlu0 %7069
      %7071 = vrot.lane.b32.xlu0 %v6959, 80
      %v7072 = vpop.permute.xlu0 %7071
      %7073 = vrot.lane.b32.xlu0 %v6960, 80
      %v7074 = vpop.permute.xlu0 %7073
      %7075 = vrot.lane.b32.xlu0 %v6961, 80
      %v7076 = vpop.permute.xlu0 %7075
      %7077 = vrot.lane.b32.xlu0 %v6962, 80
      %v7078 = vpop.permute.xlu0 %7077
      %7079 = vrot.lane.b32.xlu0 %v6963, 80
      %v7080 = vpop.permute.xlu0 %7079
      %7081 = vrot.lane.b32.xlu0 %v6964, 80
      %v7082 = vpop.permute.xlu0 %7081
      %7083 = vrot.lane.b32.xlu0 %v6965, 80
      %v7084 = vpop.permute.xlu0 %7083
      %7085 = vrot.lane.b32.xlu0 %v6966, 80
      %v7086 = vpop.permute.xlu0 %7085
      %7087 = vrot.lane.b32.xlu0 %v6967, 80
      %v7088 = vpop.permute.xlu0 %7087
      %7089 = vrot.lane.b32.xlu0 %v6968, 80
      %v7090 = vpop.permute.xlu0 %7089
      %7091 = vrot.lane.b32.xlu0 %v6969, 80
      %v7092 = vpop.permute.xlu0 %7091
      %7093 = vrot.lane.b32.xlu0 %v6970, 80
      %v7094 = vpop.permute.xlu0 %7093
      %7095 = vrot.lane.b32.xlu0 %v6971, 80
      %v7096 = vpop.permute.xlu0 %7095
      %7097 = vrot.lane.b32.xlu0 %v6972, 80
      %v7098 = vpop.permute.xlu0 %7097
      %7141 = vst.msk [vmem:[#allocation3] sm:$0xff] %vm4682, %v7016
      %7142 = vst.msk [vmem:[#allocation3 + $0x10] sm:$0xff] %vm4682, %v7018
      %7143 = vst.msk [vmem:[#allocation3 + $0x20] sm:$0xff] %vm4682, %v7020
      %7144 = vst.msk [vmem:[#allocation3 + $0x30] sm:$0xff] %vm4682, %v7022
      %7145 = vst.msk [vmem:[#allocation3 + $0x40] sm:$0xff] %vm4682, %v7024
      %7146 = vst.msk [vmem:[#allocation3 + $0x50] sm:$0xff] %vm4682, %v7026
      %7147 = vst.msk [vmem:[#allocation3 + $0x60] sm:$0xff] %vm4682, %v7028
      %7148 = vst.msk [vmem:[#allocation3 + $0x70] sm:$0xff] %vm4682, %v7030
      %7149 = vst.msk [vmem:[#allocation3 + $0x80] sm:$0xff] %vm4682, %v7032
      %7150 = vst.msk [vmem:[#allocation3 + $0x90] sm:$0xff] %vm4682, %v7034
      %7151 = vst.msk [vmem:[#allocation3 + $0xa0] sm:$0xff] %vm4682, %v7036
      %7152 = vst.msk [vmem:[#allocation3 + $0xb0] sm:$0xff] %vm4682, %v7038
      %7153 = vst.msk [vmem:[#allocation3 + $0xc0] sm:$0xff] %vm4682, %v7040
      %7154 = vst.msk [vmem:[#allocation3 + $0xd0] sm:$0xff] %vm4682, %v7042
      %7155 = vst.msk [vmem:[#allocation3 + $0xe0] sm:$0xff] %vm4682, %v7044
      %7156 = vst.msk [vmem:[#allocation3 + $0xf0] sm:$0xff] %vm4682, %v7046
      %7157 = vst.msk [vmem:[#allocation3 + $0x100] sm:$0xff] %vm4682, %v7048
      %7158 = vst.msk [vmem:[#allocation3 + $0x110] sm:$0xff] %vm4682, %v7050
      %7159 = vst.msk [vmem:[#allocation3 + $0x120] sm:$0xff] %vm4682, %v7052
      %7160 = vst.msk [vmem:[#allocation3 + $0x130] sm:$0xff] %vm4682, %v7054
      %7161 = vst.msk [vmem:[#allocation3 + $0x140] sm:$0xff] %vm4682, %v7056
      %7162 = vst.msk [vmem:[#allocation3 + $0x150] sm:$0xff] %vm4682, %v7058
      %7163 = vst.msk [vmem:[#allocation3 + $0x160] sm:$0xff] %vm4682, %v7060
      %7164 = vst.msk [vmem:[#allocation3 + $0x170] sm:$0xff] %vm4682, %v7062
      %7165 = vst.msk [vmem:[#allocation3 + $0x180] sm:$0xff] %vm4682, %v7064
      %7166 = vst.msk [vmem:[#allocation3 + $0x190] sm:$0xff] %vm4682, %v7066
      %7167 = vst.msk [vmem:[#allocation3 + $0x1a0] sm:$0xff] %vm4682, %v7068
      %7168 = vst.msk [vmem:[#allocation3 + $0x1b0] sm:$0xff] %vm4682, %v7070
      %7169 = vst.msk [vmem:[#allocation3 + $0x1c0] sm:$0xff] %vm4682, %v7072
      %7170 = vst.msk [vmem:[#allocation3 + $0x1d0] sm:$0xff] %vm4682, %v7074
      %7171 = vst.msk [vmem:[#allocation3 + $0x1e0] sm:$0xff] %vm4682, %v7076
      %7172 = vst.msk [vmem:[#allocation3 + $0x1f0] sm:$0xff] %vm4682, %v7078
      %7173 = vst.msk [vmem:[#allocation3 + $0x200] sm:$0xff] %vm4682, %v7080
      %7174 = vst.msk [vmem:[#allocation3 + $0x210] sm:$0xff] %vm4682, %v7082
      %7175 = vst.msk [vmem:[#allocation3 + $0x220] sm:$0xff] %vm4682, %v7084
      %7176 = vst.msk [vmem:[#allocation3 + $0x230] sm:$0xff] %vm4682, %v7086
      %7177 = vst.msk [vmem:[#allocation3 + $0x240] sm:$0xff] %vm4682, %v7088
      %7178 = vst.msk [vmem:[#allocation3 + $0x250] sm:$0xff] %vm4682, %v7090
      %7179 = vst.msk [vmem:[#allocation3 + $0x260] sm:$0xff] %vm4682, %v7092
      %7180 = vst.msk [vmem:[#allocation3 + $0x270] sm:$0xff] %vm4682, %v7094
      %7181 = vst.msk [vmem:[#allocation3 + $0x280] sm:$0xff] %vm4682, %v7096
      %7182 = vst.msk [vmem:[#allocation3 + $0x290] sm:$0xff] %vm4682, %v7098
      %v7183 = vld [vmem:[#allocation2 + $0x31] sm:$0xff]
      %v7184 = vld [vmem:[#allocation2 + $0x39] sm:$0xff]
      %v7185 = vld [vmem:[#allocation2 + $0x41] sm:$0xff]
      %v7186 = vld [vmem:[#allocation2 + $0x49] sm:$0xff]
      %v7187 = vld [vmem:[#allocation2 + $0x51] sm:$0xff]
      %v7188 = vld [vmem:[#allocation2 + $0x59] sm:$0xff]
      %v7189 = vld [vmem:[#allocation2 + $0x61] sm:$0xff]
      %v7190 = vld [vmem:[#allocation2 + $0x69] sm:$0xff]
      %v7191 = vld [vmem:[#allocation2 + $0x71] sm:$0xff]
      %v7192 = vld [vmem:[#allocation2 + $0x79] sm:$0xff]
      %v7193 = vld [vmem:[#allocation2 + $0x81] sm:$0xff]
      %v7194 = vld [vmem:[#allocation2 + $0x89] sm:$0xff]
      %v7195 = vld [vmem:[#allocation2 + $0x91] sm:$0xff]
      %v7196 = vld [vmem:[#allocation2 + $0x99] sm:$0xff]
      %v7197 = vld [vmem:[#allocation2 + $0xa1] sm:$0xff]
      %v7198 = vld [vmem:[#allocation2 + $0xa9] sm:$0xff]
      %v7199 = vld [vmem:[#allocation2 + $0xb1] sm:$0xff]
      %v7200 = vld [vmem:[#allocation2 + $0xb9] sm:$0xff]
      %v7201 = vld [vmem:[#allocation2 + $0xc1] sm:$0xff]
      %v7202 = vld [vmem:[#allocation2 + $0xc9] sm:$0xff]
      %v7203 = vld [vmem:[#allocation2 + $0xd1] sm:$0xff]
      %v7204 = vld [vmem:[#allocation2 + $0xd9] sm:$0xff]
      %v7205 = vld [vmem:[#allocation2 + $0xe1] sm:$0xff]
      %v7206 = vld [vmem:[#allocation2 + $0xe9] sm:$0xff]
      %v7207 = vld [vmem:[#allocation2 + $0xf1] sm:$0xff]
      %v7208 = vld [vmem:[#allocation2 + $0xf9] sm:$0xff]
      %v7209 = vld [vmem:[#allocation2 + $0x101] sm:$0xff]
      %v7210 = vld [vmem:[#allocation2 + $0x109] sm:$0xff]
      %v7211 = vld [vmem:[#allocation2 + $0x111] sm:$0xff]
      %v7212 = vld [vmem:[#allocation2 + $0x119] sm:$0xff]
      %v7213 = vld [vmem:[#allocation2 + $0x121] sm:$0xff]
      %v7214 = vld [vmem:[#allocation2 + $0x129] sm:$0xff]
      %v7215 = vld [vmem:[#allocation2 + $0x131] sm:$0xff]
      %v7216 = vld [vmem:[#allocation2 + $0x139] sm:$0xff]
      %v7217 = vld [vmem:[#allocation2 + $0x141] sm:$0xff]
      %v7218 = vld [vmem:[#allocation2 + $0x149] sm:$0xff]
      %v7219 = vld [vmem:[#allocation2 + $0x151] sm:$0xff]
      %v7220 = vld [vmem:[#allocation2 + $0x159] sm:$0xff]
      %v7221 = vld [vmem:[#allocation2 + $0x161] sm:$0xff]
      %v7222 = vld [vmem:[#allocation2 + $0x169] sm:$0xff]
      %v7223 = vld [vmem:[#allocation2 + $0x171] sm:$0xff]
      %v7224 = vld [vmem:[#allocation2 + $0x179] sm:$0xff]
      %7267 = vrot.lane.b32.xlu0 %v7183, 96
      %v7268 = vpop.permute.xlu0 %7267
      %7269 = vrot.lane.b32.xlu0 %v7184, 96
      %v7270 = vpop.permute.xlu0 %7269
      %7271 = vrot.lane.b32.xlu0 %v7185, 96
      %v7272 = vpop.permute.xlu0 %7271
      %7273 = vrot.lane.b32.xlu0 %v7186, 96
      %v7274 = vpop.permute.xlu0 %7273
      %7275 = vrot.lane.b32.xlu0 %v7187, 96
      %v7276 = vpop.permute.xlu0 %7275
      %7277 = vrot.lane.b32.xlu0 %v7188, 96
      %v7278 = vpop.permute.xlu0 %7277
      %7279 = vrot.lane.b32.xlu0 %v7189, 96
      %v7280 = vpop.permute.xlu0 %7279
      %7281 = vrot.lane.b32.xlu0 %v7190, 96
      %v7282 = vpop.permute.xlu0 %7281
      %7283 = vrot.lane.b32.xlu0 %v7191, 96
      %v7284 = vpop.permute.xlu0 %7283
      %7285 = vrot.lane.b32.xlu0 %v7192, 96
      %v7286 = vpop.permute.xlu0 %7285
      %7287 = vrot.lane.b32.xlu0 %v7193, 96
      %v7288 = vpop.permute.xlu0 %7287
      %7289 = vrot.lane.b32.xlu0 %v7194, 96
      %v7290 = vpop.permute.xlu0 %7289
      %7291 = vrot.lane.b32.xlu0 %v7195, 96
      %v7292 = vpop.permute.xlu0 %7291
      %7293 = vrot.lane.b32.xlu0 %v7196, 96
      %v7294 = vpop.permute.xlu0 %7293
      %7295 = vrot.lane.b32.xlu0 %v7197, 96
      %v7296 = vpop.permute.xlu0 %7295
      %7297 = vrot.lane.b32.xlu0 %v7198, 96
      %v7298 = vpop.permute.xlu0 %7297
      %7299 = vrot.lane.b32.xlu0 %v7199, 96
      %v7300 = vpop.permute.xlu0 %7299
      %7301 = vrot.lane.b32.xlu0 %v7200, 96
      %v7302 = vpop.permute.xlu0 %7301
      %7303 = vrot.lane.b32.xlu0 %v7201, 96
      %v7304 = vpop.permute.xlu0 %7303
      %7305 = vrot.lane.b32.xlu0 %v7202, 96
      %v7306 = vpop.permute.xlu0 %7305
      %7307 = vrot.lane.b32.xlu0 %v7203, 96
      %v7308 = vpop.permute.xlu0 %7307
      %7309 = vrot.lane.b32.xlu0 %v7204, 96
      %v7310 = vpop.permute.xlu0 %7309
      %7311 = vrot.lane.b32.xlu0 %v7205, 96
      %v7312 = vpop.permute.xlu0 %7311
      %7313 = vrot.lane.b32.xlu0 %v7206, 96
      %v7314 = vpop.permute.xlu0 %7313
      %7315 = vrot.lane.b32.xlu0 %v7207, 96
      %v7316 = vpop.permute.xlu0 %7315
      %7317 = vrot.lane.b32.xlu0 %v7208, 96
      %v7318 = vpop.permute.xlu0 %7317
      %7319 = vrot.lane.b32.xlu0 %v7209, 96
      %v7320 = vpop.permute.xlu0 %7319
      %7321 = vrot.lane.b32.xlu0 %v7210, 96
      %v7322 = vpop.permute.xlu0 %7321
      %7323 = vrot.lane.b32.xlu0 %v7211, 96
      %v7324 = vpop.permute.xlu0 %7323
      %7325 = vrot.lane.b32.xlu0 %v7212, 96
      %v7326 = vpop.permute.xlu0 %7325
      %7327 = vrot.lane.b32.xlu0 %v7213, 96
      %v7328 = vpop.permute.xlu0 %7327
      %7329 = vrot.lane.b32.xlu0 %v7214, 96
      %v7330 = vpop.permute.xlu0 %7329
      %7331 = vrot.lane.b32.xlu0 %v7215, 96
      %v7332 = vpop.permute.xlu0 %7331
      %7333 = vrot.lane.b32.xlu0 %v7216, 96
      %v7334 = vpop.permute.xlu0 %7333
      %7335 = vrot.lane.b32.xlu0 %v7217, 96
      %v7336 = vpop.permute.xlu0 %7335
      %7337 = vrot.lane.b32.xlu0 %v7218, 96
      %v7338 = vpop.permute.xlu0 %7337
      %7339 = vrot.lane.b32.xlu0 %v7219, 96
      %v7340 = vpop.permute.xlu0 %7339
      %7341 = vrot.lane.b32.xlu0 %v7220, 96
      %v7342 = vpop.permute.xlu0 %7341
      %7343 = vrot.lane.b32.xlu0 %v7221, 96
      %v7344 = vpop.permute.xlu0 %7343
      %7345 = vrot.lane.b32.xlu0 %v7222, 96
      %v7346 = vpop.permute.xlu0 %7345
      %7347 = vrot.lane.b32.xlu0 %v7223, 96
      %v7348 = vpop.permute.xlu0 %7347
      %7349 = vrot.lane.b32.xlu0 %v7224, 96
      %v7350 = vpop.permute.xlu0 %7349
      %7393 = vst.msk [vmem:[#allocation3] sm:$0xff] %vm4935, %v7268
      %7394 = vst.msk [vmem:[#allocation3 + $0x10] sm:$0xff] %vm4935, %v7270
      %7395 = vst.msk [vmem:[#allocation3 + $0x20] sm:$0xff] %vm4935, %v7272
      %7396 = vst.msk [vmem:[#allocation3 + $0x30] sm:$0xff] %vm4935, %v7274
      %7397 = vst.msk [vmem:[#allocation3 + $0x40] sm:$0xff] %vm4935, %v7276
      %7398 = vst.msk [vmem:[#allocation3 + $0x50] sm:$0xff] %vm4935, %v7278
      %7399 = vst.msk [vmem:[#allocation3 + $0x60] sm:$0xff] %vm4935, %v7280
      %7400 = vst.msk [vmem:[#allocation3 + $0x70] sm:$0xff] %vm4935, %v7282
      %7401 = vst.msk [vmem:[#allocation3 + $0x80] sm:$0xff] %vm4935, %v7284
      %7402 = vst.msk [vmem:[#allocation3 + $0x90] sm:$0xff] %vm4935, %v7286
      %7403 = vst.msk [vmem:[#allocation3 + $0xa0] sm:$0xff] %vm4935, %v7288
      %7404 = vst.msk [vmem:[#allocation3 + $0xb0] sm:$0xff] %vm4935, %v7290
      %7405 = vst.msk [vmem:[#allocation3 + $0xc0] sm:$0xff] %vm4935, %v7292
      %7406 = vst.msk [vmem:[#allocation3 + $0xd0] sm:$0xff] %vm4935, %v7294
      %7407 = vst.msk [vmem:[#allocation3 + $0xe0] sm:$0xff] %vm4935, %v7296
      %7408 = vst.msk [vmem:[#allocation3 + $0xf0] sm:$0xff] %vm4935, %v7298
      %7409 = vst.msk [vmem:[#allocation3 + $0x100] sm:$0xff] %vm4935, %v7300
      %7410 = vst.msk [vmem:[#allocation3 + $0x110] sm:$0xff] %vm4935, %v7302
      %7411 = vst.msk [vmem:[#allocation3 + $0x120] sm:$0xff] %vm4935, %v7304
      %7412 = vst.msk [vmem:[#allocation3 + $0x130] sm:$0xff] %vm4935, %v7306
      %7413 = vst.msk [vmem:[#allocation3 + $0x140] sm:$0xff] %vm4935, %v7308
      %7414 = vst.msk [vmem:[#allocation3 + $0x150] sm:$0xff] %vm4935, %v7310
      %7415 = vst.msk [vmem:[#allocation3 + $0x160] sm:$0xff] %vm4935, %v7312
      %7416 = vst.msk [vmem:[#allocation3 + $0x170] sm:$0xff] %vm4935, %v7314
      %7417 = vst.msk [vmem:[#allocation3 + $0x180] sm:$0xff] %vm4935, %v7316
      %7418 = vst.msk [vmem:[#allocation3 + $0x190] sm:$0xff] %vm4935, %v7318
      %7419 = vst.msk [vmem:[#allocation3 + $0x1a0] sm:$0xff] %vm4935, %v7320
      %7420 = vst.msk [vmem:[#allocation3 + $0x1b0] sm:$0xff] %vm4935, %v7322
      %7421 = vst.msk [vmem:[#allocation3 + $0x1c0] sm:$0xff] %vm4935, %v7324
      %7422 = vst.msk [vmem:[#allocation3 + $0x1d0] sm:$0xff] %vm4935, %v7326
      %7423 = vst.msk [vmem:[#allocation3 + $0x1e0] sm:$0xff] %vm4935, %v7328
      %7424 = vst.msk [vmem:[#allocation3 + $0x1f0] sm:$0xff] %vm4935, %v7330
      %7425 = vst.msk [vmem:[#allocation3 + $0x200] sm:$0xff] %vm4935, %v7332
      %7426 = vst.msk [vmem:[#allocation3 + $0x210] sm:$0xff] %vm4935, %v7334
      %7427 = vst.msk [vmem:[#allocation3 + $0x220] sm:$0xff] %vm4935, %v7336
      %7428 = vst.msk [vmem:[#allocation3 + $0x230] sm:$0xff] %vm4935, %v7338
      %7429 = vst.msk [vmem:[#allocation3 + $0x240] sm:$0xff] %vm4935, %v7340
      %7430 = vst.msk [vmem:[#allocation3 + $0x250] sm:$0xff] %vm4935, %v7342
      %7431 = vst.msk [vmem:[#allocation3 + $0x260] sm:$0xff] %vm4935, %v7344
      %7432 = vst.msk [vmem:[#allocation3 + $0x270] sm:$0xff] %vm4935, %v7346
      %7433 = vst.msk [vmem:[#allocation3 + $0x280] sm:$0xff] %vm4935, %v7348
      %7434 = vst.msk [vmem:[#allocation3 + $0x290] sm:$0xff] %vm4935, %v7350
      %v7435 = vld [vmem:[#allocation2 + $0x32] sm:$0xff]
      %v7436 = vld [vmem:[#allocation2 + $0x3a] sm:$0xff]
      %v7437 = vld [vmem:[#allocation2 + $0x42] sm:$0xff]
      %v7438 = vld [vmem:[#allocation2 + $0x4a] sm:$0xff]
      %v7439 = vld [vmem:[#allocation2 + $0x52] sm:$0xff]
      %v7440 = vld [vmem:[#allocation2 + $0x5a] sm:$0xff]
      %v7441 = vld [vmem:[#allocation2 + $0x62] sm:$0xff]
      %v7442 = vld [vmem:[#allocation2 + $0x6a] sm:$0xff]
      %v7443 = vld [vmem:[#allocation2 + $0x72] sm:$0xff]
      %v7444 = vld [vmem:[#allocation2 + $0x7a] sm:$0xff]
      %v7445 = vld [vmem:[#allocation2 + $0x82] sm:$0xff]
      %v7446 = vld [vmem:[#allocation2 + $0x8a] sm:$0xff]
      %v7447 = vld [vmem:[#allocation2 + $0x92] sm:$0xff]
      %v7448 = vld [vmem:[#allocation2 + $0x9a] sm:$0xff]
      %v7449 = vld [vmem:[#allocation2 + $0xa2] sm:$0xff]
      %v7450 = vld [vmem:[#allocation2 + $0xaa] sm:$0xff]
      %v7451 = vld [vmem:[#allocation2 + $0xb2] sm:$0xff]
      %v7452 = vld [vmem:[#allocation2 + $0xba] sm:$0xff]
      %v7453 = vld [vmem:[#allocation2 + $0xc2] sm:$0xff]
      %v7454 = vld [vmem:[#allocation2 + $0xca] sm:$0xff]
      %v7455 = vld [vmem:[#allocation2 + $0xd2] sm:$0xff]
      %v7456 = vld [vmem:[#allocation2 + $0xda] sm:$0xff]
      %v7457 = vld [vmem:[#allocation2 + $0xe2] sm:$0xff]
      %v7458 = vld [vmem:[#allocation2 + $0xea] sm:$0xff]
      %v7459 = vld [vmem:[#allocation2 + $0xf2] sm:$0xff]
      %v7460 = vld [vmem:[#allocation2 + $0xfa] sm:$0xff]
      %v7461 = vld [vmem:[#allocation2 + $0x102] sm:$0xff]
      %v7462 = vld [vmem:[#allocation2 + $0x10a] sm:$0xff]
      %v7463 = vld [vmem:[#allocation2 + $0x112] sm:$0xff]
      %v7464 = vld [vmem:[#allocation2 + $0x11a] sm:$0xff]
      %v7465 = vld [vmem:[#allocation2 + $0x122] sm:$0xff]
      %v7466 = vld [vmem:[#allocation2 + $0x12a] sm:$0xff]
      %v7467 = vld [vmem:[#allocation2 + $0x132] sm:$0xff]
      %v7468 = vld [vmem:[#allocation2 + $0x13a] sm:$0xff]
      %v7469 = vld [vmem:[#allocation2 + $0x142] sm:$0xff]
      %v7470 = vld [vmem:[#allocation2 + $0x14a] sm:$0xff]
      %v7471 = vld [vmem:[#allocation2 + $0x152] sm:$0xff]
      %v7472 = vld [vmem:[#allocation2 + $0x15a] sm:$0xff]
      %v7473 = vld [vmem:[#allocation2 + $0x162] sm:$0xff]
      %v7474 = vld [vmem:[#allocation2 + $0x16a] sm:$0xff]
      %v7475 = vld [vmem:[#allocation2 + $0x172] sm:$0xff]
      %v7476 = vld [vmem:[#allocation2 + $0x17a] sm:$0xff]
      %7519 = vrot.lane.b32.xlu0 %v7435, 112
      %v7520 = vpop.permute.xlu0 %7519
      %7521 = vrot.lane.b32.xlu0 %v7436, 112
      %v7522 = vpop.permute.xlu0 %7521
      %7523 = vrot.lane.b32.xlu0 %v7437, 112
      %v7524 = vpop.permute.xlu0 %7523
      %7525 = vrot.lane.b32.xlu0 %v7438, 112
      %v7526 = vpop.permute.xlu0 %7525
      %7527 = vrot.lane.b32.xlu0 %v7439, 112
      %v7528 = vpop.permute.xlu0 %7527
      %7529 = vrot.lane.b32.xlu0 %v7440, 112
      %v7530 = vpop.permute.xlu0 %7529
      %7531 = vrot.lane.b32.xlu0 %v7441, 112
      %v7532 = vpop.permute.xlu0 %7531
      %7533 = vrot.lane.b32.xlu0 %v7442, 112
      %v7534 = vpop.permute.xlu0 %7533
      %7535 = vrot.lane.b32.xlu0 %v7443, 112
      %v7536 = vpop.permute.xlu0 %7535
      %7537 = vrot.lane.b32.xlu0 %v7444, 112
      %v7538 = vpop.permute.xlu0 %7537
      %7539 = vrot.lane.b32.xlu0 %v7445, 112
      %v7540 = vpop.permute.xlu0 %7539
      %7541 = vrot.lane.b32.xlu0 %v7446, 112
      %v7542 = vpop.permute.xlu0 %7541
      %7543 = vrot.lane.b32.xlu0 %v7447, 112
      %v7544 = vpop.permute.xlu0 %7543
      %7545 = vrot.lane.b32.xlu0 %v7448, 112
      %v7546 = vpop.permute.xlu0 %7545
      %7547 = vrot.lane.b32.xlu0 %v7449, 112
      %v7548 = vpop.permute.xlu0 %7547
      %7549 = vrot.lane.b32.xlu0 %v7450, 112
      %v7550 = vpop.permute.xlu0 %7549
      %7551 = vrot.lane.b32.xlu0 %v7451, 112
      %v7552 = vpop.permute.xlu0 %7551
      %7553 = vrot.lane.b32.xlu0 %v7452, 112
      %v7554 = vpop.permute.xlu0 %7553
      %7555 = vrot.lane.b32.xlu0 %v7453, 112
      %v7556 = vpop.permute.xlu0 %7555
      %7557 = vrot.lane.b32.xlu0 %v7454, 112
      %v7558 = vpop.permute.xlu0 %7557
      %7559 = vrot.lane.b32.xlu0 %v7455, 112
      %v7560 = vpop.permute.xlu0 %7559
      %7561 = vrot.lane.b32.xlu0 %v7456, 112
      %v7562 = vpop.permute.xlu0 %7561
      %7563 = vrot.lane.b32.xlu0 %v7457, 112
      %v7564 = vpop.permute.xlu0 %7563
      %7565 = vrot.lane.b32.xlu0 %v7458, 112
      %v7566 = vpop.permute.xlu0 %7565
      %7567 = vrot.lane.b32.xlu0 %v7459, 112
      %v7568 = vpop.permute.xlu0 %7567
      %7569 = vrot.lane.b32.xlu0 %v7460, 112
      %v7570 = vpop.permute.xlu0 %7569
      %7571 = vrot.lane.b32.xlu0 %v7461, 112
      %v7572 = vpop.permute.xlu0 %7571
      %7573 = vrot.lane.b32.xlu0 %v7462, 112
      %v7574 = vpop.permute.xlu0 %7573
      %7575 = vrot.lane.b32.xlu0 %v7463, 112
      %v7576 = vpop.permute.xlu0 %7575
      %7577 = vrot.lane.b32.xlu0 %v7464, 112
      %v7578 = vpop.permute.xlu0 %7577
      %7579 = vrot.lane.b32.xlu0 %v7465, 112
      %v7580 = vpop.permute.xlu0 %7579
      %7581 = vrot.lane.b32.xlu0 %v7466, 112
      %v7582 = vpop.permute.xlu0 %7581
      %7583 = vrot.lane.b32.xlu0 %v7467, 112
      %v7584 = vpop.permute.xlu0 %7583
      %7585 = vrot.lane.b32.xlu0 %v7468, 112
      %v7586 = vpop.permute.xlu0 %7585
      %7587 = vrot.lane.b32.xlu0 %v7469, 112
      %v7588 = vpop.permute.xlu0 %7587
      %7589 = vrot.lane.b32.xlu0 %v7470, 112
      %v7590 = vpop.permute.xlu0 %7589
      %7591 = vrot.lane.b32.xlu0 %v7471, 112
      %v7592 = vpop.permute.xlu0 %7591
      %7593 = vrot.lane.b32.xlu0 %v7472, 112
      %v7594 = vpop.permute.xlu0 %7593
      %7595 = vrot.lane.b32.xlu0 %v7473, 112
      %v7596 = vpop.permute.xlu0 %7595
      %7597 = vrot.lane.b32.xlu0 %v7474, 112
      %v7598 = vpop.permute.xlu0 %7597
      %7599 = vrot.lane.b32.xlu0 %v7475, 112
      %v7600 = vpop.permute.xlu0 %7599
      %7601 = vrot.lane.b32.xlu0 %v7476, 112
      %v7602 = vpop.permute.xlu0 %7601
      %7645 = vst.msk [vmem:[#allocation3] sm:$0xff] %vm5188, %v7520
      %7646 = vst.msk [vmem:[#allocation3 + $0x10] sm:$0xff] %vm5188, %v7522
      %7647 = vst.msk [vmem:[#allocation3 + $0x20] sm:$0xff] %vm5188, %v7524
      %7648 = vst.msk [vmem:[#allocation3 + $0x30] sm:$0xff] %vm5188, %v7526
      %7649 = vst.msk [vmem:[#allocation3 + $0x40] sm:$0xff] %vm5188, %v7528
      %7650 = vst.msk [vmem:[#allocation3 + $0x50] sm:$0xff] %vm5188, %v7530
      %7651 = vst.msk [vmem:[#allocation3 + $0x60] sm:$0xff] %vm5188, %v7532
      %7652 = vst.msk [vmem:[#allocation3 + $0x70] sm:$0xff] %vm5188, %v7534
      %7653 = vst.msk [vmem:[#allocation3 + $0x80] sm:$0xff] %vm5188, %v7536
      %7654 = vst.msk [vmem:[#allocation3 + $0x90] sm:$0xff] %vm5188, %v7538
      %7655 = vst.msk [vmem:[#allocation3 + $0xa0] sm:$0xff] %vm5188, %v7540
      %7656 = vst.msk [vmem:[#allocation3 + $0xb0] sm:$0xff] %vm5188, %v7542
      %7657 = vst.msk [vmem:[#allocation3 + $0xc0] sm:$0xff] %vm5188, %v7544
      %7658 = vst.msk [vmem:[#allocation3 + $0xd0] sm:$0xff] %vm5188, %v7546
      %7659 = vst.msk [vmem:[#allocation3 + $0xe0] sm:$0xff] %vm5188, %v7548
      %7660 = vst.msk [vmem:[#allocation3 + $0xf0] sm:$0xff] %vm5188, %v7550
      %7661 = vst.msk [vmem:[#allocation3 + $0x100] sm:$0xff] %vm5188, %v7552
      %7662 = vst.msk [vmem:[#allocation3 + $0x110] sm:$0xff] %vm5188, %v7554
      %7663 = vst.msk [vmem:[#allocation3 + $0x120] sm:$0xff] %vm5188, %v7556
      %7664 = vst.msk [vmem:[#allocation3 + $0x130] sm:$0xff] %vm5188, %v7558
      %7665 = vst.msk [vmem:[#allocation3 + $0x140] sm:$0xff] %vm5188, %v7560
      %7666 = vst.msk [vmem:[#allocation3 + $0x150] sm:$0xff] %vm5188, %v7562
      %7667 = vst.msk [vmem:[#allocation3 + $0x160] sm:$0xff] %vm5188, %v7564
      %7668 = vst.msk [vmem:[#allocation3 + $0x170] sm:$0xff] %vm5188, %v7566
      %7669 = vst.msk [vmem:[#allocation3 + $0x180] sm:$0xff] %vm5188, %v7568
      %7670 = vst.msk [vmem:[#allocation3 + $0x190] sm:$0xff] %vm5188, %v7570
      %7671 = vst.msk [vmem:[#allocation3 + $0x1a0] sm:$0xff] %vm5188, %v7572
      %7672 = vst.msk [vmem:[#allocation3 + $0x1b0] sm:$0xff] %vm5188, %v7574
      %7673 = vst.msk [vmem:[#allocation3 + $0x1c0] sm:$0xff] %vm5188, %v7576
      %7674 = vst.msk [vmem:[#allocation3 + $0x1d0] sm:$0xff] %vm5188, %v7578
      %7675 = vst.msk [vmem:[#allocation3 + $0x1e0] sm:$0xff] %vm5188, %v7580
      %7676 = vst.msk [vmem:[#allocation3 + $0x1f0] sm:$0xff] %vm5188, %v7582
      %7677 = vst.msk [vmem:[#allocation3 + $0x200] sm:$0xff] %vm5188, %v7584
      %7678 = vst.msk [vmem:[#allocation3 + $0x210] sm:$0xff] %vm5188, %v7586
      %7679 = vst.msk [vmem:[#allocation3 + $0x220] sm:$0xff] %vm5188, %v7588
      %7680 = vst.msk [vmem:[#allocation3 + $0x230] sm:$0xff] %vm5188, %v7590
      %7681 = vst.msk [vmem:[#allocation3 + $0x240] sm:$0xff] %vm5188, %v7592
      %7682 = vst.msk [vmem:[#allocation3 + $0x250] sm:$0xff] %vm5188, %v7594
      %7683 = vst.msk [vmem:[#allocation3 + $0x260] sm:$0xff] %vm5188, %v7596
      %7684 = vst.msk [vmem:[#allocation3 + $0x270] sm:$0xff] %vm5188, %v7598
      %7685 = vst.msk [vmem:[#allocation3 + $0x280] sm:$0xff] %vm5188, %v7600
      %7686 = vst.msk [vmem:[#allocation3 + $0x290] sm:$0xff] %vm5188, %v7602
      %v7687 = vld [vmem:[#allocation2 + $0x33] sm:$0xff]
      %v7688 = vld [vmem:[#allocation2 + $0x3b] sm:$0xff]
      %v7689 = vld [vmem:[#allocation2 + $0x43] sm:$0xff]
      %v7690 = vld [vmem:[#allocation2 + $0x4b] sm:$0xff]
      %v7691 = vld [vmem:[#allocation2 + $0x53] sm:$0xff]
      %v7692 = vld [vmem:[#allocation2 + $0x5b] sm:$0xff]
      %v7693 = vld [vmem:[#allocation2 + $0x63] sm:$0xff]
      %v7694 = vld [vmem:[#allocation2 + $0x6b] sm:$0xff]
      %v7695 = vld [vmem:[#allocation2 + $0x73] sm:$0xff]
      %v7696 = vld [vmem:[#allocation2 + $0x7b] sm:$0xff]
      %v7697 = vld [vmem:[#allocation2 + $0x83] sm:$0xff]
      %v7698 = vld [vmem:[#allocation2 + $0x8b] sm:$0xff]
      %v7699 = vld [vmem:[#allocation2 + $0x93] sm:$0xff]
      %v7700 = vld [vmem:[#allocation2 + $0x9b] sm:$0xff]
      %v7701 = vld [vmem:[#allocation2 + $0xa3] sm:$0xff]
      %v7702 = vld [vmem:[#allocation2 + $0xab] sm:$0xff]
      %v7703 = vld [vmem:[#allocation2 + $0xb3] sm:$0xff]
      %v7704 = vld [vmem:[#allocation2 + $0xbb] sm:$0xff]
      %v7705 = vld [vmem:[#allocation2 + $0xc3] sm:$0xff]
      %v7706 = vld [vmem:[#allocation2 + $0xcb] sm:$0xff]
      %v7707 = vld [vmem:[#allocation2 + $0xd3] sm:$0xff]
      %v7708 = vld [vmem:[#allocation2 + $0xdb] sm:$0xff]
      %v7709 = vld [vmem:[#allocation2 + $0xe3] sm:$0xff]
      %v7710 = vld [vmem:[#allocation2 + $0xeb] sm:$0xff]
      %v7711 = vld [vmem:[#allocation2 + $0xf3] sm:$0xff]
      %v7712 = vld [vmem:[#allocation2 + $0xfb] sm:$0xff]
      %v7713 = vld [vmem:[#allocation2 + $0x103] sm:$0xff]
      %v7714 = vld [vmem:[#allocation2 + $0x10b] sm:$0xff]
      %v7715 = vld [vmem:[#allocation2 + $0x113] sm:$0xff]
      %v7716 = vld [vmem:[#allocation2 + $0x11b] sm:$0xff]
      %v7717 = vld [vmem:[#allocation2 + $0x123] sm:$0xff]
      %v7718 = vld [vmem:[#allocation2 + $0x12b] sm:$0xff]
      %v7719 = vld [vmem:[#allocation2 + $0x133] sm:$0xff]
      %v7720 = vld [vmem:[#allocation2 + $0x13b] sm:$0xff]
      %v7721 = vld [vmem:[#allocation2 + $0x143] sm:$0xff]
      %v7722 = vld [vmem:[#allocation2 + $0x14b] sm:$0xff]
      %v7723 = vld [vmem:[#allocation2 + $0x153] sm:$0xff]
      %v7724 = vld [vmem:[#allocation2 + $0x15b] sm:$0xff]
      %v7725 = vld [vmem:[#allocation2 + $0x163] sm:$0xff]
      %v7726 = vld [vmem:[#allocation2 + $0x16b] sm:$0xff]
      %v7727 = vld [vmem:[#allocation2 + $0x173] sm:$0xff]
      %v7728 = vld [vmem:[#allocation2 + $0x17b] sm:$0xff]
      %7729 = vst.msk [vmem:[#allocation3 + $0x8] sm:$0xff] %vm3417, %v7687
      %7730 = vst.msk [vmem:[#allocation3 + $0x18] sm:$0xff] %vm3417, %v7688
      %7731 = vst.msk [vmem:[#allocation3 + $0x28] sm:$0xff] %vm3417, %v7689
      %7732 = vst.msk [vmem:[#allocation3 + $0x38] sm:$0xff] %vm3417, %v7690
      %7733 = vst.msk [vmem:[#allocation3 + $0x48] sm:$0xff] %vm3417, %v7691
      %7734 = vst.msk [vmem:[#allocation3 + $0x58] sm:$0xff] %vm3417, %v7692
      %7735 = vst.msk [vmem:[#allocation3 + $0x68] sm:$0xff] %vm3417, %v7693
      %7736 = vst.msk [vmem:[#allocation3 + $0x78] sm:$0xff] %vm3417, %v7694
      %7737 = vst.msk [vmem:[#allocation3 + $0x88] sm:$0xff] %vm3417, %v7695
      %7738 = vst.msk [vmem:[#allocation3 + $0x98] sm:$0xff] %vm3417, %v7696
      %7739 = vst.msk [vmem:[#allocation3 + $0xa8] sm:$0xff] %vm3417, %v7697
      %7740 = vst.msk [vmem:[#allocation3 + $0xb8] sm:$0xff] %vm3417, %v7698
      %7741 = vst.msk [vmem:[#allocation3 + $0xc8] sm:$0xff] %vm3417, %v7699
      %7742 = vst.msk [vmem:[#allocation3 + $0xd8] sm:$0xff] %vm3417, %v7700
      %7743 = vst.msk [vmem:[#allocation3 + $0xe8] sm:$0xff] %vm3417, %v7701
      %7744 = vst.msk [vmem:[#allocation3 + $0xf8] sm:$0xff] %vm3417, %v7702
      %7745 = vst.msk [vmem:[#allocation3 + $0x108] sm:$0xff] %vm3417, %v7703
      %7746 = vst.msk [vmem:[#allocation3 + $0x118] sm:$0xff] %vm3417, %v7704
      %7747 = vst.msk [vmem:[#allocation3 + $0x128] sm:$0xff] %vm3417, %v7705
      %7748 = vst.msk [vmem:[#allocation3 + $0x138] sm:$0xff] %vm3417, %v7706
      %7749 = vst.msk [vmem:[#allocation3 + $0x148] sm:$0xff] %vm3417, %v7707
      %7750 = vst.msk [vmem:[#allocation3 + $0x158] sm:$0xff] %vm3417, %v7708
      %7751 = vst.msk [vmem:[#allocation3 + $0x168] sm:$0xff] %vm3417, %v7709
      %7752 = vst.msk [vmem:[#allocation3 + $0x178] sm:$0xff] %vm3417, %v7710
      %7753 = vst.msk [vmem:[#allocation3 + $0x188] sm:$0xff] %vm3417, %v7711
      %7754 = vst.msk [vmem:[#allocation3 + $0x198] sm:$0xff] %vm3417, %v7712
      %7755 = vst.msk [vmem:[#allocation3 + $0x1a8] sm:$0xff] %vm3417, %v7713
      %7756 = vst.msk [vmem:[#allocation3 + $0x1b8] sm:$0xff] %vm3417, %v7714
      %7757 = vst.msk [vmem:[#allocation3 + $0x1c8] sm:$0xff] %vm3417, %v7715
      %7758 = vst.msk [vmem:[#allocation3 + $0x1d8] sm:$0xff] %vm3417, %v7716
      %7759 = vst.msk [vmem:[#allocation3 + $0x1e8] sm:$0xff] %vm3417, %v7717
      %7760 = vst.msk [vmem:[#allocation3 + $0x1f8] sm:$0xff] %vm3417, %v7718
      %7761 = vst.msk [vmem:[#allocation3 + $0x208] sm:$0xff] %vm3417, %v7719
      %7762 = vst.msk [vmem:[#allocation3 + $0x218] sm:$0xff] %vm3417, %v7720
      %7763 = vst.msk [vmem:[#allocation3 + $0x228] sm:$0xff] %vm3417, %v7721
      %7764 = vst.msk [vmem:[#allocation3 + $0x238] sm:$0xff] %vm3417, %v7722
      %7765 = vst.msk [vmem:[#allocation3 + $0x248] sm:$0xff] %vm3417, %v7723
      %7766 = vst.msk [vmem:[#allocation3 + $0x258] sm:$0xff] %vm3417, %v7724
      %7767 = vst.msk [vmem:[#allocation3 + $0x268] sm:$0xff] %vm3417, %v7725
      %7768 = vst.msk [vmem:[#allocation3 + $0x278] sm:$0xff] %vm3417, %v7726
      %7769 = vst.msk [vmem:[#allocation3 + $0x288] sm:$0xff] %vm3417, %v7727
      %7770 = vst.msk [vmem:[#allocation3 + $0x298] sm:$0xff] %vm3417, %v7728
      %v7771 = vld [vmem:[#allocation3] sm:$0xff]
      %v7772 = vld [vmem:[#allocation3 + $0x8] sm:$0xff]
      %v7773 = vld [vmem:[#allocation3 + $0x10] sm:$0xff]
      %v7774 = vld [vmem:[#allocation3 + $0x18] sm:$0xff]
      %v7775 = vld [vmem:[#allocation3 + $0x20] sm:$0xff]
      %v7776 = vld [vmem:[#allocation3 + $0x28] sm:$0xff]
      %v7777 = vld [vmem:[#allocation3 + $0x30] sm:$0xff]
      %v7778 = vld [vmem:[#allocation3 + $0x38] sm:$0xff]
      %v7779 = vld [vmem:[#allocation3 + $0x40] sm:$0xff]
      %v7780 = vld [vmem:[#allocation3 + $0x48] sm:$0xff]
      %v7781 = vld [vmem:[#allocation3 + $0x50] sm:$0xff]
      %v7782 = vld [vmem:[#allocation3 + $0x58] sm:$0xff]
      %v7783 = vld [vmem:[#allocation3 + $0x60] sm:$0xff]
      %v7784 = vld [vmem:[#allocation3 + $0x68] sm:$0xff]
      %v7785 = vld [vmem:[#allocation3 + $0x70] sm:$0xff]
      %v7786 = vld [vmem:[#allocation3 + $0x78] sm:$0xff]
      %v7787 = vld [vmem:[#allocation3 + $0x80] sm:$0xff]
      %v7788 = vld [vmem:[#allocation3 + $0x88] sm:$0xff]
      %v7789 = vld [vmem:[#allocation3 + $0x90] sm:$0xff]
      %v7790 = vld [vmem:[#allocation3 + $0x98] sm:$0xff]
      %v7791 = vld [vmem:[#allocation3 + $0xa0] sm:$0xff]
      %v7792 = vld [vmem:[#allocation3 + $0xa8] sm:$0xff]
      %v7793 = vld [vmem:[#allocation3 + $0xb0] sm:$0xff]
      %v7794 = vld [vmem:[#allocation3 + $0xb8] sm:$0xff]
      %v7795 = vld [vmem:[#allocation3 + $0xc0] sm:$0xff]
      %v7796 = vld [vmem:[#allocation3 + $0xc8] sm:$0xff]
      %v7797 = vld [vmem:[#allocation3 + $0xd0] sm:$0xff]
      %v7798 = vld [vmem:[#allocation3 + $0xd8] sm:$0xff]
      %v7799 = vld [vmem:[#allocation3 + $0xe0] sm:$0xff]
      %v7800 = vld [vmem:[#allocation3 + $0xe8] sm:$0xff]
      %v7801 = vld [vmem:[#allocation3 + $0xf0] sm:$0xff]
      %v7802 = vld [vmem:[#allocation3 + $0xf8] sm:$0xff]
      %v7803 = vld [vmem:[#allocation3 + $0x100] sm:$0xff]
      %v7804 = vld [vmem:[#allocation3 + $0x108] sm:$0xff]
      %v7805 = vld [vmem:[#allocation3 + $0x110] sm:$0xff]
      %v7806 = vld [vmem:[#allocation3 + $0x118] sm:$0xff]
      %v7807 = vld [vmem:[#allocation3 + $0x120] sm:$0xff]
      %v7808 = vld [vmem:[#allocation3 + $0x128] sm:$0xff]
      %v7809 = vld [vmem:[#allocation3 + $0x130] sm:$0xff]
      %v7810 = vld [vmem:[#allocation3 + $0x138] sm:$0xff]
      %v7811 = vld [vmem:[#allocation3 + $0x140] sm:$0xff]
      %v7812 = vld [vmem:[#allocation3 + $0x148] sm:$0xff]
      %v7813 = vld [vmem:[#allocation3 + $0x150] sm:$0xff]
      %v7814 = vld [vmem:[#allocation3 + $0x158] sm:$0xff]
      %v7815 = vld [vmem:[#allocation3 + $0x160] sm:$0xff]
      %v7816 = vld [vmem:[#allocation3 + $0x168] sm:$0xff]
      %v7817 = vld [vmem:[#allocation3 + $0x170] sm:$0xff]
      %v7818 = vld [vmem:[#allocation3 + $0x178] sm:$0xff]
      %v7819 = vld [vmem:[#allocation3 + $0x180] sm:$0xff]
      %v7820 = vld [vmem:[#allocation3 + $0x188] sm:$0xff]
      %v7821 = vld [vmem:[#allocation3 + $0x190] sm:$0xff]
      %v7822 = vld [vmem:[#allocation3 + $0x198] sm:$0xff]
      %v7823 = vld [vmem:[#allocation3 + $0x1a0] sm:$0xff]
      %v7824 = vld [vmem:[#allocation3 + $0x1a8] sm:$0xff]
      %v7825 = vld [vmem:[#allocation3 + $0x1b0] sm:$0xff]
      %v7826 = vld [vmem:[#allocation3 + $0x1b8] sm:$0xff]
      %v7827 = vld [vmem:[#allocation3 + $0x1c0] sm:$0xff]
      %v7828 = vld [vmem:[#allocation3 + $0x1c8] sm:$0xff]
      %v7829 = vld [vmem:[#allocation3 + $0x1d0] sm:$0xff]
      %v7830 = vld [vmem:[#allocation3 + $0x1d8] sm:$0xff]
      %v7831 = vld [vmem:[#allocation3 + $0x1e0] sm:$0xff]
      %v7832 = vld [vmem:[#allocation3 + $0x1e8] sm:$0xff]
      %v7833 = vld [vmem:[#allocation3 + $0x1f0] sm:$0xff]
      %v7834 = vld [vmem:[#allocation3 + $0x1f8] sm:$0xff]
      %v7835 = vld [vmem:[#allocation3 + $0x200] sm:$0xff]
      %v7836 = vld [vmem:[#allocation3 + $0x208] sm:$0xff]
      %v7837 = vld [vmem:[#allocation3 + $0x210] sm:$0xff]
      %v7838 = vld [vmem:[#allocation3 + $0x218] sm:$0xff]
      %v7839 = vld [vmem:[#allocation3 + $0x220] sm:$0xff]
      %v7840 = vld [vmem:[#allocation3 + $0x228] sm:$0xff]
      %v7841 = vld [vmem:[#allocation3 + $0x230] sm:$0xff]
      %v7842 = vld [vmem:[#allocation3 + $0x238] sm:$0xff]
      %v7843 = vld [vmem:[#allocation3 + $0x240] sm:$0xff]
      %v7844 = vld [vmem:[#allocation3 + $0x248] sm:$0xff]
      %v7845 = vld [vmem:[#allocation3 + $0x250] sm:$0xff]
      %v7846 = vld [vmem:[#allocation3 + $0x258] sm:$0xff]
      %v7847 = vld [vmem:[#allocation3 + $0x260] sm:$0xff]
      %v7848 = vld [vmem:[#allocation3 + $0x268] sm:$0xff]
      %v7849 = vld [vmem:[#allocation3 + $0x270] sm:$0xff]
      %v7850 = vld [vmem:[#allocation3 + $0x278] sm:$0xff]
      %v7851 = vld [vmem:[#allocation3 + $0x280] sm:$0xff]
      %v7852 = vld [vmem:[#allocation3 + $0x288] sm:$0xff]
      %v7853 = vld [vmem:[#allocation3 + $0x290] sm:$0xff]
      %v7854 = vld [vmem:[#allocation3 + $0x298] sm:$0xff]
      %v7855 = vld [vmem:[%s6] sm:$0xff]
      %v7856 = vld [vmem:[%s6 + $0x8] sm:$0xff]
      %v7857 = vld [vmem:[%s6 + $0x10] sm:$0xff]
      %v7858 = vld [vmem:[%s6 + $0x18] sm:$0xff]
      %v7859 = vld [vmem:[%s6 + $0x20] sm:$0xff]
      %v7860 = vld [vmem:[%s6 + $0x28] sm:$0xff]
      %v7861 = vld [vmem:[%s6 + $0x30] sm:$0xff]
      %v7862 = vld [vmem:[%s6 + $0x38] sm:$0xff]
      %v7863 = vld [vmem:[%s6 + $0x40] sm:$0xff]
      %v7864 = vld [vmem:[%s6 + $0x48] sm:$0xff]
      %v7865 = vld [vmem:[%s6 + $0x50] sm:$0xff]
      %v7866 = vld [vmem:[%s6 + $0x58] sm:$0xff]
      %v7867 = vld [vmem:[%s6 + $0x60] sm:$0xff]
      %v7868 = vld [vmem:[%s6 + $0x68] sm:$0xff]
      %v7869 = vld [vmem:[%s6 + $0x70] sm:$0xff]
      %v7870 = vld [vmem:[%s6 + $0x78] sm:$0xff]
      %v7871 = vld [vmem:[%s6 + $0x80] sm:$0xff]
      %v7872 = vld [vmem:[%s6 + $0x88] sm:$0xff]
      %v7873 = vld [vmem:[%s6 + $0x90] sm:$0xff]
      %v7874 = vld [vmem:[%s6 + $0x98] sm:$0xff]
      %v7875 = vld [vmem:[%s6 + $0xa0] sm:$0xff]
      %v7876 = vld [vmem:[%s6 + $0xa8] sm:$0xff]
      %v7877 = vld [vmem:[%s6 + $0xb0] sm:$0xff]
      %v7878 = vld [vmem:[%s6 + $0xb8] sm:$0xff]
      %v7879 = vld [vmem:[%s6 + $0xc0] sm:$0xff]
      %v7880 = vld [vmem:[%s6 + $0xc8] sm:$0xff]
      %v7881 = vld [vmem:[%s6 + $0xd0] sm:$0xff]
      %v7882 = vld [vmem:[%s6 + $0xd8] sm:$0xff]
      %v7883 = vld [vmem:[%s6 + $0xe0] sm:$0xff]
      %v7884 = vld [vmem:[%s6 + $0xe8] sm:$0xff]
      %v7885 = vld [vmem:[%s6 + $0xf0] sm:$0xff]
      %v7886 = vld [vmem:[%s6 + $0xf8] sm:$0xff]
      %v7887 = vld [vmem:[%s7] sm:$0x1]
      %v7889 = vlaneseq
      %v7890 = vshrl.u32 %v7889, 7
      %v7891 = vsub.s32 0, %v7890
      %v7892 = vrot.slane %v7887, %v7891
      %7894 = vmatprep.subr.mxu0 0.0
      %7895 = vmatpush1.msra.mxu0 %v7870
      %7896 = vmatprep.subr.mxu0 0.0
      %7897 = vmatpush1.msra.mxu0 %v7869
      %7898 = vmatprep.subr.mxu0 0.0
      %7899 = vmatpush1.msra.mxu0 %v7868
      %7900 = vmatprep.subr.mxu0 0.0
      %7901 = vmatpush1.msra.mxu0 %v7867
      %7902 = vmatprep.subr.mxu0 0.0
      %7903 = vmatpush1.msra.mxu0 %v7866
      %7904 = vmatprep.subr.mxu0 0.0
      %7905 = vmatpush1.msra.mxu0 %v7865
      %7906 = vmatprep.subr.mxu0 0.0
      %7907 = vmatpush1.msra.mxu0 %v7864
      %7908 = vmatprep.subr.mxu0 0.0
      %7909 = vmatpush1.msra.mxu0 %v7863
      %7910 = vmatprep.subr.mxu0 0.0
      %7911 = vmatpush1.msra.mxu0 %v7862
      %7912 = vmatprep.subr.mxu0 0.0
      %7913 = vmatpush1.msra.mxu0 %v7861
      %7914 = vmatprep.subr.mxu0 0.0
      %7915 = vmatpush1.msra.mxu0 %v7860
      %7916 = vmatprep.subr.mxu0 0.0
      %7917 = vmatpush1.msra.mxu0 %v7859
      %7918 = vmatprep.subr.mxu0 0.0
      %7919 = vmatpush1.msra.mxu0 %v7858
      %7920 = vmatprep.subr.mxu0 0.0
      %7921 = vmatpush1.msra.mxu0 %v7857
      %7922 = vmatprep.subr.mxu0 0.0
      %7923 = vmatpush1.msra.mxu0 %v7856
      %7924 = vmatprep.subr.mxu0 0.0
      %7925 = vmatpush1.msra.mxu0 %v7855
      %7926 = vmatprep.subr.mxu0 0.0
      %7927 = vmatpush2.msra.mxu0 %v7886
      %7928 = vmatprep.subr.mxu0 0.0
      %7929 = vmatpush2.msra.mxu0 %v7885
      %7930 = vmatprep.subr.mxu0 0.0
      %7931 = vmatpush2.msra.mxu0 %v7884
      %7932 = vmatprep.subr.mxu0 0.0
      %7933 = vmatpush2.msra.mxu0 %v7883
      %7934 = vmatprep.subr.mxu0 0.0
      %7935 = vmatpush2.msra.mxu0 %v7882
      %7936 = vmatprep.subr.mxu0 0.0
      %7937 = vmatpush2.msra.mxu0 %v7881
      %7938 = vmatprep.subr.mxu0 0.0
      %7939 = vmatpush2.msra.mxu0 %v7880
      %7940 = vmatprep.subr.mxu0 0.0
      %7941 = vmatpush2.msra.mxu0 %v7879
      %7942 = vmatprep.subr.mxu0 0.0
      %7943 = vmatpush2.msra.mxu0 %v7878
      %7944 = vmatprep.subr.mxu0 0.0
      %7945 = vmatpush2.msra.mxu0 %v7877
      %7946 = vmatprep.subr.mxu0 0.0
      %7947 = vmatpush2.msra.mxu0 %v7876
      %7948 = vmatprep.subr.mxu0 0.0
      %7949 = vmatpush2.msra.mxu0 %v7875
      %7950 = vmatprep.subr.mxu0 0.0
      %7951 = vmatpush2.msra.mxu0 %v7874
      %7952 = vmatprep.subr.mxu0 0.0
      %7953 = vmatpush2.msra.mxu0 %v7873
      %7954 = vmatprep.subr.mxu0 0.0
      %7955 = vmatpush2.msra.mxu0 %v7872
      %7956 = vmatprep.subr.mxu0 0.0
      %7957 = vmatpush2.msra.mxu0 %v7871
      %7958 = vmatprep.mubr.f32.mxu0 %v7772
      %7959 = vmatmul.mubr.f32.gmra.mxu0 %v7771
      %v7960 = vpop.f32.mrf.mxu0
      %v7961 = vadd.f32 %v7892, %v7960
      %v7962 = vpop.f32.mrf.mxu0
      %7963 = vmatprep.mubr.f32.mxu0 %v7774
      %7964 = vmatmul.mubr.f32.gmra.mxu0 %v7773
      %v7965 = vpop.f32.mrf.mxu0
      %v7966 = vadd.f32 %v7892, %v7965
      %v7967 = vpop.f32.mrf.mxu0
      %7968 = vmatprep.mubr.f32.mxu0 %v7776
      %7969 = vmatmul.mubr.f32.gmra.mxu0 %v7775
      %v7970 = vpop.f32.mrf.mxu0
      %v7971 = vadd.f32 %v7892, %v7970
      %v7972 = vpop.f32.mrf.mxu0
      %7973 = vmatprep.mubr.f32.mxu0 %v7778
      %7974 = vmatmul.mubr.f32.gmra.mxu0 %v7777
      %v7975 = vpop.f32.mrf.mxu0
      %v7976 = vadd.f32 %v7892, %v7975
      %v7977 = vpop.f32.mrf.mxu0
      %7978 = vmatprep.mubr.f32.mxu0 %v7780
      %7979 = vmatmul.mubr.f32.gmra.mxu0 %v7779
      %v7980 = vpop.f32.mrf.mxu0
      %v7981 = vadd.f32 %v7892, %v7980
      %v7982 = vpop.f32.mrf.mxu0
      %7983 = vmatprep.mubr.f32.mxu0 %v7782
      %7984 = vmatmul.mubr.f32.gmra.mxu0 %v7781
      %v7985 = vpop.f32.mrf.mxu0
      %v7986 = vadd.f32 %v7892, %v7985
      %v7987 = vpop.f32.mrf.mxu0
      %7988 = vmatprep.mubr.f32.mxu0 %v7784
      %7989 = vmatmul.mubr.f32.gmra.mxu0 %v7783
      %v7990 = vpop.f32.mrf.mxu0
      %v7991 = vadd.f32 %v7892, %v7990
      %v7992 = vpop.f32.mrf.mxu0
      %7993 = vmatprep.mubr.f32.mxu0 %v7786
      %7994 = vmatmul.mubr.f32.gmra.mxu0 %v7785
      %v7995 = vpop.f32.mrf.mxu0
      %v7996 = vadd.f32 %v7892, %v7995
      %v7997 = vpop.f32.mrf.mxu0
      %7998 = vmatprep.mubr.f32.mxu0 %v7788
      %7999 = vmatmul.mubr.f32.gmra.mxu0 %v7787
      %v8000 = vpop.f32.mrf.mxu0
      %v8001 = vadd.f32 %v7892, %v8000
      %v8002 = vpop.f32.mrf.mxu0
      %8003 = vmatprep.mubr.f32.mxu0 %v7790
      %8004 = vmatmul.mubr.f32.gmra.mxu0 %v7789
      %v8005 = vpop.f32.mrf.mxu0
      %v8006 = vadd.f32 %v7892, %v8005
      %v8007 = vpop.f32.mrf.mxu0
      %8008 = vmatprep.mubr.f32.mxu0 %v7792
      %8009 = vmatmul.mubr.f32.gmra.mxu0 %v7791
      %v8010 = vpop.f32.mrf.mxu0
      %v8011 = vadd.f32 %v7892, %v8010
      %v8012 = vpop.f32.mrf.mxu0
      %8013 = vmatprep.mubr.f32.mxu0 %v7794
      %8014 = vmatmul.mubr.f32.gmra.mxu0 %v7793
      %v8015 = vpop.f32.mrf.mxu0
      %v8016 = vadd.f32 %v7892, %v8015
      %v8017 = vpop.f32.mrf.mxu0
      %8018 = vmatprep.mubr.f32.mxu0 %v7796
      %8019 = vmatmul.mubr.f32.gmra.mxu0 %v7795
      %v8020 = vpop.f32.mrf.mxu0
      %v8021 = vadd.f32 %v7892, %v8020
      %v8022 = vpop.f32.mrf.mxu0
      %8023 = vmatprep.mubr.f32.mxu0 %v7798
      %8024 = vmatmul.mubr.f32.gmra.mxu0 %v7797
      %v8025 = vpop.f32.mrf.mxu0
      %v8026 = vadd.f32 %v7892, %v8025
      %v8027 = vpop.f32.mrf.mxu0
      %8028 = vmatprep.mubr.f32.mxu0 %v7800
      %8029 = vmatmul.mubr.f32.gmra.mxu0 %v7799
      %v8030 = vpop.f32.mrf.mxu0
      %v8031 = vadd.f32 %v7892, %v8030
      %v8032 = vpop.f32.mrf.mxu0
      %8033 = vmatprep.mubr.f32.mxu0 %v7802
      %8034 = vmatmul.mubr.f32.gmra.mxu0 %v7801
      %v8035 = vpop.f32.mrf.mxu0
      %v8036 = vadd.f32 %v7892, %v8035
      %v8037 = vpop.f32.mrf.mxu0
      %8038 = vmatprep.mubr.f32.mxu0 %v7804
      %8039 = vmatmul.mubr.f32.gmra.mxu0 %v7803
      %v8040 = vpop.f32.mrf.mxu0
      %v8041 = vadd.f32 %v7892, %v8040
      %v8042 = vpop.f32.mrf.mxu0
      %8043 = vmatprep.mubr.f32.mxu0 %v7806
      %8044 = vmatmul.mubr.f32.gmra.mxu0 %v7805
      %v8045 = vpop.f32.mrf.mxu0
      %v8046 = vadd.f32 %v7892, %v8045
      %v8047 = vpop.f32.mrf.mxu0
      %8048 = vmatprep.mubr.f32.mxu0 %v7808
      %8049 = vmatmul.mubr.f32.gmra.mxu0 %v7807
      %v8050 = vpop.f32.mrf.mxu0
      %v8051 = vadd.f32 %v7892, %v8050
      %v8052 = vpop.f32.mrf.mxu0
      %8053 = vmatprep.mubr.f32.mxu0 %v7810
      %8054 = vmatmul.mubr.f32.gmra.mxu0 %v7809
      %v8055 = vpop.f32.mrf.mxu0
      %v8056 = vadd.f32 %v7892, %v8055
      %v8057 = vpop.f32.mrf.mxu0
      %8058 = vmatprep.mubr.f32.mxu0 %v7812
      %8059 = vmatmul.mubr.f32.gmra.mxu0 %v7811
      %v8060 = vpop.f32.mrf.mxu0
      %v8061 = vadd.f32 %v7892, %v8060
      %v8062 = vpop.f32.mrf.mxu0
      %8063 = vmatprep.mubr.f32.mxu0 %v7814
      %8064 = vmatmul.mubr.f32.gmra.mxu0 %v7813
      %v8065 = vpop.f32.mrf.mxu0
      %v8066 = vadd.f32 %v7892, %v8065
      %v8067 = vpop.f32.mrf.mxu0
      %8068 = vmatprep.mubr.f32.mxu0 %v7816
      %8069 = vmatmul.mubr.f32.gmra.mxu0 %v7815
      %v8070 = vpop.f32.mrf.mxu0
      %v8071 = vadd.f32 %v7892, %v8070
      %v8072 = vpop.f32.mrf.mxu0
      %8073 = vmatprep.mubr.f32.mxu0 %v7818
      %8074 = vmatmul.mubr.f32.gmra.mxu0 %v7817
      %v8075 = vpop.f32.mrf.mxu0
      %v8076 = vadd.f32 %v7892, %v8075
      %v8077 = vpop.f32.mrf.mxu0
      %8078 = vmatprep.mubr.f32.mxu0 %v7820
      %8079 = vmatmul.mubr.f32.gmra.mxu0 %v7819
      %v8080 = vpop.f32.mrf.mxu0
      %v8081 = vadd.f32 %v7892, %v8080
      %v8082 = vpop.f32.mrf.mxu0
      %8083 = vmatprep.mubr.f32.mxu0 %v7822
      %8084 = vmatmul.mubr.f32.gmra.mxu0 %v7821
      %v8085 = vpop.f32.mrf.mxu0
      %v8086 = vadd.f32 %v7892, %v8085
      %v8087 = vpop.f32.mrf.mxu0
      %8088 = vmatprep.mubr.f32.mxu0 %v7824
      %8089 = vmatmul.mubr.f32.gmra.mxu0 %v7823
      %v8090 = vpop.f32.mrf.mxu0
      %v8091 = vadd.f32 %v7892, %v8090
      %v8092 = vpop.f32.mrf.mxu0
      %8093 = vmatprep.mubr.f32.mxu0 %v7826
      %8094 = vmatmul.mubr.f32.gmra.mxu0 %v7825
      %v8095 = vpop.f32.mrf.mxu0
      %v8096 = vadd.f32 %v7892, %v8095
      %v8097 = vpop.f32.mrf.mxu0
      %8098 = vmatprep.mubr.f32.mxu0 %v7828
      %8099 = vmatmul.mubr.f32.gmra.mxu0 %v7827
      %v8100 = vpop.f32.mrf.mxu0
      %v8101 = vadd.f32 %v7892, %v8100
      %v8102 = vpop.f32.mrf.mxu0
      %8103 = vmatprep.mubr.f32.mxu0 %v7830
      %8104 = vmatmul.mubr.f32.gmra.mxu0 %v7829
      %v8105 = vpop.f32.mrf.mxu0
      %v8106 = vadd.f32 %v7892, %v8105
      %v8107 = vpop.f32.mrf.mxu0
      %8108 = vmatprep.mubr.f32.mxu0 %v7832
      %8109 = vmatmul.mubr.f32.gmra.mxu0 %v7831
      %v8110 = vpop.f32.mrf.mxu0
      %v8111 = vadd.f32 %v7892, %v8110
      %v8112 = vpop.f32.mrf.mxu0
      %8113 = vmatprep.mubr.f32.mxu0 %v7834
      %8114 = vmatmul.mubr.f32.gmra.mxu0 %v7833
      %v8115 = vpop.f32.mrf.mxu0
      %v8116 = vadd.f32 %v7892, %v8115
      %v8117 = vpop.f32.mrf.mxu0
      %8118 = vmatprep.mubr.f32.mxu0 %v7836
      %8119 = vmatmul.mubr.f32.gmra.mxu0 %v7835
      %v8120 = vpop.f32.mrf.mxu0
      %v8121 = vadd.f32 %v7892, %v8120
      %v8122 = vpop.f32.mrf.mxu0
      %8123 = vmatprep.mubr.f32.mxu0 %v7838
      %8124 = vmatmul.mubr.f32.gmra.mxu0 %v7837
      %v8125 = vpop.f32.mrf.mxu0
      %v8126 = vadd.f32 %v7892, %v8125
      %v8127 = vpop.f32.mrf.mxu0
      %8128 = vmatprep.mubr.f32.mxu0 %v7840
      %8129 = vmatmul.mubr.f32.gmra.mxu0 %v7839
      %v8130 = vpop.f32.mrf.mxu0
      %v8131 = vadd.f32 %v7892, %v8130
      %v8132 = vpop.f32.mrf.mxu0
      %8133 = vmatprep.mubr.f32.mxu0 %v7842
      %8134 = vmatmul.mubr.f32.gmra.mxu0 %v7841
      %v8135 = vpop.f32.mrf.mxu0
      %v8136 = vadd.f32 %v7892, %v8135
      %v8137 = vpop.f32.mrf.mxu0
      %8138 = vmatprep.mubr.f32.mxu0 %v7844
      %8139 = vmatmul.mubr.f32.gmra.mxu0 %v7843
      %v8140 = vpop.f32.mrf.mxu0
      %v8141 = vadd.f32 %v7892, %v8140
      %v8142 = vpop.f32.mrf.mxu0
      %8143 = vmatprep.mubr.f32.mxu0 %v7846
      %8144 = vmatmul.mubr.f32.gmra.mxu0 %v7845
      %v8145 = vpop.f32.mrf.mxu0
      %v8146 = vadd.f32 %v7892, %v8145
      %v8147 = vpop.f32.mrf.mxu0
      %8148 = vmatprep.mubr.f32.mxu0 %v7848
      %8149 = vmatmul.mubr.f32.gmra.mxu0 %v7847
      %v8150 = vpop.f32.mrf.mxu0
      %v8151 = vadd.f32 %v7892, %v8150
      %v8152 = vpop.f32.mrf.mxu0
      %8153 = vmatprep.mubr.f32.mxu0 %v7850
      %8154 = vmatmul.mubr.f32.gmra.mxu0 %v7849
      %v8155 = vpop.f32.mrf.mxu0
      %v8156 = vadd.f32 %v7892, %v8155
      %v8157 = vpop.f32.mrf.mxu0
      %8158 = vmatprep.mubr.f32.mxu0 %v7852
      %8159 = vmatmul.mubr.f32.gmra.mxu0 %v7851
      %v8160 = vpop.f32.mrf.mxu0
      %v8161 = vadd.f32 %v7892, %v8160
      %v8162 = vpop.f32.mrf.mxu0
      %8163 = vmatprep.mubr.f32.mxu0 %v7854
      %8164 = vmatmul.mubr.f32.gmra.mxu0 %v7853
      %v8165 = vpop.f32.mrf.mxu0
      %v8166 = vadd.f32 %v7892, %v8165
      %v8167 = vpop.f32.mrf.mxu0
      %8168 = vdwg.mxu0
      %v8169 = vtanh.pop %v7961
      %v8170 = vtanh.pop %v7966
      %v8171 = vtanh.pop %v7971
      %v8172 = vtanh.pop %v7976
      %v8173 = vtanh.pop %v7981
      %v8174 = vtanh.pop %v7986
      %v8175 = vtanh.pop %v7991
      %v8176 = vtanh.pop %v7996
      %v8177 = vtanh.pop %v8001
      %v8178 = vtanh.pop %v8006
      %v8179 = vtanh.pop %v8011
      %v8180 = vtanh.pop %v8016
      %v8181 = vtanh.pop %v8021
      %v8182 = vtanh.pop %v8026
      %v8183 = vtanh.pop %v8031
      %v8184 = vtanh.pop %v8036
      %v8185 = vtanh.pop %v8041
      %v8186 = vtanh.pop %v8046
      %v8187 = vtanh.pop %v8051
      %v8188 = vtanh.pop %v8056
      %v8189 = vtanh.pop %v8061
      %v8190 = vtanh.pop %v8066
      %v8191 = vtanh.pop %v8071
      %v8192 = vtanh.pop %v8076
      %v8193 = vtanh.pop %v8081
      %v8194 = vtanh.pop %v8086
      %v8195 = vtanh.pop %v8091
      %v8196 = vtanh.pop %v8096
      %v8197 = vtanh.pop %v8101
      %v8198 = vtanh.pop %v8106
      %v8199 = vtanh.pop %v8111
      %v8200 = vtanh.pop %v8116
      %v8201 = vtanh.pop %v8121
      %v8202 = vtanh.pop %v8126
      %v8203 = vtanh.pop %v8131
      %v8204 = vtanh.pop %v8136
      %v8205 = vtanh.pop %v8141
      %v8206 = vtanh.pop %v8146
      %v8207 = vtanh.pop %v8151
      %v8208 = vtanh.pop %v8156
      %v8209 = vtanh.pop %v8161
      %v8210 = vtanh.pop %v8166
      %v8211 = vsel %vm758, %v8169, 0.0
      %v8212 = vsel %vm759, %v8170, 0.0
      %v8213 = vsel %vm760, %v8171, 0.0
      %v8214 = vsel %vm761, %v8172, 0.0
      %v8215 = vsel %vm762, %v8173, 0.0
      %v8216 = vsel %vm763, %v8174, 0.0
      %v8217 = vsel %vm764, %v8175, 0.0
      %v8218 = vsel %vm765, %v8176, 0.0
      %v8219 = vsel %vm766, %v8177, 0.0
      %v8220 = vsel %vm767, %v8178, 0.0
      %v8221 = vsel %vm768, %v8179, 0.0
      %v8222 = vsel %vm769, %v8180, 0.0
      %v8223 = vsel %vm770, %v8181, 0.0
      %v8224 = vsel %vm771, %v8182, 0.0
      %v8225 = vsel %vm772, %v8183, 0.0
      %v8226 = vsel %vm773, %v8184, 0.0
      %v8227 = vsel %vm774, %v8185, 0.0
      %v8228 = vsel %vm775, %v8186, 0.0
      %v8229 = vsel %vm776, %v8187, 0.0
      %v8230 = vsel %vm777, %v8188, 0.0
      %v8231 = vsel %vm778, %v8189, 0.0
      %v8232 = vsel %vm779, %v8190, 0.0
      %v8233 = vsel %vm780, %v8191, 0.0
      %v8234 = vsel %vm781, %v8192, 0.0
      %v8235 = vsel %vm782, %v8193, 0.0
      %v8236 = vsel %vm783, %v8194, 0.0
      %v8237 = vsel %vm784, %v8195, 0.0
      %v8238 = vsel %vm785, %v8196, 0.0
      %v8239 = vsel %vm786, %v8197, 0.0
      %v8240 = vsel %vm787, %v8198, 0.0
      %v8241 = vsel %vm788, %v8199, 0.0
      %v8242 = vsel %vm789, %v8200, 0.0
      %v8243 = vsel %vm790, %v8201, 0.0
      %v8244 = vsel %vm791, %v8202, 0.0
      %v8245 = vsel %vm792, %v8203, 0.0
      %v8246 = vsel %vm793, %v8204, 0.0
      %v8247 = vsel %vm794, %v8205, 0.0
      %v8248 = vsel %vm795, %v8206, 0.0
      %v8249 = vsel %vm796, %v8207, 0.0
      %v8250 = vsel %vm797, %v8208, 0.0
      %v8251 = vsel %vm798, %v8209, 0.0
      %v8252 = vsel %vm799, %v8210, 0.0
      %8253 = vst [vmem:[#allocation2 + $0x20] sm:$0xff] %v8211
      %8254 = vst [vmem:[#allocation2 + $0x28] sm:$0xff] %v8212
      %8255 = vst [vmem:[#allocation2 + $0x30] sm:$0xff] %v8213
      %8256 = vst [vmem:[#allocation2 + $0x38] sm:$0xff] %v8214
      %8257 = vst [vmem:[#allocation2 + $0x40] sm:$0xff] %v8215
      %8258 = vst [vmem:[#allocation2 + $0x48] sm:$0xff] %v8216
      %8259 = vst [vmem:[#allocation2 + $0x50] sm:$0xff] %v8217
      %8260 = vst [vmem:[#allocation2 + $0x58] sm:$0xff] %v8218
      %8261 = vst [vmem:[#allocation2 + $0x60] sm:$0xff] %v8219
      %8262 = vst [vmem:[#allocation2 + $0x68] sm:$0xff] %v8220
      %8263 = vst [vmem:[#allocation2 + $0x70] sm:$0xff] %v8221
      %8264 = vst [vmem:[#allocation2 + $0x78] sm:$0xff] %v8222
      %8265 = vst [vmem:[#allocation2 + $0x80] sm:$0xff] %v8223
      %8266 = vst [vmem:[#allocation2 + $0x88] sm:$0xff] %v8224
      %8267 = vst [vmem:[#allocation2 + $0x90] sm:$0xff] %v8225
      %8268 = vst [vmem:[#allocation2 + $0x98] sm:$0xff] %v8226
      %8269 = vst [vmem:[#allocation2 + $0xa0] sm:$0xff] %v8227
      %8270 = vst [vmem:[#allocation2 + $0xa8] sm:$0xff] %v8228
      %8271 = vst [vmem:[#allocation2 + $0xb0] sm:$0xff] %v8229
      %8272 = vst [vmem:[#allocation2 + $0xb8] sm:$0xff] %v8230
      %8273 = vst [vmem:[#allocation2 + $0xc0] sm:$0xff] %v8231
      %8274 = vst [vmem:[#allocation2 + $0xc8] sm:$0xff] %v8232
      %8275 = vst [vmem:[#allocation2 + $0xd0] sm:$0xff] %v8233
      %8276 = vst [vmem:[#allocation2 + $0xd8] sm:$0xff] %v8234
      %8277 = vst [vmem:[#allocation2 + $0xe0] sm:$0xff] %v8235
      %8278 = vst [vmem:[#allocation2 + $0xe8] sm:$0xff] %v8236
      %8279 = vst [vmem:[#allocation2 + $0xf0] sm:$0xff] %v8237
      %8280 = vst [vmem:[#allocation2 + $0xf8] sm:$0xff] %v8238
      %8281 = vst [vmem:[#allocation2 + $0x100] sm:$0xff] %v8239
      %8282 = vst [vmem:[#allocation2 + $0x108] sm:$0xff] %v8240
      %8283 = vst [vmem:[#allocation2 + $0x110] sm:$0xff] %v8241
      %8284 = vst [vmem:[#allocation2 + $0x118] sm:$0xff] %v8242
      %8285 = vst [vmem:[#allocation2 + $0x120] sm:$0xff] %v8243
      %8286 = vst [vmem:[#allocation2 + $0x128] sm:$0xff] %v8244
      %8287 = vst [vmem:[#allocation2 + $0x130] sm:$0xff] %v8245
      %8288 = vst [vmem:[#allocation2 + $0x138] sm:$0xff] %v8246
      %8289 = vst [vmem:[#allocation2 + $0x140] sm:$0xff] %v8247
      %8290 = vst [vmem:[#allocation2 + $0x148] sm:$0xff] %v8248
      %8291 = vst [vmem:[#allocation2 + $0x150] sm:$0xff] %v8249
      %8292 = vst [vmem:[#allocation2 + $0x158] sm:$0xff] %v8250
      %8293 = vst [vmem:[#allocation2 + $0x160] sm:$0xff] %v8251
      %8294 = vst [vmem:[#allocation2 + $0x168] sm:$0xff] %v8252
      %v8295 = vld [vmem:[#allocation2 + $0x20] sm:$0xff]
      %v8296 = vld [vmem:[#allocation2 + $0x28] sm:$0xff]
      %v8297 = vld [vmem:[#allocation2 + $0x30] sm:$0xff]
      %v8298 = vld [vmem:[#allocation2 + $0x38] sm:$0xff]
      %v8299 = vld [vmem:[#allocation2 + $0x40] sm:$0xff]
      %v8300 = vld [vmem:[#allocation2 + $0x48] sm:$0xff]
      %v8301 = vld [vmem:[#allocation2 + $0x50] sm:$0xff]
      %v8302 = vld [vmem:[#allocation2 + $0x58] sm:$0xff]
      %v8303 = vld [vmem:[#allocation2 + $0x60] sm:$0xff]
      %v8304 = vld [vmem:[#allocation2 + $0x68] sm:$0xff]
      %v8305 = vld [vmem:[#allocation2 + $0x70] sm:$0xff]
      %v8306 = vld [vmem:[#allocation2 + $0x78] sm:$0xff]
      %v8307 = vld [vmem:[#allocation2 + $0x80] sm:$0xff]
      %v8308 = vld [vmem:[#allocation2 + $0x88] sm:$0xff]
      %v8309 = vld [vmem:[#allocation2 + $0x90] sm:$0xff]
      %v8310 = vld [vmem:[#allocation2 + $0x98] sm:$0xff]
      %v8311 = vld [vmem:[#allocation2 + $0xa0] sm:$0xff]
      %v8312 = vld [vmem:[#allocation2 + $0xa8] sm:$0xff]
      %v8313 = vld [vmem:[#allocation2 + $0xb0] sm:$0xff]
      %v8314 = vld [vmem:[#allocation2 + $0xb8] sm:$0xff]
      %v8315 = vld [vmem:[#allocation2 + $0xc0] sm:$0xff]
      %v8316 = vld [vmem:[#allocation2 + $0xc8] sm:$0xff]
      %v8317 = vld [vmem:[#allocation2 + $0xd0] sm:$0xff]
      %v8318 = vld [vmem:[#allocation2 + $0xd8] sm:$0xff]
      %v8319 = vld [vmem:[#allocation2 + $0xe0] sm:$0xff]
      %v8320 = vld [vmem:[#allocation2 + $0xe8] sm:$0xff]
      %v8321 = vld [vmem:[#allocation2 + $0xf0] sm:$0xff]
      %v8322 = vld [vmem:[#allocation2 + $0xf8] sm:$0xff]
      %v8323 = vld [vmem:[#allocation2 + $0x100] sm:$0xff]
      %v8324 = vld [vmem:[#allocation2 + $0x108] sm:$0xff]
      %v8325 = vld [vmem:[#allocation2 + $0x110] sm:$0xff]
      %v8326 = vld [vmem:[#allocation2 + $0x118] sm:$0xff]
      %v8327 = vld [vmem:[#allocation2 + $0x120] sm:$0xff]
      %v8328 = vld [vmem:[#allocation2 + $0x128] sm:$0xff]
      %v8329 = vld [vmem:[#allocation2 + $0x130] sm:$0xff]
      %v8330 = vld [vmem:[#allocation2 + $0x138] sm:$0xff]
      %v8331 = vld [vmem:[#allocation2 + $0x140] sm:$0xff]
      %v8332 = vld [vmem:[#allocation2 + $0x148] sm:$0xff]
      %v8333 = vld [vmem:[#allocation2 + $0x150] sm:$0xff]
      %v8334 = vld [vmem:[#allocation2 + $0x158] sm:$0xff]
      %v8335 = vld [vmem:[#allocation2 + $0x160] sm:$0xff]
      %v8336 = vld [vmem:[#allocation2 + $0x168] sm:$0xff]
      %v8337 = vld [vmem:[%s8] sm:$0xff]
      %v8338 = vld [vmem:[%s8 + $0x8] sm:$0xff]
      %v8339 = vld [vmem:[%s8 + $0x10] sm:$0xff]
      %v8340 = vld [vmem:[%s8 + $0x18] sm:$0xff]
      %v8341 = vld [vmem:[%s8 + $0x20] sm:$0xff]
      %v8342 = vld [vmem:[%s8 + $0x28] sm:$0xff]
      %v8343 = vld [vmem:[%s8 + $0x30] sm:$0xff]
      %v8344 = vld [vmem:[%s8 + $0x38] sm:$0xff]
      %v8345 = vld [vmem:[%s8 + $0x40] sm:$0xff]
      %v8346 = vld [vmem:[%s8 + $0x48] sm:$0xff]
      %v8347 = vld [vmem:[%s8 + $0x50] sm:$0xff]
      %v8348 = vld [vmem:[%s8 + $0x58] sm:$0xff]
      %v8349 = vld [vmem:[%s8 + $0x60] sm:$0xff]
      %v8350 = vld [vmem:[%s8 + $0x68] sm:$0xff]
      %v8351 = vld [vmem:[%s8 + $0x70] sm:$0xff]
      %v8352 = vld [vmem:[%s8 + $0x78] sm:$0xff]
      %v8353 = vld [vmem:[%s9] sm:$0x1]
      %v8355 = vlaneseq
      %v8356 = vshrl.u32 %v8355, 7
      %v8357 = vsub.s32 0, %v8356
      %v8358 = vrot.slane %v8353, %v8357
      %8360 = vmatprep.subr.mxu0 0.0
      %8361 = vmatpush1.msra.mxu0 %v8352
      %8362 = vmatprep.subr.mxu0 0.0
      %8363 = vmatpush1.msra.mxu0 %v8351
      %8364 = vmatprep.subr.mxu0 0.0
      %8365 = vmatpush1.msra.mxu0 %v8350
      %8366 = vmatprep.subr.mxu0 0.0
      %8367 = vmatpush1.msra.mxu0 %v8349
      %8368 = vmatprep.subr.mxu0 0.0
      %8369 = vmatpush1.msra.mxu0 %v8348
      %8370 = vmatprep.subr.mxu0 0.0
      %8371 = vmatpush1.msra.mxu0 %v8347
      %8372 = vmatprep.subr.mxu0 0.0
      %8373 = vmatpush1.msra.mxu0 %v8346
      %8374 = vmatprep.subr.mxu0 0.0
      %8375 = vmatpush1.msra.mxu0 %v8345
      %8376 = vmatprep.subr.mxu0 0.0
      %8377 = vmatpush1.msra.mxu0 %v8344
      %8378 = vmatprep.subr.mxu0 0.0
      %8379 = vmatpush1.msra.mxu0 %v8343
      %8380 = vmatprep.subr.mxu0 0.0
      %8381 = vmatpush1.msra.mxu0 %v8342
      %8382 = vmatprep.subr.mxu0 0.0
      %8383 = vmatpush1.msra.mxu0 %v8341
      %8384 = vmatprep.subr.mxu0 0.0
      %8385 = vmatpush1.msra.mxu0 %v8340
      %8386 = vmatprep.subr.mxu0 0.0
      %8387 = vmatpush1.msra.mxu0 %v8339
      %8388 = vmatprep.subr.mxu0 0.0
      %8389 = vmatpush1.msra.mxu0 %v8338
      %8390 = vmatprep.subr.mxu0 0.0
      %8391 = vmatpush1.msra.mxu0 %v8337
      %8392 = vmatprep.subr.mxu0 0.0
      %8393 = vmatpush2.msra.mxu0 0.0
      %8394 = vmatprep.subr.mxu0 0.0
      %8395 = vmatpush2.msra.mxu0 0.0
      %8396 = vmatprep.subr.mxu0 0.0
      %8397 = vmatpush2.msra.mxu0 0.0
      %8398 = vmatprep.subr.mxu0 0.0
      %8399 = vmatpush2.msra.mxu0 0.0
      %8400 = vmatprep.subr.mxu0 0.0
      %8401 = vmatpush2.msra.mxu0 0.0
      %8402 = vmatprep.subr.mxu0 0.0
      %8403 = vmatpush2.msra.mxu0 0.0
      %8404 = vmatprep.subr.mxu0 0.0
      %8405 = vmatpush2.msra.mxu0 0.0
      %8406 = vmatprep.subr.mxu0 0.0
      %8407 = vmatpush2.msra.mxu0 0.0
      %8408 = vmatprep.subr.mxu0 0.0
      %8409 = vmatpush2.msra.mxu0 0.0
      %8410 = vmatprep.subr.mxu0 0.0
      %8411 = vmatpush2.msra.mxu0 0.0
      %8412 = vmatprep.subr.mxu0 0.0
      %8413 = vmatpush2.msra.mxu0 0.0
      %8414 = vmatprep.subr.mxu0 0.0
      %8415 = vmatpush2.msra.mxu0 0.0
      %8416 = vmatprep.subr.mxu0 0.0
      %8417 = vmatpush2.msra.mxu0 0.0
      %8418 = vmatprep.subr.mxu0 0.0
      %8419 = vmatpush2.msra.mxu0 0.0
      %8420 = vmatprep.subr.mxu0 0.0
      %8421 = vmatpush2.msra.mxu0 0.0
      %8422 = vmatprep.subr.mxu0 0.0
      %8423 = vmatpush2.msra.mxu0 0.0
      %8424 = vmatprep.mubr.f32.mxu0 0.0
      %8425 = vmatmul.mubr.f32.gmra.mxu0 %v8295
      %v8426 = vpop.f32.mrf.mxu0
      %v8427 = vadd.f32 %v8358, %v8426
      %v8428 = vpop.f32.mrf.mxu0
      %8429 = vmatprep.mubr.f32.mxu0 0.0
      %8430 = vmatmul.mubr.f32.gmra.mxu0 %v8296
      %v8431 = vpop.f32.mrf.mxu0
      %v8432 = vadd.f32 %v8358, %v8431
      %v8433 = vpop.f32.mrf.mxu0
      %8434 = vmatprep.mubr.f32.mxu0 0.0
      %8435 = vmatmul.mubr.f32.gmra.mxu0 %v8297
      %v8436 = vpop.f32.mrf.mxu0
      %v8437 = vadd.f32 %v8358, %v8436
      %v8438 = vpop.f32.mrf.mxu0
      %8439 = vmatprep.mubr.f32.mxu0 0.0
      %8440 = vmatmul.mubr.f32.gmra.mxu0 %v8298
      %v8441 = vpop.f32.mrf.mxu0
      %v8442 = vadd.f32 %v8358, %v8441
      %v8443 = vpop.f32.mrf.mxu0
      %8444 = vmatprep.mubr.f32.mxu0 0.0
      %8445 = vmatmul.mubr.f32.gmra.mxu0 %v8299
      %v8446 = vpop.f32.mrf.mxu0
      %v8447 = vadd.f32 %v8358, %v8446
      %v8448 = vpop.f32.mrf.mxu0
      %8449 = vmatprep.mubr.f32.mxu0 0.0
      %8450 = vmatmul.mubr.f32.gmra.mxu0 %v8300
      %v8451 = vpop.f32.mrf.mxu0
      %v8452 = vadd.f32 %v8358, %v8451
      %v8453 = vpop.f32.mrf.mxu0
      %8454 = vmatprep.mubr.f32.mxu0 0.0
      %8455 = vmatmul.mubr.f32.gmra.mxu0 %v8301
      %v8456 = vpop.f32.mrf.mxu0
      %v8457 = vadd.f32 %v8358, %v8456
      %v8458 = vpop.f32.mrf.mxu0
      %8459 = vmatprep.mubr.f32.mxu0 0.0
      %8460 = vmatmul.mubr.f32.gmra.mxu0 %v8302
      %v8461 = vpop.f32.mrf.mxu0
      %v8462 = vadd.f32 %v8358, %v8461
      %v8463 = vpop.f32.mrf.mxu0
      %8464 = vmatprep.mubr.f32.mxu0 0.0
      %8465 = vmatmul.mubr.f32.gmra.mxu0 %v8303
      %v8466 = vpop.f32.mrf.mxu0
      %v8467 = vadd.f32 %v8358, %v8466
      %v8468 = vpop.f32.mrf.mxu0
      %8469 = vmatprep.mubr.f32.mxu0 0.0
      %8470 = vmatmul.mubr.f32.gmra.mxu0 %v8304
      %v8471 = vpop.f32.mrf.mxu0
      %v8472 = vadd.f32 %v8358, %v8471
      %v8473 = vpop.f32.mrf.mxu0
      %8474 = vmatprep.mubr.f32.mxu0 0.0
      %8475 = vmatmul.mubr.f32.gmra.mxu0 %v8305
      %v8476 = vpop.f32.mrf.mxu0
      %v8477 = vadd.f32 %v8358, %v8476
      %v8478 = vpop.f32.mrf.mxu0
      %8479 = vmatprep.mubr.f32.mxu0 0.0
      %8480 = vmatmul.mubr.f32.gmra.mxu0 %v8306
      %v8481 = vpop.f32.mrf.mxu0
      %v8482 = vadd.f32 %v8358, %v8481
      %v8483 = vpop.f32.mrf.mxu0
      %8484 = vmatprep.mubr.f32.mxu0 0.0
      %8485 = vmatmul.mubr.f32.gmra.mxu0 %v8307
      %v8486 = vpop.f32.mrf.mxu0
      %v8487 = vadd.f32 %v8358, %v8486
      %v8488 = vpop.f32.mrf.mxu0
      %8489 = vmatprep.mubr.f32.mxu0 0.0
      %8490 = vmatmul.mubr.f32.gmra.mxu0 %v8308
      %v8491 = vpop.f32.mrf.mxu0
      %v8492 = vadd.f32 %v8358, %v8491
      %v8493 = vpop.f32.mrf.mxu0
      %8494 = vmatprep.mubr.f32.mxu0 0.0
      %8495 = vmatmul.mubr.f32.gmra.mxu0 %v8309
      %v8496 = vpop.f32.mrf.mxu0
      %v8497 = vadd.f32 %v8358, %v8496
      %v8498 = vpop.f32.mrf.mxu0
      %8499 = vmatprep.mubr.f32.mxu0 0.0
      %8500 = vmatmul.mubr.f32.gmra.mxu0 %v8310
      %v8501 = vpop.f32.mrf.mxu0
      %v8502 = vadd.f32 %v8358, %v8501
      %v8503 = vpop.f32.mrf.mxu0
      %8504 = vmatprep.mubr.f32.mxu0 0.0
      %8505 = vmatmul.mubr.f32.gmra.mxu0 %v8311
      %v8506 = vpop.f32.mrf.mxu0
      %v8507 = vadd.f32 %v8358, %v8506
      %v8508 = vpop.f32.mrf.mxu0
      %8509 = vmatprep.mubr.f32.mxu0 0.0
      %8510 = vmatmul.mubr.f32.gmra.mxu0 %v8312
      %v8511 = vpop.f32.mrf.mxu0
      %v8512 = vadd.f32 %v8358, %v8511
      %v8513 = vpop.f32.mrf.mxu0
      %8514 = vmatprep.mubr.f32.mxu0 0.0
      %8515 = vmatmul.mubr.f32.gmra.mxu0 %v8313
      %v8516 = vpop.f32.mrf.mxu0
      %v8517 = vadd.f32 %v8358, %v8516
      %v8518 = vpop.f32.mrf.mxu0
      %8519 = vmatprep.mubr.f32.mxu0 0.0
      %8520 = vmatmul.mubr.f32.gmra.mxu0 %v8314
      %v8521 = vpop.f32.mrf.mxu0
      %v8522 = vadd.f32 %v8358, %v8521
      %v8523 = vpop.f32.mrf.mxu0
      %8524 = vmatprep.mubr.f32.mxu0 0.0
      %8525 = vmatmul.mubr.f32.gmra.mxu0 %v8315
      %v8526 = vpop.f32.mrf.mxu0
      %v8527 = vadd.f32 %v8358, %v8526
      %v8528 = vpop.f32.mrf.mxu0
      %8529 = vmatprep.mubr.f32.mxu0 0.0
      %8530 = vmatmul.mubr.f32.gmra.mxu0 %v8316
      %v8531 = vpop.f32.mrf.mxu0
      %v8532 = vadd.f32 %v8358, %v8531
      %v8533 = vpop.f32.mrf.mxu0
      %8534 = vmatprep.mubr.f32.mxu0 0.0
      %8535 = vmatmul.mubr.f32.gmra.mxu0 %v8317
      %v8536 = vpop.f32.mrf.mxu0
      %v8537 = vadd.f32 %v8358, %v8536
      %v8538 = vpop.f32.mrf.mxu0
      %8539 = vmatprep.mubr.f32.mxu0 0.0
      %8540 = vmatmul.mubr.f32.gmra.mxu0 %v8318
      %v8541 = vpop.f32.mrf.mxu0
      %v8542 = vadd.f32 %v8358, %v8541
      %v8543 = vpop.f32.mrf.mxu0
      %8544 = vmatprep.mubr.f32.mxu0 0.0
      %8545 = vmatmul.mubr.f32.gmra.mxu0 %v8319
      %v8546 = vpop.f32.mrf.mxu0
      %v8547 = vadd.f32 %v8358, %v8546
      %v8548 = vpop.f32.mrf.mxu0
      %8549 = vmatprep.mubr.f32.mxu0 0.0
      %8550 = vmatmul.mubr.f32.gmra.mxu0 %v8320
      %v8551 = vpop.f32.mrf.mxu0
      %v8552 = vadd.f32 %v8358, %v8551
      %v8553 = vpop.f32.mrf.mxu0
      %8554 = vmatprep.mubr.f32.mxu0 0.0
      %8555 = vmatmul.mubr.f32.gmra.mxu0 %v8321
      %v8556 = vpop.f32.mrf.mxu0
      %v8557 = vadd.f32 %v8358, %v8556
      %v8558 = vpop.f32.mrf.mxu0
      %8559 = vmatprep.mubr.f32.mxu0 0.0
      %8560 = vmatmul.mubr.f32.gmra.mxu0 %v8322
      %v8561 = vpop.f32.mrf.mxu0
      %v8562 = vadd.f32 %v8358, %v8561
      %v8563 = vpop.f32.mrf.mxu0
      %8564 = vmatprep.mubr.f32.mxu0 0.0
      %8565 = vmatmul.mubr.f32.gmra.mxu0 %v8323
      %v8566 = vpop.f32.mrf.mxu0
      %v8567 = vadd.f32 %v8358, %v8566
      %v8568 = vpop.f32.mrf.mxu0
      %8569 = vmatprep.mubr.f32.mxu0 0.0
      %8570 = vmatmul.mubr.f32.gmra.mxu0 %v8324
      %v8571 = vpop.f32.mrf.mxu0
      %v8572 = vadd.f32 %v8358, %v8571
      %v8573 = vpop.f32.mrf.mxu0
      %8574 = vmatprep.mubr.f32.mxu0 0.0
      %8575 = vmatmul.mubr.f32.gmra.mxu0 %v8325
      %v8576 = vpop.f32.mrf.mxu0
      %v8577 = vadd.f32 %v8358, %v8576
      %v8578 = vpop.f32.mrf.mxu0
      %8579 = vmatprep.mubr.f32.mxu0 0.0
      %8580 = vmatmul.mubr.f32.gmra.mxu0 %v8326
      %v8581 = vpop.f32.mrf.mxu0
      %v8582 = vadd.f32 %v8358, %v8581
      %v8583 = vpop.f32.mrf.mxu0
      %8584 = vmatprep.mubr.f32.mxu0 0.0
      %8585 = vmatmul.mubr.f32.gmra.mxu0 %v8327
      %v8586 = vpop.f32.mrf.mxu0
      %v8587 = vadd.f32 %v8358, %v8586
      %v8588 = vpop.f32.mrf.mxu0
      %8589 = vmatprep.mubr.f32.mxu0 0.0
      %8590 = vmatmul.mubr.f32.gmra.mxu0 %v8328
      %v8591 = vpop.f32.mrf.mxu0
      %v8592 = vadd.f32 %v8358, %v8591
      %v8593 = vpop.f32.mrf.mxu0
      %8594 = vmatprep.mubr.f32.mxu0 0.0
      %8595 = vmatmul.mubr.f32.gmra.mxu0 %v8329
      %v8596 = vpop.f32.mrf.mxu0
      %v8597 = vadd.f32 %v8358, %v8596
      %v8598 = vpop.f32.mrf.mxu0
      %8599 = vmatprep.mubr.f32.mxu0 0.0
      %8600 = vmatmul.mubr.f32.gmra.mxu0 %v8330
      %v8601 = vpop.f32.mrf.mxu0
      %v8602 = vadd.f32 %v8358, %v8601
      %v8603 = vpop.f32.mrf.mxu0
      %8604 = vmatprep.mubr.f32.mxu0 0.0
      %8605 = vmatmul.mubr.f32.gmra.mxu0 %v8331
      %v8606 = vpop.f32.mrf.mxu0
      %v8607 = vadd.f32 %v8358, %v8606
      %v8608 = vpop.f32.mrf.mxu0
      %8609 = vmatprep.mubr.f32.mxu0 0.0
      %8610 = vmatmul.mubr.f32.gmra.mxu0 %v8332
      %v8611 = vpop.f32.mrf.mxu0
      %v8612 = vadd.f32 %v8358, %v8611
      %v8613 = vpop.f32.mrf.mxu0
      %8614 = vmatprep.mubr.f32.mxu0 0.0
      %8615 = vmatmul.mubr.f32.gmra.mxu0 %v8333
      %v8616 = vpop.f32.mrf.mxu0
      %v8617 = vadd.f32 %v8358, %v8616
      %v8618 = vpop.f32.mrf.mxu0
      %8619 = vmatprep.mubr.f32.mxu0 0.0
      %8620 = vmatmul.mubr.f32.gmra.mxu0 %v8334
      %v8621 = vpop.f32.mrf.mxu0
      %v8622 = vadd.f32 %v8358, %v8621
      %v8623 = vpop.f32.mrf.mxu0
      %8624 = vmatprep.mubr.f32.mxu0 0.0
      %8625 = vmatmul.mubr.f32.gmra.mxu0 %v8335
      %v8626 = vpop.f32.mrf.mxu0
      %v8627 = vadd.f32 %v8358, %v8626
      %v8628 = vpop.f32.mrf.mxu0
      %8629 = vmatprep.mubr.f32.mxu0 0.0
      %8630 = vmatmul.mubr.f32.gmra.mxu0 %v8336
      %v8631 = vpop.f32.mrf.mxu0
      %v8632 = vadd.f32 %v8358, %v8631
      %v8633 = vpop.f32.mrf.mxu0
      %8634 = vdwg.mxu0
      %v8635 = vtanh.pop %v8427
      %v8636 = vtanh.pop %v8432
      %v8637 = vtanh.pop %v8437
      %v8638 = vtanh.pop %v8442
      %v8639 = vtanh.pop %v8447
      %v8640 = vtanh.pop %v8452
      %v8641 = vtanh.pop %v8457
      %v8642 = vtanh.pop %v8462
      %v8643 = vtanh.pop %v8467
      %v8644 = vtanh.pop %v8472
      %v8645 = vtanh.pop %v8477
      %v8646 = vtanh.pop %v8482
      %v8647 = vtanh.pop %v8487
      %v8648 = vtanh.pop %v8492
      %v8649 = vtanh.pop %v8497
      %v8650 = vtanh.pop %v8502
      %v8651 = vtanh.pop %v8507
      %v8652 = vtanh.pop %v8512
      %v8653 = vtanh.pop %v8517
      %v8654 = vtanh.pop %v8522
      %v8655 = vtanh.pop %v8527
      %v8656 = vtanh.pop %v8532
      %v8657 = vtanh.pop %v8537
      %v8658 = vtanh.pop %v8542
      %v8659 = vtanh.pop %v8547
      %v8660 = vtanh.pop %v8552
      %v8661 = vtanh.pop %v8557
      %v8662 = vtanh.pop %v8562
      %v8663 = vtanh.pop %v8567
      %v8664 = vtanh.pop %v8572
      %v8665 = vtanh.pop %v8577
      %v8666 = vtanh.pop %v8582
      %v8667 = vtanh.pop %v8587
      %v8668 = vtanh.pop %v8592
      %v8669 = vtanh.pop %v8597
      %v8670 = vtanh.pop %v8602
      %v8671 = vtanh.pop %v8607
      %v8672 = vtanh.pop %v8612
      %v8673 = vtanh.pop %v8617
      %v8674 = vtanh.pop %v8622
      %v8675 = vtanh.pop %v8627
      %v8676 = vtanh.pop %v8632
      %v8677 = vld [vmem:[%s10] sm:$0xff]
      %v8678 = vld [vmem:[%s10 + $0x8] sm:$0xff]
      %v8679 = vld [vmem:[%s10 + $0x10] sm:$0xff]
      %v8680 = vld [vmem:[%s10 + $0x18] sm:$0xff]
      %v8681 = vld [vmem:[%s10 + $0x20] sm:$0xff]
      %v8682 = vld [vmem:[%s10 + $0x28] sm:$0xff]
      %v8683 = vld [vmem:[%s10 + $0x30] sm:$0xff]
      %v8684 = vld [vmem:[%s10 + $0x38] sm:$0xff]
      %v8685 = vld [vmem:[%s10 + $0x40] sm:$0xff]
      %v8686 = vld [vmem:[%s10 + $0x48] sm:$0xff]
      %v8687 = vld [vmem:[%s10 + $0x50] sm:$0xff]
      %v8688 = vld [vmem:[%s10 + $0x58] sm:$0xff]
      %v8689 = vld [vmem:[%s10 + $0x60] sm:$0xff]
      %v8690 = vld [vmem:[%s10 + $0x68] sm:$0xff]
      %v8691 = vld [vmem:[%s10 + $0x70] sm:$0xff]
      %v8692 = vld [vmem:[%s10 + $0x78] sm:$0xff]
      %v8693 = vld [vmem:[%s11] sm:$0x1]
      %v8695 = vlaneseq
      %v8696 = vshrl.u32 %v8695, 7
      %v8697 = vsub.s32 0, %v8696
      %v8698 = vrot.slane %v8693, %v8697
      %8700 = vmatprep.subr.mxu0 0.0
      %8701 = vmatpush1.msra.mxu0 %v8692
      %8702 = vmatprep.subr.mxu0 0.0
      %8703 = vmatpush1.msra.mxu0 %v8691
      %8704 = vmatprep.subr.mxu0 0.0
      %8705 = vmatpush1.msra.mxu0 %v8690
      %8706 = vmatprep.subr.mxu0 0.0
      %8707 = vmatpush1.msra.mxu0 %v8689
      %8708 = vmatprep.subr.mxu0 0.0
      %8709 = vmatpush1.msra.mxu0 %v8688
      %8710 = vmatprep.subr.mxu0 0.0
      %8711 = vmatpush1.msra.mxu0 %v8687
      %8712 = vmatprep.subr.mxu0 0.0
      %8713 = vmatpush1.msra.mxu0 %v8686
      %8714 = vmatprep.subr.mxu0 0.0
      %8715 = vmatpush1.msra.mxu0 %v8685
      %8716 = vmatprep.subr.mxu0 0.0
      %8717 = vmatpush1.msra.mxu0 %v8684
      %8718 = vmatprep.subr.mxu0 0.0
      %8719 = vmatpush1.msra.mxu0 %v8683
      %8720 = vmatprep.subr.mxu0 0.0
      %8721 = vmatpush1.msra.mxu0 %v8682
      %8722 = vmatprep.subr.mxu0 0.0
      %8723 = vmatpush1.msra.mxu0 %v8681
      %8724 = vmatprep.subr.mxu0 0.0
      %8725 = vmatpush1.msra.mxu0 %v8680
      %8726 = vmatprep.subr.mxu0 0.0
      %8727 = vmatpush1.msra.mxu0 %v8679
      %8728 = vmatprep.subr.mxu0 0.0
      %8729 = vmatpush1.msra.mxu0 %v8678
      %8730 = vmatprep.subr.mxu0 0.0
      %8731 = vmatpush1.msra.mxu0 %v8677
      %8732 = vmatprep.subr.mxu0 0.0
      %8733 = vmatpush2.msra.mxu0 0.0
      %8734 = vmatprep.subr.mxu0 0.0
      %8735 = vmatpush2.msra.mxu0 0.0
      %8736 = vmatprep.subr.mxu0 0.0
      %8737 = vmatpush2.msra.mxu0 0.0
      %8738 = vmatprep.subr.mxu0 0.0
      %8739 = vmatpush2.msra.mxu0 0.0
      %8740 = vmatprep.subr.mxu0 0.0
      %8741 = vmatpush2.msra.mxu0 0.0
      %8742 = vmatprep.subr.mxu0 0.0
      %8743 = vmatpush2.msra.mxu0 0.0
      %8744 = vmatprep.subr.mxu0 0.0
      %8745 = vmatpush2.msra.mxu0 0.0
      %8746 = vmatprep.subr.mxu0 0.0
      %8747 = vmatpush2.msra.mxu0 0.0
      %8748 = vmatprep.subr.mxu0 0.0
      %8749 = vmatpush2.msra.mxu0 0.0
      %8750 = vmatprep.subr.mxu0 0.0
      %8751 = vmatpush2.msra.mxu0 0.0
      %8752 = vmatprep.subr.mxu0 0.0
      %8753 = vmatpush2.msra.mxu0 0.0
      %8754 = vmatprep.subr.mxu0 0.0
      %8755 = vmatpush2.msra.mxu0 0.0
      %8756 = vmatprep.subr.mxu0 0.0
      %8757 = vmatpush2.msra.mxu0 0.0
      %8758 = vmatprep.subr.mxu0 0.0
      %8759 = vmatpush2.msra.mxu0 0.0
      %8760 = vmatprep.subr.mxu0 0.0
      %8761 = vmatpush2.msra.mxu0 0.0
      %8762 = vmatprep.subr.mxu0 0.0
      %8763 = vmatpush2.msra.mxu0 0.0
      %8764 = vmatprep.mubr.f32.mxu0 0.0
      %8765 = vmatmul.mubr.f32.gmra.mxu0 %v8635
      %v8766 = vpop.f32.mrf.mxu0
      %v8767 = vadd.f32 %v8698, %v8766
      %v8768 = vpop.f32.mrf.mxu0
      %8769 = vmatprep.mubr.f32.mxu0 0.0
      %8770 = vmatmul.mubr.f32.gmra.mxu0 %v8636
      %v8771 = vpop.f32.mrf.mxu0
      %v8772 = vadd.f32 %v8698, %v8771
      %v8773 = vpop.f32.mrf.mxu0
      %8774 = vmatprep.mubr.f32.mxu0 0.0
      %8775 = vmatmul.mubr.f32.gmra.mxu0 %v8637
      %v8776 = vpop.f32.mrf.mxu0
      %v8777 = vadd.f32 %v8698, %v8776
      %v8778 = vpop.f32.mrf.mxu0
      %8779 = vmatprep.mubr.f32.mxu0 0.0
      %8780 = vmatmul.mubr.f32.gmra.mxu0 %v8638
      %v8781 = vpop.f32.mrf.mxu0
      %v8782 = vadd.f32 %v8698, %v8781
      %v8783 = vpop.f32.mrf.mxu0
      %8784 = vmatprep.mubr.f32.mxu0 0.0
      %8785 = vmatmul.mubr.f32.gmra.mxu0 %v8639
      %v8786 = vpop.f32.mrf.mxu0
      %v8787 = vadd.f32 %v8698, %v8786
      %v8788 = vpop.f32.mrf.mxu0
      %8789 = vmatprep.mubr.f32.mxu0 0.0
      %8790 = vmatmul.mubr.f32.gmra.mxu0 %v8640
      %v8791 = vpop.f32.mrf.mxu0
      %v8792 = vadd.f32 %v8698, %v8791
      %v8793 = vpop.f32.mrf.mxu0
      %8794 = vmatprep.mubr.f32.mxu0 0.0
      %8795 = vmatmul.mubr.f32.gmra.mxu0 %v8641
      %v8796 = vpop.f32.mrf.mxu0
      %v8797 = vadd.f32 %v8698, %v8796
      %v8798 = vpop.f32.mrf.mxu0
      %8799 = vmatprep.mubr.f32.mxu0 0.0
      %8800 = vmatmul.mubr.f32.gmra.mxu0 %v8642
      %v8801 = vpop.f32.mrf.mxu0
      %v8802 = vadd.f32 %v8698, %v8801
      %v8803 = vpop.f32.mrf.mxu0
      %8804 = vmatprep.mubr.f32.mxu0 0.0
      %8805 = vmatmul.mubr.f32.gmra.mxu0 %v8643
      %v8806 = vpop.f32.mrf.mxu0
      %v8807 = vadd.f32 %v8698, %v8806
      %v8808 = vpop.f32.mrf.mxu0
      %8809 = vmatprep.mubr.f32.mxu0 0.0
      %8810 = vmatmul.mubr.f32.gmra.mxu0 %v8644
      %v8811 = vpop.f32.mrf.mxu0
      %v8812 = vadd.f32 %v8698, %v8811
      %v8813 = vpop.f32.mrf.mxu0
      %8814 = vmatprep.mubr.f32.mxu0 0.0
      %8815 = vmatmul.mubr.f32.gmra.mxu0 %v8645
      %v8816 = vpop.f32.mrf.mxu0
      %v8817 = vadd.f32 %v8698, %v8816
      %v8818 = vpop.f32.mrf.mxu0
      %8819 = vmatprep.mubr.f32.mxu0 0.0
      %8820 = vmatmul.mubr.f32.gmra.mxu0 %v8646
      %v8821 = vpop.f32.mrf.mxu0
      %v8822 = vadd.f32 %v8698, %v8821
      %v8823 = vpop.f32.mrf.mxu0
      %8824 = vmatprep.mubr.f32.mxu0 0.0
      %8825 = vmatmul.mubr.f32.gmra.mxu0 %v8647
      %v8826 = vpop.f32.mrf.mxu0
      %v8827 = vadd.f32 %v8698, %v8826
      %v8828 = vpop.f32.mrf.mxu0
      %8829 = vmatprep.mubr.f32.mxu0 0.0
      %8830 = vmatmul.mubr.f32.gmra.mxu0 %v8648
      %v8831 = vpop.f32.mrf.mxu0
      %v8832 = vadd.f32 %v8698, %v8831
      %v8833 = vpop.f32.mrf.mxu0
      %8834 = vmatprep.mubr.f32.mxu0 0.0
      %8835 = vmatmul.mubr.f32.gmra.mxu0 %v8649
      %v8836 = vpop.f32.mrf.mxu0
      %v8837 = vadd.f32 %v8698, %v8836
      %v8838 = vpop.f32.mrf.mxu0
      %8839 = vmatprep.mubr.f32.mxu0 0.0
      %8840 = vmatmul.mubr.f32.gmra.mxu0 %v8650
      %v8841 = vpop.f32.mrf.mxu0
      %v8842 = vadd.f32 %v8698, %v8841
      %v8843 = vpop.f32.mrf.mxu0
      %8844 = vmatprep.mubr.f32.mxu0 0.0
      %8845 = vmatmul.mubr.f32.gmra.mxu0 %v8651
      %v8846 = vpop.f32.mrf.mxu0
      %v8847 = vadd.f32 %v8698, %v8846
      %v8848 = vpop.f32.mrf.mxu0
      %8849 = vmatprep.mubr.f32.mxu0 0.0
      %8850 = vmatmul.mubr.f32.gmra.mxu0 %v8652
      %v8851 = vpop.f32.mrf.mxu0
      %v8852 = vadd.f32 %v8698, %v8851
      %v8853 = vpop.f32.mrf.mxu0
      %8854 = vmatprep.mubr.f32.mxu0 0.0
      %8855 = vmatmul.mubr.f32.gmra.mxu0 %v8653
      %v8856 = vpop.f32.mrf.mxu0
      %v8857 = vadd.f32 %v8698, %v8856
      %v8858 = vpop.f32.mrf.mxu0
      %8859 = vmatprep.mubr.f32.mxu0 0.0
      %8860 = vmatmul.mubr.f32.gmra.mxu0 %v8654
      %v8861 = vpop.f32.mrf.mxu0
      %v8862 = vadd.f32 %v8698, %v8861
      %v8863 = vpop.f32.mrf.mxu0
      %8864 = vmatprep.mubr.f32.mxu0 0.0
      %8865 = vmatmul.mubr.f32.gmra.mxu0 %v8655
      %v8866 = vpop.f32.mrf.mxu0
      %v8867 = vadd.f32 %v8698, %v8866
      %v8868 = vpop.f32.mrf.mxu0
      %8869 = vmatprep.mubr.f32.mxu0 0.0
      %8870 = vmatmul.mubr.f32.gmra.mxu0 %v8656
      %v8871 = vpop.f32.mrf.mxu0
      %v8872 = vadd.f32 %v8698, %v8871
      %v8873 = vpop.f32.mrf.mxu0
      %8874 = vmatprep.mubr.f32.mxu0 0.0
      %8875 = vmatmul.mubr.f32.gmra.mxu0 %v8657
      %v8876 = vpop.f32.mrf.mxu0
      %v8877 = vadd.f32 %v8698, %v8876
      %v8878 = vpop.f32.mrf.mxu0
      %8879 = vmatprep.mubr.f32.mxu0 0.0
      %8880 = vmatmul.mubr.f32.gmra.mxu0 %v8658
      %v8881 = vpop.f32.mrf.mxu0
      %v8882 = vadd.f32 %v8698, %v8881
      %v8883 = vpop.f32.mrf.mxu0
      %8884 = vmatprep.mubr.f32.mxu0 0.0
      %8885 = vmatmul.mubr.f32.gmra.mxu0 %v8659
      %v8886 = vpop.f32.mrf.mxu0
      %v8887 = vadd.f32 %v8698, %v8886
      %v8888 = vpop.f32.mrf.mxu0
      %8889 = vmatprep.mubr.f32.mxu0 0.0
      %8890 = vmatmul.mubr.f32.gmra.mxu0 %v8660
      %v8891 = vpop.f32.mrf.mxu0
      %v8892 = vadd.f32 %v8698, %v8891
      %v8893 = vpop.f32.mrf.mxu0
      %8894 = vmatprep.mubr.f32.mxu0 0.0
      %8895 = vmatmul.mubr.f32.gmra.mxu0 %v8661
      %v8896 = vpop.f32.mrf.mxu0
      %v8897 = vadd.f32 %v8698, %v8896
      %v8898 = vpop.f32.mrf.mxu0
      %8899 = vmatprep.mubr.f32.mxu0 0.0
      %8900 = vmatmul.mubr.f32.gmra.mxu0 %v8662
      %v8901 = vpop.f32.mrf.mxu0
      %v8902 = vadd.f32 %v8698, %v8901
      %v8903 = vpop.f32.mrf.mxu0
      %8904 = vmatprep.mubr.f32.mxu0 0.0
      %8905 = vmatmul.mubr.f32.gmra.mxu0 %v8663
      %v8906 = vpop.f32.mrf.mxu0
      %v8907 = vadd.f32 %v8698, %v8906
      %v8908 = vpop.f32.mrf.mxu0
      %8909 = vmatprep.mubr.f32.mxu0 0.0
      %8910 = vmatmul.mubr.f32.gmra.mxu0 %v8664
      %v8911 = vpop.f32.mrf.mxu0
      %v8912 = vadd.f32 %v8698, %v8911
      %v8913 = vpop.f32.mrf.mxu0
      %8914 = vmatprep.mubr.f32.mxu0 0.0
      %8915 = vmatmul.mubr.f32.gmra.mxu0 %v8665
      %v8916 = vpop.f32.mrf.mxu0
      %v8917 = vadd.f32 %v8698, %v8916
      %v8918 = vpop.f32.mrf.mxu0
      %8919 = vmatprep.mubr.f32.mxu0 0.0
      %8920 = vmatmul.mubr.f32.gmra.mxu0 %v8666
      %v8921 = vpop.f32.mrf.mxu0
      %v8922 = vadd.f32 %v8698, %v8921
      %v8923 = vpop.f32.mrf.mxu0
      %8924 = vmatprep.mubr.f32.mxu0 0.0
      %8925 = vmatmul.mubr.f32.gmra.mxu0 %v8667
      %v8926 = vpop.f32.mrf.mxu0
      %v8927 = vadd.f32 %v8698, %v8926
      %v8928 = vpop.f32.mrf.mxu0
      %8929 = vmatprep.mubr.f32.mxu0 0.0
      %8930 = vmatmul.mubr.f32.gmra.mxu0 %v8668
      %v8931 = vpop.f32.mrf.mxu0
      %v8932 = vadd.f32 %v8698, %v8931
      %v8933 = vpop.f32.mrf.mxu0
      %8934 = vmatprep.mubr.f32.mxu0 0.0
      %8935 = vmatmul.mubr.f32.gmra.mxu0 %v8669
      %v8936 = vpop.f32.mrf.mxu0
      %v8937 = vadd.f32 %v8698, %v8936
      %v8938 = vpop.f32.mrf.mxu0
      %8939 = vmatprep.mubr.f32.mxu0 0.0
      %8940 = vmatmul.mubr.f32.gmra.mxu0 %v8670
      %v8941 = vpop.f32.mrf.mxu0
      %v8942 = vadd.f32 %v8698, %v8941
      %v8943 = vpop.f32.mrf.mxu0
      %8944 = vmatprep.mubr.f32.mxu0 0.0
      %8945 = vmatmul.mubr.f32.gmra.mxu0 %v8671
      %v8946 = vpop.f32.mrf.mxu0
      %v8947 = vadd.f32 %v8698, %v8946
      %v8948 = vpop.f32.mrf.mxu0
      %8949 = vmatprep.mubr.f32.mxu0 0.0
      %8950 = vmatmul.mubr.f32.gmra.mxu0 %v8672
      %v8951 = vpop.f32.mrf.mxu0
      %v8952 = vadd.f32 %v8698, %v8951
      %v8953 = vpop.f32.mrf.mxu0
      %8954 = vmatprep.mubr.f32.mxu0 0.0
      %8955 = vmatmul.mubr.f32.gmra.mxu0 %v8673
      %v8956 = vpop.f32.mrf.mxu0
      %v8957 = vadd.f32 %v8698, %v8956
      %v8958 = vpop.f32.mrf.mxu0
      %8959 = vmatprep.mubr.f32.mxu0 0.0
      %8960 = vmatmul.mubr.f32.gmra.mxu0 %v8674
      %v8961 = vpop.f32.mrf.mxu0
      %v8962 = vadd.f32 %v8698, %v8961
      %v8963 = vpop.f32.mrf.mxu0
      %8964 = vmatprep.mubr.f32.mxu0 0.0
      %8965 = vmatmul.mubr.f32.gmra.mxu0 %v8675
      %v8966 = vpop.f32.mrf.mxu0
      %v8967 = vadd.f32 %v8698, %v8966
      %v8968 = vpop.f32.mrf.mxu0
      %8969 = vmatprep.mubr.f32.mxu0 0.0
      %8970 = vmatmul.mubr.f32.gmra.mxu0 %v8676
      %v8971 = vpop.f32.mrf.mxu0
      %v8972 = vadd.f32 %v8698, %v8971
      %v8973 = vpop.f32.mrf.mxu0
      %8974 = vdwg.mxu0
      %8975 = vst [vmem:[%s413] sm:$0xff] %v8767
      %8976 = vst [vmem:[%s413 + $0x8] sm:$0xff] %v8772
      %8977 = vst [vmem:[%s413 + $0x10] sm:$0xff] %v8777
      %8978 = vst [vmem:[%s413 + $0x18] sm:$0xff] %v8782
      %8979 = vst [vmem:[%s413 + $0x20] sm:$0xff] %v8787
      %8980 = vst [vmem:[%s413 + $0x28] sm:$0xff] %v8792
      %8981 = vst [vmem:[%s413 + $0x30] sm:$0xff] %v8797
      %8982 = vst [vmem:[%s413 + $0x38] sm:$0xff] %v8802
      %8983 = vst [vmem:[%s413 + $0x40] sm:$0xff] %v8807
      %8984 = vst [vmem:[%s413 + $0x48] sm:$0xff] %v8812
      %8985 = vst [vmem:[%s413 + $0x50] sm:$0xff] %v8817
      %8986 = vst [vmem:[%s413 + $0x58] sm:$0xff] %v8822
      %8987 = vst [vmem:[%s413 + $0x60] sm:$0xff] %v8827
      %8988 = vst [vmem:[%s413 + $0x68] sm:$0xff] %v8832
      %8989 = vst [vmem:[%s413 + $0x70] sm:$0xff] %v8837
      %8990 = vst [vmem:[%s413 + $0x78] sm:$0xff] %v8842
      %8991 = vst [vmem:[%s413 + $0x80] sm:$0xff] %v8847
      %8992 = vst [vmem:[%s413 + $0x88] sm:$0xff] %v8852
      %8993 = vst [vmem:[%s413 + $0x90] sm:$0xff] %v8857
      %8994 = vst [vmem:[%s413 + $0x98] sm:$0xff] %v8862
      %8995 = vst [vmem:[%s413 + $0xa0] sm:$0xff] %v8867
      %8996 = vst [vmem:[%s413 + $0xa8] sm:$0xff] %v8872
      %8997 = vst [vmem:[%s413 + $0xb0] sm:$0xff] %v8877
      %8998 = vst [vmem:[%s413 + $0xb8] sm:$0xff] %v8882
      %8999 = vst [vmem:[%s413 + $0xc0] sm:$0xff] %v8887
      %9000 = vst [vmem:[%s413 + $0xc8] sm:$0xff] %v8892
      %9001 = vst [vmem:[%s413 + $0xd0] sm:$0xff] %v8897
      %9002 = vst [vmem:[%s413 + $0xd8] sm:$0xff] %v8902
      %9003 = vst [vmem:[%s413 + $0xe0] sm:$0xff] %v8907
      %9004 = vst [vmem:[%s413 + $0xe8] sm:$0xff] %v8912
      %9005 = vst [vmem:[%s413 + $0xf0] sm:$0xff] %v8917
      %9006 = vst [vmem:[%s413 + $0xf8] sm:$0xff] %v8922
      %9007 = vst [vmem:[%s413 + $0x100] sm:$0xff] %v8927
      %9008 = vst [vmem:[%s413 + $0x108] sm:$0xff] %v8932
      %9009 = vst [vmem:[%s413 + $0x110] sm:$0xff] %v8937
      %9010 = vst [vmem:[%s413 + $0x118] sm:$0xff] %v8942
      %9011 = vst [vmem:[%s413 + $0x120] sm:$0xff] %v8947
      %9012 = vst [vmem:[%s413 + $0x128] sm:$0xff] %v8952
      %9013 = vst [vmem:[%s413 + $0x130] sm:$0xff] %v8957
      %9014 = vst [vmem:[%s413 + $0x138] sm:$0xff] %v8962
      %9015 = vst [vmem:[%s413 + $0x140] sm:$0xff] %v8967
      %9016 = vst [vmem:[%s413 + $0x148] sm:$0xff] %v8972
      %p9017 = scmp.lt.s32.totalorder %s23, 1
      %s9018 = scalar_select %p9017, %s23, 1
      %s9019 = smul.addr %s9018, 42
      %s9020 = smul.addr %s9019, 8
      %s9021 = scalar_lea.vmem %s12, %s9020
      // Predicated region
      $region69: #{quick_cnn_forward.1} parent=67 // pred_check
        %p9022 = pneg %p298
      $region70: #{quick_cnn_forward.1} parent=67 // pred_check_branch
        %9024 = sbr.rel (%p9022) target = $region72
      $region71: #{quick_cnn_forward.1} parent=67 // pred_region
        _
      $region72: #{quick_cnn_forward.1} parent=67 // pred_fallthru
        _
    $region68: #{quick_cnn_forward.1} parent=5 // pred_fallthru
      _
    %p9025 = scmp.le.s32.totalorder 2, %s18
    // Predicated region
    $region73: #{quick_cnn_forward.1} parent=5 // pred_check
      %p9026 = pneg %p9025
    $region74: #{quick_cnn_forward.1} parent=5 // pred_check_branch
      %9028 = sbr.rel (%p9026) target = $region76
    $region75: #{quick_cnn_forward.1} parent=5 // pred_region
      %s9029 = ssub.s32 %s18, 2
      // Predicated region
      $region77: #{quick_cnn_forward.1} parent=75 // pred_check
        %p9030 = pneg %p304
      $region78: #{quick_cnn_forward.1} parent=75 // pred_check_branch
        %9032 = sbr.rel (%p9030) target = $region80
      $region79: #{quick_cnn_forward.1} parent=75 // pred_region
        %p9033 = scmp.lt.s32.totalorder %s24, 1
        %s9034 = scalar_select %p9033, %s24, 1
        %s9035 = smul.addr %s9034, 42
        %s9036 = smul.addr %s9035, 8
        %s9037 = scalar_lea.vmem %s12, %s9036
      $region80: #{quick_cnn_forward.1} parent=75 // pred_fallthru
        _
    $region76: #{quick_cnn_forward.1} parent=5 // pred_fallthru
      _
  $region6: #{quick_cnn_forward.1} parent=0 // loop_footer
    %s22 = sadd.s32 1, %s18
  $region7: #{quick_cnn_forward.1} parent=0 // loop_footer_branch
    %17 = sbr.rel target = $region3
  $region8: #{quick_cnn_forward.1} parent=0 // loop_exit
    _

</llo_original>
